<compile_context>
chip_gen: v6e
topology: v6e:2x2x1
jax: 0.10.0
libtpu: 0.0.40
codegen_flags: <defaults>
</compile_context>

<pallas_src>
import functools

import jax
import jax.numpy as jnp
from jax.experimental import pallas as pl
from jax.experimental.pallas import tpu as pltpu

_SQRT_HALF = 0.7071067811865476


def _erf(x):
    # float32-accurate erf (|err| < 1.2e-7), built from exp only so it lowers
    # cleanly inside Mosaic.
    a = jnp.abs(x)
    t = 1.0 / (1.0 + 0.5 * a)
    poly = -1.26551223 + t * (1.00002368 + t * (0.37409196 + t * (0.09678418 +
           t * (-0.18628806 + t * (0.27886807 + t * (-1.13520398 + t * (1.48851587 +
           t * (-0.82215223 + t * 0.17087277))))))))
    y = t * jnp.exp(-a * a + poly)
    return jnp.where(x >= 0.0, 1.0 - y, y - 1.0)


def _gelu(x):
    # exact (erf-based) GELU, matching torch.nn.functional.gelu default
    return 0.5 * x * (1.0 + _erf(x * _SQRT_HALF))


# ---------------------------------------------------------------------------
# column-tiling helper (channels-first layout => columns are B*H*W)
# ---------------------------------------------------------------------------
def _plan_cols(n, max_tile=2048):
    """Return (n_pad, tile): tile is a multiple of 128 dividing n_pad, as large
    as possible up to max_tile, preferring >=2 grid steps (v7x has 2 TCs)."""
    n_pad = ((n + 127) // 128) * 128
    cands = [t for t in range(128, min(n_pad, max_tile) + 1, 128) if n_pad % t == 0]
    multi = [t for t in cands if n_pad // t >= 2]
    tile = max(multi) if multi else max(cands)
    return n_pad, tile


def _pad_cols(a, n_pad):
    n = a.shape[1]
    if n_pad == n:
        return a
    return jnp.pad(a, ((0, 0), (0, n_pad - n)))


_PARALLEL1 = pltpu.CompilerParams(dimension_semantics=("parallel",))


# ---------------------------------------------------------------------------
# Pallas kernels
# ---------------------------------------------------------------------------
def _fc0_kernel(x_ref, g_ref, w_ref, wg_ref, b_ref, o_ref):
    # out(width, tileN) = W(width,C) @ x(C,tileN) + Wg(width,2) @ grid(2,tileN) + b
    acc = jnp.dot(w_ref[...], x_ref[...], preferred_element_type=jnp.float32)
    acc = acc + jnp.dot(wg_ref[...], g_ref[...], preferred_element_type=jnp.float32)
    acc = acc + b_ref[...]
    o_ref[...] = acc.astype(o_ref.dtype)


def _wlayer_kernel(x_ref, res_ref, w_ref, b_ref, o_ref, *, apply_gelu):
    # fused: out = [gelu]( W_1x1 @ x + b + spectral_branch )
    acc = jnp.dot(w_ref[...], x_ref[...], preferred_element_type=jnp.float32)
    acc = acc + b_ref[...] + res_ref[...]
    if apply_gelu:
        acc = _gelu(acc)
    o_ref[...] = acc.astype(o_ref.dtype)


def _head_kernel(x_ref, w1_ref, b1_ref, w2_ref, b2_ref, o_ref):
    # fused fc1 + GELU + fc2; the (128, tileN) intermediate stays on-chip.
    h = jnp.dot(w1_ref[...], x_ref[...], preferred_element_type=jnp.float32)
    h = _gelu(h + b1_ref[...])
    acc = jnp.dot(w2_ref[...], h, preferred_element_type=jnp.float32) + b2_ref[...]
    o_ref[...] = acc.astype(o_ref.dtype)


def _mode_mul_kernel(xs_ref, wr_ref, wi_ref, or_ref, oi_ref, *, b):
    # Batched complex channel contraction for a block of Fourier modes.
    # xs = [xr; xi] stacked along rows: (mblk, 2B, Cin); weights (mblk, Cin, Cout).
    xs = xs_ref[...]
    dn = (((2,), (1,)), ((0,), (0,)))
    zr = jax.lax.dot_general(xs, wr_ref[...], dimension_numbers=dn,
                             preferred_element_type=jnp.float32)
    zi = jax.lax.dot_general(xs, wi_ref[...], dimension_numbers=dn,
                             preferred_element_type=jnp.float32)
    # zr rows: [xr@wr ; xi@wr], zi rows: [xr@wi ; xi@wi]
    or_ref[...] = zr[:, :b, :] - zi[:, b:, :]
    oi_ref[...] = zi[:, :b, :] + zr[:, b:, :]


# ---------------------------------------------------------------------------
# Pallas wrappers
# ---------------------------------------------------------------------------
def pallas_fc0(x_cn, coords, w, wg, b):
    """x_cn:(C,N), coords:(2,N), w:(width,C), wg:(width,2), b:(width,1)."""
    c, n = x_cn.shape
    width = w.shape[0]
    n_pad, tile_n = _plan_cols(n)
    x_cn = _pad_cols(x_cn, n_pad)
    coords = _pad_cols(coords, n_pad)
    grid = (n_pad // tile_n,)
    out = pl.pallas_call(
        _fc0_kernel,
        out_shape=jax.ShapeDtypeStruct((width, n_pad), jnp.float32),
        grid=grid,
        in_specs=[pl.BlockSpec((c, tile_n), lambda i: (0, i)),
                  pl.BlockSpec((2, tile_n), lambda i: (0, i)),
                  pl.BlockSpec((width, c), lambda i: (0, 0)),
                  pl.BlockSpec((width, 2), lambda i: (0, 0)),
                  pl.BlockSpec((width, 1), lambda i: (0, 0))],
        out_specs=pl.BlockSpec((width, tile_n), lambda i: (0, i)),
        compiler_params=_PARALLEL1,
    )(x_cn, coords, w, wg, b)
    return out[:, :n]


def pallas_wlayer(x_cn, res_cn, w, b, *, apply_gelu):
    """out(Cout,N) = [gelu]( w(Cout,Cin) @ x(Cin,N) + b + res(Cout,N) )."""
    cin, n = x_cn.shape
    cout = w.shape[0]
    n_pad, tile_n = _plan_cols(n)
    x_cn = _pad_cols(x_cn, n_pad)
    res_cn = _pad_cols(res_cn, n_pad)
    grid = (n_pad // tile_n,)
    kernel = functools.partial(_wlayer_kernel, apply_gelu=apply_gelu)
    out = pl.pallas_call(
        kernel,
        out_shape=jax.ShapeDtypeStruct((cout, n_pad), jnp.float32),
        grid=grid,
        in_specs=[pl.BlockSpec((cin, tile_n), lambda i: (0, i)),
                  pl.BlockSpec((cout, tile_n), lambda i: (0, i)),
                  pl.BlockSpec((cout, cin), lambda i: (0, 0)),
                  pl.BlockSpec((cout, 1), lambda i: (0, 0))],
        out_specs=pl.BlockSpec((cout, tile_n), lambda i: (0, i)),
        compiler_params=_PARALLEL1,
    )(x_cn, res_cn, w, b)
    return out[:, :n]


def pallas_head(x_cn, w1, b1, w2, b2):
    """Fused fc1 + GELU + fc2 in channels-first layout."""
    cin, n = x_cn.shape
    c_mid = w1.shape[0]
    cout = w2.shape[0]
    n_pad, tile_n = _plan_cols(n, max_tile=1024)
    x_cn = _pad_cols(x_cn, n_pad)
    grid = (n_pad // tile_n,)
    out = pl.pallas_call(
        _head_kernel,
        out_shape=jax.ShapeDtypeStruct((cout, n_pad), jnp.float32),
        grid=grid,
        in_specs=[pl.BlockSpec((cin, tile_n), lambda i: (0, i)),
                  pl.BlockSpec((c_mid, cin), lambda i: (0, 0)),
                  pl.BlockSpec((c_mid, 1), lambda i: (0, 0)),
                  pl.BlockSpec((cout, c_mid), lambda i: (0, 0)),
                  pl.BlockSpec((cout, 1), lambda i: (0, 0))],
        out_specs=pl.BlockSpec((cout, tile_n), lambda i: (0, i)),
        compiler_params=_PARALLEL1,
    )(x_cn, w1, b1, w2, b2)
    return out[:, :n]


def pallas_mode_mul(xs, wr, wi, batch):
    """xs:(M, 2B, Cin) stacked [real;imag] rows, weights:(M, Cin, Cout).
    Returns (yr, yi) each (M, B, Cout)."""
    m, _, cin = xs.shape
    cout = wr.shape[2]
    nblk = 2 if (m % 2 == 0 and m >= 2) else 1       # 2 grid steps for v7x's 2 TCs
    mblk = m // nblk
    kernel = functools.partial(_mode_mul_kernel, b=batch)
    x_spec = pl.BlockSpec((mblk, 2 * batch, cin), lambda i: (i, 0, 0))
    w_spec = pl.BlockSpec((mblk, cin, cout), lambda i: (i, 0, 0))
    o_spec = pl.BlockSpec((mblk, batch, cout), lambda i: (i, 0, 0))
    out_shapes = (jax.ShapeDtypeStruct((m, batch, cout), jnp.float32),
                  jax.ShapeDtypeStruct((m, batch, cout), jnp.float32))
    yr, yi = pl.pallas_call(
        kernel, out_shape=out_shapes, grid=(nblk,),
        in_specs=[x_spec, w_spec, w_spec],
        out_specs=(o_spec, o_spec),
        compiler_params=_PARALLEL1,
    )(xs, wr, wi)
    return yr, yi


# ---------------------------------------------------------------------------
# SpectralConv2d_fast (FFT in jnp, mode contraction in Pallas), channels-first
# ---------------------------------------------------------------------------
def spectral_conv2d_cf(h_img, w1r, w1i, w2r, w2i, m1, m2):
    # h_img: (Cin, B, H, W) float32; weights: (m1*m2, Cin, Cout) real/imag
    Cin, B, H, W = h_img.shape
    Cout = w1r.shape[2]
    # TODO(synk): FFT/iFFT have no Pallas equivalent; computed with jnp.fft.
    x_ft = jnp.fft.rfft2(h_img, axes=(2, 3))            # (Cin, B, H, Wf) complex64
    Wf = x_ft.shape[3]

    blk1 = x_ft[:, :, :m1, :m2]                          # low-low modes
    blk2 = x_ft[:, :, H - m1:, :m2]                      # high-low modes

    def to_mbi(blk):                                     # (Cin,B,m1,m2) -> (m1*m2,B,Cin)
        return jnp.transpose(blk, (2, 3, 1, 0)).reshape(m1 * m2, B, Cin)

    xr = jnp.concatenate([to_mbi(blk1.real), to_mbi(blk2.real)], axis=0)
    xi = jnp.concatenate([to_mbi(blk1.imag), to_mbi(blk2.imag)], axis=0)
    xs = jnp.concatenate([xr, xi], axis=1)               # (2*m1*m2, 2B, Cin)
    wr = jnp.concatenate([w1r, w2r], axis=0)
    wi = jnp.concatenate([w1i, w2i], axis=0)

    yr, yi = pallas_mode_mul(xs, wr, wi, B)              # (2*m1*m2, B, Cout)
    y = (yr + 1j * yi).astype(jnp.complex64)

    def from_mbo(y_half):                                # (m1*m2,B,Co) -> (Co,B,m1,m2)
        return jnp.transpose(y_half.reshape(m1, m2, B, Cout), (3, 2, 0, 1))

    out_ft = jnp.zeros((Cout, B, H, Wf), dtype=jnp.complex64)
    out_ft = out_ft.at[:, :, :m1, :m2].set(from_mbo(y[: m1 * m2]))
    out_ft = out_ft.at[:, :, H - m1:, :m2].set(from_mbo(y[m1 * m2:]))
    return jnp.fft.irfft2(out_ft, s=(H, W), axes=(2, 3)).astype(jnp.float32)


# ---------------------------------------------------------------------------
# FNO2d forward
# ---------------------------------------------------------------------------
def fno2d_forward(x, params, m1, m2):
    # x layout: (B, X, Y, num_channels), identical to the PyTorch module input.
    B, H, W, C = x.shape
    N = B * H * W
    width = params["fc0_w"].shape[0]

    # channels-first flat layout: (C, B*H*W), flat index = b*H*W + i*W + j
    x_cn = jnp.transpose(x, (3, 0, 1, 2)).reshape(C, N)

    # coordinate channels (2, N) — fused into the fc0 kernel as a second matmul
    gx = jnp.linspace(0.0, 1.0, H, dtype=jnp.float32).reshape(1, H, 1)
    gy = jnp.linspace(0.0, 1.0, W, dtype=jnp.float32).reshape(1, 1, W)
    coords = jnp.stack([jnp.broadcast_to(gx, (B, H, W)).reshape(N),
                        jnp.broadcast_to(gy, (B, H, W)).reshape(N)], axis=0)

    h = pallas_fc0(x_cn, coords, params["fc0_w"], params["fc0_wg"],
                   params["fc0_b"])                          # (width, N)

    for layer in range(4):
        p = params["layers"][layer]
        h_img = h.reshape(width, B, H, W)
        x1 = spectral_conv2d_cf(h_img, p["w1r"], p["w1i"], p["w2r"], p["w2i"],
                                m1, m2)                      # (width, B, H, W)
        # fused: spectral + 1x1-conv + bias [+ gelu for layers 0..2]
        h = pallas_wlayer(h, x1.reshape(width, N), p["ww"], p["wb"],
                          apply_gelu=(layer != 3))

    out = pallas_head(h, params["fc1_w"], params["fc1_b"],
                      params["fc2_w"], params["fc2_b"])      # (num_channels, N)
    nc = out.shape[0]
    return jnp.transpose(out.reshape(nc, B, H, W), (1, 2, 3, 0))


# ---------------------------------------------------------------------------
# Deterministic parameter init (PyTorch (out, in) weight convention)
# ---------------------------------------------------------------------------
def init_params(key, m1, m2, width, num_channels):
    ks = iter(jax.random.split(key, 48))

    def uniform(k, shape, scale):
        return jax.random.uniform(k, shape, dtype=jnp.float32,
                                  minval=-scale, maxval=scale)

    p = {}
    cin0 = num_channels + 2
    s0 = cin0 ** -0.5
    w0 = uniform(next(ks), (width, cin0), s0)     # nn.Linear weight layout (out, in)
    p["fc0_w"] = w0[:, :num_channels]             # data-channel columns
    p["fc0_wg"] = w0[:, num_channels:]            # gridx / gridy columns (width, 2)
    p["fc0_b"] = uniform(next(ks), (width, 1), s0)

    spec_scale = 1.0 / (width * width)
    layers = []
    for _ in range(4):
        lay = {}
        for name in ("w1r", "w1i", "w2r", "w2i"):
            lay[name] = spec_scale * jax.random.uniform(
                next(ks), (m1 * m2, width, width), dtype=jnp.float32)
        sw = width ** -0.5
        lay["ww"] = uniform(next(ks), (width, width), sw)   # Conv2d 1x1 (out, in)
        lay["wb"] = uniform(next(ks), (width, 1), sw)
        layers.append(lay)
    p["layers"] = layers

    s1 = width ** -0.5
    p["fc1_w"] = uniform(next(ks), (128, width), s1)
    p["fc1_b"] = uniform(next(ks), (128, 1), s1)
    s2 = 128 ** -0.5
    p["fc2_w"] = uniform(next(ks), (num_channels, 128), s2)
    p["fc2_b"] = uniform(next(ks), (num_channels, 1), s2)
    return p


if __name__ == "__main__":
    modes1, modes2, width, num_channels = 4, 4, 32, 3
    B, H, W = 2, 16, 16

    key = jax.random.PRNGKey(0)
    k_in, k_p = jax.random.split(key)
    x = jax.random.normal(k_in, (B, H, W, num_channels), dtype=jnp.float32)
    params = init_params(k_p, modes1, modes2, width, num_channels)

    fwd = jax.jit(functools.partial(fno2d_forward, m1=modes1, m2=modes2))
    out = fwd(x, params)
    out = jax.block_until_ready(out)
    assert out.shape == (B, H, W, num_channels), out.shape
    assert out.dtype == jnp.float32
    assert bool(jnp.all(jnp.isfinite(out)))
    print("KERNEL_OK")
</pallas_src>

<mosaic_0001>
module attributes {stable_mosaic.version = 11 : i64} {
  func.func @_fc0_kernel(%arg0: i32, %arg1: memref<3x256xf32, #tpu.memory_space<vmem>>, %arg2: memref<2x256xf32, #tpu.memory_space<vmem>>, %arg3: memref<32x3xf32, #tpu.memory_space<vmem>>, %arg4: memref<32x2xf32, #tpu.memory_space<vmem>>, %arg5: memref<32x1xf32, #tpu.memory_space<vmem>>, %arg6: memref<32x256xf32, #tpu.memory_space<vmem>>) attributes {dimension_semantics = [#tpu.dimension_semantics<parallel>], iteration_bounds = array<i64: 2>, scalar_prefetch = 0 : i64, scratch_operands = 0 : i64, tpu.core_type = #tpu.core_type<tc>, window_params = [{transform_indices = @transform_0, window_bounds = array<i64: 3, 256>}, {transform_indices = @transform_1, window_bounds = array<i64: 2, 256>}, {pipeline_mode = #tpu.pipeline_mode<synchronous>, transform_indices = @transform_2, window_bounds = array<i64: 32, 3>}, {pipeline_mode = #tpu.pipeline_mode<synchronous>, transform_indices = @transform_3, window_bounds = array<i64: 32, 2>}, {pipeline_mode = #tpu.pipeline_mode<synchronous>, transform_indices = @transform_4, window_bounds = array<i64: 32, 1>}, {transform_indices = @transform_5, window_bounds = array<i64: 32, 256>}]} {
    %c0 = arith.constant 0 : index
    %c0_0 = arith.constant 0 : index
    %0 = vector.load %arg3[%c0, %c0_0] : memref<32x3xf32, #tpu.memory_space<vmem>>, vector<32x3xf32>
    %c0_1 = arith.constant 0 : index
    %c0_2 = arith.constant 0 : index
    %1 = vector.load %arg1[%c0_1, %c0_2] : memref<3x256xf32, #tpu.memory_space<vmem>>, vector<3x256xf32>
    %cst = arith.constant dense<0.000000e+00> : vector<32x256xf32>
    %2 = tpu.matmul %0, %1, %cst {dimension_numbers = #tpu.dot_dimension_numbers<[1], [0], [0], [1], [0, 0, 1, 1], [], []>} : vector<32x3xf32>, vector<3x256xf32>, vector<32x256xf32> -> vector<32x256xf32>
    %c0_3 = arith.constant 0 : index
    %c0_4 = arith.constant 0 : index
    %3 = vector.load %arg4[%c0_3, %c0_4] : memref<32x2xf32, #tpu.memory_space<vmem>>, vector<32x2xf32>
    %c0_5 = arith.constant 0 : index
    %c0_6 = arith.constant 0 : index
    %4 = vector.load %arg2[%c0_5, %c0_6] : memref<2x256xf32, #tpu.memory_space<vmem>>, vector<2x256xf32>
    %cst_7 = arith.constant dense<0.000000e+00> : vector<32x256xf32>
    %5 = tpu.matmul %3, %4, %cst_7 {dimension_numbers = #tpu.dot_dimension_numbers<[1], [0], [0], [1], [0, 0, 1, 1], [], []>} : vector<32x2xf32>, vector<2x256xf32>, vector<32x256xf32> -> vector<32x256xf32>
    %6 = arith.addf %2, %5 : vector<32x256xf32>
    %c0_8 = arith.constant 0 : index
    %c0_9 = arith.constant 0 : index
    %7 = vector.load %arg5[%c0_8, %c0_9] : memref<32x1xf32, #tpu.memory_space<vmem>>, vector<32x1xf32>
    %8 = vector.broadcast %7 : vector<32x1xf32> to vector<32x256xf32>
    %9 = arith.addf %6, %8 : vector<32x256xf32>
    %c0_10 = arith.constant 0 : index
    %c0_11 = arith.constant 0 : index
    %10 = vector.load %arg6[%c0_10, %c0_11] : memref<32x256xf32, #tpu.memory_space<vmem>>, vector<32x256xf32>
    tpu.vector_store %arg6[%c0_10, %c0_11], %9 {strides = array<i32>} : memref<32x256xf32, #tpu.memory_space<vmem>>, vector<32x256xf32>,
    return
  }
  func.func @transform_0(%arg0: i32) -> (i32, i32) {
    %c0_i32 = arith.constant 0 : i32
    %c0_i32_0 = arith.constant 0 : i32
    return %c0_i32, %arg0 : i32, i32
  }
  func.func @transform_1(%arg0: i32) -> (i32, i32) {
    %c0_i32 = arith.constant 0 : i32
    %c0_i32_0 = arith.constant 0 : i32
    return %c0_i32, %arg0 : i32, i32
  }
  func.func @transform_2(%arg0: i32) -> (i32, i32) {
    %c0_i32 = arith.constant 0 : i32
    %c0_i32_0 = arith.constant 0 : i32
    %c0_i32_1 = arith.constant 0 : i32
    return %c0_i32, %c0_i32_0 : i32, i32
  }
  func.func @transform_3(%arg0: i32) -> (i32, i32) {
    %c0_i32 = arith.constant 0 : i32
    %c0_i32_0 = arith.constant 0 : i32
    %c0_i32_1 = arith.constant 0 : i32
    return %c0_i32, %c0_i32_0 : i32, i32
  }
  func.func @transform_4(%arg0: i32) -> (i32, i32) {
    %c0_i32 = arith.constant 0 : i32
    %c0_i32_0 = arith.constant 0 : i32
    %c0_i32_1 = arith.constant 0 : i32
    return %c0_i32, %c0_i32_0 : i32, i32
  }
  func.func @transform_5(%arg0: i32) -> (i32, i32) {
    %c0_i32 = arith.constant 0 : i32
    %c0_i32_0 = arith.constant 0 : i32
    return %c0_i32, %arg0 : i32, i32
  }
}

module attributes {stable_mosaic.version = 11 : i64} {
  func.func @_mode_mul_kernel(%arg0: i32, %arg1: memref<16x4x32xf32, #tpu.memory_space<vmem>>, %arg2: memref<16x32x32xf32, #tpu.memory_space<vmem>>, %arg3: memref<16x32x32xf32, #tpu.memory_space<vmem>>, %arg4: memref<16x2x32xf32, #tpu.memory_space<vmem>>, %arg5: memref<16x2x32xf32, #tpu.memory_space<vmem>>) attributes {dimension_semantics = [#tpu.dimension_semantics<parallel>], iteration_bounds = array<i64: 2>, scalar_prefetch = 0 : i64, scratch_operands = 0 : i64, tpu.core_type = #tpu.core_type<tc>, window_params = [{transform_indices = @transform_0, window_bounds = array<i64: 16, 4, 32>}, {transform_indices = @transform_1, window_bounds = array<i64: 16, 32, 32>}, {transform_indices = @transform_2, window_bounds = array<i64: 16, 32, 32>}, {transform_indices = @transform_3, window_bounds = array<i64: 16, 2, 32>}, {transform_indices = @transform_4, window_bounds = array<i64: 16, 2, 32>}]} {
    %c0 = arith.constant 0 : index
    %c0_0 = arith.constant 0 : index
    %c0_1 = arith.constant 0 : index
    %0 = vector.load %arg1[%c0, %c0_0, %c0_1] : memref<16x4x32xf32, #tpu.memory_space<vmem>>, vector<16x4x32xf32>
    %c0_2 = arith.constant 0 : index
    %c0_3 = arith.constant 0 : index
    %c0_4 = arith.constant 0 : index
    %1 = vector.load %arg2[%c0_2, %c0_3, %c0_4] : memref<16x32x32xf32, #tpu.memory_space<vmem>>, vector<16x32x32xf32>
    %cst = arith.constant dense<0.000000e+00> : vector<16x4x32xf32>
    %2 = tpu.matmul %0, %1, %cst {dimension_numbers = #tpu.dot_dimension_numbers<[2], [1], [1], [2], [0, 0, 0, 1, 1, 2], [0], [0]>} : vector<16x4x32xf32>, vector<16x32x32xf32>, vector<16x4x32xf32> -> vector<16x4x32xf32>
    %c0_5 = arith.constant 0 : index
    %c0_6 = arith.constant 0 : index
    %c0_7 = arith.constant 0 : index
    %3 = vector.load %arg3[%c0_5, %c0_6, %c0_7] : memref<16x32x32xf32, #tpu.memory_space<vmem>>, vector<16x32x32xf32>
    %cst_8 = arith.constant dense<0.000000e+00> : vector<16x4x32xf32>
    %4 = tpu.matmul %0, %3, %cst_8 {dimension_numbers = #tpu.dot_dimension_numbers<[2], [1], [1], [2], [0, 0, 0, 1, 1, 2], [0], [0]>} : vector<16x4x32xf32>, vector<16x32x32xf32>, vector<16x4x32xf32> -> vector<16x4x32xf32>
    %5 = vector.extract_strided_slice %2 {offsets = [0, 0, 0], sizes = [16, 2, 32], strides = [1, 1, 1]} : vector<16x4x32xf32> to vector<16x2x32xf32>
    %6 = vector.extract_strided_slice %4 {offsets = [0, 2, 0], sizes = [16, 2, 32], strides = [1, 1, 1]} : vector<16x4x32xf32> to vector<16x2x32xf32>
    %7 = arith.subf %5, %6 : vector<16x2x32xf32>
    %c0_9 = arith.constant 0 : index
    %c0_10 = arith.constant 0 : index
    %c0_11 = arith.constant 0 : index
    %8 = vector.load %arg4[%c0_9, %c0_10, %c0_11] : memref<16x2x32xf32, #tpu.memory_space<vmem>>, vector<16x2x32xf32>
    tpu.vector_store %arg4[%c0_9, %c0_10, %c0_11], %7 {strides = array<i32>} : memref<16x2x32xf32, #tpu.memory_space<vmem>>, vector<16x2x32xf32>,
    %9 = vector.extract_strided_slice %4 {offsets = [0, 0, 0], sizes = [16, 2, 32], strides = [1, 1, 1]} : vector<16x4x32xf32> to vector<16x2x32xf32>
    %10 = vector.extract_strided_slice %2 {offsets = [0, 2, 0], sizes = [16, 2, 32], strides = [1, 1, 1]} : vector<16x4x32xf32> to vector<16x2x32xf32>
    %11 = arith.addf %9, %10 : vector<16x2x32xf32>
    %c0_12 = arith.constant 0 : index
    %c0_13 = arith.constant 0 : index
    %c0_14 = arith.constant 0 : index
    %12 = vector.load %arg5[%c0_12, %c0_13, %c0_14] : memref<16x2x32xf32, #tpu.memory_space<vmem>>, vector<16x2x32xf32>
    tpu.vector_store %arg5[%c0_12, %c0_13, %c0_14], %11 {strides = array<i32>} : memref<16x2x32xf32, #tpu.memory_space<vmem>>, vector<16x2x32xf32>,
    return
  }
  func.func @transform_0(%arg0: i32) -> (i32, i32, i32) {
    %c0_i32 = arith.constant 0 : i32
    %c0_i32_0 = arith.constant 0 : i32
    %c0_i32_1 = arith.constant 0 : i32
    return %arg0, %c0_i32, %c0_i32_0 : i32, i32, i32
  }
  func.func @transform_1(%arg0: i32) -> (i32, i32, i32) {
    %c0_i32 = arith.constant 0 : i32
    %c0_i32_0 = arith.constant 0 : i32
    %c0_i32_1 = arith.constant 0 : i32
    return %arg0, %c0_i32, %c0_i32_0 : i32, i32, i32
  }
  func.func @transform_2(%arg0: i32) -> (i32, i32, i32) {
    %c0_i32 = arith.constant 0 : i32
    %c0_i32_0 = arith.constant 0 : i32
    %c0_i32_1 = arith.constant 0 : i32
    return %arg0, %c0_i32, %c0_i32_0 : i32, i32, i32
  }
  func.func @transform_3(%arg0: i32) -> (i32, i32, i32) {
    %c0_i32 = arith.constant 0 : i32
    %c0_i32_0 = arith.constant 0 : i32
    %c0_i32_1 = arith.constant 0 : i32
    return %arg0, %c0_i32, %c0_i32_0 : i32, i32, i32
  }
  func.func @transform_4(%arg0: i32) -> (i32, i32, i32) {
    %c0_i32 = arith.constant 0 : i32
    %c0_i32_0 = arith.constant 0 : i32
    %c0_i32_1 = arith.constant 0 : i32
    return %arg0, %c0_i32, %c0_i32_0 : i32, i32, i32
  }
}

module attributes {stable_mosaic.version = 11 : i64} {
  func.func @_wlayer_kernel(%arg0: i32, %arg1: memref<32x256xf32, #tpu.memory_space<vmem>>, %arg2: memref<32x256xf32, #tpu.memory_space<vmem>>, %arg3: memref<32x32xf32, #tpu.memory_space<vmem>>, %arg4: memref<32x1xf32, #tpu.memory_space<vmem>>, %arg5: memref<32x256xf32, #tpu.memory_space<vmem>>) attributes {dimension_semantics = [#tpu.dimension_semantics<parallel>], iteration_bounds = array<i64: 2>, scalar_prefetch = 0 : i64, scratch_operands = 0 : i64, tpu.core_type = #tpu.core_type<tc>, window_params = [{transform_indices = @transform_0, window_bounds = array<i64: 32, 256>}, {transform_indices = @transform_1, window_bounds = array<i64: 32, 256>}, {pipeline_mode = #tpu.pipeline_mode<synchronous>, transform_indices = @transform_2, window_bounds = array<i64: 32, 32>}, {pipeline_mode = #tpu.pipeline_mode<synchronous>, transform_indices = @transform_3, window_bounds = array<i64: 32, 1>}, {transform_indices = @transform_4, window_bounds = array<i64: 32, 256>}]} {
    %c0 = arith.constant 0 : index
    %c0_0 = arith.constant 0 : index
    %0 = vector.load %arg3[%c0, %c0_0] : memref<32x32xf32, #tpu.memory_space<vmem>>, vector<32x32xf32>
    %c0_1 = arith.constant 0 : index
    %c0_2 = arith.constant 0 : index
    %1 = vector.load %arg1[%c0_1, %c0_2] : memref<32x256xf32, #tpu.memory_space<vmem>>, vector<32x256xf32>
    %cst = arith.constant dense<0.000000e+00> : vector<32x256xf32>
    %2 = tpu.matmul %0, %1, %cst {dimension_numbers = #tpu.dot_dimension_numbers<[1], [0], [0], [1], [0, 0, 1, 1], [], []>} : vector<32x32xf32>, vector<32x256xf32>, vector<32x256xf32> -> vector<32x256xf32>
    %c0_3 = arith.constant 0 : index
    %c0_4 = arith.constant 0 : index
    %3 = vector.load %arg4[%c0_3, %c0_4] : memref<32x1xf32, #tpu.memory_space<vmem>>, vector<32x1xf32>
    %4 = vector.broadcast %3 : vector<32x1xf32> to vector<32x256xf32>
    %5 = arith.addf %2, %4 : vector<32x256xf32>
    %c0_5 = arith.constant 0 : index
    %c0_6 = arith.constant 0 : index
    %6 = vector.load %arg2[%c0_5, %c0_6] : memref<32x256xf32, #tpu.memory_space<vmem>>, vector<32x256xf32>
    %7 = arith.addf %5, %6 : vector<32x256xf32>
    %cst_7 = arith.constant 5.000000e-01 : f32
    %8 = vector.broadcast %cst_7 : f32 to vector<32x256xf32>
    %9 = arith.mulf %8, %7 : vector<32x256xf32>
    %cst_8 = arith.constant 0.707106769 : f32
    %10 = vector.broadcast %cst_8 : f32 to vector<32x256xf32>
    %11 = arith.mulf %7, %10 : vector<32x256xf32>
    %12 = math.absf %11 : vector<32x256xf32>
    %cst_9 = arith.constant 5.000000e-01 : f32
    %13 = vector.broadcast %cst_9 : f32 to vector<32x256xf32>
    %14 = arith.mulf %13, %12 : vector<32x256xf32>
    %cst_10 = arith.constant 1.000000e+00 : f32
    %15 = vector.broadcast %cst_10 : f32 to vector<32x256xf32>
    %16 = arith.addf %15, %14 : vector<32x256xf32>
    %cst_11 = arith.constant 1.000000e+00 : f32
    %17 = vector.broadcast %cst_11 : f32 to vector<32x256xf32>
    %18 = arith.divf %17, %16 : vector<32x256xf32>
    %cst_12 = arith.constant 0.170872763 : f32
    %19 = vector.broadcast %cst_12 : f32 to vector<32x256xf32>
    %20 = arith.mulf %18, %19 : vector<32x256xf32>
    %cst_13 = arith.constant -0.822152256 : f32
    %21 = vector.broadcast %cst_13 : f32 to vector<32x256xf32>
    %22 = arith.addf %21, %20 : vector<32x256xf32>
    %23 = arith.mulf %18, %22 : vector<32x256xf32>
    %cst_14 = arith.constant 1.48851585 : f32
    %24 = vector.broadcast %cst_14 : f32 to vector<32x256xf32>
    %25 = arith.addf %24, %23 : vector<32x256xf32>
    %26 = arith.mulf %18, %25 : vector<32x256xf32>
    %cst_15 = arith.constant -1.13520396 : f32
    %27 = vector.broadcast %cst_15 : f32 to vector<32x256xf32>
    %28 = arith.addf %27, %26 : vector<32x256xf32>
    %29 = arith.mulf %18, %28 : vector<32x256xf32>
    %cst_16 = arith.constant 0.278868079 : f32
    %30 = vector.broadcast %cst_16 : f32 to vector<32x256xf32>
    %31 = arith.addf %30, %29 : vector<32x256xf32>
    %32 = arith.mulf %18, %31 : vector<32x256xf32>
    %cst_17 = arith.constant -0.186288059 : f32
    %33 = vector.broadcast %cst_17 : f32 to vector<32x256xf32>
    %34 = arith.addf %33, %32 : vector<32x256xf32>
    %35 = arith.mulf %18, %34 : vector<32x256xf32>
    %cst_18 = arith.constant 0.0967841818 : f32
    %36 = vector.broadcast %cst_18 : f32 to vector<32x256xf32>
    %37 = arith.addf %36, %35 : vector<32x256xf32>
    %38 = arith.mulf %18, %37 : vector<32x256xf32>
    %cst_19 = arith.constant 0.374091953 : f32
    %39 = vector.broadcast %cst_19 : f32 to vector<32x256xf32>
    %40 = arith.addf %39, %38 : vector<32x256xf32>
    %41 = arith.mulf %18, %40 : vector<32x256xf32>
    %cst_20 = arith.constant 1.00002372 : f32
    %42 = vector.broadcast %cst_20 : f32 to vector<32x256xf32>
    %43 = arith.addf %42, %41 : vector<32x256xf32>
    %44 = arith.mulf %18, %43 : vector<32x256xf32>
    %cst_21 = arith.constant -1.26551223 : f32
    %45 = vector.broadcast %cst_21 : f32 to vector<32x256xf32>
    %46 = arith.addf %45, %44 : vector<32x256xf32>
    %cst_22 = arith.constant 0.000000e+00 : f32
    %47 = vector.broadcast %cst_22 : f32 to vector<32x256xf32>
    %48 = arith.subf %47, %12 : vector<32x256xf32>
    %49 = arith.mulf %48, %12 : vector<32x256xf32>
    %50 = arith.addf %49, %46 : vector<32x256xf32>
    %51 = math.exp %50 : vector<32x256xf32>
    %52 = arith.mulf %18, %51 : vector<32x256xf32>
    %cst_23 = arith.constant 0.000000e+00 : f32
    %53 = vector.broadcast %cst_23 : f32 to vector<32x256xf32>
    %54 = arith.cmpf oge, %11, %53 : vector<32x256xf32>
    %cst_24 = arith.constant 1.000000e+00 : f32
    %55 = vector.broadcast %cst_24 : f32 to vector<32x256xf32>
    %56 = arith.subf %55, %52 : vector<32x256xf32>
    %cst_25 = arith.constant 1.000000e+00 : f32
    %57 = vector.broadcast %cst_25 : f32 to vector<32x256xf32>
    %58 = arith.subf %52, %57 : vector<32x256xf32>
    %59 = arith.select %54, %56, %58 : vector<32x256xi1>, vector<32x256xf32>
    %cst_26 = arith.constant 1.000000e+00 : f32
    %60 = vector.broadcast %cst_26 : f32 to vector<32x256xf32>
    %61 = arith.addf %60, %59 : vector<32x256xf32>
    %62 = arith.mulf %9, %61 : vector<32x256xf32>
    %c0_27 = arith.constant 0 : index
    %c0_28 = arith.constant 0 : index
    %63 = vector.load %arg5[%c0_27, %c0_28] : memref<32x256xf32, #tpu.memory_space<vmem>>, vector<32x256xf32>
    tpu.vector_store %arg5[%c0_27, %c0_28], %62 {strides = array<i32>} : memref<32x256xf32, #tpu.memory_space<vmem>>, vector<32x256xf32>,
    return
  }
  func.func @transform_0(%arg0: i32) -> (i32, i32) {
    %c0_i32 = arith.constant 0 : i32
    %c0_i32_0 = arith.constant 0 : i32
    return %c0_i32, %arg0 : i32, i32
  }
  func.func @transform_1(%arg0: i32) -> (i32, i32) {
    %c0_i32 = arith.constant 0 : i32
    %c0_i32_0 = arith.constant 0 : i32
    return %c0_i32, %arg0 : i32, i32
  }
  func.func @transform_2(%arg0: i32) -> (i32, i32) {
    %c0_i32 = arith.constant 0 : i32
    %c0_i32_0 = arith.constant 0 : i32
    %c0_i32_1 = arith.constant 0 : i32
    return %c0_i32, %c0_i32_0 : i32, i32
  }
  func.func @transform_3(%arg0: i32) -> (i32, i32) {
    %c0_i32 = arith.constant 0 : i32
    %c0_i32_0 = arith.constant 0 : i32
    %c0_i32_1 = arith.constant 0 : i32
    return %c0_i32, %c0_i32_0 : i32, i32
  }
  func.func @transform_4(%arg0: i32) -> (i32, i32) {
    %c0_i32 = arith.constant 0 : i32
    %c0_i32_0 = arith.constant 0 : i32
    return %c0_i32, %arg0 : i32, i32
  }
}

module attributes {stable_mosaic.version = 11 : i64} {
  func.func @_wlayer_kernel(%arg0: i32, %arg1: memref<32x256xf32, #tpu.memory_space<vmem>>, %arg2: memref<32x256xf32, #tpu.memory_space<vmem>>, %arg3: memref<32x32xf32, #tpu.memory_space<vmem>>, %arg4: memref<32x1xf32, #tpu.memory_space<vmem>>, %arg5: memref<32x256xf32, #tpu.memory_space<vmem>>) attributes {dimension_semantics = [#tpu.dimension_semantics<parallel>], iteration_bounds = array<i64: 2>, scalar_prefetch = 0 : i64, scratch_operands = 0 : i64, tpu.core_type = #tpu.core_type<tc>, window_params = [{transform_indices = @transform_0, window_bounds = array<i64: 32, 256>}, {transform_indices = @transform_1, window_bounds = array<i64: 32, 256>}, {pipeline_mode = #tpu.pipeline_mode<synchronous>, transform_indices = @transform_2, window_bounds = array<i64: 32, 32>}, {pipeline_mode = #tpu.pipeline_mode<synchronous>, transform_indices = @transform_3, window_bounds = array<i64: 32, 1>}, {transform_indices = @transform_4, window_bounds = array<i64: 32, 256>}]} {
    %c0 = arith.constant 0 : index
    %c0_0 = arith.constant 0 : index
    %0 = vector.load %arg3[%c0, %c0_0] : memref<32x32xf32, #tpu.memory_space<vmem>>, vector<32x32xf32>
    %c0_1 = arith.constant 0 : index
    %c0_2 = arith.constant 0 : index
    %1 = vector.load %arg1[%c0_1, %c0_2] : memref<32x256xf32, #tpu.memory_space<vmem>>, vector<32x256xf32>
    %cst = arith.constant dense<0.000000e+00> : vector<32x256xf32>
    %2 = tpu.matmul %0, %1, %cst {dimension_numbers = #tpu.dot_dimension_numbers<[1], [0], [0], [1], [0, 0, 1, 1], [], []>} : vector<32x32xf32>, vector<32x256xf32>, vector<32x256xf32> -> vector<32x256xf32>
    %c0_3 = arith.constant 0 : index
    %c0_4 = arith.constant 0 : index
    %3 = vector.load %arg4[%c0_3, %c0_4] : memref<32x1xf32, #tpu.memory_space<vmem>>, vector<32x1xf32>
    %4 = vector.broadcast %3 : vector<32x1xf32> to vector<32x256xf32>
    %5 = arith.addf %2, %4 : vector<32x256xf32>
    %c0_5 = arith.constant 0 : index
    %c0_6 = arith.constant 0 : index
    %6 = vector.load %arg2[%c0_5, %c0_6] : memref<32x256xf32, #tpu.memory_space<vmem>>, vector<32x256xf32>
    %7 = arith.addf %5, %6 : vector<32x256xf32>
    %c0_7 = arith.constant 0 : index
    %c0_8 = arith.constant 0 : index
    %8 = vector.load %arg5[%c0_7, %c0_8] : memref<32x256xf32, #tpu.memory_space<vmem>>, vector<32x256xf32>
    tpu.vector_store %arg5[%c0_7, %c0_8], %7 {strides = array<i32>} : memref<32x256xf32, #tpu.memory_space<vmem>>, vector<32x256xf32>,
    return
  }
  func.func @transform_0(%arg0: i32) -> (i32, i32) {
    %c0_i32 = arith.constant 0 : i32
    %c0_i32_0 = arith.constant 0 : i32
    return %c0_i32, %arg0 : i32, i32
  }
  func.func @transform_1(%arg0: i32) -> (i32, i32) {
    %c0_i32 = arith.constant 0 : i32
    %c0_i32_0 = arith.constant 0 : i32
    return %c0_i32, %arg0 : i32, i32
  }
  func.func @transform_2(%arg0: i32) -> (i32, i32) {
    %c0_i32 = arith.constant 0 : i32
    %c0_i32_0 = arith.constant 0 : i32
    %c0_i32_1 = arith.constant 0 : i32
    return %c0_i32, %c0_i32_0 : i32, i32
  }
  func.func @transform_3(%arg0: i32) -> (i32, i32) {
    %c0_i32 = arith.constant 0 : i32
    %c0_i32_0 = arith.constant 0 : i32
    %c0_i32_1 = arith.constant 0 : i32
    return %c0_i32, %c0_i32_0 : i32, i32
  }
  func.func @transform_4(%arg0: i32) -> (i32, i32) {
    %c0_i32 = arith.constant 0 : i32
    %c0_i32_0 = arith.constant 0 : i32
    return %c0_i32, %arg0 : i32, i32
  }
}

module attributes {stable_mosaic.version = 11 : i64} {
  func.func @_head_kernel(%arg0: i32, %arg1: memref<32x256xf32, #tpu.memory_space<vmem>>, %arg2: memref<128x32xf32, #tpu.memory_space<vmem>>, %arg3: memref<128x1xf32, #tpu.memory_space<vmem>>, %arg4: memref<3x128xf32, #tpu.memory_space<vmem>>, %arg5: memref<3x1xf32, #tpu.memory_space<vmem>>, %arg6: memref<3x256xf32, #tpu.memory_space<vmem>>) attributes {dimension_semantics = [#tpu.dimension_semantics<parallel>], iteration_bounds = array<i64: 2>, scalar_prefetch = 0 : i64, scratch_operands = 0 : i64, tpu.core_type = #tpu.core_type<tc>, window_params = [{transform_indices = @transform_0, window_bounds = array<i64: 32, 256>}, {pipeline_mode = #tpu.pipeline_mode<synchronous>, transform_indices = @transform_1, window_bounds = array<i64: 128, 32>}, {pipeline_mode = #tpu.pipeline_mode<synchronous>, transform_indices = @transform_2, window_bounds = array<i64: 128, 1>}, {pipeline_mode = #tpu.pipeline_mode<synchronous>, transform_indices = @transform_3, window_bounds = array<i64: 3, 128>}, {pipeline_mode = #tpu.pipeline_mode<synchronous>, transform_indices = @transform_4, window_bounds = array<i64: 3, 1>}, {transform_indices = @transform_5, window_bounds = array<i64: 3, 256>}]} {
    %c0 = arith.constant 0 : index
    %c0_0 = arith.constant 0 : index
    %0 = vector.load %arg2[%c0, %c0_0] : memref<128x32xf32, #tpu.memory_space<vmem>>, vector<128x32xf32>
    %c0_1 = arith.constant 0 : index
    %c0_2 = arith.constant 0 : index
    %1 = vector.load %arg1[%c0_1, %c0_2] : memref<32x256xf32, #tpu.memory_space<vmem>>, vector<32x256xf32>
    %cst = arith.constant dense<0.000000e+00> : vector<128x256xf32>
    %2 = tpu.matmul %0, %1, %cst {dimension_numbers = #tpu.dot_dimension_numbers<[1], [0], [0], [1], [0, 0, 1, 1], [], []>} : vector<128x32xf32>, vector<32x256xf32>, vector<128x256xf32> -> vector<128x256xf32>
    %c0_3 = arith.constant 0 : index
    %c0_4 = arith.constant 0 : index
    %3 = vector.load %arg3[%c0_3, %c0_4] : memref<128x1xf32, #tpu.memory_space<vmem>>, vector<128x1xf32>
    %4 = vector.broadcast %3 : vector<128x1xf32> to vector<128x256xf32>
    %5 = arith.addf %2, %4 : vector<128x256xf32>
    %cst_5 = arith.constant 5.000000e-01 : f32
    %6 = vector.broadcast %cst_5 : f32 to vector<128x256xf32>
    %7 = arith.mulf %6, %5 : vector<128x256xf32>
    %cst_6 = arith.constant 0.707106769 : f32
    %8 = vector.broadcast %cst_6 : f32 to vector<128x256xf32>
    %9 = arith.mulf %5, %8 : vector<128x256xf32>
    %10 = math.absf %9 : vector<128x256xf32>
    %cst_7 = arith.constant 5.000000e-01 : f32
    %11 = vector.broadcast %cst_7 : f32 to vector<128x256xf32>
    %12 = arith.mulf %11, %10 : vector<128x256xf32>
    %cst_8 = arith.constant 1.000000e+00 : f32
    %13 = vector.broadcast %cst_8 : f32 to vector<128x256xf32>
    %14 = arith.addf %13, %12 : vector<128x256xf32>
    %cst_9 = arith.constant 1.000000e+00 : f32
    %15 = vector.broadcast %cst_9 : f32 to vector<128x256xf32>
    %16 = arith.divf %15, %14 : vector<128x256xf32>
    %cst_10 = arith.constant 0.170872763 : f32
    %17 = vector.broadcast %cst_10 : f32 to vector<128x256xf32>
    %18 = arith.mulf %16, %17 : vector<128x256xf32>
    %cst_11 = arith.constant -0.822152256 : f32
    %19 = vector.broadcast %cst_11 : f32 to vector<128x256xf32>
    %20 = arith.addf %19, %18 : vector<128x256xf32>
    %21 = arith.mulf %16, %20 : vector<128x256xf32>
    %cst_12 = arith.constant 1.48851585 : f32
    %22 = vector.broadcast %cst_12 : f32 to vector<128x256xf32>
    %23 = arith.addf %22, %21 : vector<128x256xf32>
    %24 = arith.mulf %16, %23 : vector<128x256xf32>
    %cst_13 = arith.constant -1.13520396 : f32
    %25 = vector.broadcast %cst_13 : f32 to vector<128x256xf32>
    %26 = arith.addf %25, %24 : vector<128x256xf32>
    %27 = arith.mulf %16, %26 : vector<128x256xf32>
    %cst_14 = arith.constant 0.278868079 : f32
    %28 = vector.broadcast %cst_14 : f32 to vector<128x256xf32>
    %29 = arith.addf %28, %27 : vector<128x256xf32>
    %30 = arith.mulf %16, %29 : vector<128x256xf32>
    %cst_15 = arith.constant -0.186288059 : f32
    %31 = vector.broadcast %cst_15 : f32 to vector<128x256xf32>
    %32 = arith.addf %31, %30 : vector<128x256xf32>
    %33 = arith.mulf %16, %32 : vector<128x256xf32>
    %cst_16 = arith.constant 0.0967841818 : f32
    %34 = vector.broadcast %cst_16 : f32 to vector<128x256xf32>
    %35 = arith.addf %34, %33 : vector<128x256xf32>
    %36 = arith.mulf %16, %35 : vector<128x256xf32>
    %cst_17 = arith.constant 0.374091953 : f32
    %37 = vector.broadcast %cst_17 : f32 to vector<128x256xf32>
    %38 = arith.addf %37, %36 : vector<128x256xf32>
    %39 = arith.mulf %16, %38 : vector<128x256xf32>
    %cst_18 = arith.constant 1.00002372 : f32
    %40 = vector.broadcast %cst_18 : f32 to vector<128x256xf32>
    %41 = arith.addf %40, %39 : vector<128x256xf32>
    %42 = arith.mulf %16, %41 : vector<128x256xf32>
    %cst_19 = arith.constant -1.26551223 : f32
    %43 = vector.broadcast %cst_19 : f32 to vector<128x256xf32>
    %44 = arith.addf %43, %42 : vector<128x256xf32>
    %cst_20 = arith.constant 0.000000e+00 : f32
    %45 = vector.broadcast %cst_20 : f32 to vector<128x256xf32>
    %46 = arith.subf %45, %10 : vector<128x256xf32>
    %47 = arith.mulf %46, %10 : vector<128x256xf32>
    %48 = arith.addf %47, %44 : vector<128x256xf32>
    %49 = math.exp %48 : vector<128x256xf32>
    %50 = arith.mulf %16, %49 : vector<128x256xf32>
    %cst_21 = arith.constant 0.000000e+00 : f32
    %51 = vector.broadcast %cst_21 : f32 to vector<128x256xf32>
    %52 = arith.cmpf oge, %9, %51 : vector<128x256xf32>
    %cst_22 = arith.constant 1.000000e+00 : f32
    %53 = vector.broadcast %cst_22 : f32 to vector<128x256xf32>
    %54 = arith.subf %53, %50 : vector<128x256xf32>
    %cst_23 = arith.constant 1.000000e+00 : f32
    %55 = vector.broadcast %cst_23 : f32 to vector<128x256xf32>
    %56 = arith.subf %50, %55 : vector<128x256xf32>
    %57 = arith.select %52, %54, %56 : vector<128x256xi1>, vector<128x256xf32>
    %cst_24 = arith.constant 1.000000e+00 : f32
    %58 = vector.broadcast %cst_24 : f32 to vector<128x256xf32>
    %59 = arith.addf %58, %57 : vector<128x256xf32>
    %60 = arith.mulf %7, %59 : vector<128x256xf32>
    %c0_25 = arith.constant 0 : index
    %c0_26 = arith.constant 0 : index
    %61 = vector.load %arg4[%c0_25, %c0_26] : memref<3x128xf32, #tpu.memory_space<vmem>>, vector<3x128xf32>
    %cst_27 = arith.constant dense<0.000000e+00> : vector<3x256xf32>
    %62 = tpu.matmul %61, %60, %cst_27 {dimension_numbers = #tpu.dot_dimension_numbers<[1], [0], [0], [1], [0, 0, 1, 1], [], []>} : vector<3x128xf32>, vector<128x256xf32>, vector<3x256xf32> -> vector<3x256xf32>
    %c0_28 = arith.constant 0 : index
    %c0_29 = arith.constant 0 : index
    %63 = vector.load %arg5[%c0_28, %c0_29] : memref<3x1xf32, #tpu.memory_space<vmem>>, vector<3x1xf32>
    %64 = vector.broadcast %63 : vector<3x1xf32> to vector<3x256xf32>
    %65 = arith.addf %62, %64 : vector<3x256xf32>
    %c0_30 = arith.constant 0 : index
    %c0_31 = arith.constant 0 : index
    %66 = vector.load %arg6[%c0_30, %c0_31] : memref<3x256xf32, #tpu.memory_space<vmem>>, vector<3x256xf32>
    tpu.vector_store %arg6[%c0_30, %c0_31], %65 {strides = array<i32>} : memref<3x256xf32, #tpu.memory_space<vmem>>, vector<3x256xf32>,
    return
  }
  func.func @transform_0(%arg0: i32) -> (i32, i32) {
    %c0_i32 = arith.constant 0 : i32
    %c0_i32_0 = arith.constant 0 : i32
    return %c0_i32, %arg0 : i32, i32
  }
  func.func @transform_1(%arg0: i32) -> (i32, i32) {
    %c0_i32 = arith.constant 0 : i32
    %c0_i32_0 = arith.constant 0 : i32
    %c0_i32_1 = arith.constant 0 : i32
    return %c0_i32, %c0_i32_0 : i32, i32
  }
  func.func @transform_2(%arg0: i32) -> (i32, i32) {
    %c0_i32 = arith.constant 0 : i32
    %c0_i32_0 = arith.constant 0 : i32
    %c0_i32_1 = arith.constant 0 : i32
    return %c0_i32, %c0_i32_0 : i32, i32
  }
  func.func @transform_3(%arg0: i32) -> (i32, i32) {
    %c0_i32 = arith.constant 0 : i32
    %c0_i32_0 = arith.constant 0 : i32
    %c0_i32_1 = arith.constant 0 : i32
    return %c0_i32, %c0_i32_0 : i32, i32
  }
  func.func @transform_4(%arg0: i32) -> (i32, i32) {
    %c0_i32 = arith.constant 0 : i32
    %c0_i32_0 = arith.constant 0 : i32
    %c0_i32_1 = arith.constant 0 : i32
    return %c0_i32, %c0_i32_0 : i32, i32
  }
  func.func @transform_5(%arg0: i32) -> (i32, i32) {
    %c0_i32 = arith.constant 0 : i32
    %c0_i32_0 = arith.constant 0 : i32
    return %c0_i32, %arg0 : i32, i32
  }
}

</mosaic_0001>

<llo_original>
// kernel: fno2d_forward.10
$region0: #{fno2d_forward.10}
  #allocation0 [shape = 'u32[]', space=smem, size = 0x4, offset = 0x4, fixed_abs, tag = 'smem constant byte address 0x4 - core index']
  #allocation1 [shape = 'u32[144,128]{1,0:T(1,128)}', space=vmem, size = 0x12000, scoped, tag = 'internal scratch']
  %s0 = inlined_call_operand.vmem [shape: f32[3,512], index: 0, kind: input, shape index: {}]
  %s1 = inlined_call_operand.vmem [shape: f32[2,512], index: 1, kind: input, shape index: {}]
  %s2 = inlined_call_operand.vmem [shape: f32[32,3], index: 2, kind: input, shape index: {}]
  %s3 = inlined_call_operand.vmem [shape: f32[32,2], index: 3, kind: input, shape index: {}]
  %s4 = inlined_call_operand.vmem [shape: f32[32,1], index: 4, kind: input, shape index: {}]
  %s5 = inlined_call_operand.vmem [shape: f32[32,512], index: 5, kind: output, shape index: {}]
  %s6 = sld [smem:[#allocation0]]
  $region72: #{fno2d_forward.10} parent=0
    _
  %s8 = ssub.s32 1, %s6
  %s9 = scalar_select 0, %s8, %s6
  $region1: #{fno2d_forward.10} parent=0
    #allocation2 [shape = 'u8[65536]{0}', space=vmem, size = 0x10000, scoped, tag = 'output window, operand 0']
    loop: start=0, step=1, limit=4
    $region2: #{fno2d_forward.10} parent=1 // loop_pre_header
      _
    $region3: #{fno2d_forward.10} parent=1 // loop_header
      %s11 = sphi 0, %s15
      %p12 = scmp.ge.s32.totalorder %s11, 4
      %s21 = sphi 0, %s23
      %s24 = sphi 0, %s21
      %s25 = sphi 0, %s24
      %s41 = sphi 0, %s25
      %s47 = sphi 0, %s49
      %s50 = sphi 0, %s47
      %s51 = sphi 0, %s50
      %s67 = sphi 0, %s51
      %s71 = sphi 0, %s71
      %s73 = sphi 0, %s71
      %s74 = sphi 0, %s73
      %s88 = sphi 0, %s74
      %s92 = sphi 0, %s92
      %s94 = sphi 0, %s92
      %s95 = sphi 0, %s94
      %s109 = sphi 0, %s95
      %s113 = sphi 0, %s113
      %s115 = sphi 0, %s113
      %s116 = sphi 0, %s115
      %s130 = sphi 0, %s116
      %s136 = sphi 0, %s138
      %s139 = sphi 0, %s136
      %s140 = sphi 0, %s139
      %s156 = sphi 0, %s140
    $region4: #{fno2d_forward.10} parent=1 // loop_header_branch
      %14 = sbr.rel (%p12) target = $region8
    $region5: #{fno2d_forward.10} parent=1 // loop_body
      %s16 = ssub.s32 %s11, 1
      %s17 = ssub.s32 %s11, 2
      %s18 = sadd.s32 %s11, 1
      %s19 = ssub.s32 %s11, %s18
      %p20 = scmp.eq.s32.totalorder %s19, 0
      %s22 = sadd.s32 %s21, 1
      %s23 = scalar_select %p20, %s21, %s22
      %p26 = pneg %p20
      %p27 = scmp.eq.s32.totalorder %s11, 1
      %p28 = por %p26, %p27
      %p29 = scmp.ne.s32.totalorder %s21, %s24
      %p30 = scmp.eq.s32.totalorder %s11, 0
      %p31 = por %p29, %p30
      %p32 = scmp.ne.s32.totalorder %s21, %s24
      %p33 = scmp.eq.s32.totalorder %s16, 1
      %p34 = por %p32, %p33
      %p35 = scmp.ne.s32.totalorder %s24, %s25
      %p36 = scmp.eq.s32.totalorder %s16, 0
      %p37 = por %p35, %p36
      %p38 = scmp.ne.s32.totalorder %s24, %s25
      %p39 = scmp.eq.s32.totalorder %s17, 1
      %p40 = por %p38, %p39
      %p42 = scmp.ne.s32.totalorder %s25, %s41
      %p43 = scmp.eq.s32.totalorder %s17, 0
      %p44 = por %p42, %p43
      %s45 = ssub.s32 %s11, %s18
      %p46 = scmp.eq.s32.totalorder %s45, 0
      %s48 = sadd.s32 %s47, 1
      %s49 = scalar_select %p46, %s47, %s48
      %p52 = pneg %p46
      %p53 = scmp.eq.s32.totalorder %s11, 1
      %p54 = por %p52, %p53
      %p55 = scmp.ne.s32.totalorder %s47, %s50
      %p56 = scmp.eq.s32.totalorder %s11, 0
      %p57 = por %p55, %p56
      %p58 = scmp.ne.s32.totalorder %s47, %s50
      %p59 = scmp.eq.s32.totalorder %s16, 1
      %p60 = por %p58, %p59
      %p61 = scmp.ne.s32.totalorder %s50, %s51
      %p62 = scmp.eq.s32.totalorder %s16, 0
      %p63 = por %p61, %p62
      %p64 = scmp.ne.s32.totalorder %s50, %s51
      %p65 = scmp.eq.s32.totalorder %s17, 1
      %p66 = por %p64, %p65
      %p68 = scmp.ne.s32.totalorder %s51, %s67
      %p69 = scmp.eq.s32.totalorder %s17, 0
      %p70 = por %p68, %p69
      %s72 = sadd.s32 %s71, 1
      %p75 = scmp.eq.s32.totalorder %s11, 1
      %p76 = scmp.ne.s32.totalorder %s71, %s73
      %p77 = scmp.eq.s32.totalorder %s11, 0
      %p78 = por %p76, %p77
      %p79 = scmp.ne.s32.totalorder %s71, %s73
      %p80 = scmp.eq.s32.totalorder %s16, 1
      %p81 = por %p79, %p80
      %p82 = scmp.ne.s32.totalorder %s73, %s74
      %p83 = scmp.eq.s32.totalorder %s16, 0
      %p84 = por %p82, %p83
      %p85 = scmp.ne.s32.totalorder %s73, %s74
      %p86 = scmp.eq.s32.totalorder %s17, 1
      %p87 = por %p85, %p86
      %p89 = scmp.ne.s32.totalorder %s74, %s88
      %p90 = scmp.eq.s32.totalorder %s17, 0
      %p91 = por %p89, %p90
      %s93 = sadd.s32 %s92, 1
      %p96 = scmp.eq.s32.totalorder %s11, 1
      %p97 = scmp.ne.s32.totalorder %s92, %s94
      %p98 = scmp.eq.s32.totalorder %s11, 0
      %p99 = por %p97, %p98
      %p100 = scmp.ne.s32.totalorder %s92, %s94
      %p101 = scmp.eq.s32.totalorder %s16, 1
      %p102 = por %p100, %p101
      %p103 = scmp.ne.s32.totalorder %s94, %s95
      %p104 = scmp.eq.s32.totalorder %s16, 0
      %p105 = por %p103, %p104
      %p106 = scmp.ne.s32.totalorder %s94, %s95
      %p107 = scmp.eq.s32.totalorder %s17, 1
      %p108 = por %p106, %p107
      %p110 = scmp.ne.s32.totalorder %s95, %s109
      %p111 = scmp.eq.s32.totalorder %s17, 0
      %p112 = por %p110, %p111
      %s114 = sadd.s32 %s113, 1
      %p117 = scmp.eq.s32.totalorder %s11, 1
      %p118 = scmp.ne.s32.totalorder %s113, %s115
      %p119 = scmp.eq.s32.totalorder %s11, 0
      %p120 = por %p118, %p119
      %p121 = scmp.ne.s32.totalorder %s113, %s115
      %p122 = scmp.eq.s32.totalorder %s16, 1
      %p123 = por %p121, %p122
      %p124 = scmp.ne.s32.totalorder %s115, %s116
      %p125 = scmp.eq.s32.totalorder %s16, 0
      %p126 = por %p124, %p125
      %p127 = scmp.ne.s32.totalorder %s115, %s116
      %p128 = scmp.eq.s32.totalorder %s17, 1
      %p129 = por %p127, %p128
      %p131 = scmp.ne.s32.totalorder %s116, %s130
      %p132 = scmp.eq.s32.totalorder %s17, 0
      %p133 = por %p131, %p132
      %s134 = ssub.s32 %s11, %s18
      %p135 = scmp.eq.s32.totalorder %s134, 0
      %s137 = sadd.s32 %s136, 1
      %s138 = scalar_select %p135, %s136, %s137
      %p141 = pneg %p135
      %p142 = scmp.eq.s32.totalorder %s11, 1
      %p143 = por %p141, %p142
      %p144 = scmp.ne.s32.totalorder %s136, %s139
      %p145 = scmp.eq.s32.totalorder %s11, 0
      %p146 = por %p144, %p145
      %p147 = scmp.ne.s32.totalorder %s136, %s139
      %p148 = scmp.eq.s32.totalorder %s16, 1
      %p149 = por %p147, %p148
      %p150 = scmp.ne.s32.totalorder %s139, %s140
      %p151 = scmp.eq.s32.totalorder %s16, 0
      %p152 = por %p150, %p151
      %p153 = scmp.ne.s32.totalorder %s139, %s140
      %p154 = scmp.eq.s32.totalorder %s17, 1
      %p155 = por %p153, %p154
      %p157 = scmp.ne.s32.totalorder %s140, %s156
      %p158 = scmp.eq.s32.totalorder %s17, 0
      %p159 = por %p157, %p158
      %p160 = scmp.le.s32.totalorder 1, %s11
      %p161 = scmp.lt.s32.totalorder %s11, 3
      %p162 = pnand %p160, %p161
      %p163 = pneg %p162
      // Predicated region
      $region9: #{fno2d_forward.10} parent=5 // pred_check
        _
      $region10: #{fno2d_forward.10} parent=5 // pred_check_branch
        %165 = sbr.rel (%p162) target = $region12
      $region11: #{fno2d_forward.10} parent=5 // pred_region
        %s166 = ssub.s32 %s11, 1
        // Predicated region
        $region13: #{fno2d_forward.10} parent=11 // pred_check
          %p167 = pneg %p84
        $region14: #{fno2d_forward.10} parent=11 // pred_check_branch
          %169 = sbr.rel (%p167) target = $region16
        $region15: #{fno2d_forward.10} parent=11 // pred_region
          _
        $region16: #{fno2d_forward.10} parent=11 // pred_fallthru
          _
        // Predicated region
        $region17: #{fno2d_forward.10} parent=11 // pred_check
          %p170 = pneg %p105
        $region18: #{fno2d_forward.10} parent=11 // pred_check_branch
          %172 = sbr.rel (%p170) target = $region20
        $region19: #{fno2d_forward.10} parent=11 // pred_region
          _
        $region20: #{fno2d_forward.10} parent=11 // pred_fallthru
          _
        // Predicated region
        $region21: #{fno2d_forward.10} parent=11 // pred_check
          %p173 = pneg %p126
        $region22: #{fno2d_forward.10} parent=11 // pred_check_branch
          %175 = sbr.rel (%p173) target = $region24
        $region23: #{fno2d_forward.10} parent=11 // pred_region
          _
        $region24: #{fno2d_forward.10} parent=11 // pred_fallthru
          _
      $region12: #{fno2d_forward.10} parent=5 // pred_fallthru
        _
      %p176 = scmp.lt.s32.totalorder %s11, 2
      // Predicated region
      $region25: #{fno2d_forward.10} parent=5 // pred_check
        %p177 = pneg %p176
      $region26: #{fno2d_forward.10} parent=5 // pred_check_branch
        %179 = sbr.rel (%p177) target = $region28
      $region27: #{fno2d_forward.10} parent=5 // pred_region
        // Predicated region
        $region29: #{fno2d_forward.10} parent=27 // pred_check
          %p180 = pneg %p31
        $region30: #{fno2d_forward.10} parent=27 // pred_check_branch
          %182 = sbr.rel (%p180) target = $region32
        $region31: #{fno2d_forward.10} parent=27 // pred_region
          %s183 = smul.u32 2, %s11
          %p184 = scmp.lt.s32.totalorder %s183, 3
          %s185 = scalar_select %p184, %s183, 3
          %s186 = smul.addr %s185, 4
          %s187 = scalar_lea.vmem %s0, %s186
          %s188 = smul.u32 2, %s11
        $region32: #{fno2d_forward.10} parent=27 // pred_fallthru
          _
        // Predicated region
        $region33: #{fno2d_forward.10} parent=27 // pred_check
          %p189 = pneg %p57
        $region34: #{fno2d_forward.10} parent=27 // pred_check_branch
          %191 = sbr.rel (%p189) target = $region36
        $region35: #{fno2d_forward.10} parent=27 // pred_region
          %s192 = smul.u32 2, %s11
          %p193 = scmp.lt.s32.totalorder %s192, 3
          %s194 = scalar_select %p193, %s192, 3
          %s195 = smul.addr %s194, 2
          %s196 = scalar_lea.vmem %s1, %s195
          %s197 = smul.u32 2, %s11
        $region36: #{fno2d_forward.10} parent=27 // pred_fallthru
          _
      $region28: #{fno2d_forward.10} parent=5 // pred_fallthru
        _
      %p198 = scmp.le.s32.totalorder 1, %s11
      %p199 = scmp.lt.s32.totalorder %s11, 3
      %p200 = pnand %p198, %p199
      %p201 = pneg %p200
      // Predicated region
      $region37: #{fno2d_forward.10} parent=5 // pred_check
        _
      $region38: #{fno2d_forward.10} parent=5 // pred_check_branch
        %203 = sbr.rel (%p200) target = $region40
      $region39: #{fno2d_forward.10} parent=5 // pred_region
        %s204 = ssub.s32 %s11, 1
        %s205 = smul.u32 2, %s16
        %p206 = scmp.lt.s32.totalorder %s205, 3
        %s207 = scalar_select %p206, %s205, 3
        %s208 = smul.addr %s207, 4
        %s209 = scalar_lea.vmem %s0, %s208
        %p210 = pneg %p37
        %p211 = pneg %p34
        %s212 = smul.u32 2, %s16
        %p213 = scmp.lt.s32.totalorder %s212, 3
        %s214 = scalar_select %p213, %s212, 3
        %s215 = smul.addr %s214, 2
        %s216 = scalar_lea.vmem %s1, %s215
        %p217 = pneg %p63
        %p218 = pneg %p60
        %p219 = pneg %p84
        %p220 = pneg %p81
        %p221 = pneg %p105
        %p222 = pneg %p102
        %p223 = pneg %p126
        %p224 = pneg %p123
        %p225 = pneg %p152
        %p226 = pneg %p149
        %s227 = sand.u32 %s139, 1
        %s228 = sand.u32 %s139, 1
        %s229 = smul.addr %s228, 64
        %s230 = scalar_lea.vmem [#allocation2], %s229
        %s231 = smul.u32 2, %s16
        %p232 = scmp.lt.s32.totalorder %s231, 3
        %s233 = scalar_select %p232, %s231, 3
        %s234 = smul.addr %s233, 4
        %s235 = scalar_lea.vmem %s0, %s234
        %s236 = smul.u32 2, %s16
        %s237 = smul.u32 2, %s16
        %p238 = scmp.lt.s32.totalorder %s237, 3
        %s239 = scalar_select %p238, %s237, 3
        %s240 = smul.addr %s239, 2
        %s241 = scalar_lea.vmem %s1, %s240
        %s242 = smul.u32 2, %s16
        %s243 = smul.u32 2, %s16
        %v244 = vld [vmem:[%s2] sm:$0xff]
        %v245 = vld [vmem:[%s2 + $0x8] sm:$0xff]
        %v246 = vld [vmem:[%s2 + $0x10] sm:$0xff]
        %v247 = vld [vmem:[%s2 + $0x18] sm:$0xff]
        %v248 = vld [vmem:[%s235] sm:$0x77]
        %v249 = vld [vmem:[%s3] sm:$0xff]
        %v250 = vld [vmem:[%s3 + $0x8] sm:$0xff]
        %v251 = vld [vmem:[%s3 + $0x10] sm:$0xff]
        %v252 = vld [vmem:[%s3 + $0x18] sm:$0xff]
        %v253 = vld [vmem:[%s241] sm:$0xf]
        %v256 = vunpack.c.l.s4 1983009808
        %v257 = vunpack.c.0.s8 %v256
        %v258 = vlaneseq
        %v259 = vshrl.u32 %v258, 7
        %v260 = vsub.s32 %v257, %v259
        %v261 = vrot.slane %v253, %v260
        %v262 = vcombine.high %v261, %v261
        %vm263 = vcmask 15360
        %v265 = vsel %vm263, %v249, 0
        %v268 = vsel %vm263, %v250, 0
        %v271 = vsel %vm263, %v251, 0
        %v274 = vsel %vm263, %v252, 0
        %vm276 = vcmask 1041408
        %v277 = vsel %vm276, %v261, 0
        %v279 = vsel %vm276, %v262, 0
        %281 = vmatprep.subr.mxu0 0.0
        %282 = vmatpush1.msra.mxu0 0.0
        %283 = vmatprep.subr.mxu0 0.0
        %284 = vmatpush1.msra.mxu0 0.0
        %285 = vmatprep.subr.mxu0 0.0
        %286 = vmatpush1.msra.mxu0 0.0
        %287 = vmatprep.subr.mxu0 0.0
        %288 = vmatpush1.msra.mxu0 0.0
        %289 = vmatprep.subr.mxu0 0.0
        %290 = vmatpush1.msra.mxu0 0.0
        %291 = vmatprep.subr.mxu0 0.0
        %292 = vmatpush1.msra.mxu0 0.0
        %293 = vmatprep.subr.mxu0 0.0
        %294 = vmatpush1.msra.mxu0 0.0
        %295 = vmatprep.subr.mxu0 0.0
        %296 = vmatpush1.msra.mxu0 0.0
        %297 = vmatprep.subr.mxu0 0.0
        %298 = vmatpush1.msra.mxu0 0.0
        %299 = vmatprep.subr.mxu0 0.0
        %300 = vmatpush1.msra.mxu0 0.0
        %301 = vmatprep.subr.mxu0 0.0
        %302 = vmatpush1.msra.mxu0 0.0
        %303 = vmatprep.subr.mxu0 0.0
        %304 = vmatpush1.msra.mxu0 0.0
        %305 = vmatprep.subr.mxu0 0.0
        %306 = vmatpush1.msra.mxu0 0.0
        %307 = vmatprep.subr.mxu0 0.0
        %308 = vmatpush1.msra.mxu0 0.0
        %309 = vmatprep.subr.mxu0 0.0
        %310 = vmatpush1.msra.mxu0 0.0
        %311 = vmatprep.subr.mxu0 %v279
        %312 = vmatpush1.msra.mxu0 %v277
        %313 = vmatprep.subr.mxu0 0.0
        %314 = vmatpush2.msra.mxu0 0.0
        %315 = vmatprep.subr.mxu0 0.0
        %316 = vmatpush2.msra.mxu0 0.0
        %317 = vmatprep.subr.mxu0 0.0
        %318 = vmatpush2.msra.mxu0 0.0
        %319 = vmatprep.subr.mxu0 0.0
        %320 = vmatpush2.msra.mxu0 0.0
        %321 = vmatprep.subr.mxu0 0.0
        %322 = vmatpush2.msra.mxu0 0.0
        %323 = vmatprep.subr.mxu0 0.0
        %324 = vmatpush2.msra.mxu0 0.0
        %325 = vmatprep.subr.mxu0 0.0
        %326 = vmatpush2.msra.mxu0 0.0
        %327 = vmatprep.subr.mxu0 0.0
        %328 = vmatpush2.msra.mxu0 0.0
        %329 = vmatprep.subr.mxu0 0.0
        %330 = vmatpush2.msra.mxu0 0.0
        %331 = vmatprep.subr.mxu0 0.0
        %332 = vmatpush2.msra.mxu0 0.0
        %333 = vmatprep.subr.mxu0 0.0
        %334 = vmatpush2.msra.mxu0 0.0
        %335 = vmatprep.subr.mxu0 0.0
        %336 = vmatpush2.msra.mxu0 0.0
        %337 = vmatprep.subr.mxu0 0.0
        %338 = vmatpush2.msra.mxu0 0.0
        %339 = vmatprep.subr.mxu0 0.0
        %340 = vmatpush2.msra.mxu0 0.0
        %341 = vmatprep.subr.mxu0 0.0
        %342 = vmatpush2.msra.mxu0 0.0
        %343 = vmatprep.subr.mxu0 0.0
        %344 = vmatpush2.msra.mxu0 0.0
        %345 = vmatprep.mubr.f32.mxu0 0.0
        %346 = vmatmul.mubr.f32.gmra.mxu0 %v265
        %v347 = vpop.f32.mrf.mxu0
        %v348 = vadd.f32 0.0, %v347
        %v349 = vpop.f32.mrf.mxu0
        %v350 = vadd.f32 0.0, %v349
        %351 = vmatprep.mubr.f32.mxu0 0.0
        %352 = vmatmul.mubr.f32.gmra.mxu0 %v268
        %v353 = vpop.f32.mrf.mxu0
        %v354 = vadd.f32 0.0, %v353
        %v355 = vpop.f32.mrf.mxu0
        %v356 = vadd.f32 0.0, %v355
        %357 = vmatprep.mubr.f32.mxu0 0.0
        %358 = vmatmul.mubr.f32.gmra.mxu0 %v271
        %v359 = vpop.f32.mrf.mxu0
        %v360 = vadd.f32 0.0, %v359
        %v361 = vpop.f32.mrf.mxu0
        %v362 = vadd.f32 0.0, %v361
        %363 = vmatprep.mubr.f32.mxu0 0.0
        %364 = vmatmul.mubr.f32.gmra.mxu0 %v274
        %v365 = vpop.f32.mrf.mxu0
        %v366 = vadd.f32 0.0, %v365
        %v367 = vpop.f32.mrf.mxu0
        %v368 = vadd.f32 0.0, %v367
        %369 = vdwg.mxu0
        %v371 = vcombine.high %v248, %v248
        %vm372 = vcmask 23552
        %v374 = vsel %vm372, %v244, 0
        %v377 = vsel %vm372, %v245, 0
        %v380 = vsel %vm372, %v246, 0
        %v383 = vsel %vm372, %v247, 0
        %vm385 = vcmask 1042432
        %v386 = vsel %vm385, %v248, 0
        %v388 = vsel %vm385, %v371, 0
        %390 = vmatprep.subr.mxu0 0.0
        %391 = vmatpush1.msra.mxu0 0.0
        %392 = vmatprep.subr.mxu0 0.0
        %393 = vmatpush1.msra.mxu0 0.0
        %394 = vmatprep.subr.mxu0 0.0
        %395 = vmatpush1.msra.mxu0 0.0
        %396 = vmatprep.subr.mxu0 0.0
        %397 = vmatpush1.msra.mxu0 0.0
        %398 = vmatprep.subr.mxu0 0.0
        %399 = vmatpush1.msra.mxu0 0.0
        %400 = vmatprep.subr.mxu0 0.0
        %401 = vmatpush1.msra.mxu0 0.0
        %402 = vmatprep.subr.mxu0 0.0
        %403 = vmatpush1.msra.mxu0 0.0
        %404 = vmatprep.subr.mxu0 0.0
        %405 = vmatpush1.msra.mxu0 0.0
        %406 = vmatprep.subr.mxu0 0.0
        %407 = vmatpush1.msra.mxu0 0.0
        %408 = vmatprep.subr.mxu0 0.0
        %409 = vmatpush1.msra.mxu0 0.0
        %410 = vmatprep.subr.mxu0 0.0
        %411 = vmatpush1.msra.mxu0 0.0
        %412 = vmatprep.subr.mxu0 0.0
        %413 = vmatpush1.msra.mxu0 0.0
        %414 = vmatprep.subr.mxu0 0.0
        %415 = vmatpush1.msra.mxu0 0.0
        %416 = vmatprep.subr.mxu0 0.0
        %417 = vmatpush1.msra.mxu0 0.0
        %418 = vmatprep.subr.mxu0 0.0
        %419 = vmatpush1.msra.mxu0 0.0
        %420 = vmatprep.subr.mxu0 %v388
        %421 = vmatpush1.msra.mxu0 %v386
        %422 = vmatprep.subr.mxu0 0.0
        %423 = vmatpush2.msra.mxu0 0.0
        %424 = vmatprep.subr.mxu0 0.0
        %425 = vmatpush2.msra.mxu0 0.0
        %426 = vmatprep.subr.mxu0 0.0
        %427 = vmatpush2.msra.mxu0 0.0
        %428 = vmatprep.subr.mxu0 0.0
        %429 = vmatpush2.msra.mxu0 0.0
        %430 = vmatprep.subr.mxu0 0.0
        %431 = vmatpush2.msra.mxu0 0.0
        %432 = vmatprep.subr.mxu0 0.0
        %433 = vmatpush2.msra.mxu0 0.0
        %434 = vmatprep.subr.mxu0 0.0
        %435 = vmatpush2.msra.mxu0 0.0
        %436 = vmatprep.subr.mxu0 0.0
        %437 = vmatpush2.msra.mxu0 0.0
        %438 = vmatprep.subr.mxu0 0.0
        %439 = vmatpush2.msra.mxu0 0.0
        %440 = vmatprep.subr.mxu0 0.0
        %441 = vmatpush2.msra.mxu0 0.0
        %442 = vmatprep.subr.mxu0 0.0
        %443 = vmatpush2.msra.mxu0 0.0
        %444 = vmatprep.subr.mxu0 0.0
        %445 = vmatpush2.msra.mxu0 0.0
        %446 = vmatprep.subr.mxu0 0.0
        %447 = vmatpush2.msra.mxu0 0.0
        %448 = vmatprep.subr.mxu0 0.0
        %449 = vmatpush2.msra.mxu0 0.0
        %450 = vmatprep.subr.mxu0 0.0
        %451 = vmatpush2.msra.mxu0 0.0
        %452 = vmatprep.subr.mxu0 0.0
        %453 = vmatpush2.msra.mxu0 0.0
        %454 = vmatprep.mubr.f32.mxu0 0.0
        %455 = vmatmul.mubr.f32.gmra.mxu0 %v374
        %v456 = vpop.f32.mrf.mxu0
        %v457 = vadd.f32 %v348, %v456
        %v458 = vpop.f32.mrf.mxu0
        %v459 = vadd.f32 %v350, %v458
        %460 = vmatprep.mubr.f32.mxu0 0.0
        %461 = vmatmul.mubr.f32.gmra.mxu0 %v377
        %v462 = vpop.f32.mrf.mxu0
        %v463 = vadd.f32 %v354, %v462
        %v464 = vpop.f32.mrf.mxu0
        %v465 = vadd.f32 %v356, %v464
        %466 = vmatprep.mubr.f32.mxu0 0.0
        %467 = vmatmul.mubr.f32.gmra.mxu0 %v380
        %v468 = vpop.f32.mrf.mxu0
        %v469 = vadd.f32 %v360, %v468
        %v470 = vpop.f32.mrf.mxu0
        %v471 = vadd.f32 %v362, %v470
        %472 = vmatprep.mubr.f32.mxu0 0.0
        %473 = vmatmul.mubr.f32.gmra.mxu0 %v383
        %v474 = vpop.f32.mrf.mxu0
        %v475 = vadd.f32 %v366, %v474
        %v476 = vpop.f32.mrf.mxu0
        %v477 = vadd.f32 %v368, %v476
        %478 = vdwg.mxu0
        %v479 = vld [vmem:[%s4] sm:$0xff]
        %v480 = vld [vmem:[%s4 + $0x8] sm:$0xff]
        %v481 = vld [vmem:[%s4 + $0x10] sm:$0xff]
        %v482 = vld [vmem:[%s4 + $0x18] sm:$0xff]
        %484 = vset.pattern.permute.xlu0 0
        %485 = vperm.xlu0 %484, %v479
        %v486 = vpop.permute.xlu0 %485
        %489 = vset.pattern.permute.xlu0 0
        %490 = vperm.xlu0 %489, %v480
        %v491 = vpop.permute.xlu0 %490
        %494 = vset.pattern.permute.xlu0 0
        %495 = vperm.xlu0 %494, %v481
        %v496 = vpop.permute.xlu0 %495
        %499 = vset.pattern.permute.xlu0 0
        %500 = vperm.xlu0 %499, %v482
        %v501 = vpop.permute.xlu0 %500
        %v503 = vadd.f32 %v457, %v486
        %v504 = vadd.f32 %v459, %v486
        %v505 = vadd.f32 %v463, %v491
        %v506 = vadd.f32 %v465, %v491
        %v507 = vadd.f32 %v469, %v496
        %v508 = vadd.f32 %v471, %v496
        %v509 = vadd.f32 %v475, %v501
        %v510 = vadd.f32 %v477, %v501
        %511 = vst [vmem:[%s230] sm:$0xff] %v503
        %512 = vst [vmem:[%s230 + $0x8] sm:$0xff] %v504
        %513 = vst [vmem:[%s230 + $0x10] sm:$0xff] %v505
        %514 = vst [vmem:[%s230 + $0x18] sm:$0xff] %v506
        %515 = vst [vmem:[%s230 + $0x20] sm:$0xff] %v507
        %516 = vst [vmem:[%s230 + $0x28] sm:$0xff] %v508
        %517 = vst [vmem:[%s230 + $0x30] sm:$0xff] %v509
        %518 = vst [vmem:[%s230 + $0x38] sm:$0xff] %v510
        %s519 = sand.u32 %s139, 1
        %s520 = sand.u32 %s139, 1
        %s521 = smul.addr %s520, 64
        %s522 = scalar_lea.vmem [#allocation2], %s521
        // Predicated region
        $region41: #{fno2d_forward.10} parent=39 // pred_check
          %p523 = pneg %p149
        $region42: #{fno2d_forward.10} parent=39 // pred_check_branch
          %525 = sbr.rel (%p523) target = $region44
        $region43: #{fno2d_forward.10} parent=39 // pred_region
          %s526 = smul.u32 2, %s16
          %s527 = smul.addr %s526, 8
          %s528 = scalar_lea.vmem %s5, %s527
          // Predicated region
          $region45: #{fno2d_forward.10} parent=43 // pred_check
            _
          $region46: #{fno2d_forward.10} parent=43 // pred_check_branch
            %530 = sbr.rel (0) target = $region48
          $region47: #{fno2d_forward.10} parent=43 // pred_region
            // Predicated region
            $region49: #{fno2d_forward.10} parent=47 // pred_check
              _
            $region50: #{fno2d_forward.10} parent=47 // pred_check_branch
              %532 = sbr.rel (0) target = $region52
            $region51: #{fno2d_forward.10} parent=47 // pred_region
              loop: start=0, step=1, limit=1
              $region53: #{fno2d_forward.10} parent=51 // loop_pre_header
                _
              $region54: #{fno2d_forward.10} parent=51 // loop_header
                %s534 = sphi 0, %s538
                %p535 = scmp.ge.s32.totalorder %s534, 1
                %s539 = sphi %s522, %s522
                %s540 = sphi %s528, %s528
              $region55: #{fno2d_forward.10} parent=51 // loop_header_branch
                %537 = sbr.rel (%p535) target = $region59
              $region56: #{fno2d_forward.10} parent=51 // loop_body
                %v541 = vld [vmem:[%s539] sm:$0xff]
                %542 = vst [vmem:[%s540] sm:$0xff] %v541
                %v543 = vld [vmem:[%s539 + $0x8] sm:$0xff]
                %544 = vst [vmem:[%s540 + $0x8] sm:$0xff] %v543
                %v545 = vld [vmem:[%s539 + $0x10] sm:$0xff]
                %546 = vst [vmem:[%s540 + $0x20] sm:$0xff] %v545
                %v547 = vld [vmem:[%s539 + $0x18] sm:$0xff]
                %548 = vst [vmem:[%s540 + $0x28] sm:$0xff] %v547
                %v549 = vld [vmem:[%s539 + $0x20] sm:$0xff]
                %550 = vst [vmem:[%s540 + $0x40] sm:$0xff] %v549
                %v551 = vld [vmem:[%s539 + $0x28] sm:$0xff]
                %552 = vst [vmem:[%s540 + $0x48] sm:$0xff] %v551
                %v553 = vld [vmem:[%s539 + $0x30] sm:$0xff]
                %554 = vst [vmem:[%s540 + $0x60] sm:$0xff] %v553
                %v555 = vld [vmem:[%s539 + $0x38] sm:$0xff]
                %556 = vst [vmem:[%s540 + $0x68] sm:$0xff] %v555
              $region57: #{fno2d_forward.10} parent=51 // loop_footer
                %s538 = sadd.s32 1, %s534
              $region58: #{fno2d_forward.10} parent=51 // loop_footer_branch
                %533 = sbr.rel target = $region54
              $region59: #{fno2d_forward.10} parent=51 // loop_exit
                _
            $region52: #{fno2d_forward.10} parent=47 // pred_fallthru
              _
            // Predicated region
            $region60: #{fno2d_forward.10} parent=47 // pred_check
              _
            $region61: #{fno2d_forward.10} parent=47 // pred_check_branch
              %558 = sbr.rel target = $region63
            $region62: #{fno2d_forward.10} parent=47 // pred_region
              _
            $region63: #{fno2d_forward.10} parent=47 // pred_fallthru
              _
          $region48: #{fno2d_forward.10} parent=43 // pred_fallthru
            _
          %559 = vnop
        $region44: #{fno2d_forward.10} parent=39 // pred_fallthru
          _
      $region40: #{fno2d_forward.10} parent=5 // pred_fallthru
        _
      %p560 = scmp.le.s32.totalorder 2, %s11
      // Predicated region
      $region64: #{fno2d_forward.10} parent=5 // pred_check
        %p561 = pneg %p560
      $region65: #{fno2d_forward.10} parent=5 // pred_check_branch
        %563 = sbr.rel (%p561) target = $region67
      $region66: #{fno2d_forward.10} parent=5 // pred_region
        %s564 = ssub.s32 %s11, 2
        // Predicated region
        $region68: #{fno2d_forward.10} parent=66 // pred_check
          %p565 = pneg %p155
        $region69: #{fno2d_forward.10} parent=66 // pred_check_branch
          %567 = sbr.rel (%p565) target = $region71
        $region70: #{fno2d_forward.10} parent=66 // pred_region
          %s568 = sand.u32 %s140, 1
          %s569 = sand.u32 %s140, 1
          %s570 = smul.addr %s569, 64
          %s571 = scalar_lea.vmem [#allocation2], %s570
        $region71: #{fno2d_forward.10} parent=66 // pred_fallthru
          _
      $region67: #{fno2d_forward.10} parent=5 // pred_fallthru
        _
    $region6: #{fno2d_forward.10} parent=1 // loop_footer
      %s15 = sadd.s32 1, %s11
    $region7: #{fno2d_forward.10} parent=1 // loop_footer_branch
      %10 = sbr.rel target = $region3
    $region8: #{fno2d_forward.10} parent=1 // loop_exit
      _

// kernel: reverse.8
$region0: #{reverse.8}
  #allocation0 [shape = 's32[1]{0}', space=sflag, size = 0x4, scoped, tag = 'scoped memory for reverse.8']
  %s0 = inlined_call_operand.vmem [shape: f32[32,2,16,7], index: 0, kind: input, shape index: {}]
  %s1 = inlined_call_operand.vmem [shape: f32[32,2,16,7], index: 1, kind: output, shape index: {}]
  %s2 = scalar_lea.vmem %s0, 96
  %v3 = vld [vmem:[%s2] sm:$0xff]
  %4 = vst [vmem:[%s1] sm:$0xff] %v3
  %s5 = scalar_lea.vmem %s0, 208
  %v6 = vld [vmem:[%s5] sm:$0xff]
  %s7 = scalar_lea.vmem %s1, 112
  %8 = vst [vmem:[%s7] sm:$0xff] %v6
  %s9 = scalar_lea.vmem %s0, 80
  %v10 = vld [vmem:[%s9] sm:$0xff]
  %s11 = scalar_lea.vmem %s1, 16
  %12 = vst [vmem:[%s11] sm:$0xff] %v10
  %s13 = scalar_lea.vmem %s0, 192
  %v14 = vld [vmem:[%s13] sm:$0xff]
  %s15 = scalar_lea.vmem %s1, 128
  %16 = vst [vmem:[%s15] sm:$0xff] %v14
  %s17 = scalar_lea.vmem %s0, 64
  %v18 = vld [vmem:[%s17] sm:$0xff]
  %s19 = scalar_lea.vmem %s1, 32
  %20 = vst [vmem:[%s19] sm:$0xff] %v18
  %s21 = scalar_lea.vmem %s0, 176
  %v22 = vld [vmem:[%s21] sm:$0xff]
  %s23 = scalar_lea.vmem %s1, 144
  %24 = vst [vmem:[%s23] sm:$0xff] %v22
  %s25 = scalar_lea.vmem %s0, 48
  %v26 = vld [vmem:[%s25] sm:$0xff]
  %s27 = scalar_lea.vmem %s1, 48
  %28 = vst [vmem:[%s27] sm:$0xff] %v26
  %s29 = scalar_lea.vmem %s0, 160
  %v30 = vld [vmem:[%s29] sm:$0xff]
  %s31 = scalar_lea.vmem %s1, 160
  %32 = vst [vmem:[%s31] sm:$0xff] %v30
  %s33 = scalar_lea.vmem %s0, 32
  %v34 = vld [vmem:[%s33] sm:$0xff]
  %s35 = scalar_lea.vmem %s1, 64
  %36 = vst [vmem:[%s35] sm:$0xff] %v34
  %s37 = scalar_lea.vmem %s0, 144
  %v38 = vld [vmem:[%s37] sm:$0xff]
  %s39 = scalar_lea.vmem %s1, 176
  %40 = vst [vmem:[%s39] sm:$0xff] %v38
  %s41 = scalar_lea.vmem %s0, 16
  %v42 = vld [vmem:[%s41] sm:$0xff]
  %s43 = scalar_lea.vmem %s1, 80
  %44 = vst [vmem:[%s43] sm:$0xff] %v42
  %s45 = scalar_lea.vmem %s0, 128
  %v46 = vld [vmem:[%s45] sm:$0xff]
  %s47 = scalar_lea.vmem %s1, 192
  %48 = vst [vmem:[%s47] sm:$0xff] %v46
  %v49 = vld [vmem:[%s0] sm:$0xff]
  %s50 = scalar_lea.vmem %s1, 96
  %51 = vst [vmem:[%s50] sm:$0xff] %v49
  %s52 = scalar_lea.vmem %s0, 112
  %v53 = vld [vmem:[%s52] sm:$0xff]
  %s54 = scalar_lea.vmem %s1, 208
  %55 = vst [vmem:[%s54] sm:$0xff] %v53
  %s56 = scalar_lea.vmem %s0, 104
  %v57 = vld [vmem:[%s56] sm:$0xff]
  %s58 = scalar_lea.vmem %s1, 8
  %59 = vst [vmem:[%s58] sm:$0xff] %v57
  %s60 = scalar_lea.vmem %s0, 216
  %v61 = vld [vmem:[%s60] sm:$0xff]
  %s62 = scalar_lea.vmem %s1, 120
  %63 = vst [vmem:[%s62] sm:$0xff] %v61
  %s64 = scalar_lea.vmem %s0, 88
  %v65 = vld [vmem:[%s64] sm:$0xff]
  %s66 = scalar_lea.vmem %s1, 24
  %67 = vst [vmem:[%s66] sm:$0xff] %v65
  %s68 = scalar_lea.vmem %s0, 200
  %v69 = vld [vmem:[%s68] sm:$0xff]
  %s70 = scalar_lea.vmem %s1, 136
  %71 = vst [vmem:[%s70] sm:$0xff] %v69
  %s72 = scalar_lea.vmem %s0, 72
  %v73 = vld [vmem:[%s72] sm:$0xff]
  %s74 = scalar_lea.vmem %s1, 40
  %75 = vst [vmem:[%s74] sm:$0xff] %v73
  %s76 = scalar_lea.vmem %s0, 184
  %v77 = vld [vmem:[%s76] sm:$0xff]
  %s78 = scalar_lea.vmem %s1, 152
  %79 = vst [vmem:[%s78] sm:$0xff] %v77
  %s80 = scalar_lea.vmem %s0, 56
  %v81 = vld [vmem:[%s80] sm:$0xff]
  %s82 = scalar_lea.vmem %s1, 56
  %83 = vst [vmem:[%s82] sm:$0xff] %v81
  %s84 = scalar_lea.vmem %s0, 168
  %v85 = vld [vmem:[%s84] sm:$0xff]
  %s86 = scalar_lea.vmem %s1, 168
  %87 = vst [vmem:[%s86] sm:$0xff] %v85
  %s88 = scalar_lea.vmem %s0, 40
  %v89 = vld [vmem:[%s88] sm:$0xff]
  %s90 = scalar_lea.vmem %s1, 72
  %91 = vst [vmem:[%s90] sm:$0xff] %v89
  %s92 = scalar_lea.vmem %s0, 152
  %v93 = vld [vmem:[%s92] sm:$0xff]
  %s94 = scalar_lea.vmem %s1, 184
  %95 = vst [vmem:[%s94] sm:$0xff] %v93
  %s96 = scalar_lea.vmem %s0, 24
  %v97 = vld [vmem:[%s96] sm:$0xff]
  %s98 = scalar_lea.vmem %s1, 88
  %99 = vst [vmem:[%s98] sm:$0xff] %v97
  %s100 = scalar_lea.vmem %s0, 136
  %v101 = vld [vmem:[%s100] sm:$0xff]
  %s102 = scalar_lea.vmem %s1, 200
  %103 = vst [vmem:[%s102] sm:$0xff] %v101
  %s104 = scalar_lea.vmem %s0, 8
  %v105 = vld [vmem:[%s104] sm:$0xff]
  %s106 = scalar_lea.vmem %s1, 104
  %107 = vst [vmem:[%s106] sm:$0xff] %v105
  %s108 = scalar_lea.vmem %s0, 120
  %v109 = vld [vmem:[%s108] sm:$0xff]
  %s110 = scalar_lea.vmem %s1, 216
  %111 = vst [vmem:[%s110] sm:$0xff] %v109

// kernel: fno2d_forward.11
$region0: #{fno2d_forward.11}
  #allocation0 [shape = 'u32[]', space=smem, size = 0x4, offset = 0x4, fixed_abs, tag = 'smem constant byte address 0x4 - core index']
  #allocation1 [shape = 'u32[144,128]{1,0:T(1,128)}', space=vmem, size = 0x12000, scoped, tag = 'internal scratch']
  %s0 = inlined_call_operand.vmem [shape: f32[32,4,32], index: 0, kind: input, shape index: {}]
  %s1 = inlined_call_operand.vmem [shape: f32[32,32,32], index: 1, kind: input, shape index: {}]
  %s2 = inlined_call_operand.vmem [shape: f32[32,32,32], index: 2, kind: input, shape index: {}]
  %s3 = inlined_call_operand.vmem [shape: f32[32,2,32], index: 3, kind: output, shape index: {0}]
  %s4 = inlined_call_operand.vmem [shape: f32[32,2,32], index: 4, kind: output, shape index: {1}]
  %5 = xla_tuple %s3, %s4
  %s6 = sld [smem:[#allocation0]]
  $region53: #{fno2d_forward.11} parent=0
    _
  %s8 = ssub.s32 1, %s6
  %s9 = scalar_select 0, %s8, %s6
  loop: start=0, step=1, limit=4
  $region2: #{fno2d_forward.11} parent=0 // loop_pre_header
    _
  $region3: #{fno2d_forward.11} parent=0 // loop_header
    %s11 = sphi 0, %s15
    %p12 = scmp.ge.s32.totalorder %s11, 4
    %s21 = sphi 0, %s23
    %s24 = sphi 0, %s21
    %s25 = sphi 0, %s24
    %s41 = sphi 0, %s25
    %s47 = sphi 0, %s49
    %s50 = sphi 0, %s47
    %s51 = sphi 0, %s50
    %s67 = sphi 0, %s51
    %s73 = sphi 0, %s75
    %s76 = sphi 0, %s73
    %s77 = sphi 0, %s76
    %s93 = sphi 0, %s77
    %s99 = sphi 0, %s101
    %s102 = sphi 0, %s99
    %s103 = sphi 0, %s102
    %s119 = sphi 0, %s103
    %s125 = sphi 0, %s127
    %s128 = sphi 0, %s125
    %s129 = sphi 0, %s128
    %s145 = sphi 0, %s129
  $region4: #{fno2d_forward.11} parent=0 // loop_header_branch
    %14 = sbr.rel (%p12) target = $region8
  $region5: #{fno2d_forward.11} parent=0 // loop_body
    %s16 = ssub.s32 %s11, 1
    %s17 = ssub.s32 %s11, 2
    %s18 = sadd.s32 %s11, 1
    %s19 = ssub.s32 %s11, %s18
    %p20 = scmp.eq.s32.totalorder %s19, 0
    %s22 = sadd.s32 %s21, 1
    %s23 = scalar_select %p20, %s21, %s22
    %p26 = pneg %p20
    %p27 = scmp.eq.s32.totalorder %s11, 1
    %p28 = por %p26, %p27
    %p29 = scmp.ne.s32.totalorder %s21, %s24
    %p30 = scmp.eq.s32.totalorder %s11, 0
    %p31 = por %p29, %p30
    %p32 = scmp.ne.s32.totalorder %s21, %s24
    %p33 = scmp.eq.s32.totalorder %s16, 1
    %p34 = por %p32, %p33
    %p35 = scmp.ne.s32.totalorder %s24, %s25
    %p36 = scmp.eq.s32.totalorder %s16, 0
    %p37 = por %p35, %p36
    %p38 = scmp.ne.s32.totalorder %s24, %s25
    %p39 = scmp.eq.s32.totalorder %s17, 1
    %p40 = por %p38, %p39
    %p42 = scmp.ne.s32.totalorder %s25, %s41
    %p43 = scmp.eq.s32.totalorder %s17, 0
    %p44 = por %p42, %p43
    %s45 = ssub.s32 %s11, %s18
    %p46 = scmp.eq.s32.totalorder %s45, 0
    %s48 = sadd.s32 %s47, 1
    %s49 = scalar_select %p46, %s47, %s48
    %p52 = pneg %p46
    %p53 = scmp.eq.s32.totalorder %s11, 1
    %p54 = por %p52, %p53
    %p55 = scmp.ne.s32.totalorder %s47, %s50
    %p56 = scmp.eq.s32.totalorder %s11, 0
    %p57 = por %p55, %p56
    %p58 = scmp.ne.s32.totalorder %s47, %s50
    %p59 = scmp.eq.s32.totalorder %s16, 1
    %p60 = por %p58, %p59
    %p61 = scmp.ne.s32.totalorder %s50, %s51
    %p62 = scmp.eq.s32.totalorder %s16, 0
    %p63 = por %p61, %p62
    %p64 = scmp.ne.s32.totalorder %s50, %s51
    %p65 = scmp.eq.s32.totalorder %s17, 1
    %p66 = por %p64, %p65
    %p68 = scmp.ne.s32.totalorder %s51, %s67
    %p69 = scmp.eq.s32.totalorder %s17, 0
    %p70 = por %p68, %p69
    %s71 = ssub.s32 %s11, %s18
    %p72 = scmp.eq.s32.totalorder %s71, 0
    %s74 = sadd.s32 %s73, 1
    %s75 = scalar_select %p72, %s73, %s74
    %p78 = pneg %p72
    %p79 = scmp.eq.s32.totalorder %s11, 1
    %p80 = por %p78, %p79
    %p81 = scmp.ne.s32.totalorder %s73, %s76
    %p82 = scmp.eq.s32.totalorder %s11, 0
    %p83 = por %p81, %p82
    %p84 = scmp.ne.s32.totalorder %s73, %s76
    %p85 = scmp.eq.s32.totalorder %s16, 1
    %p86 = por %p84, %p85
    %p87 = scmp.ne.s32.totalorder %s76, %s77
    %p88 = scmp.eq.s32.totalorder %s16, 0
    %p89 = por %p87, %p88
    %p90 = scmp.ne.s32.totalorder %s76, %s77
    %p91 = scmp.eq.s32.totalorder %s17, 1
    %p92 = por %p90, %p91
    %p94 = scmp.ne.s32.totalorder %s77, %s93
    %p95 = scmp.eq.s32.totalorder %s17, 0
    %p96 = por %p94, %p95
    %s97 = ssub.s32 %s11, %s18
    %p98 = scmp.eq.s32.totalorder %s97, 0
    %s100 = sadd.s32 %s99, 1
    %s101 = scalar_select %p98, %s99, %s100
    %p104 = pneg %p98
    %p105 = scmp.eq.s32.totalorder %s11, 1
    %p106 = por %p104, %p105
    %p107 = scmp.ne.s32.totalorder %s99, %s102
    %p108 = scmp.eq.s32.totalorder %s11, 0
    %p109 = por %p107, %p108
    %p110 = scmp.ne.s32.totalorder %s99, %s102
    %p111 = scmp.eq.s32.totalorder %s16, 1
    %p112 = por %p110, %p111
    %p113 = scmp.ne.s32.totalorder %s102, %s103
    %p114 = scmp.eq.s32.totalorder %s16, 0
    %p115 = por %p113, %p114
    %p116 = scmp.ne.s32.totalorder %s102, %s103
    %p117 = scmp.eq.s32.totalorder %s17, 1
    %p118 = por %p116, %p117
    %p120 = scmp.ne.s32.totalorder %s103, %s119
    %p121 = scmp.eq.s32.totalorder %s17, 0
    %p122 = por %p120, %p121
    %s123 = ssub.s32 %s11, %s18
    %p124 = scmp.eq.s32.totalorder %s123, 0
    %s126 = sadd.s32 %s125, 1
    %s127 = scalar_select %p124, %s125, %s126
    %p130 = pneg %p124
    %p131 = scmp.eq.s32.totalorder %s11, 1
    %p132 = por %p130, %p131
    %p133 = scmp.ne.s32.totalorder %s125, %s128
    %p134 = scmp.eq.s32.totalorder %s11, 0
    %p135 = por %p133, %p134
    %p136 = scmp.ne.s32.totalorder %s125, %s128
    %p137 = scmp.eq.s32.totalorder %s16, 1
    %p138 = por %p136, %p137
    %p139 = scmp.ne.s32.totalorder %s128, %s129
    %p140 = scmp.eq.s32.totalorder %s16, 0
    %p141 = por %p139, %p140
    %p142 = scmp.ne.s32.totalorder %s128, %s129
    %p143 = scmp.eq.s32.totalorder %s17, 1
    %p144 = por %p142, %p143
    %p146 = scmp.ne.s32.totalorder %s129, %s145
    %p147 = scmp.eq.s32.totalorder %s17, 0
    %p148 = por %p146, %p147
    %p149 = scmp.le.s32.totalorder 1, %s11
    %p150 = scmp.lt.s32.totalorder %s11, 3
    %p151 = pnand %p149, %p150
    %p152 = pneg %p151
    // Predicated region
    $region9: #{fno2d_forward.11} parent=5 // pred_check
      _
    $region10: #{fno2d_forward.11} parent=5 // pred_check_branch
      %154 = sbr.rel (%p151) target = $region12
    $region11: #{fno2d_forward.11} parent=5 // pred_region
      %s155 = ssub.s32 %s11, 1
    $region12: #{fno2d_forward.11} parent=5 // pred_fallthru
      _
    %p156 = scmp.lt.s32.totalorder %s11, 2
    // Predicated region
    $region13: #{fno2d_forward.11} parent=5 // pred_check
      %p157 = pneg %p156
    $region14: #{fno2d_forward.11} parent=5 // pred_check_branch
      %159 = sbr.rel (%p157) target = $region16
    $region15: #{fno2d_forward.11} parent=5 // pred_region
      // Predicated region
      $region17: #{fno2d_forward.11} parent=15 // pred_check
        %p160 = pneg %p31
      $region18: #{fno2d_forward.11} parent=15 // pred_check_branch
        %162 = sbr.rel (%p160) target = $region20
      $region19: #{fno2d_forward.11} parent=15 // pred_region
        %s163 = smul.u32 16, %s11
        %p164 = scmp.lt.s32.totalorder %s163, 31
        %s165 = scalar_select %p164, %s163, 31
        %s166 = smul.addr %s165, 4
        %s167 = scalar_lea.vmem %s0, %s166
        %s168 = smul.u32 16, %s11
      $region20: #{fno2d_forward.11} parent=15 // pred_fallthru
        _
      // Predicated region
      $region21: #{fno2d_forward.11} parent=15 // pred_check
        %p169 = pneg %p57
      $region22: #{fno2d_forward.11} parent=15 // pred_check_branch
        %171 = sbr.rel (%p169) target = $region24
      $region23: #{fno2d_forward.11} parent=15 // pred_region
        %s172 = smul.u32 16, %s11
        %p173 = scmp.lt.s32.totalorder %s172, 31
        %s174 = scalar_select %p173, %s172, 31
        %s175 = smul.addr %s174, 4
        %s176 = smul.addr %s175, 8
        %s177 = scalar_lea.vmem %s1, %s176
        %s178 = smul.u32 16, %s11
      $region24: #{fno2d_forward.11} parent=15 // pred_fallthru
        _
      // Predicated region
      $region25: #{fno2d_forward.11} parent=15 // pred_check
        %p179 = pneg %p83
      $region26: #{fno2d_forward.11} parent=15 // pred_check_branch
        %181 = sbr.rel (%p179) target = $region28
      $region27: #{fno2d_forward.11} parent=15 // pred_region
        %s182 = smul.u32 16, %s11
        %p183 = scmp.lt.s32.totalorder %s182, 31
        %s184 = scalar_select %p183, %s182, 31
        %s185 = smul.addr %s184, 4
        %s186 = smul.addr %s185, 8
        %s187 = scalar_lea.vmem %s2, %s186
        %s188 = smul.u32 16, %s11
      $region28: #{fno2d_forward.11} parent=15 // pred_fallthru
        _
    $region16: #{fno2d_forward.11} parent=5 // pred_fallthru
      _
    %p189 = scmp.le.s32.totalorder 1, %s11
    %p190 = scmp.lt.s32.totalorder %s11, 3
    %p191 = pnand %p189, %p190
    %p192 = pneg %p191
    // Predicated region
    $region29: #{fno2d_forward.11} parent=5 // pred_check
      _
    $region30: #{fno2d_forward.11} parent=5 // pred_check_branch
      %194 = sbr.rel (%p191) target = $region32
    $region31: #{fno2d_forward.11} parent=5 // pred_region
      %s195 = ssub.s32 %s11, 1
      %s196 = smul.u32 16, %s16
      %p197 = scmp.lt.s32.totalorder %s196, 31
      %s198 = scalar_select %p197, %s196, 31
      %s199 = smul.addr %s198, 4
      %s200 = scalar_lea.vmem %s0, %s199
      %p201 = pneg %p37
      %p202 = pneg %p34
      %s203 = smul.u32 16, %s16
      %p204 = scmp.lt.s32.totalorder %s203, 31
      %s205 = scalar_select %p204, %s203, 31
      %s206 = smul.addr %s205, 4
      %s207 = smul.addr %s206, 8
      %s208 = scalar_lea.vmem %s1, %s207
      %p209 = pneg %p63
      %p210 = pneg %p60
      %s211 = smul.u32 16, %s16
      %p212 = scmp.lt.s32.totalorder %s211, 31
      %s213 = scalar_select %p212, %s211, 31
      %s214 = smul.addr %s213, 4
      %s215 = smul.addr %s214, 8
      %s216 = scalar_lea.vmem %s2, %s215
      %p217 = pneg %p89
      %p218 = pneg %p86
      %p219 = pneg %p115
      %p220 = pneg %p112
      %s221 = smul.u32 16, %s16
      %p222 = scmp.lt.s32.totalorder %s221, 31
      %s223 = scalar_select %p222, %s221, 31
      %s224 = smul.addr %s223, 2
      %s225 = scalar_lea.vmem %s3, %s224
      %p226 = pneg %p141
      %p227 = pneg %p138
      %s228 = smul.u32 16, %s16
      %p229 = scmp.lt.s32.totalorder %s228, 31
      %s230 = scalar_select %p229, %s228, 31
      %s231 = smul.addr %s230, 2
      %s232 = scalar_lea.vmem %s4, %s231
      %s233 = smul.u32 16, %s16
      %p234 = scmp.lt.s32.totalorder %s233, 31
      %s235 = scalar_select %p234, %s233, 31
      %s236 = smul.addr %s235, 4
      %s237 = scalar_lea.vmem %s0, %s236
      %s238 = smul.u32 16, %s16
      %s239 = smul.u32 16, %s16
      %p240 = scmp.lt.s32.totalorder %s239, 31
      %s241 = scalar_select %p240, %s239, 31
      %s242 = smul.addr %s241, 4
      %s243 = smul.addr %s242, 8
      %s244 = scalar_lea.vmem %s1, %s243
      %s245 = smul.u32 16, %s16
      %s246 = smul.u32 16, %s16
      %p247 = scmp.lt.s32.totalorder %s246, 31
      %s248 = scalar_select %p247, %s246, 31
      %s249 = smul.addr %s248, 4
      %s250 = smul.addr %s249, 8
      %s251 = scalar_lea.vmem %s2, %s250
      %s252 = smul.u32 16, %s16
      %s253 = smul.u32 16, %s16
      %p254 = scmp.lt.s32.totalorder %s253, 31
      %s255 = scalar_select %p254, %s253, 31
      %s256 = smul.addr %s255, 2
      %s257 = scalar_lea.vmem %s3, %s256
      %s258 = smul.u32 16, %s16
      %s259 = smul.u32 16, %s16
      %p260 = scmp.lt.s32.totalorder %s259, 31
      %s261 = scalar_select %p260, %s259, 31
      %s262 = smul.addr %s261, 2
      %s263 = scalar_lea.vmem %s4, %s262
      %s264 = smul.u32 16, %s16
      %v265 = vld [vmem:[%s237] sm:$0xf]
      %v266 = vld [vmem:[%s237 + $0x4] sm:$0xf]
      %v267 = vld [vmem:[%s237 + $0x8] sm:$0xf]
      %v268 = vld [vmem:[%s237 + $0xc] sm:$0xf]
      %v269 = vld [vmem:[%s237 + $0x10] sm:$0xf]
      %v270 = vld [vmem:[%s237 + $0x14] sm:$0xf]
      %v271 = vld [vmem:[%s237 + $0x18] sm:$0xf]
      %v272 = vld [vmem:[%s237 + $0x1c] sm:$0xf]
      %v273 = vld [vmem:[%s237 + $0x20] sm:$0xf]
      %v274 = vld [vmem:[%s237 + $0x24] sm:$0xf]
      %v275 = vld [vmem:[%s237 + $0x28] sm:$0xf]
      %v276 = vld [vmem:[%s237 + $0x2c] sm:$0xf]
      %v277 = vld [vmem:[%s237 + $0x30] sm:$0xf]
      %v278 = vld [vmem:[%s237 + $0x34] sm:$0xf]
      %v279 = vld [vmem:[%s237 + $0x38] sm:$0xf]
      %v280 = vld [vmem:[%s237 + $0x3c] sm:$0xf]
      %v281 = vld [vmem:[%s244] sm:$0xff]
      %v282 = vld [vmem:[%s244 + $0x8] sm:$0xff]
      %v283 = vld [vmem:[%s244 + $0x10] sm:$0xff]
      %v284 = vld [vmem:[%s244 + $0x18] sm:$0xff]
      %v285 = vld [vmem:[%s244 + $0x20] sm:$0xff]
      %v286 = vld [vmem:[%s244 + $0x28] sm:$0xff]
      %v287 = vld [vmem:[%s244 + $0x30] sm:$0xff]
      %v288 = vld [vmem:[%s244 + $0x38] sm:$0xff]
      %v289 = vld [vmem:[%s244 + $0x40] sm:$0xff]
      %v290 = vld [vmem:[%s244 + $0x48] sm:$0xff]
      %v291 = vld [vmem:[%s244 + $0x50] sm:$0xff]
      %v292 = vld [vmem:[%s244 + $0x58] sm:$0xff]
      %v293 = vld [vmem:[%s244 + $0x60] sm:$0xff]
      %v294 = vld [vmem:[%s244 + $0x68] sm:$0xff]
      %v295 = vld [vmem:[%s244 + $0x70] sm:$0xff]
      %v296 = vld [vmem:[%s244 + $0x78] sm:$0xff]
      %v297 = vld [vmem:[%s244 + $0x80] sm:$0xff]
      %v298 = vld [vmem:[%s244 + $0x88] sm:$0xff]
      %v299 = vld [vmem:[%s244 + $0x90] sm:$0xff]
      %v300 = vld [vmem:[%s244 + $0x98] sm:$0xff]
      %v301 = vld [vmem:[%s244 + $0xa0] sm:$0xff]
      %v302 = vld [vmem:[%s244 + $0xa8] sm:$0xff]
      %v303 = vld [vmem:[%s244 + $0xb0] sm:$0xff]
      %v304 = vld [vmem:[%s244 + $0xb8] sm:$0xff]
      %v305 = vld [vmem:[%s244 + $0xc0] sm:$0xff]
      %v306 = vld [vmem:[%s244 + $0xc8] sm:$0xff]
      %v307 = vld [vmem:[%s244 + $0xd0] sm:$0xff]
      %v308 = vld [vmem:[%s244 + $0xd8] sm:$0xff]
      %v309 = vld [vmem:[%s244 + $0xe0] sm:$0xff]
      %v310 = vld [vmem:[%s244 + $0xe8] sm:$0xff]
      %v311 = vld [vmem:[%s244 + $0xf0] sm:$0xff]
      %v312 = vld [vmem:[%s244 + $0xf8] sm:$0xff]
      %v313 = vld [vmem:[%s244 + $0x100] sm:$0xff]
      %v314 = vld [vmem:[%s244 + $0x108] sm:$0xff]
      %v315 = vld [vmem:[%s244 + $0x110] sm:$0xff]
      %v316 = vld [vmem:[%s244 + $0x118] sm:$0xff]
      %v317 = vld [vmem:[%s244 + $0x120] sm:$0xff]
      %v318 = vld [vmem:[%s244 + $0x128] sm:$0xff]
      %v319 = vld [vmem:[%s244 + $0x130] sm:$0xff]
      %v320 = vld [vmem:[%s244 + $0x138] sm:$0xff]
      %v321 = vld [vmem:[%s244 + $0x140] sm:$0xff]
      %v322 = vld [vmem:[%s244 + $0x148] sm:$0xff]
      %v323 = vld [vmem:[%s244 + $0x150] sm:$0xff]
      %v324 = vld [vmem:[%s244 + $0x158] sm:$0xff]
      %v325 = vld [vmem:[%s244 + $0x160] sm:$0xff]
      %v326 = vld [vmem:[%s244 + $0x168] sm:$0xff]
      %v327 = vld [vmem:[%s244 + $0x170] sm:$0xff]
      %v328 = vld [vmem:[%s244 + $0x178] sm:$0xff]
      %v329 = vld [vmem:[%s244 + $0x180] sm:$0xff]
      %v330 = vld [vmem:[%s244 + $0x188] sm:$0xff]
      %v331 = vld [vmem:[%s244 + $0x190] sm:$0xff]
      %v332 = vld [vmem:[%s244 + $0x198] sm:$0xff]
      %v333 = vld [vmem:[%s244 + $0x1a0] sm:$0xff]
      %v334 = vld [vmem:[%s244 + $0x1a8] sm:$0xff]
      %v335 = vld [vmem:[%s244 + $0x1b0] sm:$0xff]
      %v336 = vld [vmem:[%s244 + $0x1b8] sm:$0xff]
      %v337 = vld [vmem:[%s244 + $0x1c0] sm:$0xff]
      %v338 = vld [vmem:[%s244 + $0x1c8] sm:$0xff]
      %v339 = vld [vmem:[%s244 + $0x1d0] sm:$0xff]
      %v340 = vld [vmem:[%s244 + $0x1d8] sm:$0xff]
      %v341 = vld [vmem:[%s244 + $0x1e0] sm:$0xff]
      %v342 = vld [vmem:[%s244 + $0x1e8] sm:$0xff]
      %v343 = vld [vmem:[%s244 + $0x1f0] sm:$0xff]
      %v344 = vld [vmem:[%s244 + $0x1f8] sm:$0xff]
      %vm345 = vcmask 261120
      %v347 = vsel %vm345, %v265, 0
      %349 = vmatprep.subr.mxu0 0.0
      %350 = vmatpush1.msra.mxu0 0.0
      %351 = vmatprep.subr.mxu0 0.0
      %352 = vmatpush1.msra.mxu0 0.0
      %353 = vmatprep.subr.mxu0 0.0
      %354 = vmatpush1.msra.mxu0 0.0
      %355 = vmatprep.subr.mxu0 0.0
      %356 = vmatpush1.msra.mxu0 0.0
      %357 = vmatprep.subr.mxu0 0.0
      %358 = vmatpush1.msra.mxu0 0.0
      %359 = vmatprep.subr.mxu0 0.0
      %360 = vmatpush1.msra.mxu0 0.0
      %361 = vmatprep.subr.mxu0 0.0
      %362 = vmatpush1.msra.mxu0 0.0
      %363 = vmatprep.subr.mxu0 0.0
      %364 = vmatpush1.msra.mxu0 0.0
      %365 = vmatprep.subr.mxu0 0.0
      %366 = vmatpush1.msra.mxu0 0.0
      %367 = vmatprep.subr.mxu0 0.0
      %368 = vmatpush1.msra.mxu0 0.0
      %369 = vmatprep.subr.mxu0 0.0
      %370 = vmatpush1.msra.mxu0 0.0
      %371 = vmatprep.subr.mxu0 0.0
      %372 = vmatpush1.msra.mxu0 0.0
      %373 = vmatprep.subr.mxu0 0.0
      %374 = vmatpush1.msra.mxu0 %v284
      %375 = vmatprep.subr.mxu0 0.0
      %376 = vmatpush1.msra.mxu0 %v283
      %377 = vmatprep.subr.mxu0 0.0
      %378 = vmatpush1.msra.mxu0 %v282
      %379 = vmatprep.subr.mxu0 0.0
      %380 = vmatpush1.msra.mxu0 %v281
      %381 = vmatprep.subr.mxu0 0.0
      %382 = vmatpush2.msra.mxu0 0.0
      %383 = vmatprep.subr.mxu0 0.0
      %384 = vmatpush2.msra.mxu0 0.0
      %385 = vmatprep.subr.mxu0 0.0
      %386 = vmatpush2.msra.mxu0 0.0
      %387 = vmatprep.subr.mxu0 0.0
      %388 = vmatpush2.msra.mxu0 0.0
      %389 = vmatprep.subr.mxu0 0.0
      %390 = vmatpush2.msra.mxu0 0.0
      %391 = vmatprep.subr.mxu0 0.0
      %392 = vmatpush2.msra.mxu0 0.0
      %393 = vmatprep.subr.mxu0 0.0
      %394 = vmatpush2.msra.mxu0 0.0
      %395 = vmatprep.subr.mxu0 0.0
      %396 = vmatpush2.msra.mxu0 0.0
      %397 = vmatprep.subr.mxu0 0.0
      %398 = vmatpush2.msra.mxu0 0.0
      %399 = vmatprep.subr.mxu0 0.0
      %400 = vmatpush2.msra.mxu0 0.0
      %401 = vmatprep.subr.mxu0 0.0
      %402 = vmatpush2.msra.mxu0 0.0
      %403 = vmatprep.subr.mxu0 0.0
      %404 = vmatpush2.msra.mxu0 0.0
      %405 = vmatprep.subr.mxu0 0.0
      %406 = vmatpush2.msra.mxu0 0.0
      %407 = vmatprep.subr.mxu0 0.0
      %408 = vmatpush2.msra.mxu0 0.0
      %409 = vmatprep.subr.mxu0 0.0
      %410 = vmatpush2.msra.mxu0 0.0
      %411 = vmatprep.subr.mxu0 0.0
      %412 = vmatpush2.msra.mxu0 0.0
      %413 = vmatprep.mubr.f32.mxu0 0.0
      %414 = vmatmul.mubr.f32.gmra.mxu0 %v347
      %v415 = vpop.f32.mrf.mxu0
      %v416 = vadd.f32 0.0, %v415
      %v417 = vpop.f32.mrf.mxu0
      %418 = vdwg.mxu0
      %v420 = vsel %vm345, %v266, 0
      %422 = vmatprep.subr.mxu0 0.0
      %423 = vmatpush1.msra.mxu0 0.0
      %424 = vmatprep.subr.mxu0 0.0
      %425 = vmatpush1.msra.mxu0 0.0
      %426 = vmatprep.subr.mxu0 0.0
      %427 = vmatpush1.msra.mxu0 0.0
      %428 = vmatprep.subr.mxu0 0.0
      %429 = vmatpush1.msra.mxu0 0.0
      %430 = vmatprep.subr.mxu0 0.0
      %431 = vmatpush1.msra.mxu0 0.0
      %432 = vmatprep.subr.mxu0 0.0
      %433 = vmatpush1.msra.mxu0 0.0
      %434 = vmatprep.subr.mxu0 0.0
      %435 = vmatpush1.msra.mxu0 0.0
      %436 = vmatprep.subr.mxu0 0.0
      %437 = vmatpush1.msra.mxu0 0.0
      %438 = vmatprep.subr.mxu0 0.0
      %439 = vmatpush1.msra.mxu0 0.0
      %440 = vmatprep.subr.mxu0 0.0
      %441 = vmatpush1.msra.mxu0 0.0
      %442 = vmatprep.subr.mxu0 0.0
      %443 = vmatpush1.msra.mxu0 0.0
      %444 = vmatprep.subr.mxu0 0.0
      %445 = vmatpush1.msra.mxu0 0.0
      %446 = vmatprep.subr.mxu0 0.0
      %447 = vmatpush1.msra.mxu0 %v288
      %448 = vmatprep.subr.mxu0 0.0
      %449 = vmatpush1.msra.mxu0 %v287
      %450 = vmatprep.subr.mxu0 0.0
      %451 = vmatpush1.msra.mxu0 %v286
      %452 = vmatprep.subr.mxu0 0.0
      %453 = vmatpush1.msra.mxu0 %v285
      %454 = vmatprep.subr.mxu0 0.0
      %455 = vmatpush2.msra.mxu0 0.0
      %456 = vmatprep.subr.mxu0 0.0
      %457 = vmatpush2.msra.mxu0 0.0
      %458 = vmatprep.subr.mxu0 0.0
      %459 = vmatpush2.msra.mxu0 0.0
      %460 = vmatprep.subr.mxu0 0.0
      %461 = vmatpush2.msra.mxu0 0.0
      %462 = vmatprep.subr.mxu0 0.0
      %463 = vmatpush2.msra.mxu0 0.0
      %464 = vmatprep.subr.mxu0 0.0
      %465 = vmatpush2.msra.mxu0 0.0
      %466 = vmatprep.subr.mxu0 0.0
      %467 = vmatpush2.msra.mxu0 0.0
      %468 = vmatprep.subr.mxu0 0.0
      %469 = vmatpush2.msra.mxu0 0.0
      %470 = vmatprep.subr.mxu0 0.0
      %471 = vmatpush2.msra.mxu0 0.0
      %472 = vmatprep.subr.mxu0 0.0
      %473 = vmatpush2.msra.mxu0 0.0
      %474 = vmatprep.subr.mxu0 0.0
      %475 = vmatpush2.msra.mxu0 0.0
      %476 = vmatprep.subr.mxu0 0.0
      %477 = vmatpush2.msra.mxu0 0.0
      %478 = vmatprep.subr.mxu0 0.0
      %479 = vmatpush2.msra.mxu0 0.0
      %480 = vmatprep.subr.mxu0 0.0
      %481 = vmatpush2.msra.mxu0 0.0
      %482 = vmatprep.subr.mxu0 0.0
      %483 = vmatpush2.msra.mxu0 0.0
      %484 = vmatprep.subr.mxu0 0.0
      %485 = vmatpush2.msra.mxu0 0.0
      %486 = vmatprep.mubr.f32.mxu0 0.0
      %487 = vmatmul.mubr.f32.gmra.mxu0 %v420
      %v488 = vpop.f32.mrf.mxu0
      %v489 = vadd.f32 0.0, %v488
      %v490 = vpop.f32.mrf.mxu0
      %491 = vdwg.mxu0
      %v493 = vsel %vm345, %v267, 0
      %495 = vmatprep.subr.mxu0 0.0
      %496 = vmatpush1.msra.mxu0 0.0
      %497 = vmatprep.subr.mxu0 0.0
      %498 = vmatpush1.msra.mxu0 0.0
      %499 = vmatprep.subr.mxu0 0.0
      %500 = vmatpush1.msra.mxu0 0.0
      %501 = vmatprep.subr.mxu0 0.0
      %502 = vmatpush1.msra.mxu0 0.0
      %503 = vmatprep.subr.mxu0 0.0
      %504 = vmatpush1.msra.mxu0 0.0
      %505 = vmatprep.subr.mxu0 0.0
      %506 = vmatpush1.msra.mxu0 0.0
      %507 = vmatprep.subr.mxu0 0.0
      %508 = vmatpush1.msra.mxu0 0.0
      %509 = vmatprep.subr.mxu0 0.0
      %510 = vmatpush1.msra.mxu0 0.0
      %511 = vmatprep.subr.mxu0 0.0
      %512 = vmatpush1.msra.mxu0 0.0
      %513 = vmatprep.subr.mxu0 0.0
      %514 = vmatpush1.msra.mxu0 0.0
      %515 = vmatprep.subr.mxu0 0.0
      %516 = vmatpush1.msra.mxu0 0.0
      %517 = vmatprep.subr.mxu0 0.0
      %518 = vmatpush1.msra.mxu0 0.0
      %519 = vmatprep.subr.mxu0 0.0
      %520 = vmatpush1.msra.mxu0 %v292
      %521 = vmatprep.subr.mxu0 0.0
      %522 = vmatpush1.msra.mxu0 %v291
      %523 = vmatprep.subr.mxu0 0.0
      %524 = vmatpush1.msra.mxu0 %v290
      %525 = vmatprep.subr.mxu0 0.0
      %526 = vmatpush1.msra.mxu0 %v289
      %527 = vmatprep.subr.mxu0 0.0
      %528 = vmatpush2.msra.mxu0 0.0
      %529 = vmatprep.subr.mxu0 0.0
      %530 = vmatpush2.msra.mxu0 0.0
      %531 = vmatprep.subr.mxu0 0.0
      %532 = vmatpush2.msra.mxu0 0.0
      %533 = vmatprep.subr.mxu0 0.0
      %534 = vmatpush2.msra.mxu0 0.0
      %535 = vmatprep.subr.mxu0 0.0
      %536 = vmatpush2.msra.mxu0 0.0
      %537 = vmatprep.subr.mxu0 0.0
      %538 = vmatpush2.msra.mxu0 0.0
      %539 = vmatprep.subr.mxu0 0.0
      %540 = vmatpush2.msra.mxu0 0.0
      %541 = vmatprep.subr.mxu0 0.0
      %542 = vmatpush2.msra.mxu0 0.0
      %543 = vmatprep.subr.mxu0 0.0
      %544 = vmatpush2.msra.mxu0 0.0
      %545 = vmatprep.subr.mxu0 0.0
      %546 = vmatpush2.msra.mxu0 0.0
      %547 = vmatprep.subr.mxu0 0.0
      %548 = vmatpush2.msra.mxu0 0.0
      %549 = vmatprep.subr.mxu0 0.0
      %550 = vmatpush2.msra.mxu0 0.0
      %551 = vmatprep.subr.mxu0 0.0
      %552 = vmatpush2.msra.mxu0 0.0
      %553 = vmatprep.subr.mxu0 0.0
      %554 = vmatpush2.msra.mxu0 0.0
      %555 = vmatprep.subr.mxu0 0.0
      %556 = vmatpush2.msra.mxu0 0.0
      %557 = vmatprep.subr.mxu0 0.0
      %558 = vmatpush2.msra.mxu0 0.0
      %559 = vmatprep.mubr.f32.mxu0 0.0
      %560 = vmatmul.mubr.f32.gmra.mxu0 %v493
      %v561 = vpop.f32.mrf.mxu0
      %v562 = vadd.f32 0.0, %v561
      %v563 = vpop.f32.mrf.mxu0
      %564 = vdwg.mxu0
      %v566 = vsel %vm345, %v268, 0
      %568 = vmatprep.subr.mxu0 0.0
      %569 = vmatpush1.msra.mxu0 0.0
      %570 = vmatprep.subr.mxu0 0.0
      %571 = vmatpush1.msra.mxu0 0.0
      %572 = vmatprep.subr.mxu0 0.0
      %573 = vmatpush1.msra.mxu0 0.0
      %574 = vmatprep.subr.mxu0 0.0
      %575 = vmatpush1.msra.mxu0 0.0
      %576 = vmatprep.subr.mxu0 0.0
      %577 = vmatpush1.msra.mxu0 0.0
      %578 = vmatprep.subr.mxu0 0.0
      %579 = vmatpush1.msra.mxu0 0.0
      %580 = vmatprep.subr.mxu0 0.0
      %581 = vmatpush1.msra.mxu0 0.0
      %582 = vmatprep.subr.mxu0 0.0
      %583 = vmatpush1.msra.mxu0 0.0
      %584 = vmatprep.subr.mxu0 0.0
      %585 = vmatpush1.msra.mxu0 0.0
      %586 = vmatprep.subr.mxu0 0.0
      %587 = vmatpush1.msra.mxu0 0.0
      %588 = vmatprep.subr.mxu0 0.0
      %589 = vmatpush1.msra.mxu0 0.0
      %590 = vmatprep.subr.mxu0 0.0
      %591 = vmatpush1.msra.mxu0 0.0
      %592 = vmatprep.subr.mxu0 0.0
      %593 = vmatpush1.msra.mxu0 %v296
      %594 = vmatprep.subr.mxu0 0.0
      %595 = vmatpush1.msra.mxu0 %v295
      %596 = vmatprep.subr.mxu0 0.0
      %597 = vmatpush1.msra.mxu0 %v294
      %598 = vmatprep.subr.mxu0 0.0
      %599 = vmatpush1.msra.mxu0 %v293
      %600 = vmatprep.subr.mxu0 0.0
      %601 = vmatpush2.msra.mxu0 0.0
      %602 = vmatprep.subr.mxu0 0.0
      %603 = vmatpush2.msra.mxu0 0.0
      %604 = vmatprep.subr.mxu0 0.0
      %605 = vmatpush2.msra.mxu0 0.0
      %606 = vmatprep.subr.mxu0 0.0
      %607 = vmatpush2.msra.mxu0 0.0
      %608 = vmatprep.subr.mxu0 0.0
      %609 = vmatpush2.msra.mxu0 0.0
      %610 = vmatprep.subr.mxu0 0.0
      %611 = vmatpush2.msra.mxu0 0.0
      %612 = vmatprep.subr.mxu0 0.0
      %613 = vmatpush2.msra.mxu0 0.0
      %614 = vmatprep.subr.mxu0 0.0
      %615 = vmatpush2.msra.mxu0 0.0
      %616 = vmatprep.subr.mxu0 0.0
      %617 = vmatpush2.msra.mxu0 0.0
      %618 = vmatprep.subr.mxu0 0.0
      %619 = vmatpush2.msra.mxu0 0.0
      %620 = vmatprep.subr.mxu0 0.0
      %621 = vmatpush2.msra.mxu0 0.0
      %622 = vmatprep.subr.mxu0 0.0
      %623 = vmatpush2.msra.mxu0 0.0
      %624 = vmatprep.subr.mxu0 0.0
      %625 = vmatpush2.msra.mxu0 0.0
      %626 = vmatprep.subr.mxu0 0.0
      %627 = vmatpush2.msra.mxu0 0.0
      %628 = vmatprep.subr.mxu0 0.0
      %629 = vmatpush2.msra.mxu0 0.0
      %630 = vmatprep.subr.mxu0 0.0
      %631 = vmatpush2.msra.mxu0 0.0
      %632 = vmatprep.mubr.f32.mxu0 0.0
      %633 = vmatmul.mubr.f32.gmra.mxu0 %v566
      %v634 = vpop.f32.mrf.mxu0
      %v635 = vadd.f32 0.0, %v634
      %v636 = vpop.f32.mrf.mxu0
      %637 = vdwg.mxu0
      %v639 = vsel %vm345, %v269, 0
      %641 = vmatprep.subr.mxu0 0.0
      %642 = vmatpush1.msra.mxu0 0.0
      %643 = vmatprep.subr.mxu0 0.0
      %644 = vmatpush1.msra.mxu0 0.0
      %645 = vmatprep.subr.mxu0 0.0
      %646 = vmatpush1.msra.mxu0 0.0
      %647 = vmatprep.subr.mxu0 0.0
      %648 = vmatpush1.msra.mxu0 0.0
      %649 = vmatprep.subr.mxu0 0.0
      %650 = vmatpush1.msra.mxu0 0.0
      %651 = vmatprep.subr.mxu0 0.0
      %652 = vmatpush1.msra.mxu0 0.0
      %653 = vmatprep.subr.mxu0 0.0
      %654 = vmatpush1.msra.mxu0 0.0
      %655 = vmatprep.subr.mxu0 0.0
      %656 = vmatpush1.msra.mxu0 0.0
      %657 = vmatprep.subr.mxu0 0.0
      %658 = vmatpush1.msra.mxu0 0.0
      %659 = vmatprep.subr.mxu0 0.0
      %660 = vmatpush1.msra.mxu0 0.0
      %661 = vmatprep.subr.mxu0 0.0
      %662 = vmatpush1.msra.mxu0 0.0
      %663 = vmatprep.subr.mxu0 0.0
      %664 = vmatpush1.msra.mxu0 0.0
      %665 = vmatprep.subr.mxu0 0.0
      %666 = vmatpush1.msra.mxu0 %v300
      %667 = vmatprep.subr.mxu0 0.0
      %668 = vmatpush1.msra.mxu0 %v299
      %669 = vmatprep.subr.mxu0 0.0
      %670 = vmatpush1.msra.mxu0 %v298
      %671 = vmatprep.subr.mxu0 0.0
      %672 = vmatpush1.msra.mxu0 %v297
      %673 = vmatprep.subr.mxu0 0.0
      %674 = vmatpush2.msra.mxu0 0.0
      %675 = vmatprep.subr.mxu0 0.0
      %676 = vmatpush2.msra.mxu0 0.0
      %677 = vmatprep.subr.mxu0 0.0
      %678 = vmatpush2.msra.mxu0 0.0
      %679 = vmatprep.subr.mxu0 0.0
      %680 = vmatpush2.msra.mxu0 0.0
      %681 = vmatprep.subr.mxu0 0.0
      %682 = vmatpush2.msra.mxu0 0.0
      %683 = vmatprep.subr.mxu0 0.0
      %684 = vmatpush2.msra.mxu0 0.0
      %685 = vmatprep.subr.mxu0 0.0
      %686 = vmatpush2.msra.mxu0 0.0
      %687 = vmatprep.subr.mxu0 0.0
      %688 = vmatpush2.msra.mxu0 0.0
      %689 = vmatprep.subr.mxu0 0.0
      %690 = vmatpush2.msra.mxu0 0.0
      %691 = vmatprep.subr.mxu0 0.0
      %692 = vmatpush2.msra.mxu0 0.0
      %693 = vmatprep.subr.mxu0 0.0
      %694 = vmatpush2.msra.mxu0 0.0
      %695 = vmatprep.subr.mxu0 0.0
      %696 = vmatpush2.msra.mxu0 0.0
      %697 = vmatprep.subr.mxu0 0.0
      %698 = vmatpush2.msra.mxu0 0.0
      %699 = vmatprep.subr.mxu0 0.0
      %700 = vmatpush2.msra.mxu0 0.0
      %701 = vmatprep.subr.mxu0 0.0
      %702 = vmatpush2.msra.mxu0 0.0
      %703 = vmatprep.subr.mxu0 0.0
      %704 = vmatpush2.msra.mxu0 0.0
      %705 = vmatprep.mubr.f32.mxu0 0.0
      %706 = vmatmul.mubr.f32.gmra.mxu0 %v639
      %v707 = vpop.f32.mrf.mxu0
      %v708 = vadd.f32 0.0, %v707
      %v709 = vpop.f32.mrf.mxu0
      %710 = vdwg.mxu0
      %v712 = vsel %vm345, %v270, 0
      %714 = vmatprep.subr.mxu0 0.0
      %715 = vmatpush1.msra.mxu0 0.0
      %716 = vmatprep.subr.mxu0 0.0
      %717 = vmatpush1.msra.mxu0 0.0
      %718 = vmatprep.subr.mxu0 0.0
      %719 = vmatpush1.msra.mxu0 0.0
      %720 = vmatprep.subr.mxu0 0.0
      %721 = vmatpush1.msra.mxu0 0.0
      %722 = vmatprep.subr.mxu0 0.0
      %723 = vmatpush1.msra.mxu0 0.0
      %724 = vmatprep.subr.mxu0 0.0
      %725 = vmatpush1.msra.mxu0 0.0
      %726 = vmatprep.subr.mxu0 0.0
      %727 = vmatpush1.msra.mxu0 0.0
      %728 = vmatprep.subr.mxu0 0.0
      %729 = vmatpush1.msra.mxu0 0.0
      %730 = vmatprep.subr.mxu0 0.0
      %731 = vmatpush1.msra.mxu0 0.0
      %732 = vmatprep.subr.mxu0 0.0
      %733 = vmatpush1.msra.mxu0 0.0
      %734 = vmatprep.subr.mxu0 0.0
      %735 = vmatpush1.msra.mxu0 0.0
      %736 = vmatprep.subr.mxu0 0.0
      %737 = vmatpush1.msra.mxu0 0.0
      %738 = vmatprep.subr.mxu0 0.0
      %739 = vmatpush1.msra.mxu0 %v304
      %740 = vmatprep.subr.mxu0 0.0
      %741 = vmatpush1.msra.mxu0 %v303
      %742 = vmatprep.subr.mxu0 0.0
      %743 = vmatpush1.msra.mxu0 %v302
      %744 = vmatprep.subr.mxu0 0.0
      %745 = vmatpush1.msra.mxu0 %v301
      %746 = vmatprep.subr.mxu0 0.0
      %747 = vmatpush2.msra.mxu0 0.0
      %748 = vmatprep.subr.mxu0 0.0
      %749 = vmatpush2.msra.mxu0 0.0
      %750 = vmatprep.subr.mxu0 0.0
      %751 = vmatpush2.msra.mxu0 0.0
      %752 = vmatprep.subr.mxu0 0.0
      %753 = vmatpush2.msra.mxu0 0.0
      %754 = vmatprep.subr.mxu0 0.0
      %755 = vmatpush2.msra.mxu0 0.0
      %756 = vmatprep.subr.mxu0 0.0
      %757 = vmatpush2.msra.mxu0 0.0
      %758 = vmatprep.subr.mxu0 0.0
      %759 = vmatpush2.msra.mxu0 0.0
      %760 = vmatprep.subr.mxu0 0.0
      %761 = vmatpush2.msra.mxu0 0.0
      %762 = vmatprep.subr.mxu0 0.0
      %763 = vmatpush2.msra.mxu0 0.0
      %764 = vmatprep.subr.mxu0 0.0
      %765 = vmatpush2.msra.mxu0 0.0
      %766 = vmatprep.subr.mxu0 0.0
      %767 = vmatpush2.msra.mxu0 0.0
      %768 = vmatprep.subr.mxu0 0.0
      %769 = vmatpush2.msra.mxu0 0.0
      %770 = vmatprep.subr.mxu0 0.0
      %771 = vmatpush2.msra.mxu0 0.0
      %772 = vmatprep.subr.mxu0 0.0
      %773 = vmatpush2.msra.mxu0 0.0
      %774 = vmatprep.subr.mxu0 0.0
      %775 = vmatpush2.msra.mxu0 0.0
      %776 = vmatprep.subr.mxu0 0.0
      %777 = vmatpush2.msra.mxu0 0.0
      %778 = vmatprep.mubr.f32.mxu0 0.0
      %779 = vmatmul.mubr.f32.gmra.mxu0 %v712
      %v780 = vpop.f32.mrf.mxu0
      %v781 = vadd.f32 0.0, %v780
      %v782 = vpop.f32.mrf.mxu0
      %783 = vdwg.mxu0
      %v785 = vsel %vm345, %v271, 0
      %787 = vmatprep.subr.mxu0 0.0
      %788 = vmatpush1.msra.mxu0 0.0
      %789 = vmatprep.subr.mxu0 0.0
      %790 = vmatpush1.msra.mxu0 0.0
      %791 = vmatprep.subr.mxu0 0.0
      %792 = vmatpush1.msra.mxu0 0.0
      %793 = vmatprep.subr.mxu0 0.0
      %794 = vmatpush1.msra.mxu0 0.0
      %795 = vmatprep.subr.mxu0 0.0
      %796 = vmatpush1.msra.mxu0 0.0
      %797 = vmatprep.subr.mxu0 0.0
      %798 = vmatpush1.msra.mxu0 0.0
      %799 = vmatprep.subr.mxu0 0.0
      %800 = vmatpush1.msra.mxu0 0.0
      %801 = vmatprep.subr.mxu0 0.0
      %802 = vmatpush1.msra.mxu0 0.0
      %803 = vmatprep.subr.mxu0 0.0
      %804 = vmatpush1.msra.mxu0 0.0
      %805 = vmatprep.subr.mxu0 0.0
      %806 = vmatpush1.msra.mxu0 0.0
      %807 = vmatprep.subr.mxu0 0.0
      %808 = vmatpush1.msra.mxu0 0.0
      %809 = vmatprep.subr.mxu0 0.0
      %810 = vmatpush1.msra.mxu0 0.0
      %811 = vmatprep.subr.mxu0 0.0
      %812 = vmatpush1.msra.mxu0 %v308
      %813 = vmatprep.subr.mxu0 0.0
      %814 = vmatpush1.msra.mxu0 %v307
      %815 = vmatprep.subr.mxu0 0.0
      %816 = vmatpush1.msra.mxu0 %v306
      %817 = vmatprep.subr.mxu0 0.0
      %818 = vmatpush1.msra.mxu0 %v305
      %819 = vmatprep.subr.mxu0 0.0
      %820 = vmatpush2.msra.mxu0 0.0
      %821 = vmatprep.subr.mxu0 0.0
      %822 = vmatpush2.msra.mxu0 0.0
      %823 = vmatprep.subr.mxu0 0.0
      %824 = vmatpush2.msra.mxu0 0.0
      %825 = vmatprep.subr.mxu0 0.0
      %826 = vmatpush2.msra.mxu0 0.0
      %827 = vmatprep.subr.mxu0 0.0
      %828 = vmatpush2.msra.mxu0 0.0
      %829 = vmatprep.subr.mxu0 0.0
      %830 = vmatpush2.msra.mxu0 0.0
      %831 = vmatprep.subr.mxu0 0.0
      %832 = vmatpush2.msra.mxu0 0.0
      %833 = vmatprep.subr.mxu0 0.0
      %834 = vmatpush2.msra.mxu0 0.0
      %835 = vmatprep.subr.mxu0 0.0
      %836 = vmatpush2.msra.mxu0 0.0
      %837 = vmatprep.subr.mxu0 0.0
      %838 = vmatpush2.msra.mxu0 0.0
      %839 = vmatprep.subr.mxu0 0.0
      %840 = vmatpush2.msra.mxu0 0.0
      %841 = vmatprep.subr.mxu0 0.0
      %842 = vmatpush2.msra.mxu0 0.0
      %843 = vmatprep.subr.mxu0 0.0
      %844 = vmatpush2.msra.mxu0 0.0
      %845 = vmatprep.subr.mxu0 0.0
      %846 = vmatpush2.msra.mxu0 0.0
      %847 = vmatprep.subr.mxu0 0.0
      %848 = vmatpush2.msra.mxu0 0.0
      %849 = vmatprep.subr.mxu0 0.0
      %850 = vmatpush2.msra.mxu0 0.0
      %851 = vmatprep.mubr.f32.mxu0 0.0
      %852 = vmatmul.mubr.f32.gmra.mxu0 %v785
      %v853 = vpop.f32.mrf.mxu0
      %v854 = vadd.f32 0.0, %v853
      %v855 = vpop.f32.mrf.mxu0
      %856 = vdwg.mxu0
      %v858 = vsel %vm345, %v272, 0
      %860 = vmatprep.subr.mxu0 0.0
      %861 = vmatpush1.msra.mxu0 0.0
      %862 = vmatprep.subr.mxu0 0.0
      %863 = vmatpush1.msra.mxu0 0.0
      %864 = vmatprep.subr.mxu0 0.0
      %865 = vmatpush1.msra.mxu0 0.0
      %866 = vmatprep.subr.mxu0 0.0
      %867 = vmatpush1.msra.mxu0 0.0
      %868 = vmatprep.subr.mxu0 0.0
      %869 = vmatpush1.msra.mxu0 0.0
      %870 = vmatprep.subr.mxu0 0.0
      %871 = vmatpush1.msra.mxu0 0.0
      %872 = vmatprep.subr.mxu0 0.0
      %873 = vmatpush1.msra.mxu0 0.0
      %874 = vmatprep.subr.mxu0 0.0
      %875 = vmatpush1.msra.mxu0 0.0
      %876 = vmatprep.subr.mxu0 0.0
      %877 = vmatpush1.msra.mxu0 0.0
      %878 = vmatprep.subr.mxu0 0.0
      %879 = vmatpush1.msra.mxu0 0.0
      %880 = vmatprep.subr.mxu0 0.0
      %881 = vmatpush1.msra.mxu0 0.0
      %882 = vmatprep.subr.mxu0 0.0
      %883 = vmatpush1.msra.mxu0 0.0
      %884 = vmatprep.subr.mxu0 0.0
      %885 = vmatpush1.msra.mxu0 %v312
      %886 = vmatprep.subr.mxu0 0.0
      %887 = vmatpush1.msra.mxu0 %v311
      %888 = vmatprep.subr.mxu0 0.0
      %889 = vmatpush1.msra.mxu0 %v310
      %890 = vmatprep.subr.mxu0 0.0
      %891 = vmatpush1.msra.mxu0 %v309
      %892 = vmatprep.subr.mxu0 0.0
      %893 = vmatpush2.msra.mxu0 0.0
      %894 = vmatprep.subr.mxu0 0.0
      %895 = vmatpush2.msra.mxu0 0.0
      %896 = vmatprep.subr.mxu0 0.0
      %897 = vmatpush2.msra.mxu0 0.0
      %898 = vmatprep.subr.mxu0 0.0
      %899 = vmatpush2.msra.mxu0 0.0
      %900 = vmatprep.subr.mxu0 0.0
      %901 = vmatpush2.msra.mxu0 0.0
      %902 = vmatprep.subr.mxu0 0.0
      %903 = vmatpush2.msra.mxu0 0.0
      %904 = vmatprep.subr.mxu0 0.0
      %905 = vmatpush2.msra.mxu0 0.0
      %906 = vmatprep.subr.mxu0 0.0
      %907 = vmatpush2.msra.mxu0 0.0
      %908 = vmatprep.subr.mxu0 0.0
      %909 = vmatpush2.msra.mxu0 0.0
      %910 = vmatprep.subr.mxu0 0.0
      %911 = vmatpush2.msra.mxu0 0.0
      %912 = vmatprep.subr.mxu0 0.0
      %913 = vmatpush2.msra.mxu0 0.0
      %914 = vmatprep.subr.mxu0 0.0
      %915 = vmatpush2.msra.mxu0 0.0
      %916 = vmatprep.subr.mxu0 0.0
      %917 = vmatpush2.msra.mxu0 0.0
      %918 = vmatprep.subr.mxu0 0.0
      %919 = vmatpush2.msra.mxu0 0.0
      %920 = vmatprep.subr.mxu0 0.0
      %921 = vmatpush2.msra.mxu0 0.0
      %922 = vmatprep.subr.mxu0 0.0
      %923 = vmatpush2.msra.mxu0 0.0
      %924 = vmatprep.mubr.f32.mxu0 0.0
      %925 = vmatmul.mubr.f32.gmra.mxu0 %v858
      %v926 = vpop.f32.mrf.mxu0
      %v927 = vadd.f32 0.0, %v926
      %v928 = vpop.f32.mrf.mxu0
      %929 = vdwg.mxu0
      %v931 = vsel %vm345, %v273, 0
      %933 = vmatprep.subr.mxu0 0.0
      %934 = vmatpush1.msra.mxu0 0.0
      %935 = vmatprep.subr.mxu0 0.0
      %936 = vmatpush1.msra.mxu0 0.0
      %937 = vmatprep.subr.mxu0 0.0
      %938 = vmatpush1.msra.mxu0 0.0
      %939 = vmatprep.subr.mxu0 0.0
      %940 = vmatpush1.msra.mxu0 0.0
      %941 = vmatprep.subr.mxu0 0.0
      %942 = vmatpush1.msra.mxu0 0.0
      %943 = vmatprep.subr.mxu0 0.0
      %944 = vmatpush1.msra.mxu0 0.0
      %945 = vmatprep.subr.mxu0 0.0
      %946 = vmatpush1.msra.mxu0 0.0
      %947 = vmatprep.subr.mxu0 0.0
      %948 = vmatpush1.msra.mxu0 0.0
      %949 = vmatprep.subr.mxu0 0.0
      %950 = vmatpush1.msra.mxu0 0.0
      %951 = vmatprep.subr.mxu0 0.0
      %952 = vmatpush1.msra.mxu0 0.0
      %953 = vmatprep.subr.mxu0 0.0
      %954 = vmatpush1.msra.mxu0 0.0
      %955 = vmatprep.subr.mxu0 0.0
      %956 = vmatpush1.msra.mxu0 0.0
      %957 = vmatprep.subr.mxu0 0.0
      %958 = vmatpush1.msra.mxu0 %v316
      %959 = vmatprep.subr.mxu0 0.0
      %960 = vmatpush1.msra.mxu0 %v315
      %961 = vmatprep.subr.mxu0 0.0
      %962 = vmatpush1.msra.mxu0 %v314
      %963 = vmatprep.subr.mxu0 0.0
      %964 = vmatpush1.msra.mxu0 %v313
      %965 = vmatprep.subr.mxu0 0.0
      %966 = vmatpush2.msra.mxu0 0.0
      %967 = vmatprep.subr.mxu0 0.0
      %968 = vmatpush2.msra.mxu0 0.0
      %969 = vmatprep.subr.mxu0 0.0
      %970 = vmatpush2.msra.mxu0 0.0
      %971 = vmatprep.subr.mxu0 0.0
      %972 = vmatpush2.msra.mxu0 0.0
      %973 = vmatprep.subr.mxu0 0.0
      %974 = vmatpush2.msra.mxu0 0.0
      %975 = vmatprep.subr.mxu0 0.0
      %976 = vmatpush2.msra.mxu0 0.0
      %977 = vmatprep.subr.mxu0 0.0
      %978 = vmatpush2.msra.mxu0 0.0
      %979 = vmatprep.subr.mxu0 0.0
      %980 = vmatpush2.msra.mxu0 0.0
      %981 = vmatprep.subr.mxu0 0.0
      %982 = vmatpush2.msra.mxu0 0.0
      %983 = vmatprep.subr.mxu0 0.0
      %984 = vmatpush2.msra.mxu0 0.0
      %985 = vmatprep.subr.mxu0 0.0
      %986 = vmatpush2.msra.mxu0 0.0
      %987 = vmatprep.subr.mxu0 0.0
      %988 = vmatpush2.msra.mxu0 0.0
      %989 = vmatprep.subr.mxu0 0.0
      %990 = vmatpush2.msra.mxu0 0.0
      %991 = vmatprep.subr.mxu0 0.0
      %992 = vmatpush2.msra.mxu0 0.0
      %993 = vmatprep.subr.mxu0 0.0
      %994 = vmatpush2.msra.mxu0 0.0
      %995 = vmatprep.subr.mxu0 0.0
      %996 = vmatpush2.msra.mxu0 0.0
      %997 = vmatprep.mubr.f32.mxu0 0.0
      %998 = vmatmul.mubr.f32.gmra.mxu0 %v931
      %v999 = vpop.f32.mrf.mxu0
      %v1000 = vadd.f32 0.0, %v999
      %v1001 = vpop.f32.mrf.mxu0
      %1002 = vdwg.mxu0
      %v1004 = vsel %vm345, %v274, 0
      %1006 = vmatprep.subr.mxu0 0.0
      %1007 = vmatpush1.msra.mxu0 0.0
      %1008 = vmatprep.subr.mxu0 0.0
      %1009 = vmatpush1.msra.mxu0 0.0
      %1010 = vmatprep.subr.mxu0 0.0
      %1011 = vmatpush1.msra.mxu0 0.0
      %1012 = vmatprep.subr.mxu0 0.0
      %1013 = vmatpush1.msra.mxu0 0.0
      %1014 = vmatprep.subr.mxu0 0.0
      %1015 = vmatpush1.msra.mxu0 0.0
      %1016 = vmatprep.subr.mxu0 0.0
      %1017 = vmatpush1.msra.mxu0 0.0
      %1018 = vmatprep.subr.mxu0 0.0
      %1019 = vmatpush1.msra.mxu0 0.0
      %1020 = vmatprep.subr.mxu0 0.0
      %1021 = vmatpush1.msra.mxu0 0.0
      %1022 = vmatprep.subr.mxu0 0.0
      %1023 = vmatpush1.msra.mxu0 0.0
      %1024 = vmatprep.subr.mxu0 0.0
      %1025 = vmatpush1.msra.mxu0 0.0
      %1026 = vmatprep.subr.mxu0 0.0
      %1027 = vmatpush1.msra.mxu0 0.0
      %1028 = vmatprep.subr.mxu0 0.0
      %1029 = vmatpush1.msra.mxu0 0.0
      %1030 = vmatprep.subr.mxu0 0.0
      %1031 = vmatpush1.msra.mxu0 %v320
      %1032 = vmatprep.subr.mxu0 0.0
      %1033 = vmatpush1.msra.mxu0 %v319
      %1034 = vmatprep.subr.mxu0 0.0
      %1035 = vmatpush1.msra.mxu0 %v318
      %1036 = vmatprep.subr.mxu0 0.0
      %1037 = vmatpush1.msra.mxu0 %v317
      %1038 = vmatprep.subr.mxu0 0.0
      %1039 = vmatpush2.msra.mxu0 0.0
      %1040 = vmatprep.subr.mxu0 0.0
      %1041 = vmatpush2.msra.mxu0 0.0
      %1042 = vmatprep.subr.mxu0 0.0
      %1043 = vmatpush2.msra.mxu0 0.0
      %1044 = vmatprep.subr.mxu0 0.0
      %1045 = vmatpush2.msra.mxu0 0.0
      %1046 = vmatprep.subr.mxu0 0.0
      %1047 = vmatpush2.msra.mxu0 0.0
      %1048 = vmatprep.subr.mxu0 0.0
      %1049 = vmatpush2.msra.mxu0 0.0
      %1050 = vmatprep.subr.mxu0 0.0
      %1051 = vmatpush2.msra.mxu0 0.0
      %1052 = vmatprep.subr.mxu0 0.0
      %1053 = vmatpush2.msra.mxu0 0.0
      %1054 = vmatprep.subr.mxu0 0.0
      %1055 = vmatpush2.msra.mxu0 0.0
      %1056 = vmatprep.subr.mxu0 0.0
      %1057 = vmatpush2.msra.mxu0 0.0
      %1058 = vmatprep.subr.mxu0 0.0
      %1059 = vmatpush2.msra.mxu0 0.0
      %1060 = vmatprep.subr.mxu0 0.0
      %1061 = vmatpush2.msra.mxu0 0.0
      %1062 = vmatprep.subr.mxu0 0.0
      %1063 = vmatpush2.msra.mxu0 0.0
      %1064 = vmatprep.subr.mxu0 0.0
      %1065 = vmatpush2.msra.mxu0 0.0
      %1066 = vmatprep.subr.mxu0 0.0
      %1067 = vmatpush2.msra.mxu0 0.0
      %1068 = vmatprep.subr.mxu0 0.0
      %1069 = vmatpush2.msra.mxu0 0.0
      %1070 = vmatprep.mubr.f32.mxu0 0.0
      %1071 = vmatmul.mubr.f32.gmra.mxu0 %v1004
      %v1072 = vpop.f32.mrf.mxu0
      %v1073 = vadd.f32 0.0, %v1072
      %v1074 = vpop.f32.mrf.mxu0
      %1075 = vdwg.mxu0
      %v1077 = vsel %vm345, %v275, 0
      %1079 = vmatprep.subr.mxu0 0.0
      %1080 = vmatpush1.msra.mxu0 0.0
      %1081 = vmatprep.subr.mxu0 0.0
      %1082 = vmatpush1.msra.mxu0 0.0
      %1083 = vmatprep.subr.mxu0 0.0
      %1084 = vmatpush1.msra.mxu0 0.0
      %1085 = vmatprep.subr.mxu0 0.0
      %1086 = vmatpush1.msra.mxu0 0.0
      %1087 = vmatprep.subr.mxu0 0.0
      %1088 = vmatpush1.msra.mxu0 0.0
      %1089 = vmatprep.subr.mxu0 0.0
      %1090 = vmatpush1.msra.mxu0 0.0
      %1091 = vmatprep.subr.mxu0 0.0
      %1092 = vmatpush1.msra.mxu0 0.0
      %1093 = vmatprep.subr.mxu0 0.0
      %1094 = vmatpush1.msra.mxu0 0.0
      %1095 = vmatprep.subr.mxu0 0.0
      %1096 = vmatpush1.msra.mxu0 0.0
      %1097 = vmatprep.subr.mxu0 0.0
      %1098 = vmatpush1.msra.mxu0 0.0
      %1099 = vmatprep.subr.mxu0 0.0
      %1100 = vmatpush1.msra.mxu0 0.0
      %1101 = vmatprep.subr.mxu0 0.0
      %1102 = vmatpush1.msra.mxu0 0.0
      %1103 = vmatprep.subr.mxu0 0.0
      %1104 = vmatpush1.msra.mxu0 %v324
      %1105 = vmatprep.subr.mxu0 0.0
      %1106 = vmatpush1.msra.mxu0 %v323
      %1107 = vmatprep.subr.mxu0 0.0
      %1108 = vmatpush1.msra.mxu0 %v322
      %1109 = vmatprep.subr.mxu0 0.0
      %1110 = vmatpush1.msra.mxu0 %v321
      %1111 = vmatprep.subr.mxu0 0.0
      %1112 = vmatpush2.msra.mxu0 0.0
      %1113 = vmatprep.subr.mxu0 0.0
      %1114 = vmatpush2.msra.mxu0 0.0
      %1115 = vmatprep.subr.mxu0 0.0
      %1116 = vmatpush2.msra.mxu0 0.0
      %1117 = vmatprep.subr.mxu0 0.0
      %1118 = vmatpush2.msra.mxu0 0.0
      %1119 = vmatprep.subr.mxu0 0.0
      %1120 = vmatpush2.msra.mxu0 0.0
      %1121 = vmatprep.subr.mxu0 0.0
      %1122 = vmatpush2.msra.mxu0 0.0
      %1123 = vmatprep.subr.mxu0 0.0
      %1124 = vmatpush2.msra.mxu0 0.0
      %1125 = vmatprep.subr.mxu0 0.0
      %1126 = vmatpush2.msra.mxu0 0.0
      %1127 = vmatprep.subr.mxu0 0.0
      %1128 = vmatpush2.msra.mxu0 0.0
      %1129 = vmatprep.subr.mxu0 0.0
      %1130 = vmatpush2.msra.mxu0 0.0
      %1131 = vmatprep.subr.mxu0 0.0
      %1132 = vmatpush2.msra.mxu0 0.0
      %1133 = vmatprep.subr.mxu0 0.0
      %1134 = vmatpush2.msra.mxu0 0.0
      %1135 = vmatprep.subr.mxu0 0.0
      %1136 = vmatpush2.msra.mxu0 0.0
      %1137 = vmatprep.subr.mxu0 0.0
      %1138 = vmatpush2.msra.mxu0 0.0
      %1139 = vmatprep.subr.mxu0 0.0
      %1140 = vmatpush2.msra.mxu0 0.0
      %1141 = vmatprep.subr.mxu0 0.0
      %1142 = vmatpush2.msra.mxu0 0.0
      %1143 = vmatprep.mubr.f32.mxu0 0.0
      %1144 = vmatmul.mubr.f32.gmra.mxu0 %v1077
      %v1145 = vpop.f32.mrf.mxu0
      %v1146 = vadd.f32 0.0, %v1145
      %v1147 = vpop.f32.mrf.mxu0
      %1148 = vdwg.mxu0
      %v1150 = vsel %vm345, %v276, 0
      %1152 = vmatprep.subr.mxu0 0.0
      %1153 = vmatpush1.msra.mxu0 0.0
      %1154 = vmatprep.subr.mxu0 0.0
      %1155 = vmatpush1.msra.mxu0 0.0
      %1156 = vmatprep.subr.mxu0 0.0
      %1157 = vmatpush1.msra.mxu0 0.0
      %1158 = vmatprep.subr.mxu0 0.0
      %1159 = vmatpush1.msra.mxu0 0.0
      %1160 = vmatprep.subr.mxu0 0.0
      %1161 = vmatpush1.msra.mxu0 0.0
      %1162 = vmatprep.subr.mxu0 0.0
      %1163 = vmatpush1.msra.mxu0 0.0
      %1164 = vmatprep.subr.mxu0 0.0
      %1165 = vmatpush1.msra.mxu0 0.0
      %1166 = vmatprep.subr.mxu0 0.0
      %1167 = vmatpush1.msra.mxu0 0.0
      %1168 = vmatprep.subr.mxu0 0.0
      %1169 = vmatpush1.msra.mxu0 0.0
      %1170 = vmatprep.subr.mxu0 0.0
      %1171 = vmatpush1.msra.mxu0 0.0
      %1172 = vmatprep.subr.mxu0 0.0
      %1173 = vmatpush1.msra.mxu0 0.0
      %1174 = vmatprep.subr.mxu0 0.0
      %1175 = vmatpush1.msra.mxu0 0.0
      %1176 = vmatprep.subr.mxu0 0.0
      %1177 = vmatpush1.msra.mxu0 %v328
      %1178 = vmatprep.subr.mxu0 0.0
      %1179 = vmatpush1.msra.mxu0 %v327
      %1180 = vmatprep.subr.mxu0 0.0
      %1181 = vmatpush1.msra.mxu0 %v326
      %1182 = vmatprep.subr.mxu0 0.0
      %1183 = vmatpush1.msra.mxu0 %v325
      %1184 = vmatprep.subr.mxu0 0.0
      %1185 = vmatpush2.msra.mxu0 0.0
      %1186 = vmatprep.subr.mxu0 0.0
      %1187 = vmatpush2.msra.mxu0 0.0
      %1188 = vmatprep.subr.mxu0 0.0
      %1189 = vmatpush2.msra.mxu0 0.0
      %1190 = vmatprep.subr.mxu0 0.0
      %1191 = vmatpush2.msra.mxu0 0.0
      %1192 = vmatprep.subr.mxu0 0.0
      %1193 = vmatpush2.msra.mxu0 0.0
      %1194 = vmatprep.subr.mxu0 0.0
      %1195 = vmatpush2.msra.mxu0 0.0
      %1196 = vmatprep.subr.mxu0 0.0
      %1197 = vmatpush2.msra.mxu0 0.0
      %1198 = vmatprep.subr.mxu0 0.0
      %1199 = vmatpush2.msra.mxu0 0.0
      %1200 = vmatprep.subr.mxu0 0.0
      %1201 = vmatpush2.msra.mxu0 0.0
      %1202 = vmatprep.subr.mxu0 0.0
      %1203 = vmatpush2.msra.mxu0 0.0
      %1204 = vmatprep.subr.mxu0 0.0
      %1205 = vmatpush2.msra.mxu0 0.0
      %1206 = vmatprep.subr.mxu0 0.0
      %1207 = vmatpush2.msra.mxu0 0.0
      %1208 = vmatprep.subr.mxu0 0.0
      %1209 = vmatpush2.msra.mxu0 0.0
      %1210 = vmatprep.subr.mxu0 0.0
      %1211 = vmatpush2.msra.mxu0 0.0
      %1212 = vmatprep.subr.mxu0 0.0
      %1213 = vmatpush2.msra.mxu0 0.0
      %1214 = vmatprep.subr.mxu0 0.0
      %1215 = vmatpush2.msra.mxu0 0.0
      %1216 = vmatprep.mubr.f32.mxu0 0.0
      %1217 = vmatmul.mubr.f32.gmra.mxu0 %v1150
      %v1218 = vpop.f32.mrf.mxu0
      %v1219 = vadd.f32 0.0, %v1218
      %v1220 = vpop.f32.mrf.mxu0
      %1221 = vdwg.mxu0
      %v1223 = vsel %vm345, %v277, 0
      %1225 = vmatprep.subr.mxu0 0.0
      %1226 = vmatpush1.msra.mxu0 0.0
      %1227 = vmatprep.subr.mxu0 0.0
      %1228 = vmatpush1.msra.mxu0 0.0
      %1229 = vmatprep.subr.mxu0 0.0
      %1230 = vmatpush1.msra.mxu0 0.0
      %1231 = vmatprep.subr.mxu0 0.0
      %1232 = vmatpush1.msra.mxu0 0.0
      %1233 = vmatprep.subr.mxu0 0.0
      %1234 = vmatpush1.msra.mxu0 0.0
      %1235 = vmatprep.subr.mxu0 0.0
      %1236 = vmatpush1.msra.mxu0 0.0
      %1237 = vmatprep.subr.mxu0 0.0
      %1238 = vmatpush1.msra.mxu0 0.0
      %1239 = vmatprep.subr.mxu0 0.0
      %1240 = vmatpush1.msra.mxu0 0.0
      %1241 = vmatprep.subr.mxu0 0.0
      %1242 = vmatpush1.msra.mxu0 0.0
      %1243 = vmatprep.subr.mxu0 0.0
      %1244 = vmatpush1.msra.mxu0 0.0
      %1245 = vmatprep.subr.mxu0 0.0
      %1246 = vmatpush1.msra.mxu0 0.0
      %1247 = vmatprep.subr.mxu0 0.0
      %1248 = vmatpush1.msra.mxu0 0.0
      %1249 = vmatprep.subr.mxu0 0.0
      %1250 = vmatpush1.msra.mxu0 %v332
      %1251 = vmatprep.subr.mxu0 0.0
      %1252 = vmatpush1.msra.mxu0 %v331
      %1253 = vmatprep.subr.mxu0 0.0
      %1254 = vmatpush1.msra.mxu0 %v330
      %1255 = vmatprep.subr.mxu0 0.0
      %1256 = vmatpush1.msra.mxu0 %v329
      %1257 = vmatprep.subr.mxu0 0.0
      %1258 = vmatpush2.msra.mxu0 0.0
      %1259 = vmatprep.subr.mxu0 0.0
      %1260 = vmatpush2.msra.mxu0 0.0
      %1261 = vmatprep.subr.mxu0 0.0
      %1262 = vmatpush2.msra.mxu0 0.0
      %1263 = vmatprep.subr.mxu0 0.0
      %1264 = vmatpush2.msra.mxu0 0.0
      %1265 = vmatprep.subr.mxu0 0.0
      %1266 = vmatpush2.msra.mxu0 0.0
      %1267 = vmatprep.subr.mxu0 0.0
      %1268 = vmatpush2.msra.mxu0 0.0
      %1269 = vmatprep.subr.mxu0 0.0
      %1270 = vmatpush2.msra.mxu0 0.0
      %1271 = vmatprep.subr.mxu0 0.0
      %1272 = vmatpush2.msra.mxu0 0.0
      %1273 = vmatprep.subr.mxu0 0.0
      %1274 = vmatpush2.msra.mxu0 0.0
      %1275 = vmatprep.subr.mxu0 0.0
      %1276 = vmatpush2.msra.mxu0 0.0
      %1277 = vmatprep.subr.mxu0 0.0
      %1278 = vmatpush2.msra.mxu0 0.0
      %1279 = vmatprep.subr.mxu0 0.0
      %1280 = vmatpush2.msra.mxu0 0.0
      %1281 = vmatprep.subr.mxu0 0.0
      %1282 = vmatpush2.msra.mxu0 0.0
      %1283 = vmatprep.subr.mxu0 0.0
      %1284 = vmatpush2.msra.mxu0 0.0
      %1285 = vmatprep.subr.mxu0 0.0
      %1286 = vmatpush2.msra.mxu0 0.0
      %1287 = vmatprep.subr.mxu0 0.0
      %1288 = vmatpush2.msra.mxu0 0.0
      %1289 = vmatprep.mubr.f32.mxu0 0.0
      %1290 = vmatmul.mubr.f32.gmra.mxu0 %v1223
      %v1291 = vpop.f32.mrf.mxu0
      %v1292 = vadd.f32 0.0, %v1291
      %v1293 = vpop.f32.mrf.mxu0
      %1294 = vdwg.mxu0
      %v1296 = vsel %vm345, %v278, 0
      %1298 = vmatprep.subr.mxu0 0.0
      %1299 = vmatpush1.msra.mxu0 0.0
      %1300 = vmatprep.subr.mxu0 0.0
      %1301 = vmatpush1.msra.mxu0 0.0
      %1302 = vmatprep.subr.mxu0 0.0
      %1303 = vmatpush1.msra.mxu0 0.0
      %1304 = vmatprep.subr.mxu0 0.0
      %1305 = vmatpush1.msra.mxu0 0.0
      %1306 = vmatprep.subr.mxu0 0.0
      %1307 = vmatpush1.msra.mxu0 0.0
      %1308 = vmatprep.subr.mxu0 0.0
      %1309 = vmatpush1.msra.mxu0 0.0
      %1310 = vmatprep.subr.mxu0 0.0
      %1311 = vmatpush1.msra.mxu0 0.0
      %1312 = vmatprep.subr.mxu0 0.0
      %1313 = vmatpush1.msra.mxu0 0.0
      %1314 = vmatprep.subr.mxu0 0.0
      %1315 = vmatpush1.msra.mxu0 0.0
      %1316 = vmatprep.subr.mxu0 0.0
      %1317 = vmatpush1.msra.mxu0 0.0
      %1318 = vmatprep.subr.mxu0 0.0
      %1319 = vmatpush1.msra.mxu0 0.0
      %1320 = vmatprep.subr.mxu0 0.0
      %1321 = vmatpush1.msra.mxu0 0.0
      %1322 = vmatprep.subr.mxu0 0.0
      %1323 = vmatpush1.msra.mxu0 %v336
      %1324 = vmatprep.subr.mxu0 0.0
      %1325 = vmatpush1.msra.mxu0 %v335
      %1326 = vmatprep.subr.mxu0 0.0
      %1327 = vmatpush1.msra.mxu0 %v334
      %1328 = vmatprep.subr.mxu0 0.0
      %1329 = vmatpush1.msra.mxu0 %v333
      %1330 = vmatprep.subr.mxu0 0.0
      %1331 = vmatpush2.msra.mxu0 0.0
      %1332 = vmatprep.subr.mxu0 0.0
      %1333 = vmatpush2.msra.mxu0 0.0
      %1334 = vmatprep.subr.mxu0 0.0
      %1335 = vmatpush2.msra.mxu0 0.0
      %1336 = vmatprep.subr.mxu0 0.0
      %1337 = vmatpush2.msra.mxu0 0.0
      %1338 = vmatprep.subr.mxu0 0.0
      %1339 = vmatpush2.msra.mxu0 0.0
      %1340 = vmatprep.subr.mxu0 0.0
      %1341 = vmatpush2.msra.mxu0 0.0
      %1342 = vmatprep.subr.mxu0 0.0
      %1343 = vmatpush2.msra.mxu0 0.0
      %1344 = vmatprep.subr.mxu0 0.0
      %1345 = vmatpush2.msra.mxu0 0.0
      %1346 = vmatprep.subr.mxu0 0.0
      %1347 = vmatpush2.msra.mxu0 0.0
      %1348 = vmatprep.subr.mxu0 0.0
      %1349 = vmatpush2.msra.mxu0 0.0
      %1350 = vmatprep.subr.mxu0 0.0
      %1351 = vmatpush2.msra.mxu0 0.0
      %1352 = vmatprep.subr.mxu0 0.0
      %1353 = vmatpush2.msra.mxu0 0.0
      %1354 = vmatprep.subr.mxu0 0.0
      %1355 = vmatpush2.msra.mxu0 0.0
      %1356 = vmatprep.subr.mxu0 0.0
      %1357 = vmatpush2.msra.mxu0 0.0
      %1358 = vmatprep.subr.mxu0 0.0
      %1359 = vmatpush2.msra.mxu0 0.0
      %1360 = vmatprep.subr.mxu0 0.0
      %1361 = vmatpush2.msra.mxu0 0.0
      %1362 = vmatprep.mubr.f32.mxu0 0.0
      %1363 = vmatmul.mubr.f32.gmra.mxu0 %v1296
      %v1364 = vpop.f32.mrf.mxu0
      %v1365 = vadd.f32 0.0, %v1364
      %v1366 = vpop.f32.mrf.mxu0
      %1367 = vdwg.mxu0
      %v1369 = vsel %vm345, %v279, 0
      %1371 = vmatprep.subr.mxu0 0.0
      %1372 = vmatpush1.msra.mxu0 0.0
      %1373 = vmatprep.subr.mxu0 0.0
      %1374 = vmatpush1.msra.mxu0 0.0
      %1375 = vmatprep.subr.mxu0 0.0
      %1376 = vmatpush1.msra.mxu0 0.0
      %1377 = vmatprep.subr.mxu0 0.0
      %1378 = vmatpush1.msra.mxu0 0.0
      %1379 = vmatprep.subr.mxu0 0.0
      %1380 = vmatpush1.msra.mxu0 0.0
      %1381 = vmatprep.subr.mxu0 0.0
      %1382 = vmatpush1.msra.mxu0 0.0
      %1383 = vmatprep.subr.mxu0 0.0
      %1384 = vmatpush1.msra.mxu0 0.0
      %1385 = vmatprep.subr.mxu0 0.0
      %1386 = vmatpush1.msra.mxu0 0.0
      %1387 = vmatprep.subr.mxu0 0.0
      %1388 = vmatpush1.msra.mxu0 0.0
      %1389 = vmatprep.subr.mxu0 0.0
      %1390 = vmatpush1.msra.mxu0 0.0
      %1391 = vmatprep.subr.mxu0 0.0
      %1392 = vmatpush1.msra.mxu0 0.0
      %1393 = vmatprep.subr.mxu0 0.0
      %1394 = vmatpush1.msra.mxu0 0.0
      %1395 = vmatprep.subr.mxu0 0.0
      %1396 = vmatpush1.msra.mxu0 %v340
      %1397 = vmatprep.subr.mxu0 0.0
      %1398 = vmatpush1.msra.mxu0 %v339
      %1399 = vmatprep.subr.mxu0 0.0
      %1400 = vmatpush1.msra.mxu0 %v338
      %1401 = vmatprep.subr.mxu0 0.0
      %1402 = vmatpush1.msra.mxu0 %v337
      %1403 = vmatprep.subr.mxu0 0.0
      %1404 = vmatpush2.msra.mxu0 0.0
      %1405 = vmatprep.subr.mxu0 0.0
      %1406 = vmatpush2.msra.mxu0 0.0
      %1407 = vmatprep.subr.mxu0 0.0
      %1408 = vmatpush2.msra.mxu0 0.0
      %1409 = vmatprep.subr.mxu0 0.0
      %1410 = vmatpush2.msra.mxu0 0.0
      %1411 = vmatprep.subr.mxu0 0.0
      %1412 = vmatpush2.msra.mxu0 0.0
      %1413 = vmatprep.subr.mxu0 0.0
      %1414 = vmatpush2.msra.mxu0 0.0
      %1415 = vmatprep.subr.mxu0 0.0
      %1416 = vmatpush2.msra.mxu0 0.0
      %1417 = vmatprep.subr.mxu0 0.0
      %1418 = vmatpush2.msra.mxu0 0.0
      %1419 = vmatprep.subr.mxu0 0.0
      %1420 = vmatpush2.msra.mxu0 0.0
      %1421 = vmatprep.subr.mxu0 0.0
      %1422 = vmatpush2.msra.mxu0 0.0
      %1423 = vmatprep.subr.mxu0 0.0
      %1424 = vmatpush2.msra.mxu0 0.0
      %1425 = vmatprep.subr.mxu0 0.0
      %1426 = vmatpush2.msra.mxu0 0.0
      %1427 = vmatprep.subr.mxu0 0.0
      %1428 = vmatpush2.msra.mxu0 0.0
      %1429 = vmatprep.subr.mxu0 0.0
      %1430 = vmatpush2.msra.mxu0 0.0
      %1431 = vmatprep.subr.mxu0 0.0
      %1432 = vmatpush2.msra.mxu0 0.0
      %1433 = vmatprep.subr.mxu0 0.0
      %1434 = vmatpush2.msra.mxu0 0.0
      %1435 = vmatprep.mubr.f32.mxu0 0.0
      %1436 = vmatmul.mubr.f32.gmra.mxu0 %v1369
      %v1437 = vpop.f32.mrf.mxu0
      %v1438 = vadd.f32 0.0, %v1437
      %v1439 = vpop.f32.mrf.mxu0
      %1440 = vdwg.mxu0
      %v1442 = vsel %vm345, %v280, 0
      %1444 = vmatprep.subr.mxu0 0.0
      %1445 = vmatpush1.msra.mxu0 0.0
      %1446 = vmatprep.subr.mxu0 0.0
      %1447 = vmatpush1.msra.mxu0 0.0
      %1448 = vmatprep.subr.mxu0 0.0
      %1449 = vmatpush1.msra.mxu0 0.0
      %1450 = vmatprep.subr.mxu0 0.0
      %1451 = vmatpush1.msra.mxu0 0.0
      %1452 = vmatprep.subr.mxu0 0.0
      %1453 = vmatpush1.msra.mxu0 0.0
      %1454 = vmatprep.subr.mxu0 0.0
      %1455 = vmatpush1.msra.mxu0 0.0
      %1456 = vmatprep.subr.mxu0 0.0
      %1457 = vmatpush1.msra.mxu0 0.0
      %1458 = vmatprep.subr.mxu0 0.0
      %1459 = vmatpush1.msra.mxu0 0.0
      %1460 = vmatprep.subr.mxu0 0.0
      %1461 = vmatpush1.msra.mxu0 0.0
      %1462 = vmatprep.subr.mxu0 0.0
      %1463 = vmatpush1.msra.mxu0 0.0
      %1464 = vmatprep.subr.mxu0 0.0
      %1465 = vmatpush1.msra.mxu0 0.0
      %1466 = vmatprep.subr.mxu0 0.0
      %1467 = vmatpush1.msra.mxu0 0.0
      %1468 = vmatprep.subr.mxu0 0.0
      %1469 = vmatpush1.msra.mxu0 %v344
      %1470 = vmatprep.subr.mxu0 0.0
      %1471 = vmatpush1.msra.mxu0 %v343
      %1472 = vmatprep.subr.mxu0 0.0
      %1473 = vmatpush1.msra.mxu0 %v342
      %1474 = vmatprep.subr.mxu0 0.0
      %1475 = vmatpush1.msra.mxu0 %v341
      %1476 = vmatprep.subr.mxu0 0.0
      %1477 = vmatpush2.msra.mxu0 0.0
      %1478 = vmatprep.subr.mxu0 0.0
      %1479 = vmatpush2.msra.mxu0 0.0
      %1480 = vmatprep.subr.mxu0 0.0
      %1481 = vmatpush2.msra.mxu0 0.0
      %1482 = vmatprep.subr.mxu0 0.0
      %1483 = vmatpush2.msra.mxu0 0.0
      %1484 = vmatprep.subr.mxu0 0.0
      %1485 = vmatpush2.msra.mxu0 0.0
      %1486 = vmatprep.subr.mxu0 0.0
      %1487 = vmatpush2.msra.mxu0 0.0
      %1488 = vmatprep.subr.mxu0 0.0
      %1489 = vmatpush2.msra.mxu0 0.0
      %1490 = vmatprep.subr.mxu0 0.0
      %1491 = vmatpush2.msra.mxu0 0.0
      %1492 = vmatprep.subr.mxu0 0.0
      %1493 = vmatpush2.msra.mxu0 0.0
      %1494 = vmatprep.subr.mxu0 0.0
      %1495 = vmatpush2.msra.mxu0 0.0
      %1496 = vmatprep.subr.mxu0 0.0
      %1497 = vmatpush2.msra.mxu0 0.0
      %1498 = vmatprep.subr.mxu0 0.0
      %1499 = vmatpush2.msra.mxu0 0.0
      %1500 = vmatprep.subr.mxu0 0.0
      %1501 = vmatpush2.msra.mxu0 0.0
      %1502 = vmatprep.subr.mxu0 0.0
      %1503 = vmatpush2.msra.mxu0 0.0
      %1504 = vmatprep.subr.mxu0 0.0
      %1505 = vmatpush2.msra.mxu0 0.0
      %1506 = vmatprep.subr.mxu0 0.0
      %1507 = vmatpush2.msra.mxu0 0.0
      %1508 = vmatprep.mubr.f32.mxu0 0.0
      %1509 = vmatmul.mubr.f32.gmra.mxu0 %v1442
      %v1510 = vpop.f32.mrf.mxu0
      %v1511 = vadd.f32 0.0, %v1510
      %v1512 = vpop.f32.mrf.mxu0
      %1513 = vdwg.mxu0
      %v1514 = vld [vmem:[%s251] sm:$0xff]
      %v1515 = vld [vmem:[%s251 + $0x8] sm:$0xff]
      %v1516 = vld [vmem:[%s251 + $0x10] sm:$0xff]
      %v1517 = vld [vmem:[%s251 + $0x18] sm:$0xff]
      %v1518 = vld [vmem:[%s251 + $0x20] sm:$0xff]
      %v1519 = vld [vmem:[%s251 + $0x28] sm:$0xff]
      %v1520 = vld [vmem:[%s251 + $0x30] sm:$0xff]
      %v1521 = vld [vmem:[%s251 + $0x38] sm:$0xff]
      %v1522 = vld [vmem:[%s251 + $0x40] sm:$0xff]
      %v1523 = vld [vmem:[%s251 + $0x48] sm:$0xff]
      %v1524 = vld [vmem:[%s251 + $0x50] sm:$0xff]
      %v1525 = vld [vmem:[%s251 + $0x58] sm:$0xff]
      %v1526 = vld [vmem:[%s251 + $0x60] sm:$0xff]
      %v1527 = vld [vmem:[%s251 + $0x68] sm:$0xff]
      %v1528 = vld [vmem:[%s251 + $0x70] sm:$0xff]
      %v1529 = vld [vmem:[%s251 + $0x78] sm:$0xff]
      %v1530 = vld [vmem:[%s251 + $0x80] sm:$0xff]
      %v1531 = vld [vmem:[%s251 + $0x88] sm:$0xff]
      %v1532 = vld [vmem:[%s251 + $0x90] sm:$0xff]
      %v1533 = vld [vmem:[%s251 + $0x98] sm:$0xff]
      %v1534 = vld [vmem:[%s251 + $0xa0] sm:$0xff]
      %v1535 = vld [vmem:[%s251 + $0xa8] sm:$0xff]
      %v1536 = vld [vmem:[%s251 + $0xb0] sm:$0xff]
      %v1537 = vld [vmem:[%s251 + $0xb8] sm:$0xff]
      %v1538 = vld [vmem:[%s251 + $0xc0] sm:$0xff]
      %v1539 = vld [vmem:[%s251 + $0xc8] sm:$0xff]
      %v1540 = vld [vmem:[%s251 + $0xd0] sm:$0xff]
      %v1541 = vld [vmem:[%s251 + $0xd8] sm:$0xff]
      %v1542 = vld [vmem:[%s251 + $0xe0] sm:$0xff]
      %v1543 = vld [vmem:[%s251 + $0xe8] sm:$0xff]
      %v1544 = vld [vmem:[%s251 + $0xf0] sm:$0xff]
      %v1545 = vld [vmem:[%s251 + $0xf8] sm:$0xff]
      %v1546 = vld [vmem:[%s251 + $0x100] sm:$0xff]
      %v1547 = vld [vmem:[%s251 + $0x108] sm:$0xff]
      %v1548 = vld [vmem:[%s251 + $0x110] sm:$0xff]
      %v1549 = vld [vmem:[%s251 + $0x118] sm:$0xff]
      %v1550 = vld [vmem:[%s251 + $0x120] sm:$0xff]
      %v1551 = vld [vmem:[%s251 + $0x128] sm:$0xff]
      %v1552 = vld [vmem:[%s251 + $0x130] sm:$0xff]
      %v1553 = vld [vmem:[%s251 + $0x138] sm:$0xff]
      %v1554 = vld [vmem:[%s251 + $0x140] sm:$0xff]
      %v1555 = vld [vmem:[%s251 + $0x148] sm:$0xff]
      %v1556 = vld [vmem:[%s251 + $0x150] sm:$0xff]
      %v1557 = vld [vmem:[%s251 + $0x158] sm:$0xff]
      %v1558 = vld [vmem:[%s251 + $0x160] sm:$0xff]
      %v1559 = vld [vmem:[%s251 + $0x168] sm:$0xff]
      %v1560 = vld [vmem:[%s251 + $0x170] sm:$0xff]
      %v1561 = vld [vmem:[%s251 + $0x178] sm:$0xff]
      %v1562 = vld [vmem:[%s251 + $0x180] sm:$0xff]
      %v1563 = vld [vmem:[%s251 + $0x188] sm:$0xff]
      %v1564 = vld [vmem:[%s251 + $0x190] sm:$0xff]
      %v1565 = vld [vmem:[%s251 + $0x198] sm:$0xff]
      %v1566 = vld [vmem:[%s251 + $0x1a0] sm:$0xff]
      %v1567 = vld [vmem:[%s251 + $0x1a8] sm:$0xff]
      %v1568 = vld [vmem:[%s251 + $0x1b0] sm:$0xff]
      %v1569 = vld [vmem:[%s251 + $0x1b8] sm:$0xff]
      %v1570 = vld [vmem:[%s251 + $0x1c0] sm:$0xff]
      %v1571 = vld [vmem:[%s251 + $0x1c8] sm:$0xff]
      %v1572 = vld [vmem:[%s251 + $0x1d0] sm:$0xff]
      %v1573 = vld [vmem:[%s251 + $0x1d8] sm:$0xff]
      %v1574 = vld [vmem:[%s251 + $0x1e0] sm:$0xff]
      %v1575 = vld [vmem:[%s251 + $0x1e8] sm:$0xff]
      %v1576 = vld [vmem:[%s251 + $0x1f0] sm:$0xff]
      %v1577 = vld [vmem:[%s251 + $0x1f8] sm:$0xff]
      %1578 = vmatprep.subr.mxu0 0.0
      %1579 = vmatpush1.msra.mxu0 0.0
      %1580 = vmatprep.subr.mxu0 0.0
      %1581 = vmatpush1.msra.mxu0 0.0
      %1582 = vmatprep.subr.mxu0 0.0
      %1583 = vmatpush1.msra.mxu0 0.0
      %1584 = vmatprep.subr.mxu0 0.0
      %1585 = vmatpush1.msra.mxu0 0.0
      %1586 = vmatprep.subr.mxu0 0.0
      %1587 = vmatpush1.msra.mxu0 0.0
      %1588 = vmatprep.subr.mxu0 0.0
      %1589 = vmatpush1.msra.mxu0 0.0
      %1590 = vmatprep.subr.mxu0 0.0
      %1591 = vmatpush1.msra.mxu0 0.0
      %1592 = vmatprep.subr.mxu0 0.0
      %1593 = vmatpush1.msra.mxu0 0.0
      %1594 = vmatprep.subr.mxu0 0.0
      %1595 = vmatpush1.msra.mxu0 0.0
      %1596 = vmatprep.subr.mxu0 0.0
      %1597 = vmatpush1.msra.mxu0 0.0
      %1598 = vmatprep.subr.mxu0 0.0
      %1599 = vmatpush1.msra.mxu0 0.0
      %1600 = vmatprep.subr.mxu0 0.0
      %1601 = vmatpush1.msra.mxu0 0.0
      %1602 = vmatprep.subr.mxu0 0.0
      %1603 = vmatpush1.msra.mxu0 %v1517
      %1604 = vmatprep.subr.mxu0 0.0
      %1605 = vmatpush1.msra.mxu0 %v1516
      %1606 = vmatprep.subr.mxu0 0.0
      %1607 = vmatpush1.msra.mxu0 %v1515
      %1608 = vmatprep.subr.mxu0 0.0
      %1609 = vmatpush1.msra.mxu0 %v1514
      %1610 = vmatprep.subr.mxu0 0.0
      %1611 = vmatpush2.msra.mxu0 0.0
      %1612 = vmatprep.subr.mxu0 0.0
      %1613 = vmatpush2.msra.mxu0 0.0
      %1614 = vmatprep.subr.mxu0 0.0
      %1615 = vmatpush2.msra.mxu0 0.0
      %1616 = vmatprep.subr.mxu0 0.0
      %1617 = vmatpush2.msra.mxu0 0.0
      %1618 = vmatprep.subr.mxu0 0.0
      %1619 = vmatpush2.msra.mxu0 0.0
      %1620 = vmatprep.subr.mxu0 0.0
      %1621 = vmatpush2.msra.mxu0 0.0
      %1622 = vmatprep.subr.mxu0 0.0
      %1623 = vmatpush2.msra.mxu0 0.0
      %1624 = vmatprep.subr.mxu0 0.0
      %1625 = vmatpush2.msra.mxu0 0.0
      %1626 = vmatprep.subr.mxu0 0.0
      %1627 = vmatpush2.msra.mxu0 0.0
      %1628 = vmatprep.subr.mxu0 0.0
      %1629 = vmatpush2.msra.mxu0 0.0
      %1630 = vmatprep.subr.mxu0 0.0
      %1631 = vmatpush2.msra.mxu0 0.0
      %1632 = vmatprep.subr.mxu0 0.0
      %1633 = vmatpush2.msra.mxu0 0.0
      %1634 = vmatprep.subr.mxu0 0.0
      %1635 = vmatpush2.msra.mxu0 0.0
      %1636 = vmatprep.subr.mxu0 0.0
      %1637 = vmatpush2.msra.mxu0 0.0
      %1638 = vmatprep.subr.mxu0 0.0
      %1639 = vmatpush2.msra.mxu0 0.0
      %1640 = vmatprep.subr.mxu0 0.0
      %1641 = vmatpush2.msra.mxu0 0.0
      %1642 = vmatprep.mubr.f32.mxu0 0.0
      %1643 = vmatmul.mubr.f32.gmra.mxu0 %v347
      %v1644 = vpop.f32.mrf.mxu0
      %v1645 = vadd.f32 0.0, %v1644
      %v1646 = vpop.f32.mrf.mxu0
      %1647 = vdwg.mxu0
      %1648 = vmatprep.subr.mxu0 0.0
      %1649 = vmatpush1.msra.mxu0 0.0
      %1650 = vmatprep.subr.mxu0 0.0
      %1651 = vmatpush1.msra.mxu0 0.0
      %1652 = vmatprep.subr.mxu0 0.0
      %1653 = vmatpush1.msra.mxu0 0.0
      %1654 = vmatprep.subr.mxu0 0.0
      %1655 = vmatpush1.msra.mxu0 0.0
      %1656 = vmatprep.subr.mxu0 0.0
      %1657 = vmatpush1.msra.mxu0 0.0
      %1658 = vmatprep.subr.mxu0 0.0
      %1659 = vmatpush1.msra.mxu0 0.0
      %1660 = vmatprep.subr.mxu0 0.0
      %1661 = vmatpush1.msra.mxu0 0.0
      %1662 = vmatprep.subr.mxu0 0.0
      %1663 = vmatpush1.msra.mxu0 0.0
      %1664 = vmatprep.subr.mxu0 0.0
      %1665 = vmatpush1.msra.mxu0 0.0
      %1666 = vmatprep.subr.mxu0 0.0
      %1667 = vmatpush1.msra.mxu0 0.0
      %1668 = vmatprep.subr.mxu0 0.0
      %1669 = vmatpush1.msra.mxu0 0.0
      %1670 = vmatprep.subr.mxu0 0.0
      %1671 = vmatpush1.msra.mxu0 0.0
      %1672 = vmatprep.subr.mxu0 0.0
      %1673 = vmatpush1.msra.mxu0 %v1521
      %1674 = vmatprep.subr.mxu0 0.0
      %1675 = vmatpush1.msra.mxu0 %v1520
      %1676 = vmatprep.subr.mxu0 0.0
      %1677 = vmatpush1.msra.mxu0 %v1519
      %1678 = vmatprep.subr.mxu0 0.0
      %1679 = vmatpush1.msra.mxu0 %v1518
      %1680 = vmatprep.subr.mxu0 0.0
      %1681 = vmatpush2.msra.mxu0 0.0
      %1682 = vmatprep.subr.mxu0 0.0
      %1683 = vmatpush2.msra.mxu0 0.0
      %1684 = vmatprep.subr.mxu0 0.0
      %1685 = vmatpush2.msra.mxu0 0.0
      %1686 = vmatprep.subr.mxu0 0.0
      %1687 = vmatpush2.msra.mxu0 0.0
      %1688 = vmatprep.subr.mxu0 0.0
      %1689 = vmatpush2.msra.mxu0 0.0
      %1690 = vmatprep.subr.mxu0 0.0
      %1691 = vmatpush2.msra.mxu0 0.0
      %1692 = vmatprep.subr.mxu0 0.0
      %1693 = vmatpush2.msra.mxu0 0.0
      %1694 = vmatprep.subr.mxu0 0.0
      %1695 = vmatpush2.msra.mxu0 0.0
      %1696 = vmatprep.subr.mxu0 0.0
      %1697 = vmatpush2.msra.mxu0 0.0
      %1698 = vmatprep.subr.mxu0 0.0
      %1699 = vmatpush2.msra.mxu0 0.0
      %1700 = vmatprep.subr.mxu0 0.0
      %1701 = vmatpush2.msra.mxu0 0.0
      %1702 = vmatprep.subr.mxu0 0.0
      %1703 = vmatpush2.msra.mxu0 0.0
      %1704 = vmatprep.subr.mxu0 0.0
      %1705 = vmatpush2.msra.mxu0 0.0
      %1706 = vmatprep.subr.mxu0 0.0
      %1707 = vmatpush2.msra.mxu0 0.0
      %1708 = vmatprep.subr.mxu0 0.0
      %1709 = vmatpush2.msra.mxu0 0.0
      %1710 = vmatprep.subr.mxu0 0.0
      %1711 = vmatpush2.msra.mxu0 0.0
      %1712 = vmatprep.mubr.f32.mxu0 0.0
      %1713 = vmatmul.mubr.f32.gmra.mxu0 %v420
      %v1714 = vpop.f32.mrf.mxu0
      %v1715 = vadd.f32 0.0, %v1714
      %v1716 = vpop.f32.mrf.mxu0
      %1717 = vdwg.mxu0
      %1718 = vmatprep.subr.mxu0 0.0
      %1719 = vmatpush1.msra.mxu0 0.0
      %1720 = vmatprep.subr.mxu0 0.0
      %1721 = vmatpush1.msra.mxu0 0.0
      %1722 = vmatprep.subr.mxu0 0.0
      %1723 = vmatpush1.msra.mxu0 0.0
      %1724 = vmatprep.subr.mxu0 0.0
      %1725 = vmatpush1.msra.mxu0 0.0
      %1726 = vmatprep.subr.mxu0 0.0
      %1727 = vmatpush1.msra.mxu0 0.0
      %1728 = vmatprep.subr.mxu0 0.0
      %1729 = vmatpush1.msra.mxu0 0.0
      %1730 = vmatprep.subr.mxu0 0.0
      %1731 = vmatpush1.msra.mxu0 0.0
      %1732 = vmatprep.subr.mxu0 0.0
      %1733 = vmatpush1.msra.mxu0 0.0
      %1734 = vmatprep.subr.mxu0 0.0
      %1735 = vmatpush1.msra.mxu0 0.0
      %1736 = vmatprep.subr.mxu0 0.0
      %1737 = vmatpush1.msra.mxu0 0.0
      %1738 = vmatprep.subr.mxu0 0.0
      %1739 = vmatpush1.msra.mxu0 0.0
      %1740 = vmatprep.subr.mxu0 0.0
      %1741 = vmatpush1.msra.mxu0 0.0
      %1742 = vmatprep.subr.mxu0 0.0
      %1743 = vmatpush1.msra.mxu0 %v1525
      %1744 = vmatprep.subr.mxu0 0.0
      %1745 = vmatpush1.msra.mxu0 %v1524
      %1746 = vmatprep.subr.mxu0 0.0
      %1747 = vmatpush1.msra.mxu0 %v1523
      %1748 = vmatprep.subr.mxu0 0.0
      %1749 = vmatpush1.msra.mxu0 %v1522
      %1750 = vmatprep.subr.mxu0 0.0
      %1751 = vmatpush2.msra.mxu0 0.0
      %1752 = vmatprep.subr.mxu0 0.0
      %1753 = vmatpush2.msra.mxu0 0.0
      %1754 = vmatprep.subr.mxu0 0.0
      %1755 = vmatpush2.msra.mxu0 0.0
      %1756 = vmatprep.subr.mxu0 0.0
      %1757 = vmatpush2.msra.mxu0 0.0
      %1758 = vmatprep.subr.mxu0 0.0
      %1759 = vmatpush2.msra.mxu0 0.0
      %1760 = vmatprep.subr.mxu0 0.0
      %1761 = vmatpush2.msra.mxu0 0.0
      %1762 = vmatprep.subr.mxu0 0.0
      %1763 = vmatpush2.msra.mxu0 0.0
      %1764 = vmatprep.subr.mxu0 0.0
      %1765 = vmatpush2.msra.mxu0 0.0
      %1766 = vmatprep.subr.mxu0 0.0
      %1767 = vmatpush2.msra.mxu0 0.0
      %1768 = vmatprep.subr.mxu0 0.0
      %1769 = vmatpush2.msra.mxu0 0.0
      %1770 = vmatprep.subr.mxu0 0.0
      %1771 = vmatpush2.msra.mxu0 0.0
      %1772 = vmatprep.subr.mxu0 0.0
      %1773 = vmatpush2.msra.mxu0 0.0
      %1774 = vmatprep.subr.mxu0 0.0
      %1775 = vmatpush2.msra.mxu0 0.0
      %1776 = vmatprep.subr.mxu0 0.0
      %1777 = vmatpush2.msra.mxu0 0.0
      %1778 = vmatprep.subr.mxu0 0.0
      %1779 = vmatpush2.msra.mxu0 0.0
      %1780 = vmatprep.subr.mxu0 0.0
      %1781 = vmatpush2.msra.mxu0 0.0
      %1782 = vmatprep.mubr.f32.mxu0 0.0
      %1783 = vmatmul.mubr.f32.gmra.mxu0 %v493
      %v1784 = vpop.f32.mrf.mxu0
      %v1785 = vadd.f32 0.0, %v1784
      %v1786 = vpop.f32.mrf.mxu0
      %1787 = vdwg.mxu0
      %1788 = vmatprep.subr.mxu0 0.0
      %1789 = vmatpush1.msra.mxu0 0.0
      %1790 = vmatprep.subr.mxu0 0.0
      %1791 = vmatpush1.msra.mxu0 0.0
      %1792 = vmatprep.subr.mxu0 0.0
      %1793 = vmatpush1.msra.mxu0 0.0
      %1794 = vmatprep.subr.mxu0 0.0
      %1795 = vmatpush1.msra.mxu0 0.0
      %1796 = vmatprep.subr.mxu0 0.0
      %1797 = vmatpush1.msra.mxu0 0.0
      %1798 = vmatprep.subr.mxu0 0.0
      %1799 = vmatpush1.msra.mxu0 0.0
      %1800 = vmatprep.subr.mxu0 0.0
      %1801 = vmatpush1.msra.mxu0 0.0
      %1802 = vmatprep.subr.mxu0 0.0
      %1803 = vmatpush1.msra.mxu0 0.0
      %1804 = vmatprep.subr.mxu0 0.0
      %1805 = vmatpush1.msra.mxu0 0.0
      %1806 = vmatprep.subr.mxu0 0.0
      %1807 = vmatpush1.msra.mxu0 0.0
      %1808 = vmatprep.subr.mxu0 0.0
      %1809 = vmatpush1.msra.mxu0 0.0
      %1810 = vmatprep.subr.mxu0 0.0
      %1811 = vmatpush1.msra.mxu0 0.0
      %1812 = vmatprep.subr.mxu0 0.0
      %1813 = vmatpush1.msra.mxu0 %v1529
      %1814 = vmatprep.subr.mxu0 0.0
      %1815 = vmatpush1.msra.mxu0 %v1528
      %1816 = vmatprep.subr.mxu0 0.0
      %1817 = vmatpush1.msra.mxu0 %v1527
      %1818 = vmatprep.subr.mxu0 0.0
      %1819 = vmatpush1.msra.mxu0 %v1526
      %1820 = vmatprep.subr.mxu0 0.0
      %1821 = vmatpush2.msra.mxu0 0.0
      %1822 = vmatprep.subr.mxu0 0.0
      %1823 = vmatpush2.msra.mxu0 0.0
      %1824 = vmatprep.subr.mxu0 0.0
      %1825 = vmatpush2.msra.mxu0 0.0
      %1826 = vmatprep.subr.mxu0 0.0
      %1827 = vmatpush2.msra.mxu0 0.0
      %1828 = vmatprep.subr.mxu0 0.0
      %1829 = vmatpush2.msra.mxu0 0.0
      %1830 = vmatprep.subr.mxu0 0.0
      %1831 = vmatpush2.msra.mxu0 0.0
      %1832 = vmatprep.subr.mxu0 0.0
      %1833 = vmatpush2.msra.mxu0 0.0
      %1834 = vmatprep.subr.mxu0 0.0
      %1835 = vmatpush2.msra.mxu0 0.0
      %1836 = vmatprep.subr.mxu0 0.0
      %1837 = vmatpush2.msra.mxu0 0.0
      %1838 = vmatprep.subr.mxu0 0.0
      %1839 = vmatpush2.msra.mxu0 0.0
      %1840 = vmatprep.subr.mxu0 0.0
      %1841 = vmatpush2.msra.mxu0 0.0
      %1842 = vmatprep.subr.mxu0 0.0
      %1843 = vmatpush2.msra.mxu0 0.0
      %1844 = vmatprep.subr.mxu0 0.0
      %1845 = vmatpush2.msra.mxu0 0.0
      %1846 = vmatprep.subr.mxu0 0.0
      %1847 = vmatpush2.msra.mxu0 0.0
      %1848 = vmatprep.subr.mxu0 0.0
      %1849 = vmatpush2.msra.mxu0 0.0
      %1850 = vmatprep.subr.mxu0 0.0
      %1851 = vmatpush2.msra.mxu0 0.0
      %1852 = vmatprep.mubr.f32.mxu0 0.0
      %1853 = vmatmul.mubr.f32.gmra.mxu0 %v566
      %v1854 = vpop.f32.mrf.mxu0
      %v1855 = vadd.f32 0.0, %v1854
      %v1856 = vpop.f32.mrf.mxu0
      %1857 = vdwg.mxu0
      %1858 = vmatprep.subr.mxu0 0.0
      %1859 = vmatpush1.msra.mxu0 0.0
      %1860 = vmatprep.subr.mxu0 0.0
      %1861 = vmatpush1.msra.mxu0 0.0
      %1862 = vmatprep.subr.mxu0 0.0
      %1863 = vmatpush1.msra.mxu0 0.0
      %1864 = vmatprep.subr.mxu0 0.0
      %1865 = vmatpush1.msra.mxu0 0.0
      %1866 = vmatprep.subr.mxu0 0.0
      %1867 = vmatpush1.msra.mxu0 0.0
      %1868 = vmatprep.subr.mxu0 0.0
      %1869 = vmatpush1.msra.mxu0 0.0
      %1870 = vmatprep.subr.mxu0 0.0
      %1871 = vmatpush1.msra.mxu0 0.0
      %1872 = vmatprep.subr.mxu0 0.0
      %1873 = vmatpush1.msra.mxu0 0.0
      %1874 = vmatprep.subr.mxu0 0.0
      %1875 = vmatpush1.msra.mxu0 0.0
      %1876 = vmatprep.subr.mxu0 0.0
      %1877 = vmatpush1.msra.mxu0 0.0
      %1878 = vmatprep.subr.mxu0 0.0
      %1879 = vmatpush1.msra.mxu0 0.0
      %1880 = vmatprep.subr.mxu0 0.0
      %1881 = vmatpush1.msra.mxu0 0.0
      %1882 = vmatprep.subr.mxu0 0.0
      %1883 = vmatpush1.msra.mxu0 %v1533
      %1884 = vmatprep.subr.mxu0 0.0
      %1885 = vmatpush1.msra.mxu0 %v1532
      %1886 = vmatprep.subr.mxu0 0.0
      %1887 = vmatpush1.msra.mxu0 %v1531
      %1888 = vmatprep.subr.mxu0 0.0
      %1889 = vmatpush1.msra.mxu0 %v1530
      %1890 = vmatprep.subr.mxu0 0.0
      %1891 = vmatpush2.msra.mxu0 0.0
      %1892 = vmatprep.subr.mxu0 0.0
      %1893 = vmatpush2.msra.mxu0 0.0
      %1894 = vmatprep.subr.mxu0 0.0
      %1895 = vmatpush2.msra.mxu0 0.0
      %1896 = vmatprep.subr.mxu0 0.0
      %1897 = vmatpush2.msra.mxu0 0.0
      %1898 = vmatprep.subr.mxu0 0.0
      %1899 = vmatpush2.msra.mxu0 0.0
      %1900 = vmatprep.subr.mxu0 0.0
      %1901 = vmatpush2.msra.mxu0 0.0
      %1902 = vmatprep.subr.mxu0 0.0
      %1903 = vmatpush2.msra.mxu0 0.0
      %1904 = vmatprep.subr.mxu0 0.0
      %1905 = vmatpush2.msra.mxu0 0.0
      %1906 = vmatprep.subr.mxu0 0.0
      %1907 = vmatpush2.msra.mxu0 0.0
      %1908 = vmatprep.subr.mxu0 0.0
      %1909 = vmatpush2.msra.mxu0 0.0
      %1910 = vmatprep.subr.mxu0 0.0
      %1911 = vmatpush2.msra.mxu0 0.0
      %1912 = vmatprep.subr.mxu0 0.0
      %1913 = vmatpush2.msra.mxu0 0.0
      %1914 = vmatprep.subr.mxu0 0.0
      %1915 = vmatpush2.msra.mxu0 0.0
      %1916 = vmatprep.subr.mxu0 0.0
      %1917 = vmatpush2.msra.mxu0 0.0
      %1918 = vmatprep.subr.mxu0 0.0
      %1919 = vmatpush2.msra.mxu0 0.0
      %1920 = vmatprep.subr.mxu0 0.0
      %1921 = vmatpush2.msra.mxu0 0.0
      %1922 = vmatprep.mubr.f32.mxu0 0.0
      %1923 = vmatmul.mubr.f32.gmra.mxu0 %v639
      %v1924 = vpop.f32.mrf.mxu0
      %v1925 = vadd.f32 0.0, %v1924
      %v1926 = vpop.f32.mrf.mxu0
      %1927 = vdwg.mxu0
      %1928 = vmatprep.subr.mxu0 0.0
      %1929 = vmatpush1.msra.mxu0 0.0
      %1930 = vmatprep.subr.mxu0 0.0
      %1931 = vmatpush1.msra.mxu0 0.0
      %1932 = vmatprep.subr.mxu0 0.0
      %1933 = vmatpush1.msra.mxu0 0.0
      %1934 = vmatprep.subr.mxu0 0.0
      %1935 = vmatpush1.msra.mxu0 0.0
      %1936 = vmatprep.subr.mxu0 0.0
      %1937 = vmatpush1.msra.mxu0 0.0
      %1938 = vmatprep.subr.mxu0 0.0
      %1939 = vmatpush1.msra.mxu0 0.0
      %1940 = vmatprep.subr.mxu0 0.0
      %1941 = vmatpush1.msra.mxu0 0.0
      %1942 = vmatprep.subr.mxu0 0.0
      %1943 = vmatpush1.msra.mxu0 0.0
      %1944 = vmatprep.subr.mxu0 0.0
      %1945 = vmatpush1.msra.mxu0 0.0
      %1946 = vmatprep.subr.mxu0 0.0
      %1947 = vmatpush1.msra.mxu0 0.0
      %1948 = vmatprep.subr.mxu0 0.0
      %1949 = vmatpush1.msra.mxu0 0.0
      %1950 = vmatprep.subr.mxu0 0.0
      %1951 = vmatpush1.msra.mxu0 0.0
      %1952 = vmatprep.subr.mxu0 0.0
      %1953 = vmatpush1.msra.mxu0 %v1537
      %1954 = vmatprep.subr.mxu0 0.0
      %1955 = vmatpush1.msra.mxu0 %v1536
      %1956 = vmatprep.subr.mxu0 0.0
      %1957 = vmatpush1.msra.mxu0 %v1535
      %1958 = vmatprep.subr.mxu0 0.0
      %1959 = vmatpush1.msra.mxu0 %v1534
      %1960 = vmatprep.subr.mxu0 0.0
      %1961 = vmatpush2.msra.mxu0 0.0
      %1962 = vmatprep.subr.mxu0 0.0
      %1963 = vmatpush2.msra.mxu0 0.0
      %1964 = vmatprep.subr.mxu0 0.0
      %1965 = vmatpush2.msra.mxu0 0.0
      %1966 = vmatprep.subr.mxu0 0.0
      %1967 = vmatpush2.msra.mxu0 0.0
      %1968 = vmatprep.subr.mxu0 0.0
      %1969 = vmatpush2.msra.mxu0 0.0
      %1970 = vmatprep.subr.mxu0 0.0
      %1971 = vmatpush2.msra.mxu0 0.0
      %1972 = vmatprep.subr.mxu0 0.0
      %1973 = vmatpush2.msra.mxu0 0.0
      %1974 = vmatprep.subr.mxu0 0.0
      %1975 = vmatpush2.msra.mxu0 0.0
      %1976 = vmatprep.subr.mxu0 0.0
      %1977 = vmatpush2.msra.mxu0 0.0
      %1978 = vmatprep.subr.mxu0 0.0
      %1979 = vmatpush2.msra.mxu0 0.0
      %1980 = vmatprep.subr.mxu0 0.0
      %1981 = vmatpush2.msra.mxu0 0.0
      %1982 = vmatprep.subr.mxu0 0.0
      %1983 = vmatpush2.msra.mxu0 0.0
      %1984 = vmatprep.subr.mxu0 0.0
      %1985 = vmatpush2.msra.mxu0 0.0
      %1986 = vmatprep.subr.mxu0 0.0
      %1987 = vmatpush2.msra.mxu0 0.0
      %1988 = vmatprep.subr.mxu0 0.0
      %1989 = vmatpush2.msra.mxu0 0.0
      %1990 = vmatprep.subr.mxu0 0.0
      %1991 = vmatpush2.msra.mxu0 0.0
      %1992 = vmatprep.mubr.f32.mxu0 0.0
      %1993 = vmatmul.mubr.f32.gmra.mxu0 %v712
      %v1994 = vpop.f32.mrf.mxu0
      %v1995 = vadd.f32 0.0, %v1994
      %v1996 = vpop.f32.mrf.mxu0
      %1997 = vdwg.mxu0
      %1998 = vmatprep.subr.mxu0 0.0
      %1999 = vmatpush1.msra.mxu0 0.0
      %2000 = vmatprep.subr.mxu0 0.0
      %2001 = vmatpush1.msra.mxu0 0.0
      %2002 = vmatprep.subr.mxu0 0.0
      %2003 = vmatpush1.msra.mxu0 0.0
      %2004 = vmatprep.subr.mxu0 0.0
      %2005 = vmatpush1.msra.mxu0 0.0
      %2006 = vmatprep.subr.mxu0 0.0
      %2007 = vmatpush1.msra.mxu0 0.0
      %2008 = vmatprep.subr.mxu0 0.0
      %2009 = vmatpush1.msra.mxu0 0.0
      %2010 = vmatprep.subr.mxu0 0.0
      %2011 = vmatpush1.msra.mxu0 0.0
      %2012 = vmatprep.subr.mxu0 0.0
      %2013 = vmatpush1.msra.mxu0 0.0
      %2014 = vmatprep.subr.mxu0 0.0
      %2015 = vmatpush1.msra.mxu0 0.0
      %2016 = vmatprep.subr.mxu0 0.0
      %2017 = vmatpush1.msra.mxu0 0.0
      %2018 = vmatprep.subr.mxu0 0.0
      %2019 = vmatpush1.msra.mxu0 0.0
      %2020 = vmatprep.subr.mxu0 0.0
      %2021 = vmatpush1.msra.mxu0 0.0
      %2022 = vmatprep.subr.mxu0 0.0
      %2023 = vmatpush1.msra.mxu0 %v1541
      %2024 = vmatprep.subr.mxu0 0.0
      %2025 = vmatpush1.msra.mxu0 %v1540
      %2026 = vmatprep.subr.mxu0 0.0
      %2027 = vmatpush1.msra.mxu0 %v1539
      %2028 = vmatprep.subr.mxu0 0.0
      %2029 = vmatpush1.msra.mxu0 %v1538
      %2030 = vmatprep.subr.mxu0 0.0
      %2031 = vmatpush2.msra.mxu0 0.0
      %2032 = vmatprep.subr.mxu0 0.0
      %2033 = vmatpush2.msra.mxu0 0.0
      %2034 = vmatprep.subr.mxu0 0.0
      %2035 = vmatpush2.msra.mxu0 0.0
      %2036 = vmatprep.subr.mxu0 0.0
      %2037 = vmatpush2.msra.mxu0 0.0
      %2038 = vmatprep.subr.mxu0 0.0
      %2039 = vmatpush2.msra.mxu0 0.0
      %2040 = vmatprep.subr.mxu0 0.0
      %2041 = vmatpush2.msra.mxu0 0.0
      %2042 = vmatprep.subr.mxu0 0.0
      %2043 = vmatpush2.msra.mxu0 0.0
      %2044 = vmatprep.subr.mxu0 0.0
      %2045 = vmatpush2.msra.mxu0 0.0
      %2046 = vmatprep.subr.mxu0 0.0
      %2047 = vmatpush2.msra.mxu0 0.0
      %2048 = vmatprep.subr.mxu0 0.0
      %2049 = vmatpush2.msra.mxu0 0.0
      %2050 = vmatprep.subr.mxu0 0.0
      %2051 = vmatpush2.msra.mxu0 0.0
      %2052 = vmatprep.subr.mxu0 0.0
      %2053 = vmatpush2.msra.mxu0 0.0
      %2054 = vmatprep.subr.mxu0 0.0
      %2055 = vmatpush2.msra.mxu0 0.0
      %2056 = vmatprep.subr.mxu0 0.0
      %2057 = vmatpush2.msra.mxu0 0.0
      %2058 = vmatprep.subr.mxu0 0.0
      %2059 = vmatpush2.msra.mxu0 0.0
      %2060 = vmatprep.subr.mxu0 0.0
      %2061 = vmatpush2.msra.mxu0 0.0
      %2062 = vmatprep.mubr.f32.mxu0 0.0
      %2063 = vmatmul.mubr.f32.gmra.mxu0 %v785
      %v2064 = vpop.f32.mrf.mxu0
      %v2065 = vadd.f32 0.0, %v2064
      %v2066 = vpop.f32.mrf.mxu0
      %2067 = vdwg.mxu0
      %2068 = vmatprep.subr.mxu0 0.0
      %2069 = vmatpush1.msra.mxu0 0.0
      %2070 = vmatprep.subr.mxu0 0.0
      %2071 = vmatpush1.msra.mxu0 0.0
      %2072 = vmatprep.subr.mxu0 0.0
      %2073 = vmatpush1.msra.mxu0 0.0
      %2074 = vmatprep.subr.mxu0 0.0
      %2075 = vmatpush1.msra.mxu0 0.0
      %2076 = vmatprep.subr.mxu0 0.0
      %2077 = vmatpush1.msra.mxu0 0.0
      %2078 = vmatprep.subr.mxu0 0.0
      %2079 = vmatpush1.msra.mxu0 0.0
      %2080 = vmatprep.subr.mxu0 0.0
      %2081 = vmatpush1.msra.mxu0 0.0
      %2082 = vmatprep.subr.mxu0 0.0
      %2083 = vmatpush1.msra.mxu0 0.0
      %2084 = vmatprep.subr.mxu0 0.0
      %2085 = vmatpush1.msra.mxu0 0.0
      %2086 = vmatprep.subr.mxu0 0.0
      %2087 = vmatpush1.msra.mxu0 0.0
      %2088 = vmatprep.subr.mxu0 0.0
      %2089 = vmatpush1.msra.mxu0 0.0
      %2090 = vmatprep.subr.mxu0 0.0
      %2091 = vmatpush1.msra.mxu0 0.0
      %2092 = vmatprep.subr.mxu0 0.0
      %2093 = vmatpush1.msra.mxu0 %v1545
      %2094 = vmatprep.subr.mxu0 0.0
      %2095 = vmatpush1.msra.mxu0 %v1544
      %2096 = vmatprep.subr.mxu0 0.0
      %2097 = vmatpush1.msra.mxu0 %v1543
      %2098 = vmatprep.subr.mxu0 0.0
      %2099 = vmatpush1.msra.mxu0 %v1542
      %2100 = vmatprep.subr.mxu0 0.0
      %2101 = vmatpush2.msra.mxu0 0.0
      %2102 = vmatprep.subr.mxu0 0.0
      %2103 = vmatpush2.msra.mxu0 0.0
      %2104 = vmatprep.subr.mxu0 0.0
      %2105 = vmatpush2.msra.mxu0 0.0
      %2106 = vmatprep.subr.mxu0 0.0
      %2107 = vmatpush2.msra.mxu0 0.0
      %2108 = vmatprep.subr.mxu0 0.0
      %2109 = vmatpush2.msra.mxu0 0.0
      %2110 = vmatprep.subr.mxu0 0.0
      %2111 = vmatpush2.msra.mxu0 0.0
      %2112 = vmatprep.subr.mxu0 0.0
      %2113 = vmatpush2.msra.mxu0 0.0
      %2114 = vmatprep.subr.mxu0 0.0
      %2115 = vmatpush2.msra.mxu0 0.0
      %2116 = vmatprep.subr.mxu0 0.0
      %2117 = vmatpush2.msra.mxu0 0.0
      %2118 = vmatprep.subr.mxu0 0.0
      %2119 = vmatpush2.msra.mxu0 0.0
      %2120 = vmatprep.subr.mxu0 0.0
      %2121 = vmatpush2.msra.mxu0 0.0
      %2122 = vmatprep.subr.mxu0 0.0
      %2123 = vmatpush2.msra.mxu0 0.0
      %2124 = vmatprep.subr.mxu0 0.0
      %2125 = vmatpush2.msra.mxu0 0.0
      %2126 = vmatprep.subr.mxu0 0.0
      %2127 = vmatpush2.msra.mxu0 0.0
      %2128 = vmatprep.subr.mxu0 0.0
      %2129 = vmatpush2.msra.mxu0 0.0
      %2130 = vmatprep.subr.mxu0 0.0
      %2131 = vmatpush2.msra.mxu0 0.0
      %2132 = vmatprep.mubr.f32.mxu0 0.0
      %2133 = vmatmul.mubr.f32.gmra.mxu0 %v858
      %v2134 = vpop.f32.mrf.mxu0
      %v2135 = vadd.f32 0.0, %v2134
      %v2136 = vpop.f32.mrf.mxu0
      %2137 = vdwg.mxu0
      %2138 = vmatprep.subr.mxu0 0.0
      %2139 = vmatpush1.msra.mxu0 0.0
      %2140 = vmatprep.subr.mxu0 0.0
      %2141 = vmatpush1.msra.mxu0 0.0
      %2142 = vmatprep.subr.mxu0 0.0
      %2143 = vmatpush1.msra.mxu0 0.0
      %2144 = vmatprep.subr.mxu0 0.0
      %2145 = vmatpush1.msra.mxu0 0.0
      %2146 = vmatprep.subr.mxu0 0.0
      %2147 = vmatpush1.msra.mxu0 0.0
      %2148 = vmatprep.subr.mxu0 0.0
      %2149 = vmatpush1.msra.mxu0 0.0
      %2150 = vmatprep.subr.mxu0 0.0
      %2151 = vmatpush1.msra.mxu0 0.0
      %2152 = vmatprep.subr.mxu0 0.0
      %2153 = vmatpush1.msra.mxu0 0.0
      %2154 = vmatprep.subr.mxu0 0.0
      %2155 = vmatpush1.msra.mxu0 0.0
      %2156 = vmatprep.subr.mxu0 0.0
      %2157 = vmatpush1.msra.mxu0 0.0
      %2158 = vmatprep.subr.mxu0 0.0
      %2159 = vmatpush1.msra.mxu0 0.0
      %2160 = vmatprep.subr.mxu0 0.0
      %2161 = vmatpush1.msra.mxu0 0.0
      %2162 = vmatprep.subr.mxu0 0.0
      %2163 = vmatpush1.msra.mxu0 %v1549
      %2164 = vmatprep.subr.mxu0 0.0
      %2165 = vmatpush1.msra.mxu0 %v1548
      %2166 = vmatprep.subr.mxu0 0.0
      %2167 = vmatpush1.msra.mxu0 %v1547
      %2168 = vmatprep.subr.mxu0 0.0
      %2169 = vmatpush1.msra.mxu0 %v1546
      %2170 = vmatprep.subr.mxu0 0.0
      %2171 = vmatpush2.msra.mxu0 0.0
      %2172 = vmatprep.subr.mxu0 0.0
      %2173 = vmatpush2.msra.mxu0 0.0
      %2174 = vmatprep.subr.mxu0 0.0
      %2175 = vmatpush2.msra.mxu0 0.0
      %2176 = vmatprep.subr.mxu0 0.0
      %2177 = vmatpush2.msra.mxu0 0.0
      %2178 = vmatprep.subr.mxu0 0.0
      %2179 = vmatpush2.msra.mxu0 0.0
      %2180 = vmatprep.subr.mxu0 0.0
      %2181 = vmatpush2.msra.mxu0 0.0
      %2182 = vmatprep.subr.mxu0 0.0
      %2183 = vmatpush2.msra.mxu0 0.0
      %2184 = vmatprep.subr.mxu0 0.0
      %2185 = vmatpush2.msra.mxu0 0.0
      %2186 = vmatprep.subr.mxu0 0.0
      %2187 = vmatpush2.msra.mxu0 0.0
      %2188 = vmatprep.subr.mxu0 0.0
      %2189 = vmatpush2.msra.mxu0 0.0
      %2190 = vmatprep.subr.mxu0 0.0
      %2191 = vmatpush2.msra.mxu0 0.0
      %2192 = vmatprep.subr.mxu0 0.0
      %2193 = vmatpush2.msra.mxu0 0.0
      %2194 = vmatprep.subr.mxu0 0.0
      %2195 = vmatpush2.msra.mxu0 0.0
      %2196 = vmatprep.subr.mxu0 0.0
      %2197 = vmatpush2.msra.mxu0 0.0
      %2198 = vmatprep.subr.mxu0 0.0
      %2199 = vmatpush2.msra.mxu0 0.0
      %2200 = vmatprep.subr.mxu0 0.0
      %2201 = vmatpush2.msra.mxu0 0.0
      %2202 = vmatprep.mubr.f32.mxu0 0.0
      %2203 = vmatmul.mubr.f32.gmra.mxu0 %v931
      %v2204 = vpop.f32.mrf.mxu0
      %v2205 = vadd.f32 0.0, %v2204
      %v2206 = vpop.f32.mrf.mxu0
      %2207 = vdwg.mxu0
      %2208 = vmatprep.subr.mxu0 0.0
      %2209 = vmatpush1.msra.mxu0 0.0
      %2210 = vmatprep.subr.mxu0 0.0
      %2211 = vmatpush1.msra.mxu0 0.0
      %2212 = vmatprep.subr.mxu0 0.0
      %2213 = vmatpush1.msra.mxu0 0.0
      %2214 = vmatprep.subr.mxu0 0.0
      %2215 = vmatpush1.msra.mxu0 0.0
      %2216 = vmatprep.subr.mxu0 0.0
      %2217 = vmatpush1.msra.mxu0 0.0
      %2218 = vmatprep.subr.mxu0 0.0
      %2219 = vmatpush1.msra.mxu0 0.0
      %2220 = vmatprep.subr.mxu0 0.0
      %2221 = vmatpush1.msra.mxu0 0.0
      %2222 = vmatprep.subr.mxu0 0.0
      %2223 = vmatpush1.msra.mxu0 0.0
      %2224 = vmatprep.subr.mxu0 0.0
      %2225 = vmatpush1.msra.mxu0 0.0
      %2226 = vmatprep.subr.mxu0 0.0
      %2227 = vmatpush1.msra.mxu0 0.0
      %2228 = vmatprep.subr.mxu0 0.0
      %2229 = vmatpush1.msra.mxu0 0.0
      %2230 = vmatprep.subr.mxu0 0.0
      %2231 = vmatpush1.msra.mxu0 0.0
      %2232 = vmatprep.subr.mxu0 0.0
      %2233 = vmatpush1.msra.mxu0 %v1553
      %2234 = vmatprep.subr.mxu0 0.0
      %2235 = vmatpush1.msra.mxu0 %v1552
      %2236 = vmatprep.subr.mxu0 0.0
      %2237 = vmatpush1.msra.mxu0 %v1551
      %2238 = vmatprep.subr.mxu0 0.0
      %2239 = vmatpush1.msra.mxu0 %v1550
      %2240 = vmatprep.subr.mxu0 0.0
      %2241 = vmatpush2.msra.mxu0 0.0
      %2242 = vmatprep.subr.mxu0 0.0
      %2243 = vmatpush2.msra.mxu0 0.0
      %2244 = vmatprep.subr.mxu0 0.0
      %2245 = vmatpush2.msra.mxu0 0.0
      %2246 = vmatprep.subr.mxu0 0.0
      %2247 = vmatpush2.msra.mxu0 0.0
      %2248 = vmatprep.subr.mxu0 0.0
      %2249 = vmatpush2.msra.mxu0 0.0
      %2250 = vmatprep.subr.mxu0 0.0
      %2251 = vmatpush2.msra.mxu0 0.0
      %2252 = vmatprep.subr.mxu0 0.0
      %2253 = vmatpush2.msra.mxu0 0.0
      %2254 = vmatprep.subr.mxu0 0.0
      %2255 = vmatpush2.msra.mxu0 0.0
      %2256 = vmatprep.subr.mxu0 0.0
      %2257 = vmatpush2.msra.mxu0 0.0
      %2258 = vmatprep.subr.mxu0 0.0
      %2259 = vmatpush2.msra.mxu0 0.0
      %2260 = vmatprep.subr.mxu0 0.0
      %2261 = vmatpush2.msra.mxu0 0.0
      %2262 = vmatprep.subr.mxu0 0.0
      %2263 = vmatpush2.msra.mxu0 0.0
      %2264 = vmatprep.subr.mxu0 0.0
      %2265 = vmatpush2.msra.mxu0 0.0
      %2266 = vmatprep.subr.mxu0 0.0
      %2267 = vmatpush2.msra.mxu0 0.0
      %2268 = vmatprep.subr.mxu0 0.0
      %2269 = vmatpush2.msra.mxu0 0.0
      %2270 = vmatprep.subr.mxu0 0.0
      %2271 = vmatpush2.msra.mxu0 0.0
      %2272 = vmatprep.mubr.f32.mxu0 0.0
      %2273 = vmatmul.mubr.f32.gmra.mxu0 %v1004
      %v2274 = vpop.f32.mrf.mxu0
      %v2275 = vadd.f32 0.0, %v2274
      %v2276 = vpop.f32.mrf.mxu0
      %2277 = vdwg.mxu0
      %2278 = vmatprep.subr.mxu0 0.0
      %2279 = vmatpush1.msra.mxu0 0.0
      %2280 = vmatprep.subr.mxu0 0.0
      %2281 = vmatpush1.msra.mxu0 0.0
      %2282 = vmatprep.subr.mxu0 0.0
      %2283 = vmatpush1.msra.mxu0 0.0
      %2284 = vmatprep.subr.mxu0 0.0
      %2285 = vmatpush1.msra.mxu0 0.0
      %2286 = vmatprep.subr.mxu0 0.0
      %2287 = vmatpush1.msra.mxu0 0.0
      %2288 = vmatprep.subr.mxu0 0.0
      %2289 = vmatpush1.msra.mxu0 0.0
      %2290 = vmatprep.subr.mxu0 0.0
      %2291 = vmatpush1.msra.mxu0 0.0
      %2292 = vmatprep.subr.mxu0 0.0
      %2293 = vmatpush1.msra.mxu0 0.0
      %2294 = vmatprep.subr.mxu0 0.0
      %2295 = vmatpush1.msra.mxu0 0.0
      %2296 = vmatprep.subr.mxu0 0.0
      %2297 = vmatpush1.msra.mxu0 0.0
      %2298 = vmatprep.subr.mxu0 0.0
      %2299 = vmatpush1.msra.mxu0 0.0
      %2300 = vmatprep.subr.mxu0 0.0
      %2301 = vmatpush1.msra.mxu0 0.0
      %2302 = vmatprep.subr.mxu0 0.0
      %2303 = vmatpush1.msra.mxu0 %v1557
      %2304 = vmatprep.subr.mxu0 0.0
      %2305 = vmatpush1.msra.mxu0 %v1556
      %2306 = vmatprep.subr.mxu0 0.0
      %2307 = vmatpush1.msra.mxu0 %v1555
      %2308 = vmatprep.subr.mxu0 0.0
      %2309 = vmatpush1.msra.mxu0 %v1554
      %2310 = vmatprep.subr.mxu0 0.0
      %2311 = vmatpush2.msra.mxu0 0.0
      %2312 = vmatprep.subr.mxu0 0.0
      %2313 = vmatpush2.msra.mxu0 0.0
      %2314 = vmatprep.subr.mxu0 0.0
      %2315 = vmatpush2.msra.mxu0 0.0
      %2316 = vmatprep.subr.mxu0 0.0
      %2317 = vmatpush2.msra.mxu0 0.0
      %2318 = vmatprep.subr.mxu0 0.0
      %2319 = vmatpush2.msra.mxu0 0.0
      %2320 = vmatprep.subr.mxu0 0.0
      %2321 = vmatpush2.msra.mxu0 0.0
      %2322 = vmatprep.subr.mxu0 0.0
      %2323 = vmatpush2.msra.mxu0 0.0
      %2324 = vmatprep.subr.mxu0 0.0
      %2325 = vmatpush2.msra.mxu0 0.0
      %2326 = vmatprep.subr.mxu0 0.0
      %2327 = vmatpush2.msra.mxu0 0.0
      %2328 = vmatprep.subr.mxu0 0.0
      %2329 = vmatpush2.msra.mxu0 0.0
      %2330 = vmatprep.subr.mxu0 0.0
      %2331 = vmatpush2.msra.mxu0 0.0
      %2332 = vmatprep.subr.mxu0 0.0
      %2333 = vmatpush2.msra.mxu0 0.0
      %2334 = vmatprep.subr.mxu0 0.0
      %2335 = vmatpush2.msra.mxu0 0.0
      %2336 = vmatprep.subr.mxu0 0.0
      %2337 = vmatpush2.msra.mxu0 0.0
      %2338 = vmatprep.subr.mxu0 0.0
      %2339 = vmatpush2.msra.mxu0 0.0
      %2340 = vmatprep.subr.mxu0 0.0
      %2341 = vmatpush2.msra.mxu0 0.0
      %2342 = vmatprep.mubr.f32.mxu0 0.0
      %2343 = vmatmul.mubr.f32.gmra.mxu0 %v1077
      %v2344 = vpop.f32.mrf.mxu0
      %v2345 = vadd.f32 0.0, %v2344
      %v2346 = vpop.f32.mrf.mxu0
      %2347 = vdwg.mxu0
      %2348 = vmatprep.subr.mxu0 0.0
      %2349 = vmatpush1.msra.mxu0 0.0
      %2350 = vmatprep.subr.mxu0 0.0
      %2351 = vmatpush1.msra.mxu0 0.0
      %2352 = vmatprep.subr.mxu0 0.0
      %2353 = vmatpush1.msra.mxu0 0.0
      %2354 = vmatprep.subr.mxu0 0.0
      %2355 = vmatpush1.msra.mxu0 0.0
      %2356 = vmatprep.subr.mxu0 0.0
      %2357 = vmatpush1.msra.mxu0 0.0
      %2358 = vmatprep.subr.mxu0 0.0
      %2359 = vmatpush1.msra.mxu0 0.0
      %2360 = vmatprep.subr.mxu0 0.0
      %2361 = vmatpush1.msra.mxu0 0.0
      %2362 = vmatprep.subr.mxu0 0.0
      %2363 = vmatpush1.msra.mxu0 0.0
      %2364 = vmatprep.subr.mxu0 0.0
      %2365 = vmatpush1.msra.mxu0 0.0
      %2366 = vmatprep.subr.mxu0 0.0
      %2367 = vmatpush1.msra.mxu0 0.0
      %2368 = vmatprep.subr.mxu0 0.0
      %2369 = vmatpush1.msra.mxu0 0.0
      %2370 = vmatprep.subr.mxu0 0.0
      %2371 = vmatpush1.msra.mxu0 0.0
      %2372 = vmatprep.subr.mxu0 0.0
      %2373 = vmatpush1.msra.mxu0 %v1561
      %2374 = vmatprep.subr.mxu0 0.0
      %2375 = vmatpush1.msra.mxu0 %v1560
      %2376 = vmatprep.subr.mxu0 0.0
      %2377 = vmatpush1.msra.mxu0 %v1559
      %2378 = vmatprep.subr.mxu0 0.0
      %2379 = vmatpush1.msra.mxu0 %v1558
      %2380 = vmatprep.subr.mxu0 0.0
      %2381 = vmatpush2.msra.mxu0 0.0
      %2382 = vmatprep.subr.mxu0 0.0
      %2383 = vmatpush2.msra.mxu0 0.0
      %2384 = vmatprep.subr.mxu0 0.0
      %2385 = vmatpush2.msra.mxu0 0.0
      %2386 = vmatprep.subr.mxu0 0.0
      %2387 = vmatpush2.msra.mxu0 0.0
      %2388 = vmatprep.subr.mxu0 0.0
      %2389 = vmatpush2.msra.mxu0 0.0
      %2390 = vmatprep.subr.mxu0 0.0
      %2391 = vmatpush2.msra.mxu0 0.0
      %2392 = vmatprep.subr.mxu0 0.0
      %2393 = vmatpush2.msra.mxu0 0.0
      %2394 = vmatprep.subr.mxu0 0.0
      %2395 = vmatpush2.msra.mxu0 0.0
      %2396 = vmatprep.subr.mxu0 0.0
      %2397 = vmatpush2.msra.mxu0 0.0
      %2398 = vmatprep.subr.mxu0 0.0
      %2399 = vmatpush2.msra.mxu0 0.0
      %2400 = vmatprep.subr.mxu0 0.0
      %2401 = vmatpush2.msra.mxu0 0.0
      %2402 = vmatprep.subr.mxu0 0.0
      %2403 = vmatpush2.msra.mxu0 0.0
      %2404 = vmatprep.subr.mxu0 0.0
      %2405 = vmatpush2.msra.mxu0 0.0
      %2406 = vmatprep.subr.mxu0 0.0
      %2407 = vmatpush2.msra.mxu0 0.0
      %2408 = vmatprep.subr.mxu0 0.0
      %2409 = vmatpush2.msra.mxu0 0.0
      %2410 = vmatprep.subr.mxu0 0.0
      %2411 = vmatpush2.msra.mxu0 0.0
      %2412 = vmatprep.mubr.f32.mxu0 0.0
      %2413 = vmatmul.mubr.f32.gmra.mxu0 %v1150
      %v2414 = vpop.f32.mrf.mxu0
      %v2415 = vadd.f32 0.0, %v2414
      %v2416 = vpop.f32.mrf.mxu0
      %2417 = vdwg.mxu0
      %2418 = vmatprep.subr.mxu0 0.0
      %2419 = vmatpush1.msra.mxu0 0.0
      %2420 = vmatprep.subr.mxu0 0.0
      %2421 = vmatpush1.msra.mxu0 0.0
      %2422 = vmatprep.subr.mxu0 0.0
      %2423 = vmatpush1.msra.mxu0 0.0
      %2424 = vmatprep.subr.mxu0 0.0
      %2425 = vmatpush1.msra.mxu0 0.0
      %2426 = vmatprep.subr.mxu0 0.0
      %2427 = vmatpush1.msra.mxu0 0.0
      %2428 = vmatprep.subr.mxu0 0.0
      %2429 = vmatpush1.msra.mxu0 0.0
      %2430 = vmatprep.subr.mxu0 0.0
      %2431 = vmatpush1.msra.mxu0 0.0
      %2432 = vmatprep.subr.mxu0 0.0
      %2433 = vmatpush1.msra.mxu0 0.0
      %2434 = vmatprep.subr.mxu0 0.0
      %2435 = vmatpush1.msra.mxu0 0.0
      %2436 = vmatprep.subr.mxu0 0.0
      %2437 = vmatpush1.msra.mxu0 0.0
      %2438 = vmatprep.subr.mxu0 0.0
      %2439 = vmatpush1.msra.mxu0 0.0
      %2440 = vmatprep.subr.mxu0 0.0
      %2441 = vmatpush1.msra.mxu0 0.0
      %2442 = vmatprep.subr.mxu0 0.0
      %2443 = vmatpush1.msra.mxu0 %v1565
      %2444 = vmatprep.subr.mxu0 0.0
      %2445 = vmatpush1.msra.mxu0 %v1564
      %2446 = vmatprep.subr.mxu0 0.0
      %2447 = vmatpush1.msra.mxu0 %v1563
      %2448 = vmatprep.subr.mxu0 0.0
      %2449 = vmatpush1.msra.mxu0 %v1562
      %2450 = vmatprep.subr.mxu0 0.0
      %2451 = vmatpush2.msra.mxu0 0.0
      %2452 = vmatprep.subr.mxu0 0.0
      %2453 = vmatpush2.msra.mxu0 0.0
      %2454 = vmatprep.subr.mxu0 0.0
      %2455 = vmatpush2.msra.mxu0 0.0
      %2456 = vmatprep.subr.mxu0 0.0
      %2457 = vmatpush2.msra.mxu0 0.0
      %2458 = vmatprep.subr.mxu0 0.0
      %2459 = vmatpush2.msra.mxu0 0.0
      %2460 = vmatprep.subr.mxu0 0.0
      %2461 = vmatpush2.msra.mxu0 0.0
      %2462 = vmatprep.subr.mxu0 0.0
      %2463 = vmatpush2.msra.mxu0 0.0
      %2464 = vmatprep.subr.mxu0 0.0
      %2465 = vmatpush2.msra.mxu0 0.0
      %2466 = vmatprep.subr.mxu0 0.0
      %2467 = vmatpush2.msra.mxu0 0.0
      %2468 = vmatprep.subr.mxu0 0.0
      %2469 = vmatpush2.msra.mxu0 0.0
      %2470 = vmatprep.subr.mxu0 0.0
      %2471 = vmatpush2.msra.mxu0 0.0
      %2472 = vmatprep.subr.mxu0 0.0
      %2473 = vmatpush2.msra.mxu0 0.0
      %2474 = vmatprep.subr.mxu0 0.0
      %2475 = vmatpush2.msra.mxu0 0.0
      %2476 = vmatprep.subr.mxu0 0.0
      %2477 = vmatpush2.msra.mxu0 0.0
      %2478 = vmatprep.subr.mxu0 0.0
      %2479 = vmatpush2.msra.mxu0 0.0
      %2480 = vmatprep.subr.mxu0 0.0
      %2481 = vmatpush2.msra.mxu0 0.0
      %2482 = vmatprep.mubr.f32.mxu0 0.0
      %2483 = vmatmul.mubr.f32.gmra.mxu0 %v1223
      %v2484 = vpop.f32.mrf.mxu0
      %v2485 = vadd.f32 0.0, %v2484
      %v2486 = vpop.f32.mrf.mxu0
      %2487 = vdwg.mxu0
      %2488 = vmatprep.subr.mxu0 0.0
      %2489 = vmatpush1.msra.mxu0 0.0
      %2490 = vmatprep.subr.mxu0 0.0
      %2491 = vmatpush1.msra.mxu0 0.0
      %2492 = vmatprep.subr.mxu0 0.0
      %2493 = vmatpush1.msra.mxu0 0.0
      %2494 = vmatprep.subr.mxu0 0.0
      %2495 = vmatpush1.msra.mxu0 0.0
      %2496 = vmatprep.subr.mxu0 0.0
      %2497 = vmatpush1.msra.mxu0 0.0
      %2498 = vmatprep.subr.mxu0 0.0
      %2499 = vmatpush1.msra.mxu0 0.0
      %2500 = vmatprep.subr.mxu0 0.0
      %2501 = vmatpush1.msra.mxu0 0.0
      %2502 = vmatprep.subr.mxu0 0.0
      %2503 = vmatpush1.msra.mxu0 0.0
      %2504 = vmatprep.subr.mxu0 0.0
      %2505 = vmatpush1.msra.mxu0 0.0
      %2506 = vmatprep.subr.mxu0 0.0
      %2507 = vmatpush1.msra.mxu0 0.0
      %2508 = vmatprep.subr.mxu0 0.0
      %2509 = vmatpush1.msra.mxu0 0.0
      %2510 = vmatprep.subr.mxu0 0.0
      %2511 = vmatpush1.msra.mxu0 0.0
      %2512 = vmatprep.subr.mxu0 0.0
      %2513 = vmatpush1.msra.mxu0 %v1569
      %2514 = vmatprep.subr.mxu0 0.0
      %2515 = vmatpush1.msra.mxu0 %v1568
      %2516 = vmatprep.subr.mxu0 0.0
      %2517 = vmatpush1.msra.mxu0 %v1567
      %2518 = vmatprep.subr.mxu0 0.0
      %2519 = vmatpush1.msra.mxu0 %v1566
      %2520 = vmatprep.subr.mxu0 0.0
      %2521 = vmatpush2.msra.mxu0 0.0
      %2522 = vmatprep.subr.mxu0 0.0
      %2523 = vmatpush2.msra.mxu0 0.0
      %2524 = vmatprep.subr.mxu0 0.0
      %2525 = vmatpush2.msra.mxu0 0.0
      %2526 = vmatprep.subr.mxu0 0.0
      %2527 = vmatpush2.msra.mxu0 0.0
      %2528 = vmatprep.subr.mxu0 0.0
      %2529 = vmatpush2.msra.mxu0 0.0
      %2530 = vmatprep.subr.mxu0 0.0
      %2531 = vmatpush2.msra.mxu0 0.0
      %2532 = vmatprep.subr.mxu0 0.0
      %2533 = vmatpush2.msra.mxu0 0.0
      %2534 = vmatprep.subr.mxu0 0.0
      %2535 = vmatpush2.msra.mxu0 0.0
      %2536 = vmatprep.subr.mxu0 0.0
      %2537 = vmatpush2.msra.mxu0 0.0
      %2538 = vmatprep.subr.mxu0 0.0
      %2539 = vmatpush2.msra.mxu0 0.0
      %2540 = vmatprep.subr.mxu0 0.0
      %2541 = vmatpush2.msra.mxu0 0.0
      %2542 = vmatprep.subr.mxu0 0.0
      %2543 = vmatpush2.msra.mxu0 0.0
      %2544 = vmatprep.subr.mxu0 0.0
      %2545 = vmatpush2.msra.mxu0 0.0
      %2546 = vmatprep.subr.mxu0 0.0
      %2547 = vmatpush2.msra.mxu0 0.0
      %2548 = vmatprep.subr.mxu0 0.0
      %2549 = vmatpush2.msra.mxu0 0.0
      %2550 = vmatprep.subr.mxu0 0.0
      %2551 = vmatpush2.msra.mxu0 0.0
      %2552 = vmatprep.mubr.f32.mxu0 0.0
      %2553 = vmatmul.mubr.f32.gmra.mxu0 %v1296
      %v2554 = vpop.f32.mrf.mxu0
      %v2555 = vadd.f32 0.0, %v2554
      %v2556 = vpop.f32.mrf.mxu0
      %2557 = vdwg.mxu0
      %2558 = vmatprep.subr.mxu0 0.0
      %2559 = vmatpush1.msra.mxu0 0.0
      %2560 = vmatprep.subr.mxu0 0.0
      %2561 = vmatpush1.msra.mxu0 0.0
      %2562 = vmatprep.subr.mxu0 0.0
      %2563 = vmatpush1.msra.mxu0 0.0
      %2564 = vmatprep.subr.mxu0 0.0
      %2565 = vmatpush1.msra.mxu0 0.0
      %2566 = vmatprep.subr.mxu0 0.0
      %2567 = vmatpush1.msra.mxu0 0.0
      %2568 = vmatprep.subr.mxu0 0.0
      %2569 = vmatpush1.msra.mxu0 0.0
      %2570 = vmatprep.subr.mxu0 0.0
      %2571 = vmatpush1.msra.mxu0 0.0
      %2572 = vmatprep.subr.mxu0 0.0
      %2573 = vmatpush1.msra.mxu0 0.0
      %2574 = vmatprep.subr.mxu0 0.0
      %2575 = vmatpush1.msra.mxu0 0.0
      %2576 = vmatprep.subr.mxu0 0.0
      %2577 = vmatpush1.msra.mxu0 0.0
      %2578 = vmatprep.subr.mxu0 0.0
      %2579 = vmatpush1.msra.mxu0 0.0
      %2580 = vmatprep.subr.mxu0 0.0
      %2581 = vmatpush1.msra.mxu0 0.0
      %2582 = vmatprep.subr.mxu0 0.0
      %2583 = vmatpush1.msra.mxu0 %v1573
      %2584 = vmatprep.subr.mxu0 0.0
      %2585 = vmatpush1.msra.mxu0 %v1572
      %2586 = vmatprep.subr.mxu0 0.0
      %2587 = vmatpush1.msra.mxu0 %v1571
      %2588 = vmatprep.subr.mxu0 0.0
      %2589 = vmatpush1.msra.mxu0 %v1570
      %2590 = vmatprep.subr.mxu0 0.0
      %2591 = vmatpush2.msra.mxu0 0.0
      %2592 = vmatprep.subr.mxu0 0.0
      %2593 = vmatpush2.msra.mxu0 0.0
      %2594 = vmatprep.subr.mxu0 0.0
      %2595 = vmatpush2.msra.mxu0 0.0
      %2596 = vmatprep.subr.mxu0 0.0
      %2597 = vmatpush2.msra.mxu0 0.0
      %2598 = vmatprep.subr.mxu0 0.0
      %2599 = vmatpush2.msra.mxu0 0.0
      %2600 = vmatprep.subr.mxu0 0.0
      %2601 = vmatpush2.msra.mxu0 0.0
      %2602 = vmatprep.subr.mxu0 0.0
      %2603 = vmatpush2.msra.mxu0 0.0
      %2604 = vmatprep.subr.mxu0 0.0
      %2605 = vmatpush2.msra.mxu0 0.0
      %2606 = vmatprep.subr.mxu0 0.0
      %2607 = vmatpush2.msra.mxu0 0.0
      %2608 = vmatprep.subr.mxu0 0.0
      %2609 = vmatpush2.msra.mxu0 0.0
      %2610 = vmatprep.subr.mxu0 0.0
      %2611 = vmatpush2.msra.mxu0 0.0
      %2612 = vmatprep.subr.mxu0 0.0
      %2613 = vmatpush2.msra.mxu0 0.0
      %2614 = vmatprep.subr.mxu0 0.0
      %2615 = vmatpush2.msra.mxu0 0.0
      %2616 = vmatprep.subr.mxu0 0.0
      %2617 = vmatpush2.msra.mxu0 0.0
      %2618 = vmatprep.subr.mxu0 0.0
      %2619 = vmatpush2.msra.mxu0 0.0
      %2620 = vmatprep.subr.mxu0 0.0
      %2621 = vmatpush2.msra.mxu0 0.0
      %2622 = vmatprep.mubr.f32.mxu0 0.0
      %2623 = vmatmul.mubr.f32.gmra.mxu0 %v1369
      %v2624 = vpop.f32.mrf.mxu0
      %v2625 = vadd.f32 0.0, %v2624
      %v2626 = vpop.f32.mrf.mxu0
      %2627 = vdwg.mxu0
      %2628 = vmatprep.subr.mxu0 0.0
      %2629 = vmatpush1.msra.mxu0 0.0
      %2630 = vmatprep.subr.mxu0 0.0
      %2631 = vmatpush1.msra.mxu0 0.0
      %2632 = vmatprep.subr.mxu0 0.0
      %2633 = vmatpush1.msra.mxu0 0.0
      %2634 = vmatprep.subr.mxu0 0.0
      %2635 = vmatpush1.msra.mxu0 0.0
      %2636 = vmatprep.subr.mxu0 0.0
      %2637 = vmatpush1.msra.mxu0 0.0
      %2638 = vmatprep.subr.mxu0 0.0
      %2639 = vmatpush1.msra.mxu0 0.0
      %2640 = vmatprep.subr.mxu0 0.0
      %2641 = vmatpush1.msra.mxu0 0.0
      %2642 = vmatprep.subr.mxu0 0.0
      %2643 = vmatpush1.msra.mxu0 0.0
      %2644 = vmatprep.subr.mxu0 0.0
      %2645 = vmatpush1.msra.mxu0 0.0
      %2646 = vmatprep.subr.mxu0 0.0
      %2647 = vmatpush1.msra.mxu0 0.0
      %2648 = vmatprep.subr.mxu0 0.0
      %2649 = vmatpush1.msra.mxu0 0.0
      %2650 = vmatprep.subr.mxu0 0.0
      %2651 = vmatpush1.msra.mxu0 0.0
      %2652 = vmatprep.subr.mxu0 0.0
      %2653 = vmatpush1.msra.mxu0 %v1577
      %2654 = vmatprep.subr.mxu0 0.0
      %2655 = vmatpush1.msra.mxu0 %v1576
      %2656 = vmatprep.subr.mxu0 0.0
      %2657 = vmatpush1.msra.mxu0 %v1575
      %2658 = vmatprep.subr.mxu0 0.0
      %2659 = vmatpush1.msra.mxu0 %v1574
      %2660 = vmatprep.subr.mxu0 0.0
      %2661 = vmatpush2.msra.mxu0 0.0
      %2662 = vmatprep.subr.mxu0 0.0
      %2663 = vmatpush2.msra.mxu0 0.0
      %2664 = vmatprep.subr.mxu0 0.0
      %2665 = vmatpush2.msra.mxu0 0.0
      %2666 = vmatprep.subr.mxu0 0.0
      %2667 = vmatpush2.msra.mxu0 0.0
      %2668 = vmatprep.subr.mxu0 0.0
      %2669 = vmatpush2.msra.mxu0 0.0
      %2670 = vmatprep.subr.mxu0 0.0
      %2671 = vmatpush2.msra.mxu0 0.0
      %2672 = vmatprep.subr.mxu0 0.0
      %2673 = vmatpush2.msra.mxu0 0.0
      %2674 = vmatprep.subr.mxu0 0.0
      %2675 = vmatpush2.msra.mxu0 0.0
      %2676 = vmatprep.subr.mxu0 0.0
      %2677 = vmatpush2.msra.mxu0 0.0
      %2678 = vmatprep.subr.mxu0 0.0
      %2679 = vmatpush2.msra.mxu0 0.0
      %2680 = vmatprep.subr.mxu0 0.0
      %2681 = vmatpush2.msra.mxu0 0.0
      %2682 = vmatprep.subr.mxu0 0.0
      %2683 = vmatpush2.msra.mxu0 0.0
      %2684 = vmatprep.subr.mxu0 0.0
      %2685 = vmatpush2.msra.mxu0 0.0
      %2686 = vmatprep.subr.mxu0 0.0
      %2687 = vmatpush2.msra.mxu0 0.0
      %2688 = vmatprep.subr.mxu0 0.0
      %2689 = vmatpush2.msra.mxu0 0.0
      %2690 = vmatprep.subr.mxu0 0.0
      %2691 = vmatpush2.msra.mxu0 0.0
      %2692 = vmatprep.mubr.f32.mxu0 0.0
      %2693 = vmatmul.mubr.f32.gmra.mxu0 %v1442
      %v2694 = vpop.f32.mrf.mxu0
      %v2695 = vadd.f32 0.0, %v2694
      %v2696 = vpop.f32.mrf.mxu0
      %2697 = vdwg.mxu0
      %v2714 = vrot.slane %v1645, 2
      %v2715 = vrot.slane %v1715, 2
      %v2716 = vrot.slane %v1785, 2
      %v2717 = vrot.slane %v1855, 2
      %v2718 = vrot.slane %v1925, 2
      %v2719 = vrot.slane %v1995, 2
      %v2720 = vrot.slane %v2065, 2
      %v2721 = vrot.slane %v2135, 2
      %v2722 = vrot.slane %v2205, 2
      %v2723 = vrot.slane %v2275, 2
      %v2724 = vrot.slane %v2345, 2
      %v2725 = vrot.slane %v2415, 2
      %v2726 = vrot.slane %v2485, 2
      %v2727 = vrot.slane %v2555, 2
      %v2728 = vrot.slane %v2625, 2
      %v2729 = vrot.slane %v2695, 2
      %v2746 = vsub.f32 %v416, %v2714
      %v2747 = vsub.f32 %v489, %v2715
      %v2748 = vsub.f32 %v562, %v2716
      %v2749 = vsub.f32 %v635, %v2717
      %v2750 = vsub.f32 %v708, %v2718
      %v2751 = vsub.f32 %v781, %v2719
      %v2752 = vsub.f32 %v854, %v2720
      %v2753 = vsub.f32 %v927, %v2721
      %v2754 = vsub.f32 %v1000, %v2722
      %v2755 = vsub.f32 %v1073, %v2723
      %v2756 = vsub.f32 %v1146, %v2724
      %v2757 = vsub.f32 %v1219, %v2725
      %v2758 = vsub.f32 %v1292, %v2726
      %v2759 = vsub.f32 %v1365, %v2727
      %v2760 = vsub.f32 %v1438, %v2728
      %v2761 = vsub.f32 %v1511, %v2729
      %vm2762 = vcmask 254976
      %2763 = vst.msk [vmem:[%s257] sm:$0x3] %vm2762, %v2746
      %2764 = vst.msk [vmem:[%s257 + $0x2] sm:$0x3] %vm2762, %v2747
      %2765 = vst.msk [vmem:[%s257 + $0x4] sm:$0x3] %vm2762, %v2748
      %2766 = vst.msk [vmem:[%s257 + $0x6] sm:$0x3] %vm2762, %v2749
      %2767 = vst.msk [vmem:[%s257 + $0x8] sm:$0x3] %vm2762, %v2750
      %2768 = vst.msk [vmem:[%s257 + $0xa] sm:$0x3] %vm2762, %v2751
      %2769 = vst.msk [vmem:[%s257 + $0xc] sm:$0x3] %vm2762, %v2752
      %2770 = vst.msk [vmem:[%s257 + $0xe] sm:$0x3] %vm2762, %v2753
      %2771 = vst.msk [vmem:[%s257 + $0x10] sm:$0x3] %vm2762, %v2754
      %2772 = vst.msk [vmem:[%s257 + $0x12] sm:$0x3] %vm2762, %v2755
      %2773 = vst.msk [vmem:[%s257 + $0x14] sm:$0x3] %vm2762, %v2756
      %2774 = vst.msk [vmem:[%s257 + $0x16] sm:$0x3] %vm2762, %v2757
      %2775 = vst.msk [vmem:[%s257 + $0x18] sm:$0x3] %vm2762, %v2758
      %2776 = vst.msk [vmem:[%s257 + $0x1a] sm:$0x3] %vm2762, %v2759
      %2777 = vst.msk [vmem:[%s257 + $0x1c] sm:$0x3] %vm2762, %v2760
      %2778 = vst.msk [vmem:[%s257 + $0x1e] sm:$0x3] %vm2762, %v2761
      %v2795 = vrot.slane %v416, 2
      %v2796 = vrot.slane %v489, 2
      %v2797 = vrot.slane %v562, 2
      %v2798 = vrot.slane %v635, 2
      %v2799 = vrot.slane %v708, 2
      %v2800 = vrot.slane %v781, 2
      %v2801 = vrot.slane %v854, 2
      %v2802 = vrot.slane %v927, 2
      %v2803 = vrot.slane %v1000, 2
      %v2804 = vrot.slane %v1073, 2
      %v2805 = vrot.slane %v1146, 2
      %v2806 = vrot.slane %v1219, 2
      %v2807 = vrot.slane %v1292, 2
      %v2808 = vrot.slane %v1365, 2
      %v2809 = vrot.slane %v1438, 2
      %v2810 = vrot.slane %v1511, 2
      %v2827 = vadd.f32 %v1645, %v2795
      %v2828 = vadd.f32 %v1715, %v2796
      %v2829 = vadd.f32 %v1785, %v2797
      %v2830 = vadd.f32 %v1855, %v2798
      %v2831 = vadd.f32 %v1925, %v2799
      %v2832 = vadd.f32 %v1995, %v2800
      %v2833 = vadd.f32 %v2065, %v2801
      %v2834 = vadd.f32 %v2135, %v2802
      %v2835 = vadd.f32 %v2205, %v2803
      %v2836 = vadd.f32 %v2275, %v2804
      %v2837 = vadd.f32 %v2345, %v2805
      %v2838 = vadd.f32 %v2415, %v2806
      %v2839 = vadd.f32 %v2485, %v2807
      %v2840 = vadd.f32 %v2555, %v2808
      %v2841 = vadd.f32 %v2625, %v2809
      %v2842 = vadd.f32 %v2695, %v2810
      %2843 = vst.msk [vmem:[%s263] sm:$0x3] %vm2762, %v2827
      %2844 = vst.msk [vmem:[%s263 + $0x2] sm:$0x3] %vm2762, %v2828
      %2845 = vst.msk [vmem:[%s263 + $0x4] sm:$0x3] %vm2762, %v2829
      %2846 = vst.msk [vmem:[%s263 + $0x6] sm:$0x3] %vm2762, %v2830
      %2847 = vst.msk [vmem:[%s263 + $0x8] sm:$0x3] %vm2762, %v2831
      %2848 = vst.msk [vmem:[%s263 + $0xa] sm:$0x3] %vm2762, %v2832
      %2849 = vst.msk [vmem:[%s263 + $0xc] sm:$0x3] %vm2762, %v2833
      %2850 = vst.msk [vmem:[%s263 + $0xe] sm:$0x3] %vm2762, %v2834
      %2851 = vst.msk [vmem:[%s263 + $0x10] sm:$0x3] %vm2762, %v2835
      %2852 = vst.msk [vmem:[%s263 + $0x12] sm:$0x3] %vm2762, %v2836
      %2853 = vst.msk [vmem:[%s263 + $0x14] sm:$0x3] %vm2762, %v2837
      %2854 = vst.msk [vmem:[%s263 + $0x16] sm:$0x3] %vm2762, %v2838
      %2855 = vst.msk [vmem:[%s263 + $0x18] sm:$0x3] %vm2762, %v2839
      %2856 = vst.msk [vmem:[%s263 + $0x1a] sm:$0x3] %vm2762, %v2840
      %2857 = vst.msk [vmem:[%s263 + $0x1c] sm:$0x3] %vm2762, %v2841
      %2858 = vst.msk [vmem:[%s263 + $0x1e] sm:$0x3] %vm2762, %v2842
      %s2859 = smul.u32 16, %s16
      %p2860 = scmp.lt.s32.totalorder %s2859, 31
      %s2861 = scalar_select %p2860, %s2859, 31
      %s2862 = smul.addr %s2861, 2
      %s2863 = scalar_lea.vmem %s3, %s2862
      %s2864 = smul.u32 16, %s16
      %p2865 = scmp.lt.s32.totalorder %s2864, 31
      %s2866 = scalar_select %p2865, %s2864, 31
      %s2867 = smul.addr %s2866, 2
      %s2868 = scalar_lea.vmem %s4, %s2867
      // Predicated region
      $region33: #{fno2d_forward.11} parent=31 // pred_check
        %p2869 = pneg %p112
      $region34: #{fno2d_forward.11} parent=31 // pred_check_branch
        %2871 = sbr.rel (%p2869) target = $region36
      $region35: #{fno2d_forward.11} parent=31 // pred_region
        %s2872 = smul.u32 16, %s16
      $region36: #{fno2d_forward.11} parent=31 // pred_fallthru
        _
      // Predicated region
      $region37: #{fno2d_forward.11} parent=31 // pred_check
        %p2873 = pneg %p138
      $region38: #{fno2d_forward.11} parent=31 // pred_check_branch
        %2875 = sbr.rel (%p2873) target = $region40
      $region39: #{fno2d_forward.11} parent=31 // pred_region
        %s2876 = smul.u32 16, %s16
      $region40: #{fno2d_forward.11} parent=31 // pred_fallthru
        _
    $region32: #{fno2d_forward.11} parent=5 // pred_fallthru
      _
    %p2877 = scmp.le.s32.totalorder 2, %s11
    // Predicated region
    $region41: #{fno2d_forward.11} parent=5 // pred_check
      %p2878 = pneg %p2877
    $region42: #{fno2d_forward.11} parent=5 // pred_check_branch
      %2880 = sbr.rel (%p2878) target = $region44
    $region43: #{fno2d_forward.11} parent=5 // pred_region
      %s2881 = ssub.s32 %s11, 2
      // Predicated region
      $region45: #{fno2d_forward.11} parent=43 // pred_check
        %p2882 = pneg %p118
      $region46: #{fno2d_forward.11} parent=43 // pred_check_branch
        %2884 = sbr.rel (%p2882) target = $region48
      $region47: #{fno2d_forward.11} parent=43 // pred_region
        %s2885 = smul.u32 16, %s17
        %p2886 = scmp.lt.s32.totalorder %s2885, 31
        %s2887 = scalar_select %p2886, %s2885, 31
        %s2888 = smul.addr %s2887, 2
        %s2889 = scalar_lea.vmem %s3, %s2888
      $region48: #{fno2d_forward.11} parent=43 // pred_fallthru
        _
      // Predicated region
      $region49: #{fno2d_forward.11} parent=43 // pred_check
        %p2890 = pneg %p144
      $region50: #{fno2d_forward.11} parent=43 // pred_check_branch
        %2892 = sbr.rel (%p2890) target = $region52
      $region51: #{fno2d_forward.11} parent=43 // pred_region
        %s2893 = smul.u32 16, %s17
        %p2894 = scmp.lt.s32.totalorder %s2893, 31
        %s2895 = scalar_select %p2894, %s2893, 31
        %s2896 = smul.addr %s2895, 2
        %s2897 = scalar_lea.vmem %s4, %s2896
      $region52: #{fno2d_forward.11} parent=43 // pred_fallthru
        _
    $region44: #{fno2d_forward.11} parent=5 // pred_fallthru
      _
  $region6: #{fno2d_forward.11} parent=0 // loop_footer
    %s15 = sadd.s32 1, %s11
  $region7: #{fno2d_forward.11} parent=0 // loop_footer_branch
    %10 = sbr.rel target = $region3
  $region8: #{fno2d_forward.11} parent=0 // loop_exit
    _

// kernel: fno2d_forward.12
$region0: #{fno2d_forward.12}
  #allocation0 [shape = 'u32[]', space=smem, size = 0x4, offset = 0x4, fixed_abs, tag = 'smem constant byte address 0x4 - core index']
  #allocation1 [shape = 'u32[144,128]{1,0:T(1,128)}', space=vmem, size = 0x12000, scoped, tag = 'internal scratch']
  %s0 = inlined_call_operand.vmem [shape: f32[32,512], index: 0, kind: input, shape index: {}]
  %s1 = inlined_call_operand.vmem [shape: f32[32,512], index: 1, kind: input, shape index: {}]
  %s2 = inlined_call_operand.vmem [shape: f32[32,32], index: 2, kind: input, shape index: {}]
  %s3 = inlined_call_operand.vmem [shape: f32[32,1], index: 3, kind: input, shape index: {}]
  %s4 = inlined_call_operand.vmem [shape: f32[32,512], index: 4, kind: output, shape index: {}]
  %s5 = sld [smem:[#allocation0]]
  $region114: #{fno2d_forward.12} parent=0
    _
  %s7 = ssub.s32 1, %s5
  %s8 = scalar_select 0, %s7, %s5
  $region1: #{fno2d_forward.12} parent=0
    #allocation2 [shape = 'u8[65536]{0}', space=vmem, size = 0x10000, scoped, tag = 'input window, operand 0']
    #allocation3 [shape = 'u8[65536]{0}', space=vmem, size = 0x10000, scoped, tag = 'input window, operand 1']
    #allocation4 [shape = 'u8[65536]{0}', space=vmem, size = 0x10000, scoped, tag = 'output window, operand 0']
    loop: start=0, step=1, limit=4
    $region2: #{fno2d_forward.12} parent=1 // loop_pre_header
      _
    $region3: #{fno2d_forward.12} parent=1 // loop_header
      %s10 = sphi 0, %s14
      %p11 = scmp.ge.s32.totalorder %s10, 4
      %s20 = sphi 0, %s22
      %s23 = sphi 0, %s20
      %s24 = sphi 0, %s23
      %s40 = sphi 0, %s24
      %s46 = sphi 0, %s48
      %s49 = sphi 0, %s46
      %s50 = sphi 0, %s49
      %s66 = sphi 0, %s50
      %s70 = sphi 0, %s70
      %s72 = sphi 0, %s70
      %s73 = sphi 0, %s72
      %s87 = sphi 0, %s73
      %s91 = sphi 0, %s91
      %s93 = sphi 0, %s91
      %s94 = sphi 0, %s93
      %s108 = sphi 0, %s94
      %s114 = sphi 0, %s116
      %s117 = sphi 0, %s114
      %s118 = sphi 0, %s117
      %s134 = sphi 0, %s118
    $region4: #{fno2d_forward.12} parent=1 // loop_header_branch
      %13 = sbr.rel (%p11) target = $region8
    $region5: #{fno2d_forward.12} parent=1 // loop_body
      %s15 = ssub.s32 %s10, 1
      %s16 = ssub.s32 %s10, 2
      %s17 = sadd.s32 %s10, 1
      %s18 = ssub.s32 %s10, %s17
      %p19 = scmp.eq.s32.totalorder %s18, 0
      %s21 = sadd.s32 %s20, 1
      %s22 = scalar_select %p19, %s20, %s21
      %p25 = pneg %p19
      %p26 = scmp.eq.s32.totalorder %s10, 1
      %p27 = por %p25, %p26
      %p28 = scmp.ne.s32.totalorder %s20, %s23
      %p29 = scmp.eq.s32.totalorder %s10, 0
      %p30 = por %p28, %p29
      %p31 = scmp.ne.s32.totalorder %s20, %s23
      %p32 = scmp.eq.s32.totalorder %s15, 1
      %p33 = por %p31, %p32
      %p34 = scmp.ne.s32.totalorder %s23, %s24
      %p35 = scmp.eq.s32.totalorder %s15, 0
      %p36 = por %p34, %p35
      %p37 = scmp.ne.s32.totalorder %s23, %s24
      %p38 = scmp.eq.s32.totalorder %s16, 1
      %p39 = por %p37, %p38
      %p41 = scmp.ne.s32.totalorder %s24, %s40
      %p42 = scmp.eq.s32.totalorder %s16, 0
      %p43 = por %p41, %p42
      %s44 = ssub.s32 %s10, %s17
      %p45 = scmp.eq.s32.totalorder %s44, 0
      %s47 = sadd.s32 %s46, 1
      %s48 = scalar_select %p45, %s46, %s47
      %p51 = pneg %p45
      %p52 = scmp.eq.s32.totalorder %s10, 1
      %p53 = por %p51, %p52
      %p54 = scmp.ne.s32.totalorder %s46, %s49
      %p55 = scmp.eq.s32.totalorder %s10, 0
      %p56 = por %p54, %p55
      %p57 = scmp.ne.s32.totalorder %s46, %s49
      %p58 = scmp.eq.s32.totalorder %s15, 1
      %p59 = por %p57, %p58
      %p60 = scmp.ne.s32.totalorder %s49, %s50
      %p61 = scmp.eq.s32.totalorder %s15, 0
      %p62 = por %p60, %p61
      %p63 = scmp.ne.s32.totalorder %s49, %s50
      %p64 = scmp.eq.s32.totalorder %s16, 1
      %p65 = por %p63, %p64
      %p67 = scmp.ne.s32.totalorder %s50, %s66
      %p68 = scmp.eq.s32.totalorder %s16, 0
      %p69 = por %p67, %p68
      %s71 = sadd.s32 %s70, 1
      %p74 = scmp.eq.s32.totalorder %s10, 1
      %p75 = scmp.ne.s32.totalorder %s70, %s72
      %p76 = scmp.eq.s32.totalorder %s10, 0
      %p77 = por %p75, %p76
      %p78 = scmp.ne.s32.totalorder %s70, %s72
      %p79 = scmp.eq.s32.totalorder %s15, 1
      %p80 = por %p78, %p79
      %p81 = scmp.ne.s32.totalorder %s72, %s73
      %p82 = scmp.eq.s32.totalorder %s15, 0
      %p83 = por %p81, %p82
      %p84 = scmp.ne.s32.totalorder %s72, %s73
      %p85 = scmp.eq.s32.totalorder %s16, 1
      %p86 = por %p84, %p85
      %p88 = scmp.ne.s32.totalorder %s73, %s87
      %p89 = scmp.eq.s32.totalorder %s16, 0
      %p90 = por %p88, %p89
      %s92 = sadd.s32 %s91, 1
      %p95 = scmp.eq.s32.totalorder %s10, 1
      %p96 = scmp.ne.s32.totalorder %s91, %s93
      %p97 = scmp.eq.s32.totalorder %s10, 0
      %p98 = por %p96, %p97
      %p99 = scmp.ne.s32.totalorder %s91, %s93
      %p100 = scmp.eq.s32.totalorder %s15, 1
      %p101 = por %p99, %p100
      %p102 = scmp.ne.s32.totalorder %s93, %s94
      %p103 = scmp.eq.s32.totalorder %s15, 0
      %p104 = por %p102, %p103
      %p105 = scmp.ne.s32.totalorder %s93, %s94
      %p106 = scmp.eq.s32.totalorder %s16, 1
      %p107 = por %p105, %p106
      %p109 = scmp.ne.s32.totalorder %s94, %s108
      %p110 = scmp.eq.s32.totalorder %s16, 0
      %p111 = por %p109, %p110
      %s112 = ssub.s32 %s10, %s17
      %p113 = scmp.eq.s32.totalorder %s112, 0
      %s115 = sadd.s32 %s114, 1
      %s116 = scalar_select %p113, %s114, %s115
      %p119 = pneg %p113
      %p120 = scmp.eq.s32.totalorder %s10, 1
      %p121 = por %p119, %p120
      %p122 = scmp.ne.s32.totalorder %s114, %s117
      %p123 = scmp.eq.s32.totalorder %s10, 0
      %p124 = por %p122, %p123
      %p125 = scmp.ne.s32.totalorder %s114, %s117
      %p126 = scmp.eq.s32.totalorder %s15, 1
      %p127 = por %p125, %p126
      %p128 = scmp.ne.s32.totalorder %s117, %s118
      %p129 = scmp.eq.s32.totalorder %s15, 0
      %p130 = por %p128, %p129
      %p131 = scmp.ne.s32.totalorder %s117, %s118
      %p132 = scmp.eq.s32.totalorder %s16, 1
      %p133 = por %p131, %p132
      %p135 = scmp.ne.s32.totalorder %s118, %s134
      %p136 = scmp.eq.s32.totalorder %s16, 0
      %p137 = por %p135, %p136
      %p138 = scmp.le.s32.totalorder 1, %s10
      %p139 = scmp.lt.s32.totalorder %s10, 3
      %p140 = pnand %p138, %p139
      %p141 = pneg %p140
      // Predicated region
      $region9: #{fno2d_forward.12} parent=5 // pred_check
        _
      $region10: #{fno2d_forward.12} parent=5 // pred_check_branch
        %143 = sbr.rel (%p140) target = $region12
      $region11: #{fno2d_forward.12} parent=5 // pred_region
        %s144 = ssub.s32 %s10, 1
        // Predicated region
        $region13: #{fno2d_forward.12} parent=11 // pred_check
          %p145 = pneg %p83
        $region14: #{fno2d_forward.12} parent=11 // pred_check_branch
          %147 = sbr.rel (%p145) target = $region16
        $region15: #{fno2d_forward.12} parent=11 // pred_region
          _
        $region16: #{fno2d_forward.12} parent=11 // pred_fallthru
          _
        // Predicated region
        $region17: #{fno2d_forward.12} parent=11 // pred_check
          %p148 = pneg %p104
        $region18: #{fno2d_forward.12} parent=11 // pred_check_branch
          %150 = sbr.rel (%p148) target = $region20
        $region19: #{fno2d_forward.12} parent=11 // pred_region
          _
        $region20: #{fno2d_forward.12} parent=11 // pred_fallthru
          _
      $region12: #{fno2d_forward.12} parent=5 // pred_fallthru
        _
      %p151 = scmp.lt.s32.totalorder %s10, 2
      // Predicated region
      $region21: #{fno2d_forward.12} parent=5 // pred_check
        %p152 = pneg %p151
      $region22: #{fno2d_forward.12} parent=5 // pred_check_branch
        %154 = sbr.rel (%p152) target = $region24
      $region23: #{fno2d_forward.12} parent=5 // pred_region
        // Predicated region
        $region25: #{fno2d_forward.12} parent=23 // pred_check
          %p155 = pneg %p30
        $region26: #{fno2d_forward.12} parent=23 // pred_check_branch
          %157 = sbr.rel (%p155) target = $region28
        $region27: #{fno2d_forward.12} parent=23 // pred_region
          %s158 = sand.u32 %s20, 1
          %s159 = sand.u32 %s20, 1
          %s160 = smul.addr %s159, 64
          %s161 = scalar_lea.vmem [#allocation2], %s160
          %s162 = smul.u32 2, %s10
          %s163 = smul.addr %s162, 8
          %s164 = scalar_lea.vmem %s0, %s163
          // Predicated region
          $region29: #{fno2d_forward.12} parent=27 // pred_check
            _
          $region30: #{fno2d_forward.12} parent=27 // pred_check_branch
            %166 = sbr.rel (0) target = $region32
          $region31: #{fno2d_forward.12} parent=27 // pred_region
            // Predicated region
            $region33: #{fno2d_forward.12} parent=31 // pred_check
              _
            $region34: #{fno2d_forward.12} parent=31 // pred_check_branch
              %168 = sbr.rel (0) target = $region36
            $region35: #{fno2d_forward.12} parent=31 // pred_region
              loop: start=0, step=1, limit=1
              $region37: #{fno2d_forward.12} parent=35 // loop_pre_header
                _
              $region38: #{fno2d_forward.12} parent=35 // loop_header
                %s170 = sphi 0, %s174
                %p171 = scmp.ge.s32.totalorder %s170, 1
                %s175 = sphi %s164, %s164
                %s176 = sphi %s161, %s161
              $region39: #{fno2d_forward.12} parent=35 // loop_header_branch
                %173 = sbr.rel (%p171) target = $region43
              $region40: #{fno2d_forward.12} parent=35 // loop_body
                %v177 = vld [vmem:[%s175] sm:$0xff]
                %178 = vst [vmem:[%s176] sm:$0xff] %v177
                %v179 = vld [vmem:[%s175 + $0x8] sm:$0xff]
                %180 = vst [vmem:[%s176 + $0x8] sm:$0xff] %v179
                %v181 = vld [vmem:[%s175 + $0x20] sm:$0xff]
                %182 = vst [vmem:[%s176 + $0x10] sm:$0xff] %v181
                %v183 = vld [vmem:[%s175 + $0x28] sm:$0xff]
                %184 = vst [vmem:[%s176 + $0x18] sm:$0xff] %v183
                %v185 = vld [vmem:[%s175 + $0x40] sm:$0xff]
                %186 = vst [vmem:[%s176 + $0x20] sm:$0xff] %v185
                %v187 = vld [vmem:[%s175 + $0x48] sm:$0xff]
                %188 = vst [vmem:[%s176 + $0x28] sm:$0xff] %v187
                %v189 = vld [vmem:[%s175 + $0x60] sm:$0xff]
                %190 = vst [vmem:[%s176 + $0x30] sm:$0xff] %v189
                %v191 = vld [vmem:[%s175 + $0x68] sm:$0xff]
                %192 = vst [vmem:[%s176 + $0x38] sm:$0xff] %v191
              $region41: #{fno2d_forward.12} parent=35 // loop_footer
                %s174 = sadd.s32 1, %s170
              $region42: #{fno2d_forward.12} parent=35 // loop_footer_branch
                %169 = sbr.rel target = $region38
              $region43: #{fno2d_forward.12} parent=35 // loop_exit
                _
            $region36: #{fno2d_forward.12} parent=31 // pred_fallthru
              _
            // Predicated region
            $region44: #{fno2d_forward.12} parent=31 // pred_check
              _
            $region45: #{fno2d_forward.12} parent=31 // pred_check_branch
              %194 = sbr.rel target = $region47
            $region46: #{fno2d_forward.12} parent=31 // pred_region
              _
            $region47: #{fno2d_forward.12} parent=31 // pred_fallthru
              _
          $region32: #{fno2d_forward.12} parent=27 // pred_fallthru
            _
          %195 = vnop
        $region28: #{fno2d_forward.12} parent=23 // pred_fallthru
          _
        // Predicated region
        $region48: #{fno2d_forward.12} parent=23 // pred_check
          %p196 = pneg %p56
        $region49: #{fno2d_forward.12} parent=23 // pred_check_branch
          %198 = sbr.rel (%p196) target = $region51
        $region50: #{fno2d_forward.12} parent=23 // pred_region
          %s199 = sand.u32 %s46, 1
          %s200 = sand.u32 %s46, 1
          %s201 = smul.addr %s200, 64
          %s202 = scalar_lea.vmem [#allocation3], %s201
          %s203 = smul.u32 2, %s10
          %s204 = smul.addr %s203, 8
          %s205 = scalar_lea.vmem %s1, %s204
          // Predicated region
          $region52: #{fno2d_forward.12} parent=50 // pred_check
            _
          $region53: #{fno2d_forward.12} parent=50 // pred_check_branch
            %207 = sbr.rel (0) target = $region55
          $region54: #{fno2d_forward.12} parent=50 // pred_region
            // Predicated region
            $region56: #{fno2d_forward.12} parent=54 // pred_check
              _
            $region57: #{fno2d_forward.12} parent=54 // pred_check_branch
              %209 = sbr.rel (0) target = $region59
            $region58: #{fno2d_forward.12} parent=54 // pred_region
              loop: start=0, step=1, limit=1
              $region60: #{fno2d_forward.12} parent=58 // loop_pre_header
                _
              $region61: #{fno2d_forward.12} parent=58 // loop_header
                %s211 = sphi 0, %s215
                %p212 = scmp.ge.s32.totalorder %s211, 1
                %s216 = sphi %s205, %s205
                %s217 = sphi %s202, %s202
              $region62: #{fno2d_forward.12} parent=58 // loop_header_branch
                %214 = sbr.rel (%p212) target = $region66
              $region63: #{fno2d_forward.12} parent=58 // loop_body
                %v218 = vld [vmem:[%s216] sm:$0xff]
                %219 = vst [vmem:[%s217] sm:$0xff] %v218
                %v220 = vld [vmem:[%s216 + $0x8] sm:$0xff]
                %221 = vst [vmem:[%s217 + $0x8] sm:$0xff] %v220
                %v222 = vld [vmem:[%s216 + $0x20] sm:$0xff]
                %223 = vst [vmem:[%s217 + $0x10] sm:$0xff] %v222
                %v224 = vld [vmem:[%s216 + $0x28] sm:$0xff]
                %225 = vst [vmem:[%s217 + $0x18] sm:$0xff] %v224
                %v226 = vld [vmem:[%s216 + $0x40] sm:$0xff]
                %227 = vst [vmem:[%s217 + $0x20] sm:$0xff] %v226
                %v228 = vld [vmem:[%s216 + $0x48] sm:$0xff]
                %229 = vst [vmem:[%s217 + $0x28] sm:$0xff] %v228
                %v230 = vld [vmem:[%s216 + $0x60] sm:$0xff]
                %231 = vst [vmem:[%s217 + $0x30] sm:$0xff] %v230
                %v232 = vld [vmem:[%s216 + $0x68] sm:$0xff]
                %233 = vst [vmem:[%s217 + $0x38] sm:$0xff] %v232
              $region64: #{fno2d_forward.12} parent=58 // loop_footer
                %s215 = sadd.s32 1, %s211
              $region65: #{fno2d_forward.12} parent=58 // loop_footer_branch
                %210 = sbr.rel target = $region61
              $region66: #{fno2d_forward.12} parent=58 // loop_exit
                _
            $region59: #{fno2d_forward.12} parent=54 // pred_fallthru
              _
            // Predicated region
            $region67: #{fno2d_forward.12} parent=54 // pred_check
              _
            $region68: #{fno2d_forward.12} parent=54 // pred_check_branch
              %235 = sbr.rel target = $region70
            $region69: #{fno2d_forward.12} parent=54 // pred_region
              _
            $region70: #{fno2d_forward.12} parent=54 // pred_fallthru
              _
          $region55: #{fno2d_forward.12} parent=50 // pred_fallthru
            _
          %236 = vnop
        $region51: #{fno2d_forward.12} parent=23 // pred_fallthru
          _
      $region24: #{fno2d_forward.12} parent=5 // pred_fallthru
        _
      %p237 = scmp.le.s32.totalorder 1, %s10
      %p238 = scmp.lt.s32.totalorder %s10, 3
      %p239 = pnand %p237, %p238
      %p240 = pneg %p239
      // Predicated region
      $region71: #{fno2d_forward.12} parent=5 // pred_check
        _
      $region72: #{fno2d_forward.12} parent=5 // pred_check_branch
        %242 = sbr.rel (%p239) target = $region74
      $region73: #{fno2d_forward.12} parent=5 // pred_region
        %s243 = ssub.s32 %s10, 1
        %s244 = sand.u32 %s23, 1
        %s245 = sand.u32 %s23, 1
        %s246 = smul.addr %s245, 64
        %s247 = scalar_lea.vmem [#allocation2], %s246
        // Predicated region
        $region75: #{fno2d_forward.12} parent=73 // pred_check
          %p248 = pneg %p36
        $region76: #{fno2d_forward.12} parent=73 // pred_check_branch
          %250 = sbr.rel (%p248) target = $region78
        $region77: #{fno2d_forward.12} parent=73 // pred_region
          _
        $region78: #{fno2d_forward.12} parent=73 // pred_fallthru
          _
        %s251 = sand.u32 %s49, 1
        %s252 = sand.u32 %s49, 1
        %s253 = smul.addr %s252, 64
        %s254 = scalar_lea.vmem [#allocation3], %s253
        // Predicated region
        $region79: #{fno2d_forward.12} parent=73 // pred_check
          %p255 = pneg %p62
        $region80: #{fno2d_forward.12} parent=73 // pred_check_branch
          %257 = sbr.rel (%p255) target = $region82
        $region81: #{fno2d_forward.12} parent=73 // pred_region
          _
        $region82: #{fno2d_forward.12} parent=73 // pred_fallthru
          _
        %s258 = sand.u32 %s23, 1
        %s259 = sand.u32 %s23, 1
        %s260 = smul.addr %s259, 64
        %s261 = scalar_lea.vmem [#allocation2], %s260
        %p262 = pneg %p36
        %p263 = pneg %p33
        %s264 = sand.u32 %s49, 1
        %s265 = sand.u32 %s49, 1
        %s266 = smul.addr %s265, 64
        %s267 = scalar_lea.vmem [#allocation3], %s266
        %p268 = pneg %p62
        %p269 = pneg %p59
        %p270 = pneg %p83
        %p271 = pneg %p80
        %p272 = pneg %p104
        %p273 = pneg %p101
        %p274 = pneg %p130
        %p275 = pneg %p127
        %s276 = sand.u32 %s117, 1
        %s277 = sand.u32 %s117, 1
        %s278 = smul.addr %s277, 64
        %s279 = scalar_lea.vmem [#allocation4], %s278
        %s280 = smul.u32 2, %s15
        %s281 = smul.u32 2, %s15
        %s282 = smul.u32 2, %s15
        %v283 = vld [vmem:[%s2] sm:$0xff]
        %v284 = vld [vmem:[%s2 + $0x8] sm:$0xff]
        %v285 = vld [vmem:[%s2 + $0x10] sm:$0xff]
        %v286 = vld [vmem:[%s2 + $0x18] sm:$0xff]
        %v287 = vld [vmem:[%s247] sm:$0xff]
        %v288 = vld [vmem:[%s247 + $0x8] sm:$0xff]
        %v289 = vld [vmem:[%s247 + $0x10] sm:$0xff]
        %v290 = vld [vmem:[%s247 + $0x18] sm:$0xff]
        %v291 = vld [vmem:[%s247 + $0x20] sm:$0xff]
        %v292 = vld [vmem:[%s247 + $0x28] sm:$0xff]
        %v293 = vld [vmem:[%s247 + $0x30] sm:$0xff]
        %v294 = vld [vmem:[%s247 + $0x38] sm:$0xff]
        %v295 = vld [vmem:[%s3] sm:$0xff]
        %v296 = vld [vmem:[%s3 + $0x8] sm:$0xff]
        %v297 = vld [vmem:[%s3 + $0x10] sm:$0xff]
        %v298 = vld [vmem:[%s3 + $0x18] sm:$0xff]
        %300 = vset.pattern.permute.xlu0 0
        %301 = vperm.xlu0 %300, %v295
        %v302 = vpop.permute.xlu0 %301
        %305 = vset.pattern.permute.xlu0 0
        %306 = vperm.xlu0 %305, %v296
        %v307 = vpop.permute.xlu0 %306
        %310 = vset.pattern.permute.xlu0 0
        %311 = vperm.xlu0 %310, %v297
        %v312 = vpop.permute.xlu0 %311
        %315 = vset.pattern.permute.xlu0 0
        %316 = vperm.xlu0 %315, %v298
        %v317 = vpop.permute.xlu0 %316
        %vm319 = vcmask 261120
        %v321 = vsel %vm319, %v283, 0
        %v324 = vsel %vm319, %v284, 0
        %v327 = vsel %vm319, %v285, 0
        %v330 = vsel %vm319, %v286, 0
        %332 = vmatprep.subr.mxu0 0.0
        %333 = vmatpush1.msra.mxu0 0.0
        %334 = vmatprep.subr.mxu0 0.0
        %335 = vmatpush1.msra.mxu0 0.0
        %336 = vmatprep.subr.mxu0 0.0
        %337 = vmatpush1.msra.mxu0 0.0
        %338 = vmatprep.subr.mxu0 0.0
        %339 = vmatpush1.msra.mxu0 0.0
        %340 = vmatprep.subr.mxu0 0.0
        %341 = vmatpush1.msra.mxu0 0.0
        %342 = vmatprep.subr.mxu0 0.0
        %343 = vmatpush1.msra.mxu0 0.0
        %344 = vmatprep.subr.mxu0 0.0
        %345 = vmatpush1.msra.mxu0 0.0
        %346 = vmatprep.subr.mxu0 0.0
        %347 = vmatpush1.msra.mxu0 0.0
        %348 = vmatprep.subr.mxu0 0.0
        %349 = vmatpush1.msra.mxu0 0.0
        %350 = vmatprep.subr.mxu0 0.0
        %351 = vmatpush1.msra.mxu0 0.0
        %352 = vmatprep.subr.mxu0 0.0
        %353 = vmatpush1.msra.mxu0 0.0
        %354 = vmatprep.subr.mxu0 0.0
        %355 = vmatpush1.msra.mxu0 0.0
        %356 = vmatprep.subr.mxu0 %v294
        %357 = vmatpush1.msra.mxu0 %v293
        %358 = vmatprep.subr.mxu0 %v292
        %359 = vmatpush1.msra.mxu0 %v291
        %360 = vmatprep.subr.mxu0 %v290
        %361 = vmatpush1.msra.mxu0 %v289
        %362 = vmatprep.subr.mxu0 %v288
        %363 = vmatpush1.msra.mxu0 %v287
        %364 = vmatprep.subr.mxu0 0.0
        %365 = vmatpush2.msra.mxu0 0.0
        %366 = vmatprep.subr.mxu0 0.0
        %367 = vmatpush2.msra.mxu0 0.0
        %368 = vmatprep.subr.mxu0 0.0
        %369 = vmatpush2.msra.mxu0 0.0
        %370 = vmatprep.subr.mxu0 0.0
        %371 = vmatpush2.msra.mxu0 0.0
        %372 = vmatprep.subr.mxu0 0.0
        %373 = vmatpush2.msra.mxu0 0.0
        %374 = vmatprep.subr.mxu0 0.0
        %375 = vmatpush2.msra.mxu0 0.0
        %376 = vmatprep.subr.mxu0 0.0
        %377 = vmatpush2.msra.mxu0 0.0
        %378 = vmatprep.subr.mxu0 0.0
        %379 = vmatpush2.msra.mxu0 0.0
        %380 = vmatprep.subr.mxu0 0.0
        %381 = vmatpush2.msra.mxu0 0.0
        %382 = vmatprep.subr.mxu0 0.0
        %383 = vmatpush2.msra.mxu0 0.0
        %384 = vmatprep.subr.mxu0 0.0
        %385 = vmatpush2.msra.mxu0 0.0
        %386 = vmatprep.subr.mxu0 0.0
        %387 = vmatpush2.msra.mxu0 0.0
        %388 = vmatprep.subr.mxu0 0.0
        %389 = vmatpush2.msra.mxu0 0.0
        %390 = vmatprep.subr.mxu0 0.0
        %391 = vmatpush2.msra.mxu0 0.0
        %392 = vmatprep.subr.mxu0 0.0
        %393 = vmatpush2.msra.mxu0 0.0
        %394 = vmatprep.subr.mxu0 0.0
        %395 = vmatpush2.msra.mxu0 0.0
        %396 = vmatprep.mubr.f32.mxu0 0.0
        %397 = vmatmul.mubr.f32.gmra.mxu0 %v321
        %v398 = vpop.f32.mrf.mxu0
        %v399 = vadd.f32 %v302, %v398
        %v400 = vpop.f32.mrf.mxu0
        %v401 = vadd.f32 %v302, %v400
        %402 = vmatprep.mubr.f32.mxu0 0.0
        %403 = vmatmul.mubr.f32.gmra.mxu0 %v324
        %v404 = vpop.f32.mrf.mxu0
        %v405 = vadd.f32 %v307, %v404
        %v406 = vpop.f32.mrf.mxu0
        %v407 = vadd.f32 %v307, %v406
        %408 = vmatprep.mubr.f32.mxu0 0.0
        %409 = vmatmul.mubr.f32.gmra.mxu0 %v327
        %v410 = vpop.f32.mrf.mxu0
        %v411 = vadd.f32 %v312, %v410
        %v412 = vpop.f32.mrf.mxu0
        %v413 = vadd.f32 %v312, %v412
        %414 = vmatprep.mubr.f32.mxu0 0.0
        %415 = vmatmul.mubr.f32.gmra.mxu0 %v330
        %v416 = vpop.f32.mrf.mxu0
        %v417 = vadd.f32 %v317, %v416
        %v418 = vpop.f32.mrf.mxu0
        %v419 = vadd.f32 %v317, %v418
        %420 = vdwg.mxu0
        %v421 = vld [vmem:[%s254] sm:$0xff]
        %v422 = vld [vmem:[%s254 + $0x8] sm:$0xff]
        %v423 = vld [vmem:[%s254 + $0x10] sm:$0xff]
        %v424 = vld [vmem:[%s254 + $0x18] sm:$0xff]
        %v425 = vld [vmem:[%s254 + $0x20] sm:$0xff]
        %v426 = vld [vmem:[%s254 + $0x28] sm:$0xff]
        %v427 = vld [vmem:[%s254 + $0x30] sm:$0xff]
        %v428 = vld [vmem:[%s254 + $0x38] sm:$0xff]
        %v429 = vadd.f32 %v399, %v421
        %v430 = vadd.f32 %v401, %v422
        %v431 = vadd.f32 %v405, %v423
        %v432 = vadd.f32 %v407, %v424
        %v433 = vadd.f32 %v411, %v425
        %v434 = vadd.f32 %v413, %v426
        %v435 = vadd.f32 %v417, %v427
        %v436 = vadd.f32 %v419, %v428
        %v437 = vmul.f32 %v429, 0.5
        %v438 = vmul.f32 %v430, 0.5
        %v439 = vmul.f32 %v431, 0.5
        %v440 = vmul.f32 %v432, 0.5
        %v441 = vmul.f32 %v433, 0.5
        %v442 = vmul.f32 %v434, 0.5
        %v443 = vmul.f32 %v435, 0.5
        %v444 = vmul.f32 %v436, 0.5
        %v445 = vmul.f32 %v429, 0.70710677
        %v446 = vmul.f32 %v430, 0.70710677
        %v447 = vmul.f32 %v431, 0.70710677
        %v448 = vmul.f32 %v432, 0.70710677
        %v449 = vmul.f32 %v433, 0.70710677
        %v450 = vmul.f32 %v434, 0.70710677
        %v451 = vmul.f32 %v435, 0.70710677
        %v452 = vmul.f32 %v436, 0.70710677
        %v453 = vand.u32 2147483647, %v445
        %v454 = vand.u32 2147483647, %v446
        %v455 = vand.u32 2147483647, %v447
        %v456 = vand.u32 2147483647, %v448
        %v457 = vand.u32 2147483647, %v449
        %v458 = vand.u32 2147483647, %v450
        %v459 = vand.u32 2147483647, %v451
        %v460 = vand.u32 2147483647, %v452
        %v461 = vmul.f32 %v453, 0.5
        %v462 = vmul.f32 %v454, 0.5
        %v463 = vmul.f32 %v455, 0.5
        %v464 = vmul.f32 %v456, 0.5
        %v465 = vmul.f32 %v457, 0.5
        %v466 = vmul.f32 %v458, 0.5
        %v467 = vmul.f32 %v459, 0.5
        %v468 = vmul.f32 %v460, 0.5
        %v469 = vadd.f32 %v461, 1.0
        %v470 = vadd.f32 %v462, 1.0
        %v471 = vadd.f32 %v463, 1.0
        %v472 = vadd.f32 %v464, 1.0
        %v473 = vadd.f32 %v465, 1.0
        %v474 = vadd.f32 %v466, 1.0
        %v475 = vadd.f32 %v467, 1.0
        %v476 = vadd.f32 %v468, 1.0
        %v477 = vrcp.pop %v469
        %v478 = vmul.f32 1.0, %v477
        %v479 = vrcp.pop %v470
        %v480 = vmul.f32 1.0, %v479
        %v481 = vrcp.pop %v471
        %v482 = vmul.f32 1.0, %v481
        %v483 = vrcp.pop %v472
        %v484 = vmul.f32 1.0, %v483
        %v485 = vrcp.pop %v473
        %v486 = vmul.f32 1.0, %v485
        %v487 = vrcp.pop %v474
        %v488 = vmul.f32 1.0, %v487
        %v489 = vrcp.pop %v475
        %v490 = vmul.f32 1.0, %v489
        %v491 = vrcp.pop %v476
        %v492 = vmul.f32 1.0, %v491
        %v493 = vmul.f32 %v478, 0.17087276
        %v494 = vmul.f32 %v480, 0.17087276
        %v495 = vmul.f32 %v482, 0.17087276
        %v496 = vmul.f32 %v484, 0.17087276
        %v497 = vmul.f32 %v486, 0.17087276
        %v498 = vmul.f32 %v488, 0.17087276
        %v499 = vmul.f32 %v490, 0.17087276
        %v500 = vmul.f32 %v492, 0.17087276
        %v501 = vadd.f32 %v493, -0.82215226
        %v502 = vadd.f32 %v494, -0.82215226
        %v503 = vadd.f32 %v495, -0.82215226
        %v504 = vadd.f32 %v496, -0.82215226
        %v505 = vadd.f32 %v497, -0.82215226
        %v506 = vadd.f32 %v498, -0.82215226
        %v507 = vadd.f32 %v499, -0.82215226
        %v508 = vadd.f32 %v500, -0.82215226
        %v509 = vmul.f32 %v478, %v501
        %v510 = vmul.f32 %v480, %v502
        %v511 = vmul.f32 %v482, %v503
        %v512 = vmul.f32 %v484, %v504
        %v513 = vmul.f32 %v486, %v505
        %v514 = vmul.f32 %v488, %v506
        %v515 = vmul.f32 %v490, %v507
        %v516 = vmul.f32 %v492, %v508
        %v517 = vadd.f32 %v509, 1.4885159
        %v518 = vadd.f32 %v510, 1.4885159
        %v519 = vadd.f32 %v511, 1.4885159
        %v520 = vadd.f32 %v512, 1.4885159
        %v521 = vadd.f32 %v513, 1.4885159
        %v522 = vadd.f32 %v514, 1.4885159
        %v523 = vadd.f32 %v515, 1.4885159
        %v524 = vadd.f32 %v516, 1.4885159
        %v525 = vmul.f32 %v478, %v517
        %v526 = vmul.f32 %v480, %v518
        %v527 = vmul.f32 %v482, %v519
        %v528 = vmul.f32 %v484, %v520
        %v529 = vmul.f32 %v486, %v521
        %v530 = vmul.f32 %v488, %v522
        %v531 = vmul.f32 %v490, %v523
        %v532 = vmul.f32 %v492, %v524
        %v533 = vadd.f32 %v525, -1.135204
        %v534 = vadd.f32 %v526, -1.135204
        %v535 = vadd.f32 %v527, -1.135204
        %v536 = vadd.f32 %v528, -1.135204
        %v537 = vadd.f32 %v529, -1.135204
        %v538 = vadd.f32 %v530, -1.135204
        %v539 = vadd.f32 %v531, -1.135204
        %v540 = vadd.f32 %v532, -1.135204
        %v541 = vmul.f32 %v478, %v533
        %v542 = vmul.f32 %v480, %v534
        %v543 = vmul.f32 %v482, %v535
        %v544 = vmul.f32 %v484, %v536
        %v545 = vmul.f32 %v486, %v537
        %v546 = vmul.f32 %v488, %v538
        %v547 = vmul.f32 %v490, %v539
        %v548 = vmul.f32 %v492, %v540
        %v549 = vadd.f32 %v541, 0.27886808
        %v550 = vadd.f32 %v542, 0.27886808
        %v551 = vadd.f32 %v543, 0.27886808
        %v552 = vadd.f32 %v544, 0.27886808
        %v553 = vadd.f32 %v545, 0.27886808
        %v554 = vadd.f32 %v546, 0.27886808
        %v555 = vadd.f32 %v547, 0.27886808
        %v556 = vadd.f32 %v548, 0.27886808
        %v557 = vmul.f32 %v478, %v549
        %v558 = vmul.f32 %v480, %v550
        %v559 = vmul.f32 %v482, %v551
        %v560 = vmul.f32 %v484, %v552
        %v561 = vmul.f32 %v486, %v553
        %v562 = vmul.f32 %v488, %v554
        %v563 = vmul.f32 %v490, %v555
        %v564 = vmul.f32 %v492, %v556
        %v565 = vadd.f32 %v557, -0.18628806
        %v566 = vadd.f32 %v558, -0.18628806
        %v567 = vadd.f32 %v559, -0.18628806
        %v568 = vadd.f32 %v560, -0.18628806
        %v569 = vadd.f32 %v561, -0.18628806
        %v570 = vadd.f32 %v562, -0.18628806
        %v571 = vadd.f32 %v563, -0.18628806
        %v572 = vadd.f32 %v564, -0.18628806
        %v573 = vmul.f32 %v478, %v565
        %v574 = vmul.f32 %v480, %v566
        %v575 = vmul.f32 %v482, %v567
        %v576 = vmul.f32 %v484, %v568
        %v577 = vmul.f32 %v486, %v569
        %v578 = vmul.f32 %v488, %v570
        %v579 = vmul.f32 %v490, %v571
        %v580 = vmul.f32 %v492, %v572
        %v581 = vadd.f32 %v573, 0.09678418
        %v582 = vadd.f32 %v574, 0.09678418
        %v583 = vadd.f32 %v575, 0.09678418
        %v584 = vadd.f32 %v576, 0.09678418
        %v585 = vadd.f32 %v577, 0.09678418
        %v586 = vadd.f32 %v578, 0.09678418
        %v587 = vadd.f32 %v579, 0.09678418
        %v588 = vadd.f32 %v580, 0.09678418
        %v589 = vmul.f32 %v478, %v581
        %v590 = vmul.f32 %v480, %v582
        %v591 = vmul.f32 %v482, %v583
        %v592 = vmul.f32 %v484, %v584
        %v593 = vmul.f32 %v486, %v585
        %v594 = vmul.f32 %v488, %v586
        %v595 = vmul.f32 %v490, %v587
        %v596 = vmul.f32 %v492, %v588
        %v597 = vadd.f32 %v589, 0.37409195
        %v598 = vadd.f32 %v590, 0.37409195
        %v599 = vadd.f32 %v591, 0.37409195
        %v600 = vadd.f32 %v592, 0.37409195
        %v601 = vadd.f32 %v593, 0.37409195
        %v602 = vadd.f32 %v594, 0.37409195
        %v603 = vadd.f32 %v595, 0.37409195
        %v604 = vadd.f32 %v596, 0.37409195
        %v605 = vmul.f32 %v478, %v597
        %v606 = vmul.f32 %v480, %v598
        %v607 = vmul.f32 %v482, %v599
        %v608 = vmul.f32 %v484, %v600
        %v609 = vmul.f32 %v486, %v601
        %v610 = vmul.f32 %v488, %v602
        %v611 = vmul.f32 %v490, %v603
        %v612 = vmul.f32 %v492, %v604
        %v613 = vadd.f32 %v605, 1.0000237
        %v614 = vadd.f32 %v606, 1.0000237
        %v615 = vadd.f32 %v607, 1.0000237
        %v616 = vadd.f32 %v608, 1.0000237
        %v617 = vadd.f32 %v609, 1.0000237
        %v618 = vadd.f32 %v610, 1.0000237
        %v619 = vadd.f32 %v611, 1.0000237
        %v620 = vadd.f32 %v612, 1.0000237
        %v621 = vmul.f32 %v478, %v613
        %v622 = vmul.f32 %v480, %v614
        %v623 = vmul.f32 %v482, %v615
        %v624 = vmul.f32 %v484, %v616
        %v625 = vmul.f32 %v486, %v617
        %v626 = vmul.f32 %v488, %v618
        %v627 = vmul.f32 %v490, %v619
        %v628 = vmul.f32 %v492, %v620
        %v629 = vadd.f32 %v621, -1.2655122
        %v630 = vadd.f32 %v622, -1.2655122
        %v631 = vadd.f32 %v623, -1.2655122
        %v632 = vadd.f32 %v624, -1.2655122
        %v633 = vadd.f32 %v625, -1.2655122
        %v634 = vadd.f32 %v626, -1.2655122
        %v635 = vadd.f32 %v627, -1.2655122
        %v636 = vadd.f32 %v628, -1.2655122
        %v637 = vsub.f32 0.0, %v453
        %v638 = vsub.f32 0.0, %v454
        %v639 = vsub.f32 0.0, %v455
        %v640 = vsub.f32 0.0, %v456
        %v641 = vsub.f32 0.0, %v457
        %v642 = vsub.f32 0.0, %v458
        %v643 = vsub.f32 0.0, %v459
        %v644 = vsub.f32 0.0, %v460
        %v645 = vmul.f32 %v637, %v453
        %v646 = vmul.f32 %v638, %v454
        %v647 = vmul.f32 %v639, %v455
        %v648 = vmul.f32 %v640, %v456
        %v649 = vmul.f32 %v641, %v457
        %v650 = vmul.f32 %v642, %v458
        %v651 = vmul.f32 %v643, %v459
        %v652 = vmul.f32 %v644, %v460
        %v653 = vadd.f32 %v645, %v629
        %v654 = vadd.f32 %v646, %v630
        %v655 = vadd.f32 %v647, %v631
        %v656 = vadd.f32 %v648, %v632
        %v657 = vadd.f32 %v649, %v633
        %v658 = vadd.f32 %v650, %v634
        %v659 = vadd.f32 %v651, %v635
        %v660 = vadd.f32 %v652, %v636
        %v661 = vmul.f32 %v653, 1.442695
        %v662 = vpow.pop %v661
        %v663 = vmul.f32 %v654, 1.442695
        %v664 = vpow.pop %v663
        %v665 = vmul.f32 %v655, 1.442695
        %v666 = vpow.pop %v665
        %v667 = vmul.f32 %v656, 1.442695
        %v668 = vpow.pop %v667
        %v669 = vmul.f32 %v657, 1.442695
        %v670 = vpow.pop %v669
        %v671 = vmul.f32 %v658, 1.442695
        %v672 = vpow.pop %v671
        %v673 = vmul.f32 %v659, 1.442695
        %v674 = vpow.pop %v673
        %v675 = vmul.f32 %v660, 1.442695
        %v676 = vpow.pop %v675
        %v677 = vmul.f32 %v478, %v662
        %v678 = vmul.f32 %v480, %v664
        %v679 = vmul.f32 %v482, %v666
        %v680 = vmul.f32 %v484, %v668
        %v681 = vmul.f32 %v486, %v670
        %v682 = vmul.f32 %v488, %v672
        %v683 = vmul.f32 %v490, %v674
        %v684 = vmul.f32 %v492, %v676
        %vm685 = vcmp.ge.f32.partialorder %v445, 0.0
        %vm686 = vcmp.ge.f32.partialorder %v446, 0.0
        %vm687 = vcmp.ge.f32.partialorder %v447, 0.0
        %vm688 = vcmp.ge.f32.partialorder %v448, 0.0
        %vm689 = vcmp.ge.f32.partialorder %v449, 0.0
        %vm690 = vcmp.ge.f32.partialorder %v450, 0.0
        %vm691 = vcmp.ge.f32.partialorder %v451, 0.0
        %vm692 = vcmp.ge.f32.partialorder %v452, 0.0
        %v693 = vsub.f32 1.0, %v677
        %v694 = vsub.f32 1.0, %v678
        %v695 = vsub.f32 1.0, %v679
        %v696 = vsub.f32 1.0, %v680
        %v697 = vsub.f32 1.0, %v681
        %v698 = vsub.f32 1.0, %v682
        %v699 = vsub.f32 1.0, %v683
        %v700 = vsub.f32 1.0, %v684
        %v701 = vsub.f32 %v677, 1.0
        %v702 = vsub.f32 %v678, 1.0
        %v703 = vsub.f32 %v679, 1.0
        %v704 = vsub.f32 %v680, 1.0
        %v705 = vsub.f32 %v681, 1.0
        %v706 = vsub.f32 %v682, 1.0
        %v707 = vsub.f32 %v683, 1.0
        %v708 = vsub.f32 %v684, 1.0
        %v709 = vsel %vm685, %v693, %v701
        %v710 = vsel %vm686, %v694, %v702
        %v711 = vsel %vm687, %v695, %v703
        %v712 = vsel %vm688, %v696, %v704
        %v713 = vsel %vm689, %v697, %v705
        %v714 = vsel %vm690, %v698, %v706
        %v715 = vsel %vm691, %v699, %v707
        %v716 = vsel %vm692, %v700, %v708
        %v717 = vadd.f32 %v709, 1.0
        %v718 = vadd.f32 %v710, 1.0
        %v719 = vadd.f32 %v711, 1.0
        %v720 = vadd.f32 %v712, 1.0
        %v721 = vadd.f32 %v713, 1.0
        %v722 = vadd.f32 %v714, 1.0
        %v723 = vadd.f32 %v715, 1.0
        %v724 = vadd.f32 %v716, 1.0
        %v725 = vmul.f32 %v437, %v717
        %v726 = vmul.f32 %v438, %v718
        %v727 = vmul.f32 %v439, %v719
        %v728 = vmul.f32 %v440, %v720
        %v729 = vmul.f32 %v441, %v721
        %v730 = vmul.f32 %v442, %v722
        %v731 = vmul.f32 %v443, %v723
        %v732 = vmul.f32 %v444, %v724
        %733 = vst [vmem:[%s279] sm:$0xff] %v725
        %734 = vst [vmem:[%s279 + $0x8] sm:$0xff] %v726
        %735 = vst [vmem:[%s279 + $0x10] sm:$0xff] %v727
        %736 = vst [vmem:[%s279 + $0x18] sm:$0xff] %v728
        %737 = vst [vmem:[%s279 + $0x20] sm:$0xff] %v729
        %738 = vst [vmem:[%s279 + $0x28] sm:$0xff] %v730
        %739 = vst [vmem:[%s279 + $0x30] sm:$0xff] %v731
        %740 = vst [vmem:[%s279 + $0x38] sm:$0xff] %v732
        %s741 = sand.u32 %s117, 1
        %s742 = sand.u32 %s117, 1
        %s743 = smul.addr %s742, 64
        %s744 = scalar_lea.vmem [#allocation4], %s743
        // Predicated region
        $region83: #{fno2d_forward.12} parent=73 // pred_check
          %p745 = pneg %p127
        $region84: #{fno2d_forward.12} parent=73 // pred_check_branch
          %747 = sbr.rel (%p745) target = $region86
        $region85: #{fno2d_forward.12} parent=73 // pred_region
          %s748 = smul.u32 2, %s15
          %s749 = smul.addr %s748, 8
          %s750 = scalar_lea.vmem %s4, %s749
          // Predicated region
          $region87: #{fno2d_forward.12} parent=85 // pred_check
            _
          $region88: #{fno2d_forward.12} parent=85 // pred_check_branch
            %752 = sbr.rel (0) target = $region90
          $region89: #{fno2d_forward.12} parent=85 // pred_region
            // Predicated region
            $region91: #{fno2d_forward.12} parent=89 // pred_check
              _
            $region92: #{fno2d_forward.12} parent=89 // pred_check_branch
              %754 = sbr.rel (0) target = $region94
            $region93: #{fno2d_forward.12} parent=89 // pred_region
              loop: start=0, step=1, limit=1
              $region95: #{fno2d_forward.12} parent=93 // loop_pre_header
                _
              $region96: #{fno2d_forward.12} parent=93 // loop_header
                %s756 = sphi 0, %s760
                %p757 = scmp.ge.s32.totalorder %s756, 1
                %s761 = sphi %s744, %s744
                %s762 = sphi %s750, %s750
              $region97: #{fno2d_forward.12} parent=93 // loop_header_branch
                %759 = sbr.rel (%p757) target = $region101
              $region98: #{fno2d_forward.12} parent=93 // loop_body
                %v763 = vld [vmem:[%s761] sm:$0xff]
                %764 = vst [vmem:[%s762] sm:$0xff] %v763
                %v765 = vld [vmem:[%s761 + $0x8] sm:$0xff]
                %766 = vst [vmem:[%s762 + $0x8] sm:$0xff] %v765
                %v767 = vld [vmem:[%s761 + $0x10] sm:$0xff]
                %768 = vst [vmem:[%s762 + $0x20] sm:$0xff] %v767
                %v769 = vld [vmem:[%s761 + $0x18] sm:$0xff]
                %770 = vst [vmem:[%s762 + $0x28] sm:$0xff] %v769
                %v771 = vld [vmem:[%s761 + $0x20] sm:$0xff]
                %772 = vst [vmem:[%s762 + $0x40] sm:$0xff] %v771
                %v773 = vld [vmem:[%s761 + $0x28] sm:$0xff]
                %774 = vst [vmem:[%s762 + $0x48] sm:$0xff] %v773
                %v775 = vld [vmem:[%s761 + $0x30] sm:$0xff]
                %776 = vst [vmem:[%s762 + $0x60] sm:$0xff] %v775
                %v777 = vld [vmem:[%s761 + $0x38] sm:$0xff]
                %778 = vst [vmem:[%s762 + $0x68] sm:$0xff] %v777
              $region99: #{fno2d_forward.12} parent=93 // loop_footer
                %s760 = sadd.s32 1, %s756
              $region100: #{fno2d_forward.12} parent=93 // loop_footer_branch
                %755 = sbr.rel target = $region96
              $region101: #{fno2d_forward.12} parent=93 // loop_exit
                _
            $region94: #{fno2d_forward.12} parent=89 // pred_fallthru
              _
            // Predicated region
            $region102: #{fno2d_forward.12} parent=89 // pred_check
              _
            $region103: #{fno2d_forward.12} parent=89 // pred_check_branch
              %780 = sbr.rel target = $region105
            $region104: #{fno2d_forward.12} parent=89 // pred_region
              _
            $region105: #{fno2d_forward.12} parent=89 // pred_fallthru
              _
          $region90: #{fno2d_forward.12} parent=85 // pred_fallthru
            _
          %781 = vnop
        $region86: #{fno2d_forward.12} parent=73 // pred_fallthru
          _
      $region74: #{fno2d_forward.12} parent=5 // pred_fallthru
        _
      %p782 = scmp.le.s32.totalorder 2, %s10
      // Predicated region
      $region106: #{fno2d_forward.12} parent=5 // pred_check
        %p783 = pneg %p782
      $region107: #{fno2d_forward.12} parent=5 // pred_check_branch
        %785 = sbr.rel (%p783) target = $region109
      $region108: #{fno2d_forward.12} parent=5 // pred_region
        %s786 = ssub.s32 %s10, 2
        // Predicated region
        $region110: #{fno2d_forward.12} parent=108 // pred_check
          %p787 = pneg %p133
        $region111: #{fno2d_forward.12} parent=108 // pred_check_branch
          %789 = sbr.rel (%p787) target = $region113
        $region112: #{fno2d_forward.12} parent=108 // pred_region
          %s790 = sand.u32 %s118, 1
          %s791 = sand.u32 %s118, 1
          %s792 = smul.addr %s791, 64
          %s793 = scalar_lea.vmem [#allocation4], %s792
        $region113: #{fno2d_forward.12} parent=108 // pred_fallthru
          _
      $region109: #{fno2d_forward.12} parent=5 // pred_fallthru
        _
    $region6: #{fno2d_forward.12} parent=1 // loop_footer
      %s14 = sadd.s32 1, %s10
    $region7: #{fno2d_forward.12} parent=1 // loop_footer_branch
      %9 = sbr.rel target = $region3
    $region8: #{fno2d_forward.12} parent=1 // loop_exit
      _

// kernel: fno2d_forward.18
$region0: #{fno2d_forward.18}
  #allocation0 [shape = 'u32[]', space=smem, size = 0x4, offset = 0x4, fixed_abs, tag = 'smem constant byte address 0x4 - core index']
  #allocation1 [shape = 'u32[144,128]{1,0:T(1,128)}', space=vmem, size = 0x12000, scoped, tag = 'internal scratch']
  %s0 = inlined_call_operand.vmem [shape: f32[32,512], index: 0, kind: input, shape index: {}]
  %s1 = inlined_call_operand.vmem [shape: f32[32,512], index: 1, kind: input, shape index: {}]
  %s2 = inlined_call_operand.vmem [shape: f32[32,32], index: 2, kind: input, shape index: {}]
  %s3 = inlined_call_operand.vmem [shape: f32[32,1], index: 3, kind: input, shape index: {}]
  %s4 = inlined_call_operand.vmem [shape: f32[32,512], index: 4, kind: output, shape index: {}]
  %s5 = sld [smem:[#allocation0]]
  $region114: #{fno2d_forward.18} parent=0
    _
  %s7 = ssub.s32 1, %s5
  %s8 = scalar_select 0, %s7, %s5
  $region1: #{fno2d_forward.18} parent=0
    #allocation2 [shape = 'u8[65536]{0}', space=vmem, size = 0x10000, scoped, tag = 'input window, operand 0']
    #allocation3 [shape = 'u8[65536]{0}', space=vmem, size = 0x10000, scoped, tag = 'input window, operand 1']
    #allocation4 [shape = 'u8[65536]{0}', space=vmem, size = 0x10000, scoped, tag = 'output window, operand 0']
    loop: start=0, step=1, limit=4
    $region2: #{fno2d_forward.18} parent=1 // loop_pre_header
      _
    $region3: #{fno2d_forward.18} parent=1 // loop_header
      %s10 = sphi 0, %s14
      %p11 = scmp.ge.s32.totalorder %s10, 4
      %s20 = sphi 0, %s22
      %s23 = sphi 0, %s20
      %s24 = sphi 0, %s23
      %s40 = sphi 0, %s24
      %s46 = sphi 0, %s48
      %s49 = sphi 0, %s46
      %s50 = sphi 0, %s49
      %s66 = sphi 0, %s50
      %s70 = sphi 0, %s70
      %s72 = sphi 0, %s70
      %s73 = sphi 0, %s72
      %s87 = sphi 0, %s73
      %s91 = sphi 0, %s91
      %s93 = sphi 0, %s91
      %s94 = sphi 0, %s93
      %s108 = sphi 0, %s94
      %s114 = sphi 0, %s116
      %s117 = sphi 0, %s114
      %s118 = sphi 0, %s117
      %s134 = sphi 0, %s118
    $region4: #{fno2d_forward.18} parent=1 // loop_header_branch
      %13 = sbr.rel (%p11) target = $region8
    $region5: #{fno2d_forward.18} parent=1 // loop_body
      %s15 = ssub.s32 %s10, 1
      %s16 = ssub.s32 %s10, 2
      %s17 = sadd.s32 %s10, 1
      %s18 = ssub.s32 %s10, %s17
      %p19 = scmp.eq.s32.totalorder %s18, 0
      %s21 = sadd.s32 %s20, 1
      %s22 = scalar_select %p19, %s20, %s21
      %p25 = pneg %p19
      %p26 = scmp.eq.s32.totalorder %s10, 1
      %p27 = por %p25, %p26
      %p28 = scmp.ne.s32.totalorder %s20, %s23
      %p29 = scmp.eq.s32.totalorder %s10, 0
      %p30 = por %p28, %p29
      %p31 = scmp.ne.s32.totalorder %s20, %s23
      %p32 = scmp.eq.s32.totalorder %s15, 1
      %p33 = por %p31, %p32
      %p34 = scmp.ne.s32.totalorder %s23, %s24
      %p35 = scmp.eq.s32.totalorder %s15, 0
      %p36 = por %p34, %p35
      %p37 = scmp.ne.s32.totalorder %s23, %s24
      %p38 = scmp.eq.s32.totalorder %s16, 1
      %p39 = por %p37, %p38
      %p41 = scmp.ne.s32.totalorder %s24, %s40
      %p42 = scmp.eq.s32.totalorder %s16, 0
      %p43 = por %p41, %p42
      %s44 = ssub.s32 %s10, %s17
      %p45 = scmp.eq.s32.totalorder %s44, 0
      %s47 = sadd.s32 %s46, 1
      %s48 = scalar_select %p45, %s46, %s47
      %p51 = pneg %p45
      %p52 = scmp.eq.s32.totalorder %s10, 1
      %p53 = por %p51, %p52
      %p54 = scmp.ne.s32.totalorder %s46, %s49
      %p55 = scmp.eq.s32.totalorder %s10, 0
      %p56 = por %p54, %p55
      %p57 = scmp.ne.s32.totalorder %s46, %s49
      %p58 = scmp.eq.s32.totalorder %s15, 1
      %p59 = por %p57, %p58
      %p60 = scmp.ne.s32.totalorder %s49, %s50
      %p61 = scmp.eq.s32.totalorder %s15, 0
      %p62 = por %p60, %p61
      %p63 = scmp.ne.s32.totalorder %s49, %s50
      %p64 = scmp.eq.s32.totalorder %s16, 1
      %p65 = por %p63, %p64
      %p67 = scmp.ne.s32.totalorder %s50, %s66
      %p68 = scmp.eq.s32.totalorder %s16, 0
      %p69 = por %p67, %p68
      %s71 = sadd.s32 %s70, 1
      %p74 = scmp.eq.s32.totalorder %s10, 1
      %p75 = scmp.ne.s32.totalorder %s70, %s72
      %p76 = scmp.eq.s32.totalorder %s10, 0
      %p77 = por %p75, %p76
      %p78 = scmp.ne.s32.totalorder %s70, %s72
      %p79 = scmp.eq.s32.totalorder %s15, 1
      %p80 = por %p78, %p79
      %p81 = scmp.ne.s32.totalorder %s72, %s73
      %p82 = scmp.eq.s32.totalorder %s15, 0
      %p83 = por %p81, %p82
      %p84 = scmp.ne.s32.totalorder %s72, %s73
      %p85 = scmp.eq.s32.totalorder %s16, 1
      %p86 = por %p84, %p85
      %p88 = scmp.ne.s32.totalorder %s73, %s87
      %p89 = scmp.eq.s32.totalorder %s16, 0
      %p90 = por %p88, %p89
      %s92 = sadd.s32 %s91, 1
      %p95 = scmp.eq.s32.totalorder %s10, 1
      %p96 = scmp.ne.s32.totalorder %s91, %s93
      %p97 = scmp.eq.s32.totalorder %s10, 0
      %p98 = por %p96, %p97
      %p99 = scmp.ne.s32.totalorder %s91, %s93
      %p100 = scmp.eq.s32.totalorder %s15, 1
      %p101 = por %p99, %p100
      %p102 = scmp.ne.s32.totalorder %s93, %s94
      %p103 = scmp.eq.s32.totalorder %s15, 0
      %p104 = por %p102, %p103
      %p105 = scmp.ne.s32.totalorder %s93, %s94
      %p106 = scmp.eq.s32.totalorder %s16, 1
      %p107 = por %p105, %p106
      %p109 = scmp.ne.s32.totalorder %s94, %s108
      %p110 = scmp.eq.s32.totalorder %s16, 0
      %p111 = por %p109, %p110
      %s112 = ssub.s32 %s10, %s17
      %p113 = scmp.eq.s32.totalorder %s112, 0
      %s115 = sadd.s32 %s114, 1
      %s116 = scalar_select %p113, %s114, %s115
      %p119 = pneg %p113
      %p120 = scmp.eq.s32.totalorder %s10, 1
      %p121 = por %p119, %p120
      %p122 = scmp.ne.s32.totalorder %s114, %s117
      %p123 = scmp.eq.s32.totalorder %s10, 0
      %p124 = por %p122, %p123
      %p125 = scmp.ne.s32.totalorder %s114, %s117
      %p126 = scmp.eq.s32.totalorder %s15, 1
      %p127 = por %p125, %p126
      %p128 = scmp.ne.s32.totalorder %s117, %s118
      %p129 = scmp.eq.s32.totalorder %s15, 0
      %p130 = por %p128, %p129
      %p131 = scmp.ne.s32.totalorder %s117, %s118
      %p132 = scmp.eq.s32.totalorder %s16, 1
      %p133 = por %p131, %p132
      %p135 = scmp.ne.s32.totalorder %s118, %s134
      %p136 = scmp.eq.s32.totalorder %s16, 0
      %p137 = por %p135, %p136
      %p138 = scmp.le.s32.totalorder 1, %s10
      %p139 = scmp.lt.s32.totalorder %s10, 3
      %p140 = pnand %p138, %p139
      %p141 = pneg %p140
      // Predicated region
      $region9: #{fno2d_forward.18} parent=5 // pred_check
        _
      $region10: #{fno2d_forward.18} parent=5 // pred_check_branch
        %143 = sbr.rel (%p140) target = $region12
      $region11: #{fno2d_forward.18} parent=5 // pred_region
        %s144 = ssub.s32 %s10, 1
        // Predicated region
        $region13: #{fno2d_forward.18} parent=11 // pred_check
          %p145 = pneg %p83
        $region14: #{fno2d_forward.18} parent=11 // pred_check_branch
          %147 = sbr.rel (%p145) target = $region16
        $region15: #{fno2d_forward.18} parent=11 // pred_region
          _
        $region16: #{fno2d_forward.18} parent=11 // pred_fallthru
          _
        // Predicated region
        $region17: #{fno2d_forward.18} parent=11 // pred_check
          %p148 = pneg %p104
        $region18: #{fno2d_forward.18} parent=11 // pred_check_branch
          %150 = sbr.rel (%p148) target = $region20
        $region19: #{fno2d_forward.18} parent=11 // pred_region
          _
        $region20: #{fno2d_forward.18} parent=11 // pred_fallthru
          _
      $region12: #{fno2d_forward.18} parent=5 // pred_fallthru
        _
      %p151 = scmp.lt.s32.totalorder %s10, 2
      // Predicated region
      $region21: #{fno2d_forward.18} parent=5 // pred_check
        %p152 = pneg %p151
      $region22: #{fno2d_forward.18} parent=5 // pred_check_branch
        %154 = sbr.rel (%p152) target = $region24
      $region23: #{fno2d_forward.18} parent=5 // pred_region
        // Predicated region
        $region25: #{fno2d_forward.18} parent=23 // pred_check
          %p155 = pneg %p30
        $region26: #{fno2d_forward.18} parent=23 // pred_check_branch
          %157 = sbr.rel (%p155) target = $region28
        $region27: #{fno2d_forward.18} parent=23 // pred_region
          %s158 = sand.u32 %s20, 1
          %s159 = sand.u32 %s20, 1
          %s160 = smul.addr %s159, 64
          %s161 = scalar_lea.vmem [#allocation2], %s160
          %s162 = smul.u32 2, %s10
          %s163 = smul.addr %s162, 8
          %s164 = scalar_lea.vmem %s0, %s163
          // Predicated region
          $region29: #{fno2d_forward.18} parent=27 // pred_check
            _
          $region30: #{fno2d_forward.18} parent=27 // pred_check_branch
            %166 = sbr.rel (0) target = $region32
          $region31: #{fno2d_forward.18} parent=27 // pred_region
            // Predicated region
            $region33: #{fno2d_forward.18} parent=31 // pred_check
              _
            $region34: #{fno2d_forward.18} parent=31 // pred_check_branch
              %168 = sbr.rel (0) target = $region36
            $region35: #{fno2d_forward.18} parent=31 // pred_region
              loop: start=0, step=1, limit=1
              $region37: #{fno2d_forward.18} parent=35 // loop_pre_header
                _
              $region38: #{fno2d_forward.18} parent=35 // loop_header
                %s170 = sphi 0, %s174
                %p171 = scmp.ge.s32.totalorder %s170, 1
                %s175 = sphi %s164, %s164
                %s176 = sphi %s161, %s161
              $region39: #{fno2d_forward.18} parent=35 // loop_header_branch
                %173 = sbr.rel (%p171) target = $region43
              $region40: #{fno2d_forward.18} parent=35 // loop_body
                %v177 = vld [vmem:[%s175] sm:$0xff]
                %178 = vst [vmem:[%s176] sm:$0xff] %v177
                %v179 = vld [vmem:[%s175 + $0x8] sm:$0xff]
                %180 = vst [vmem:[%s176 + $0x8] sm:$0xff] %v179
                %v181 = vld [vmem:[%s175 + $0x20] sm:$0xff]
                %182 = vst [vmem:[%s176 + $0x10] sm:$0xff] %v181
                %v183 = vld [vmem:[%s175 + $0x28] sm:$0xff]
                %184 = vst [vmem:[%s176 + $0x18] sm:$0xff] %v183
                %v185 = vld [vmem:[%s175 + $0x40] sm:$0xff]
                %186 = vst [vmem:[%s176 + $0x20] sm:$0xff] %v185
                %v187 = vld [vmem:[%s175 + $0x48] sm:$0xff]
                %188 = vst [vmem:[%s176 + $0x28] sm:$0xff] %v187
                %v189 = vld [vmem:[%s175 + $0x60] sm:$0xff]
                %190 = vst [vmem:[%s176 + $0x30] sm:$0xff] %v189
                %v191 = vld [vmem:[%s175 + $0x68] sm:$0xff]
                %192 = vst [vmem:[%s176 + $0x38] sm:$0xff] %v191
              $region41: #{fno2d_forward.18} parent=35 // loop_footer
                %s174 = sadd.s32 1, %s170
              $region42: #{fno2d_forward.18} parent=35 // loop_footer_branch
                %169 = sbr.rel target = $region38
              $region43: #{fno2d_forward.18} parent=35 // loop_exit
                _
            $region36: #{fno2d_forward.18} parent=31 // pred_fallthru
              _
            // Predicated region
            $region44: #{fno2d_forward.18} parent=31 // pred_check
              _
            $region45: #{fno2d_forward.18} parent=31 // pred_check_branch
              %194 = sbr.rel target = $region47
            $region46: #{fno2d_forward.18} parent=31 // pred_region
              _
            $region47: #{fno2d_forward.18} parent=31 // pred_fallthru
              _
          $region32: #{fno2d_forward.18} parent=27 // pred_fallthru
            _
          %195 = vnop
        $region28: #{fno2d_forward.18} parent=23 // pred_fallthru
          _
        // Predicated region
        $region48: #{fno2d_forward.18} parent=23 // pred_check
          %p196 = pneg %p56
        $region49: #{fno2d_forward.18} parent=23 // pred_check_branch
          %198 = sbr.rel (%p196) target = $region51
        $region50: #{fno2d_forward.18} parent=23 // pred_region
          %s199 = sand.u32 %s46, 1
          %s200 = sand.u32 %s46, 1
          %s201 = smul.addr %s200, 64
          %s202 = scalar_lea.vmem [#allocation3], %s201
          %s203 = smul.u32 2, %s10
          %s204 = smul.addr %s203, 8
          %s205 = scalar_lea.vmem %s1, %s204
          // Predicated region
          $region52: #{fno2d_forward.18} parent=50 // pred_check
            _
          $region53: #{fno2d_forward.18} parent=50 // pred_check_branch
            %207 = sbr.rel (0) target = $region55
          $region54: #{fno2d_forward.18} parent=50 // pred_region
            // Predicated region
            $region56: #{fno2d_forward.18} parent=54 // pred_check
              _
            $region57: #{fno2d_forward.18} parent=54 // pred_check_branch
              %209 = sbr.rel (0) target = $region59
            $region58: #{fno2d_forward.18} parent=54 // pred_region
              loop: start=0, step=1, limit=1
              $region60: #{fno2d_forward.18} parent=58 // loop_pre_header
                _
              $region61: #{fno2d_forward.18} parent=58 // loop_header
                %s211 = sphi 0, %s215
                %p212 = scmp.ge.s32.totalorder %s211, 1
                %s216 = sphi %s205, %s205
                %s217 = sphi %s202, %s202
              $region62: #{fno2d_forward.18} parent=58 // loop_header_branch
                %214 = sbr.rel (%p212) target = $region66
              $region63: #{fno2d_forward.18} parent=58 // loop_body
                %v218 = vld [vmem:[%s216] sm:$0xff]
                %219 = vst [vmem:[%s217] sm:$0xff] %v218
                %v220 = vld [vmem:[%s216 + $0x8] sm:$0xff]
                %221 = vst [vmem:[%s217 + $0x8] sm:$0xff] %v220
                %v222 = vld [vmem:[%s216 + $0x20] sm:$0xff]
                %223 = vst [vmem:[%s217 + $0x10] sm:$0xff] %v222
                %v224 = vld [vmem:[%s216 + $0x28] sm:$0xff]
                %225 = vst [vmem:[%s217 + $0x18] sm:$0xff] %v224
                %v226 = vld [vmem:[%s216 + $0x40] sm:$0xff]
                %227 = vst [vmem:[%s217 + $0x20] sm:$0xff] %v226
                %v228 = vld [vmem:[%s216 + $0x48] sm:$0xff]
                %229 = vst [vmem:[%s217 + $0x28] sm:$0xff] %v228
                %v230 = vld [vmem:[%s216 + $0x60] sm:$0xff]
                %231 = vst [vmem:[%s217 + $0x30] sm:$0xff] %v230
                %v232 = vld [vmem:[%s216 + $0x68] sm:$0xff]
                %233 = vst [vmem:[%s217 + $0x38] sm:$0xff] %v232
              $region64: #{fno2d_forward.18} parent=58 // loop_footer
                %s215 = sadd.s32 1, %s211
              $region65: #{fno2d_forward.18} parent=58 // loop_footer_branch
                %210 = sbr.rel target = $region61
              $region66: #{fno2d_forward.18} parent=58 // loop_exit
                _
            $region59: #{fno2d_forward.18} parent=54 // pred_fallthru
              _
            // Predicated region
            $region67: #{fno2d_forward.18} parent=54 // pred_check
              _
            $region68: #{fno2d_forward.18} parent=54 // pred_check_branch
              %235 = sbr.rel target = $region70
            $region69: #{fno2d_forward.18} parent=54 // pred_region
              _
            $region70: #{fno2d_forward.18} parent=54 // pred_fallthru
              _
          $region55: #{fno2d_forward.18} parent=50 // pred_fallthru
            _
          %236 = vnop
        $region51: #{fno2d_forward.18} parent=23 // pred_fallthru
          _
      $region24: #{fno2d_forward.18} parent=5 // pred_fallthru
        _
      %p237 = scmp.le.s32.totalorder 1, %s10
      %p238 = scmp.lt.s32.totalorder %s10, 3
      %p239 = pnand %p237, %p238
      %p240 = pneg %p239
      // Predicated region
      $region71: #{fno2d_forward.18} parent=5 // pred_check
        _
      $region72: #{fno2d_forward.18} parent=5 // pred_check_branch
        %242 = sbr.rel (%p239) target = $region74
      $region73: #{fno2d_forward.18} parent=5 // pred_region
        %s243 = ssub.s32 %s10, 1
        %s244 = sand.u32 %s23, 1
        %s245 = sand.u32 %s23, 1
        %s246 = smul.addr %s245, 64
        %s247 = scalar_lea.vmem [#allocation2], %s246
        // Predicated region
        $region75: #{fno2d_forward.18} parent=73 // pred_check
          %p248 = pneg %p36
        $region76: #{fno2d_forward.18} parent=73 // pred_check_branch
          %250 = sbr.rel (%p248) target = $region78
        $region77: #{fno2d_forward.18} parent=73 // pred_region
          _
        $region78: #{fno2d_forward.18} parent=73 // pred_fallthru
          _
        %s251 = sand.u32 %s49, 1
        %s252 = sand.u32 %s49, 1
        %s253 = smul.addr %s252, 64
        %s254 = scalar_lea.vmem [#allocation3], %s253
        // Predicated region
        $region79: #{fno2d_forward.18} parent=73 // pred_check
          %p255 = pneg %p62
        $region80: #{fno2d_forward.18} parent=73 // pred_check_branch
          %257 = sbr.rel (%p255) target = $region82
        $region81: #{fno2d_forward.18} parent=73 // pred_region
          _
        $region82: #{fno2d_forward.18} parent=73 // pred_fallthru
          _
        %s258 = sand.u32 %s23, 1
        %s259 = sand.u32 %s23, 1
        %s260 = smul.addr %s259, 64
        %s261 = scalar_lea.vmem [#allocation2], %s260
        %p262 = pneg %p36
        %p263 = pneg %p33
        %s264 = sand.u32 %s49, 1
        %s265 = sand.u32 %s49, 1
        %s266 = smul.addr %s265, 64
        %s267 = scalar_lea.vmem [#allocation3], %s266
        %p268 = pneg %p62
        %p269 = pneg %p59
        %p270 = pneg %p83
        %p271 = pneg %p80
        %p272 = pneg %p104
        %p273 = pneg %p101
        %p274 = pneg %p130
        %p275 = pneg %p127
        %s276 = sand.u32 %s117, 1
        %s277 = sand.u32 %s117, 1
        %s278 = smul.addr %s277, 64
        %s279 = scalar_lea.vmem [#allocation4], %s278
        %s280 = smul.u32 2, %s15
        %s281 = smul.u32 2, %s15
        %s282 = smul.u32 2, %s15
        %v283 = vld [vmem:[%s2] sm:$0xff]
        %v284 = vld [vmem:[%s2 + $0x8] sm:$0xff]
        %v285 = vld [vmem:[%s2 + $0x10] sm:$0xff]
        %v286 = vld [vmem:[%s2 + $0x18] sm:$0xff]
        %v287 = vld [vmem:[%s247] sm:$0xff]
        %v288 = vld [vmem:[%s247 + $0x8] sm:$0xff]
        %v289 = vld [vmem:[%s247 + $0x10] sm:$0xff]
        %v290 = vld [vmem:[%s247 + $0x18] sm:$0xff]
        %v291 = vld [vmem:[%s247 + $0x20] sm:$0xff]
        %v292 = vld [vmem:[%s247 + $0x28] sm:$0xff]
        %v293 = vld [vmem:[%s247 + $0x30] sm:$0xff]
        %v294 = vld [vmem:[%s247 + $0x38] sm:$0xff]
        %v295 = vld [vmem:[%s3] sm:$0xff]
        %v296 = vld [vmem:[%s3 + $0x8] sm:$0xff]
        %v297 = vld [vmem:[%s3 + $0x10] sm:$0xff]
        %v298 = vld [vmem:[%s3 + $0x18] sm:$0xff]
        %300 = vset.pattern.permute.xlu0 0
        %301 = vperm.xlu0 %300, %v295
        %v302 = vpop.permute.xlu0 %301
        %305 = vset.pattern.permute.xlu0 0
        %306 = vperm.xlu0 %305, %v296
        %v307 = vpop.permute.xlu0 %306
        %310 = vset.pattern.permute.xlu0 0
        %311 = vperm.xlu0 %310, %v297
        %v312 = vpop.permute.xlu0 %311
        %315 = vset.pattern.permute.xlu0 0
        %316 = vperm.xlu0 %315, %v298
        %v317 = vpop.permute.xlu0 %316
        %vm319 = vcmask 261120
        %v321 = vsel %vm319, %v283, 0
        %v324 = vsel %vm319, %v284, 0
        %v327 = vsel %vm319, %v285, 0
        %v330 = vsel %vm319, %v286, 0
        %332 = vmatprep.subr.mxu0 0.0
        %333 = vmatpush1.msra.mxu0 0.0
        %334 = vmatprep.subr.mxu0 0.0
        %335 = vmatpush1.msra.mxu0 0.0
        %336 = vmatprep.subr.mxu0 0.0
        %337 = vmatpush1.msra.mxu0 0.0
        %338 = vmatprep.subr.mxu0 0.0
        %339 = vmatpush1.msra.mxu0 0.0
        %340 = vmatprep.subr.mxu0 0.0
        %341 = vmatpush1.msra.mxu0 0.0
        %342 = vmatprep.subr.mxu0 0.0
        %343 = vmatpush1.msra.mxu0 0.0
        %344 = vmatprep.subr.mxu0 0.0
        %345 = vmatpush1.msra.mxu0 0.0
        %346 = vmatprep.subr.mxu0 0.0
        %347 = vmatpush1.msra.mxu0 0.0
        %348 = vmatprep.subr.mxu0 0.0
        %349 = vmatpush1.msra.mxu0 0.0
        %350 = vmatprep.subr.mxu0 0.0
        %351 = vmatpush1.msra.mxu0 0.0
        %352 = vmatprep.subr.mxu0 0.0
        %353 = vmatpush1.msra.mxu0 0.0
        %354 = vmatprep.subr.mxu0 0.0
        %355 = vmatpush1.msra.mxu0 0.0
        %356 = vmatprep.subr.mxu0 %v294
        %357 = vmatpush1.msra.mxu0 %v293
        %358 = vmatprep.subr.mxu0 %v292
        %359 = vmatpush1.msra.mxu0 %v291
        %360 = vmatprep.subr.mxu0 %v290
        %361 = vmatpush1.msra.mxu0 %v289
        %362 = vmatprep.subr.mxu0 %v288
        %363 = vmatpush1.msra.mxu0 %v287
        %364 = vmatprep.subr.mxu0 0.0
        %365 = vmatpush2.msra.mxu0 0.0
        %366 = vmatprep.subr.mxu0 0.0
        %367 = vmatpush2.msra.mxu0 0.0
        %368 = vmatprep.subr.mxu0 0.0
        %369 = vmatpush2.msra.mxu0 0.0
        %370 = vmatprep.subr.mxu0 0.0
        %371 = vmatpush2.msra.mxu0 0.0
        %372 = vmatprep.subr.mxu0 0.0
        %373 = vmatpush2.msra.mxu0 0.0
        %374 = vmatprep.subr.mxu0 0.0
        %375 = vmatpush2.msra.mxu0 0.0
        %376 = vmatprep.subr.mxu0 0.0
        %377 = vmatpush2.msra.mxu0 0.0
        %378 = vmatprep.subr.mxu0 0.0
        %379 = vmatpush2.msra.mxu0 0.0
        %380 = vmatprep.subr.mxu0 0.0
        %381 = vmatpush2.msra.mxu0 0.0
        %382 = vmatprep.subr.mxu0 0.0
        %383 = vmatpush2.msra.mxu0 0.0
        %384 = vmatprep.subr.mxu0 0.0
        %385 = vmatpush2.msra.mxu0 0.0
        %386 = vmatprep.subr.mxu0 0.0
        %387 = vmatpush2.msra.mxu0 0.0
        %388 = vmatprep.subr.mxu0 0.0
        %389 = vmatpush2.msra.mxu0 0.0
        %390 = vmatprep.subr.mxu0 0.0
        %391 = vmatpush2.msra.mxu0 0.0
        %392 = vmatprep.subr.mxu0 0.0
        %393 = vmatpush2.msra.mxu0 0.0
        %394 = vmatprep.subr.mxu0 0.0
        %395 = vmatpush2.msra.mxu0 0.0
        %396 = vmatprep.mubr.f32.mxu0 0.0
        %397 = vmatmul.mubr.f32.gmra.mxu0 %v321
        %v398 = vpop.f32.mrf.mxu0
        %v399 = vadd.f32 %v302, %v398
        %v400 = vpop.f32.mrf.mxu0
        %v401 = vadd.f32 %v302, %v400
        %402 = vmatprep.mubr.f32.mxu0 0.0
        %403 = vmatmul.mubr.f32.gmra.mxu0 %v324
        %v404 = vpop.f32.mrf.mxu0
        %v405 = vadd.f32 %v307, %v404
        %v406 = vpop.f32.mrf.mxu0
        %v407 = vadd.f32 %v307, %v406
        %408 = vmatprep.mubr.f32.mxu0 0.0
        %409 = vmatmul.mubr.f32.gmra.mxu0 %v327
        %v410 = vpop.f32.mrf.mxu0
        %v411 = vadd.f32 %v312, %v410
        %v412 = vpop.f32.mrf.mxu0
        %v413 = vadd.f32 %v312, %v412
        %414 = vmatprep.mubr.f32.mxu0 0.0
        %415 = vmatmul.mubr.f32.gmra.mxu0 %v330
        %v416 = vpop.f32.mrf.mxu0
        %v417 = vadd.f32 %v317, %v416
        %v418 = vpop.f32.mrf.mxu0
        %v419 = vadd.f32 %v317, %v418
        %420 = vdwg.mxu0
        %v421 = vld [vmem:[%s254] sm:$0xff]
        %v422 = vld [vmem:[%s254 + $0x8] sm:$0xff]
        %v423 = vld [vmem:[%s254 + $0x10] sm:$0xff]
        %v424 = vld [vmem:[%s254 + $0x18] sm:$0xff]
        %v425 = vld [vmem:[%s254 + $0x20] sm:$0xff]
        %v426 = vld [vmem:[%s254 + $0x28] sm:$0xff]
        %v427 = vld [vmem:[%s254 + $0x30] sm:$0xff]
        %v428 = vld [vmem:[%s254 + $0x38] sm:$0xff]
        %v429 = vadd.f32 %v399, %v421
        %v430 = vadd.f32 %v401, %v422
        %v431 = vadd.f32 %v405, %v423
        %v432 = vadd.f32 %v407, %v424
        %v433 = vadd.f32 %v411, %v425
        %v434 = vadd.f32 %v413, %v426
        %v435 = vadd.f32 %v417, %v427
        %v436 = vadd.f32 %v419, %v428
        %437 = vst [vmem:[%s279] sm:$0xff] %v429
        %438 = vst [vmem:[%s279 + $0x8] sm:$0xff] %v430
        %439 = vst [vmem:[%s279 + $0x10] sm:$0xff] %v431
        %440 = vst [vmem:[%s279 + $0x18] sm:$0xff] %v432
        %441 = vst [vmem:[%s279 + $0x20] sm:$0xff] %v433
        %442 = vst [vmem:[%s279 + $0x28] sm:$0xff] %v434
        %443 = vst [vmem:[%s279 + $0x30] sm:$0xff] %v435
        %444 = vst [vmem:[%s279 + $0x38] sm:$0xff] %v436
        %s445 = sand.u32 %s117, 1
        %s446 = sand.u32 %s117, 1
        %s447 = smul.addr %s446, 64
        %s448 = scalar_lea.vmem [#allocation4], %s447
        // Predicated region
        $region83: #{fno2d_forward.18} parent=73 // pred_check
          %p449 = pneg %p127
        $region84: #{fno2d_forward.18} parent=73 // pred_check_branch
          %451 = sbr.rel (%p449) target = $region86
        $region85: #{fno2d_forward.18} parent=73 // pred_region
          %s452 = smul.u32 2, %s15
          %s453 = smul.addr %s452, 8
          %s454 = scalar_lea.vmem %s4, %s453
          // Predicated region
          $region87: #{fno2d_forward.18} parent=85 // pred_check
            _
          $region88: #{fno2d_forward.18} parent=85 // pred_check_branch
            %456 = sbr.rel (0) target = $region90
          $region89: #{fno2d_forward.18} parent=85 // pred_region
            // Predicated region
            $region91: #{fno2d_forward.18} parent=89 // pred_check
              _
            $region92: #{fno2d_forward.18} parent=89 // pred_check_branch
              %458 = sbr.rel (0) target = $region94
            $region93: #{fno2d_forward.18} parent=89 // pred_region
              loop: start=0, step=1, limit=1
              $region95: #{fno2d_forward.18} parent=93 // loop_pre_header
                _
              $region96: #{fno2d_forward.18} parent=93 // loop_header
                %s460 = sphi 0, %s464
                %p461 = scmp.ge.s32.totalorder %s460, 1
                %s465 = sphi %s448, %s448
                %s466 = sphi %s454, %s454
              $region97: #{fno2d_forward.18} parent=93 // loop_header_branch
                %463 = sbr.rel (%p461) target = $region101
              $region98: #{fno2d_forward.18} parent=93 // loop_body
                %v467 = vld [vmem:[%s465] sm:$0xff]
                %468 = vst [vmem:[%s466] sm:$0xff] %v467
                %v469 = vld [vmem:[%s465 + $0x8] sm:$0xff]
                %470 = vst [vmem:[%s466 + $0x8] sm:$0xff] %v469
                %v471 = vld [vmem:[%s465 + $0x10] sm:$0xff]
                %472 = vst [vmem:[%s466 + $0x20] sm:$0xff] %v471
                %v473 = vld [vmem:[%s465 + $0x18] sm:$0xff]
                %474 = vst [vmem:[%s466 + $0x28] sm:$0xff] %v473
                %v475 = vld [vmem:[%s465 + $0x20] sm:$0xff]
                %476 = vst [vmem:[%s466 + $0x40] sm:$0xff] %v475
                %v477 = vld [vmem:[%s465 + $0x28] sm:$0xff]
                %478 = vst [vmem:[%s466 + $0x48] sm:$0xff] %v477
                %v479 = vld [vmem:[%s465 + $0x30] sm:$0xff]
                %480 = vst [vmem:[%s466 + $0x60] sm:$0xff] %v479
                %v481 = vld [vmem:[%s465 + $0x38] sm:$0xff]
                %482 = vst [vmem:[%s466 + $0x68] sm:$0xff] %v481
              $region99: #{fno2d_forward.18} parent=93 // loop_footer
                %s464 = sadd.s32 1, %s460
              $region100: #{fno2d_forward.18} parent=93 // loop_footer_branch
                %459 = sbr.rel target = $region96
              $region101: #{fno2d_forward.18} parent=93 // loop_exit
                _
            $region94: #{fno2d_forward.18} parent=89 // pred_fallthru
              _
            // Predicated region
            $region102: #{fno2d_forward.18} parent=89 // pred_check
              _
            $region103: #{fno2d_forward.18} parent=89 // pred_check_branch
              %484 = sbr.rel target = $region105
            $region104: #{fno2d_forward.18} parent=89 // pred_region
              _
            $region105: #{fno2d_forward.18} parent=89 // pred_fallthru
              _
          $region90: #{fno2d_forward.18} parent=85 // pred_fallthru
            _
          %485 = vnop
        $region86: #{fno2d_forward.18} parent=73 // pred_fallthru
          _
      $region74: #{fno2d_forward.18} parent=5 // pred_fallthru
        _
      %p486 = scmp.le.s32.totalorder 2, %s10
      // Predicated region
      $region106: #{fno2d_forward.18} parent=5 // pred_check
        %p487 = pneg %p486
      $region107: #{fno2d_forward.18} parent=5 // pred_check_branch
        %489 = sbr.rel (%p487) target = $region109
      $region108: #{fno2d_forward.18} parent=5 // pred_region
        %s490 = ssub.s32 %s10, 2
        // Predicated region
        $region110: #{fno2d_forward.18} parent=108 // pred_check
          %p491 = pneg %p133
        $region111: #{fno2d_forward.18} parent=108 // pred_check_branch
          %493 = sbr.rel (%p491) target = $region113
        $region112: #{fno2d_forward.18} parent=108 // pred_region
          %s494 = sand.u32 %s118, 1
          %s495 = sand.u32 %s118, 1
          %s496 = smul.addr %s495, 64
          %s497 = scalar_lea.vmem [#allocation4], %s496
        $region113: #{fno2d_forward.18} parent=108 // pred_fallthru
          _
      $region109: #{fno2d_forward.18} parent=5 // pred_fallthru
        _
    $region6: #{fno2d_forward.18} parent=1 // loop_footer
      %s14 = sadd.s32 1, %s10
    $region7: #{fno2d_forward.18} parent=1 // loop_footer_branch
      %9 = sbr.rel target = $region3
    $region8: #{fno2d_forward.18} parent=1 // loop_exit
      _

// kernel: fno2d_forward.19
$region0: #{fno2d_forward.19}
  #allocation0 [shape = 'u32[]', space=smem, size = 0x4, offset = 0x4, fixed_abs, tag = 'smem constant byte address 0x4 - core index']
  #allocation1 [shape = 'u32[144,128]{1,0:T(1,128)}', space=vmem, size = 0x12000, scoped, tag = 'internal scratch']
  %s0 = inlined_call_operand.vmem [shape: f32[32,512], index: 0, kind: input, shape index: {}]
  %s1 = inlined_call_operand.vmem [shape: f32[128,32], index: 1, kind: input, shape index: {}]
  %s2 = inlined_call_operand.vmem [shape: f32[128,1], index: 2, kind: input, shape index: {}]
  %s3 = inlined_call_operand.vmem [shape: f32[3,128], index: 3, kind: input, shape index: {}]
  %s4 = inlined_call_operand.vmem [shape: f32[3,1], index: 4, kind: input, shape index: {}]
  %s5 = inlined_call_operand.vmem [shape: f32[3,512], index: 5, kind: output, shape index: {}]
  %s6 = sld [smem:[#allocation0]]
  $region76: #{fno2d_forward.19} parent=0
    _
  %s8 = ssub.s32 1, %s6
  %s9 = scalar_select 0, %s8, %s6
  $region1: #{fno2d_forward.19} parent=0
    #allocation2 [shape = 'u8[65536]{0}', space=vmem, size = 0x10000, scoped, tag = 'input window, operand 0']
    loop: start=0, step=1, limit=4
    $region2: #{fno2d_forward.19} parent=1 // loop_pre_header
      _
    $region3: #{fno2d_forward.19} parent=1 // loop_header
      %s11 = sphi 0, %s15
      %p12 = scmp.ge.s32.totalorder %s11, 4
      %s21 = sphi 0, %s23
      %s24 = sphi 0, %s21
      %s25 = sphi 0, %s24
      %s41 = sphi 0, %s25
      %s45 = sphi 0, %s45
      %s47 = sphi 0, %s45
      %s48 = sphi 0, %s47
      %s62 = sphi 0, %s48
      %s66 = sphi 0, %s66
      %s68 = sphi 0, %s66
      %s69 = sphi 0, %s68
      %s83 = sphi 0, %s69
      %s87 = sphi 0, %s87
      %s89 = sphi 0, %s87
      %s90 = sphi 0, %s89
      %s104 = sphi 0, %s90
      %s108 = sphi 0, %s108
      %s110 = sphi 0, %s108
      %s111 = sphi 0, %s110
      %s125 = sphi 0, %s111
      %s131 = sphi 0, %s133
      %s134 = sphi 0, %s131
      %s135 = sphi 0, %s134
      %s151 = sphi 0, %s135
    $region4: #{fno2d_forward.19} parent=1 // loop_header_branch
      %14 = sbr.rel (%p12) target = $region8
    $region5: #{fno2d_forward.19} parent=1 // loop_body
      %s16 = ssub.s32 %s11, 1
      %s17 = ssub.s32 %s11, 2
      %s18 = sadd.s32 %s11, 1
      %s19 = ssub.s32 %s11, %s18
      %p20 = scmp.eq.s32.totalorder %s19, 0
      %s22 = sadd.s32 %s21, 1
      %s23 = scalar_select %p20, %s21, %s22
      %p26 = pneg %p20
      %p27 = scmp.eq.s32.totalorder %s11, 1
      %p28 = por %p26, %p27
      %p29 = scmp.ne.s32.totalorder %s21, %s24
      %p30 = scmp.eq.s32.totalorder %s11, 0
      %p31 = por %p29, %p30
      %p32 = scmp.ne.s32.totalorder %s21, %s24
      %p33 = scmp.eq.s32.totalorder %s16, 1
      %p34 = por %p32, %p33
      %p35 = scmp.ne.s32.totalorder %s24, %s25
      %p36 = scmp.eq.s32.totalorder %s16, 0
      %p37 = por %p35, %p36
      %p38 = scmp.ne.s32.totalorder %s24, %s25
      %p39 = scmp.eq.s32.totalorder %s17, 1
      %p40 = por %p38, %p39
      %p42 = scmp.ne.s32.totalorder %s25, %s41
      %p43 = scmp.eq.s32.totalorder %s17, 0
      %p44 = por %p42, %p43
      %s46 = sadd.s32 %s45, 1
      %p49 = scmp.eq.s32.totalorder %s11, 1
      %p50 = scmp.ne.s32.totalorder %s45, %s47
      %p51 = scmp.eq.s32.totalorder %s11, 0
      %p52 = por %p50, %p51
      %p53 = scmp.ne.s32.totalorder %s45, %s47
      %p54 = scmp.eq.s32.totalorder %s16, 1
      %p55 = por %p53, %p54
      %p56 = scmp.ne.s32.totalorder %s47, %s48
      %p57 = scmp.eq.s32.totalorder %s16, 0
      %p58 = por %p56, %p57
      %p59 = scmp.ne.s32.totalorder %s47, %s48
      %p60 = scmp.eq.s32.totalorder %s17, 1
      %p61 = por %p59, %p60
      %p63 = scmp.ne.s32.totalorder %s48, %s62
      %p64 = scmp.eq.s32.totalorder %s17, 0
      %p65 = por %p63, %p64
      %s67 = sadd.s32 %s66, 1
      %p70 = scmp.eq.s32.totalorder %s11, 1
      %p71 = scmp.ne.s32.totalorder %s66, %s68
      %p72 = scmp.eq.s32.totalorder %s11, 0
      %p73 = por %p71, %p72
      %p74 = scmp.ne.s32.totalorder %s66, %s68
      %p75 = scmp.eq.s32.totalorder %s16, 1
      %p76 = por %p74, %p75
      %p77 = scmp.ne.s32.totalorder %s68, %s69
      %p78 = scmp.eq.s32.totalorder %s16, 0
      %p79 = por %p77, %p78
      %p80 = scmp.ne.s32.totalorder %s68, %s69
      %p81 = scmp.eq.s32.totalorder %s17, 1
      %p82 = por %p80, %p81
      %p84 = scmp.ne.s32.totalorder %s69, %s83
      %p85 = scmp.eq.s32.totalorder %s17, 0
      %p86 = por %p84, %p85
      %s88 = sadd.s32 %s87, 1
      %p91 = scmp.eq.s32.totalorder %s11, 1
      %p92 = scmp.ne.s32.totalorder %s87, %s89
      %p93 = scmp.eq.s32.totalorder %s11, 0
      %p94 = por %p92, %p93
      %p95 = scmp.ne.s32.totalorder %s87, %s89
      %p96 = scmp.eq.s32.totalorder %s16, 1
      %p97 = por %p95, %p96
      %p98 = scmp.ne.s32.totalorder %s89, %s90
      %p99 = scmp.eq.s32.totalorder %s16, 0
      %p100 = por %p98, %p99
      %p101 = scmp.ne.s32.totalorder %s89, %s90
      %p102 = scmp.eq.s32.totalorder %s17, 1
      %p103 = por %p101, %p102
      %p105 = scmp.ne.s32.totalorder %s90, %s104
      %p106 = scmp.eq.s32.totalorder %s17, 0
      %p107 = por %p105, %p106
      %s109 = sadd.s32 %s108, 1
      %p112 = scmp.eq.s32.totalorder %s11, 1
      %p113 = scmp.ne.s32.totalorder %s108, %s110
      %p114 = scmp.eq.s32.totalorder %s11, 0
      %p115 = por %p113, %p114
      %p116 = scmp.ne.s32.totalorder %s108, %s110
      %p117 = scmp.eq.s32.totalorder %s16, 1
      %p118 = por %p116, %p117
      %p119 = scmp.ne.s32.totalorder %s110, %s111
      %p120 = scmp.eq.s32.totalorder %s16, 0
      %p121 = por %p119, %p120
      %p122 = scmp.ne.s32.totalorder %s110, %s111
      %p123 = scmp.eq.s32.totalorder %s17, 1
      %p124 = por %p122, %p123
      %p126 = scmp.ne.s32.totalorder %s111, %s125
      %p127 = scmp.eq.s32.totalorder %s17, 0
      %p128 = por %p126, %p127
      %s129 = ssub.s32 %s11, %s18
      %p130 = scmp.eq.s32.totalorder %s129, 0
      %s132 = sadd.s32 %s131, 1
      %s133 = scalar_select %p130, %s131, %s132
      %p136 = pneg %p130
      %p137 = scmp.eq.s32.totalorder %s11, 1
      %p138 = por %p136, %p137
      %p139 = scmp.ne.s32.totalorder %s131, %s134
      %p140 = scmp.eq.s32.totalorder %s11, 0
      %p141 = por %p139, %p140
      %p142 = scmp.ne.s32.totalorder %s131, %s134
      %p143 = scmp.eq.s32.totalorder %s16, 1
      %p144 = por %p142, %p143
      %p145 = scmp.ne.s32.totalorder %s134, %s135
      %p146 = scmp.eq.s32.totalorder %s16, 0
      %p147 = por %p145, %p146
      %p148 = scmp.ne.s32.totalorder %s134, %s135
      %p149 = scmp.eq.s32.totalorder %s17, 1
      %p150 = por %p148, %p149
      %p152 = scmp.ne.s32.totalorder %s135, %s151
      %p153 = scmp.eq.s32.totalorder %s17, 0
      %p154 = por %p152, %p153
      %p155 = scmp.le.s32.totalorder 1, %s11
      %p156 = scmp.lt.s32.totalorder %s11, 3
      %p157 = pnand %p155, %p156
      %p158 = pneg %p157
      // Predicated region
      $region9: #{fno2d_forward.19} parent=5 // pred_check
        _
      $region10: #{fno2d_forward.19} parent=5 // pred_check_branch
        %160 = sbr.rel (%p157) target = $region12
      $region11: #{fno2d_forward.19} parent=5 // pred_region
        %s161 = ssub.s32 %s11, 1
        // Predicated region
        $region13: #{fno2d_forward.19} parent=11 // pred_check
          %p162 = pneg %p58
        $region14: #{fno2d_forward.19} parent=11 // pred_check_branch
          %164 = sbr.rel (%p162) target = $region16
        $region15: #{fno2d_forward.19} parent=11 // pred_region
          _
        $region16: #{fno2d_forward.19} parent=11 // pred_fallthru
          _
        // Predicated region
        $region17: #{fno2d_forward.19} parent=11 // pred_check
          %p165 = pneg %p79
        $region18: #{fno2d_forward.19} parent=11 // pred_check_branch
          %167 = sbr.rel (%p165) target = $region20
        $region19: #{fno2d_forward.19} parent=11 // pred_region
          _
        $region20: #{fno2d_forward.19} parent=11 // pred_fallthru
          _
        // Predicated region
        $region21: #{fno2d_forward.19} parent=11 // pred_check
          %p168 = pneg %p100
        $region22: #{fno2d_forward.19} parent=11 // pred_check_branch
          %170 = sbr.rel (%p168) target = $region24
        $region23: #{fno2d_forward.19} parent=11 // pred_region
          _
        $region24: #{fno2d_forward.19} parent=11 // pred_fallthru
          _
        // Predicated region
        $region25: #{fno2d_forward.19} parent=11 // pred_check
          %p171 = pneg %p121
        $region26: #{fno2d_forward.19} parent=11 // pred_check_branch
          %173 = sbr.rel (%p171) target = $region28
        $region27: #{fno2d_forward.19} parent=11 // pred_region
          _
        $region28: #{fno2d_forward.19} parent=11 // pred_fallthru
          _
      $region12: #{fno2d_forward.19} parent=5 // pred_fallthru
        _
      %p174 = scmp.lt.s32.totalorder %s11, 2
      // Predicated region
      $region29: #{fno2d_forward.19} parent=5 // pred_check
        %p175 = pneg %p174
      $region30: #{fno2d_forward.19} parent=5 // pred_check_branch
        %177 = sbr.rel (%p175) target = $region32
      $region31: #{fno2d_forward.19} parent=5 // pred_region
        // Predicated region
        $region33: #{fno2d_forward.19} parent=31 // pred_check
          %p178 = pneg %p31
        $region34: #{fno2d_forward.19} parent=31 // pred_check_branch
          %180 = sbr.rel (%p178) target = $region36
        $region35: #{fno2d_forward.19} parent=31 // pred_region
          %s181 = sand.u32 %s21, 1
          %s182 = sand.u32 %s21, 1
          %s183 = smul.addr %s182, 64
          %s184 = scalar_lea.vmem [#allocation2], %s183
          %s185 = smul.u32 2, %s11
          %s186 = smul.addr %s185, 8
          %s187 = scalar_lea.vmem %s0, %s186
          // Predicated region
          $region37: #{fno2d_forward.19} parent=35 // pred_check
            _
          $region38: #{fno2d_forward.19} parent=35 // pred_check_branch
            %189 = sbr.rel (0) target = $region40
          $region39: #{fno2d_forward.19} parent=35 // pred_region
            // Predicated region
            $region41: #{fno2d_forward.19} parent=39 // pred_check
              _
            $region42: #{fno2d_forward.19} parent=39 // pred_check_branch
              %191 = sbr.rel (0) target = $region44
            $region43: #{fno2d_forward.19} parent=39 // pred_region
              loop: start=0, step=1, limit=1
              $region45: #{fno2d_forward.19} parent=43 // loop_pre_header
                _
              $region46: #{fno2d_forward.19} parent=43 // loop_header
                %s193 = sphi 0, %s197
                %p194 = scmp.ge.s32.totalorder %s193, 1
                %s198 = sphi %s187, %s187
                %s199 = sphi %s184, %s184
              $region47: #{fno2d_forward.19} parent=43 // loop_header_branch
                %196 = sbr.rel (%p194) target = $region51
              $region48: #{fno2d_forward.19} parent=43 // loop_body
                %v200 = vld [vmem:[%s198] sm:$0xff]
                %201 = vst [vmem:[%s199] sm:$0xff] %v200
                %v202 = vld [vmem:[%s198 + $0x8] sm:$0xff]
                %203 = vst [vmem:[%s199 + $0x8] sm:$0xff] %v202
                %v204 = vld [vmem:[%s198 + $0x20] sm:$0xff]
                %205 = vst [vmem:[%s199 + $0x10] sm:$0xff] %v204
                %v206 = vld [vmem:[%s198 + $0x28] sm:$0xff]
                %207 = vst [vmem:[%s199 + $0x18] sm:$0xff] %v206
                %v208 = vld [vmem:[%s198 + $0x40] sm:$0xff]
                %209 = vst [vmem:[%s199 + $0x20] sm:$0xff] %v208
                %v210 = vld [vmem:[%s198 + $0x48] sm:$0xff]
                %211 = vst [vmem:[%s199 + $0x28] sm:$0xff] %v210
                %v212 = vld [vmem:[%s198 + $0x60] sm:$0xff]
                %213 = vst [vmem:[%s199 + $0x30] sm:$0xff] %v212
                %v214 = vld [vmem:[%s198 + $0x68] sm:$0xff]
                %215 = vst [vmem:[%s199 + $0x38] sm:$0xff] %v214
              $region49: #{fno2d_forward.19} parent=43 // loop_footer
                %s197 = sadd.s32 1, %s193
              $region50: #{fno2d_forward.19} parent=43 // loop_footer_branch
                %192 = sbr.rel target = $region46
              $region51: #{fno2d_forward.19} parent=43 // loop_exit
                _
            $region44: #{fno2d_forward.19} parent=39 // pred_fallthru
              _
            // Predicated region
            $region52: #{fno2d_forward.19} parent=39 // pred_check
              _
            $region53: #{fno2d_forward.19} parent=39 // pred_check_branch
              %217 = sbr.rel target = $region55
            $region54: #{fno2d_forward.19} parent=39 // pred_region
              _
            $region55: #{fno2d_forward.19} parent=39 // pred_fallthru
              _
          $region40: #{fno2d_forward.19} parent=35 // pred_fallthru
            _
          %218 = vnop
        $region36: #{fno2d_forward.19} parent=31 // pred_fallthru
          _
      $region32: #{fno2d_forward.19} parent=5 // pred_fallthru
        _
      %p219 = scmp.le.s32.totalorder 1, %s11
      %p220 = scmp.lt.s32.totalorder %s11, 3
      %p221 = pnand %p219, %p220
      %p222 = pneg %p221
      // Predicated region
      $region56: #{fno2d_forward.19} parent=5 // pred_check
        _
      $region57: #{fno2d_forward.19} parent=5 // pred_check_branch
        %224 = sbr.rel (%p221) target = $region59
      $region58: #{fno2d_forward.19} parent=5 // pred_region
        %s225 = ssub.s32 %s11, 1
        %s226 = sand.u32 %s24, 1
        %s227 = sand.u32 %s24, 1
        %s228 = smul.addr %s227, 64
        %s229 = scalar_lea.vmem [#allocation2], %s228
        // Predicated region
        $region60: #{fno2d_forward.19} parent=58 // pred_check
          %p230 = pneg %p37
        $region61: #{fno2d_forward.19} parent=58 // pred_check_branch
          %232 = sbr.rel (%p230) target = $region63
        $region62: #{fno2d_forward.19} parent=58 // pred_region
          _
        $region63: #{fno2d_forward.19} parent=58 // pred_fallthru
          _
        %s233 = sand.u32 %s24, 1
        %s234 = sand.u32 %s24, 1
        %s235 = smul.addr %s234, 64
        %s236 = scalar_lea.vmem [#allocation2], %s235
        %p237 = pneg %p37
        %p238 = pneg %p34
        %p239 = pneg %p58
        %p240 = pneg %p55
        %p241 = pneg %p79
        %p242 = pneg %p76
        %p243 = pneg %p100
        %p244 = pneg %p97
        %p245 = pneg %p121
        %p246 = pneg %p118
        %p247 = pneg %p147
        %p248 = pneg %p144
        %s249 = smul.u32 2, %s16
        %p250 = scmp.lt.s32.totalorder %s249, 3
        %s251 = scalar_select %p250, %s249, 3
        %s252 = smul.addr %s251, 4
        %s253 = scalar_lea.vmem %s5, %s252
        %s254 = smul.u32 2, %s16
        %s255 = smul.u32 2, %s16
        %p256 = scmp.lt.s32.totalorder %s255, 3
        %s257 = scalar_select %p256, %s255, 3
        %s258 = smul.addr %s257, 4
        %s259 = scalar_lea.vmem %s5, %s258
        %s260 = smul.u32 2, %s16
        %v261 = vld [vmem:[%s1] sm:$0xff]
        %v262 = vld [vmem:[%s1 + $0x8] sm:$0xff]
        %v263 = vld [vmem:[%s1 + $0x10] sm:$0xff]
        %v264 = vld [vmem:[%s1 + $0x18] sm:$0xff]
        %v265 = vld [vmem:[%s1 + $0x20] sm:$0xff]
        %v266 = vld [vmem:[%s1 + $0x28] sm:$0xff]
        %v267 = vld [vmem:[%s1 + $0x30] sm:$0xff]
        %v268 = vld [vmem:[%s1 + $0x38] sm:$0xff]
        %v269 = vld [vmem:[%s1 + $0x40] sm:$0xff]
        %v270 = vld [vmem:[%s1 + $0x48] sm:$0xff]
        %v271 = vld [vmem:[%s1 + $0x50] sm:$0xff]
        %v272 = vld [vmem:[%s1 + $0x58] sm:$0xff]
        %v273 = vld [vmem:[%s1 + $0x60] sm:$0xff]
        %v274 = vld [vmem:[%s1 + $0x68] sm:$0xff]
        %v275 = vld [vmem:[%s1 + $0x70] sm:$0xff]
        %v276 = vld [vmem:[%s1 + $0x78] sm:$0xff]
        %v277 = vld [vmem:[%s229] sm:$0xff]
        %v278 = vld [vmem:[%s229 + $0x8] sm:$0xff]
        %v279 = vld [vmem:[%s229 + $0x10] sm:$0xff]
        %v280 = vld [vmem:[%s229 + $0x18] sm:$0xff]
        %v281 = vld [vmem:[%s229 + $0x20] sm:$0xff]
        %v282 = vld [vmem:[%s229 + $0x28] sm:$0xff]
        %v283 = vld [vmem:[%s229 + $0x30] sm:$0xff]
        %v284 = vld [vmem:[%s229 + $0x38] sm:$0xff]
        %v285 = vld [vmem:[%s2] sm:$0xff]
        %v286 = vld [vmem:[%s2 + $0x8] sm:$0xff]
        %v287 = vld [vmem:[%s2 + $0x10] sm:$0xff]
        %v288 = vld [vmem:[%s2 + $0x18] sm:$0xff]
        %v289 = vld [vmem:[%s2 + $0x20] sm:$0xff]
        %v290 = vld [vmem:[%s2 + $0x28] sm:$0xff]
        %v291 = vld [vmem:[%s2 + $0x30] sm:$0xff]
        %v292 = vld [vmem:[%s2 + $0x38] sm:$0xff]
        %v293 = vld [vmem:[%s2 + $0x40] sm:$0xff]
        %v294 = vld [vmem:[%s2 + $0x48] sm:$0xff]
        %v295 = vld [vmem:[%s2 + $0x50] sm:$0xff]
        %v296 = vld [vmem:[%s2 + $0x58] sm:$0xff]
        %v297 = vld [vmem:[%s2 + $0x60] sm:$0xff]
        %v298 = vld [vmem:[%s2 + $0x68] sm:$0xff]
        %v299 = vld [vmem:[%s2 + $0x70] sm:$0xff]
        %v300 = vld [vmem:[%s2 + $0x78] sm:$0xff]
        %302 = vset.pattern.permute.xlu0 0
        %303 = vperm.xlu0 %302, %v285
        %v304 = vpop.permute.xlu0 %303
        %307 = vset.pattern.permute.xlu0 0
        %308 = vperm.xlu0 %307, %v286
        %v309 = vpop.permute.xlu0 %308
        %312 = vset.pattern.permute.xlu0 0
        %313 = vperm.xlu0 %312, %v287
        %v314 = vpop.permute.xlu0 %313
        %317 = vset.pattern.permute.xlu0 0
        %318 = vperm.xlu0 %317, %v288
        %v319 = vpop.permute.xlu0 %318
        %322 = vset.pattern.permute.xlu0 0
        %323 = vperm.xlu0 %322, %v289
        %v324 = vpop.permute.xlu0 %323
        %327 = vset.pattern.permute.xlu0 0
        %328 = vperm.xlu0 %327, %v290
        %v329 = vpop.permute.xlu0 %328
        %332 = vset.pattern.permute.xlu0 0
        %333 = vperm.xlu0 %332, %v291
        %v334 = vpop.permute.xlu0 %333
        %337 = vset.pattern.permute.xlu0 0
        %338 = vperm.xlu0 %337, %v292
        %v339 = vpop.permute.xlu0 %338
        %342 = vset.pattern.permute.xlu0 0
        %343 = vperm.xlu0 %342, %v293
        %v344 = vpop.permute.xlu0 %343
        %347 = vset.pattern.permute.xlu0 0
        %348 = vperm.xlu0 %347, %v294
        %v349 = vpop.permute.xlu0 %348
        %352 = vset.pattern.permute.xlu0 0
        %353 = vperm.xlu0 %352, %v295
        %v354 = vpop.permute.xlu0 %353
        %357 = vset.pattern.permute.xlu0 0
        %358 = vperm.xlu0 %357, %v296
        %v359 = vpop.permute.xlu0 %358
        %362 = vset.pattern.permute.xlu0 0
        %363 = vperm.xlu0 %362, %v297
        %v364 = vpop.permute.xlu0 %363
        %367 = vset.pattern.permute.xlu0 0
        %368 = vperm.xlu0 %367, %v298
        %v369 = vpop.permute.xlu0 %368
        %372 = vset.pattern.permute.xlu0 0
        %373 = vperm.xlu0 %372, %v299
        %v374 = vpop.permute.xlu0 %373
        %377 = vset.pattern.permute.xlu0 0
        %378 = vperm.xlu0 %377, %v300
        %v379 = vpop.permute.xlu0 %378
        %vm381 = vcmask 261120
        %v383 = vsel %vm381, %v261, 0
        %v386 = vsel %vm381, %v262, 0
        %v389 = vsel %vm381, %v263, 0
        %v392 = vsel %vm381, %v264, 0
        %v395 = vsel %vm381, %v265, 0
        %v398 = vsel %vm381, %v266, 0
        %v401 = vsel %vm381, %v267, 0
        %v404 = vsel %vm381, %v268, 0
        %v407 = vsel %vm381, %v269, 0
        %v410 = vsel %vm381, %v270, 0
        %v413 = vsel %vm381, %v271, 0
        %v416 = vsel %vm381, %v272, 0
        %v419 = vsel %vm381, %v273, 0
        %v422 = vsel %vm381, %v274, 0
        %v425 = vsel %vm381, %v275, 0
        %v428 = vsel %vm381, %v276, 0
        %430 = vmatprep.subr.mxu0 0.0
        %431 = vmatpush1.msra.mxu0 0.0
        %432 = vmatprep.subr.mxu0 0.0
        %433 = vmatpush1.msra.mxu0 0.0
        %434 = vmatprep.subr.mxu0 0.0
        %435 = vmatpush1.msra.mxu0 0.0
        %436 = vmatprep.subr.mxu0 0.0
        %437 = vmatpush1.msra.mxu0 0.0
        %438 = vmatprep.subr.mxu0 0.0
        %439 = vmatpush1.msra.mxu0 0.0
        %440 = vmatprep.subr.mxu0 0.0
        %441 = vmatpush1.msra.mxu0 0.0
        %442 = vmatprep.subr.mxu0 0.0
        %443 = vmatpush1.msra.mxu0 0.0
        %444 = vmatprep.subr.mxu0 0.0
        %445 = vmatpush1.msra.mxu0 0.0
        %446 = vmatprep.subr.mxu0 0.0
        %447 = vmatpush1.msra.mxu0 0.0
        %448 = vmatprep.subr.mxu0 0.0
        %449 = vmatpush1.msra.mxu0 0.0
        %450 = vmatprep.subr.mxu0 0.0
        %451 = vmatpush1.msra.mxu0 0.0
        %452 = vmatprep.subr.mxu0 0.0
        %453 = vmatpush1.msra.mxu0 0.0
        %454 = vmatprep.subr.mxu0 %v284
        %455 = vmatpush1.msra.mxu0 %v283
        %456 = vmatprep.subr.mxu0 %v282
        %457 = vmatpush1.msra.mxu0 %v281
        %458 = vmatprep.subr.mxu0 %v280
        %459 = vmatpush1.msra.mxu0 %v279
        %460 = vmatprep.subr.mxu0 %v278
        %461 = vmatpush1.msra.mxu0 %v277
        %462 = vmatprep.subr.mxu0 0.0
        %463 = vmatpush2.msra.mxu0 0.0
        %464 = vmatprep.subr.mxu0 0.0
        %465 = vmatpush2.msra.mxu0 0.0
        %466 = vmatprep.subr.mxu0 0.0
        %467 = vmatpush2.msra.mxu0 0.0
        %468 = vmatprep.subr.mxu0 0.0
        %469 = vmatpush2.msra.mxu0 0.0
        %470 = vmatprep.subr.mxu0 0.0
        %471 = vmatpush2.msra.mxu0 0.0
        %472 = vmatprep.subr.mxu0 0.0
        %473 = vmatpush2.msra.mxu0 0.0
        %474 = vmatprep.subr.mxu0 0.0
        %475 = vmatpush2.msra.mxu0 0.0
        %476 = vmatprep.subr.mxu0 0.0
        %477 = vmatpush2.msra.mxu0 0.0
        %478 = vmatprep.subr.mxu0 0.0
        %479 = vmatpush2.msra.mxu0 0.0
        %480 = vmatprep.subr.mxu0 0.0
        %481 = vmatpush2.msra.mxu0 0.0
        %482 = vmatprep.subr.mxu0 0.0
        %483 = vmatpush2.msra.mxu0 0.0
        %484 = vmatprep.subr.mxu0 0.0
        %485 = vmatpush2.msra.mxu0 0.0
        %486 = vmatprep.subr.mxu0 0.0
        %487 = vmatpush2.msra.mxu0 0.0
        %488 = vmatprep.subr.mxu0 0.0
        %489 = vmatpush2.msra.mxu0 0.0
        %490 = vmatprep.subr.mxu0 0.0
        %491 = vmatpush2.msra.mxu0 0.0
        %492 = vmatprep.subr.mxu0 0.0
        %493 = vmatpush2.msra.mxu0 0.0
        %494 = vmatprep.mubr.f32.mxu0 0.0
        %495 = vmatmul.mubr.f32.gmra.mxu0 %v383
        %v496 = vpop.f32.mrf.mxu0
        %v497 = vadd.f32 %v304, %v496
        %v498 = vpop.f32.mrf.mxu0
        %v499 = vadd.f32 %v304, %v498
        %500 = vmatprep.mubr.f32.mxu0 0.0
        %501 = vmatmul.mubr.f32.gmra.mxu0 %v386
        %v502 = vpop.f32.mrf.mxu0
        %v503 = vadd.f32 %v309, %v502
        %v504 = vpop.f32.mrf.mxu0
        %v505 = vadd.f32 %v309, %v504
        %506 = vmatprep.mubr.f32.mxu0 0.0
        %507 = vmatmul.mubr.f32.gmra.mxu0 %v389
        %v508 = vpop.f32.mrf.mxu0
        %v509 = vadd.f32 %v314, %v508
        %v510 = vpop.f32.mrf.mxu0
        %v511 = vadd.f32 %v314, %v510
        %512 = vmatprep.mubr.f32.mxu0 0.0
        %513 = vmatmul.mubr.f32.gmra.mxu0 %v392
        %v514 = vpop.f32.mrf.mxu0
        %v515 = vadd.f32 %v319, %v514
        %v516 = vpop.f32.mrf.mxu0
        %v517 = vadd.f32 %v319, %v516
        %518 = vmatprep.mubr.f32.mxu0 0.0
        %519 = vmatmul.mubr.f32.gmra.mxu0 %v395
        %v520 = vpop.f32.mrf.mxu0
        %v521 = vadd.f32 %v324, %v520
        %v522 = vpop.f32.mrf.mxu0
        %v523 = vadd.f32 %v324, %v522
        %524 = vmatprep.mubr.f32.mxu0 0.0
        %525 = vmatmul.mubr.f32.gmra.mxu0 %v398
        %v526 = vpop.f32.mrf.mxu0
        %v527 = vadd.f32 %v329, %v526
        %v528 = vpop.f32.mrf.mxu0
        %v529 = vadd.f32 %v329, %v528
        %530 = vmatprep.mubr.f32.mxu0 0.0
        %531 = vmatmul.mubr.f32.gmra.mxu0 %v401
        %v532 = vpop.f32.mrf.mxu0
        %v533 = vadd.f32 %v334, %v532
        %v534 = vpop.f32.mrf.mxu0
        %v535 = vadd.f32 %v334, %v534
        %536 = vmatprep.mubr.f32.mxu0 0.0
        %537 = vmatmul.mubr.f32.gmra.mxu0 %v404
        %v538 = vpop.f32.mrf.mxu0
        %v539 = vadd.f32 %v339, %v538
        %v540 = vpop.f32.mrf.mxu0
        %v541 = vadd.f32 %v339, %v540
        %542 = vmatprep.mubr.f32.mxu0 0.0
        %543 = vmatmul.mubr.f32.gmra.mxu0 %v407
        %v544 = vpop.f32.mrf.mxu0
        %v545 = vadd.f32 %v344, %v544
        %v546 = vpop.f32.mrf.mxu0
        %v547 = vadd.f32 %v344, %v546
        %548 = vmatprep.mubr.f32.mxu0 0.0
        %549 = vmatmul.mubr.f32.gmra.mxu0 %v410
        %v550 = vpop.f32.mrf.mxu0
        %v551 = vadd.f32 %v349, %v550
        %v552 = vpop.f32.mrf.mxu0
        %v553 = vadd.f32 %v349, %v552
        %554 = vmatprep.mubr.f32.mxu0 0.0
        %555 = vmatmul.mubr.f32.gmra.mxu0 %v413
        %v556 = vpop.f32.mrf.mxu0
        %v557 = vadd.f32 %v354, %v556
        %v558 = vpop.f32.mrf.mxu0
        %v559 = vadd.f32 %v354, %v558
        %560 = vmatprep.mubr.f32.mxu0 0.0
        %561 = vmatmul.mubr.f32.gmra.mxu0 %v416
        %v562 = vpop.f32.mrf.mxu0
        %v563 = vadd.f32 %v359, %v562
        %v564 = vpop.f32.mrf.mxu0
        %v565 = vadd.f32 %v359, %v564
        %566 = vmatprep.mubr.f32.mxu0 0.0
        %567 = vmatmul.mubr.f32.gmra.mxu0 %v419
        %v568 = vpop.f32.mrf.mxu0
        %v569 = vadd.f32 %v364, %v568
        %v570 = vpop.f32.mrf.mxu0
        %v571 = vadd.f32 %v364, %v570
        %572 = vmatprep.mubr.f32.mxu0 0.0
        %573 = vmatmul.mubr.f32.gmra.mxu0 %v422
        %v574 = vpop.f32.mrf.mxu0
        %v575 = vadd.f32 %v369, %v574
        %v576 = vpop.f32.mrf.mxu0
        %v577 = vadd.f32 %v369, %v576
        %578 = vmatprep.mubr.f32.mxu0 0.0
        %579 = vmatmul.mubr.f32.gmra.mxu0 %v425
        %v580 = vpop.f32.mrf.mxu0
        %v581 = vadd.f32 %v374, %v580
        %v582 = vpop.f32.mrf.mxu0
        %v583 = vadd.f32 %v374, %v582
        %584 = vmatprep.mubr.f32.mxu0 0.0
        %585 = vmatmul.mubr.f32.gmra.mxu0 %v428
        %v586 = vpop.f32.mrf.mxu0
        %v587 = vadd.f32 %v379, %v586
        %v588 = vpop.f32.mrf.mxu0
        %v589 = vadd.f32 %v379, %v588
        %590 = vdwg.mxu0
        %v591 = vmul.f32 %v497, 0.5
        %v592 = vmul.f32 %v499, 0.5
        %v593 = vmul.f32 %v503, 0.5
        %v594 = vmul.f32 %v505, 0.5
        %v595 = vmul.f32 %v509, 0.5
        %v596 = vmul.f32 %v511, 0.5
        %v597 = vmul.f32 %v515, 0.5
        %v598 = vmul.f32 %v517, 0.5
        %v599 = vmul.f32 %v521, 0.5
        %v600 = vmul.f32 %v523, 0.5
        %v601 = vmul.f32 %v527, 0.5
        %v602 = vmul.f32 %v529, 0.5
        %v603 = vmul.f32 %v533, 0.5
        %v604 = vmul.f32 %v535, 0.5
        %v605 = vmul.f32 %v539, 0.5
        %v606 = vmul.f32 %v541, 0.5
        %v607 = vmul.f32 %v545, 0.5
        %v608 = vmul.f32 %v547, 0.5
        %v609 = vmul.f32 %v551, 0.5
        %v610 = vmul.f32 %v553, 0.5
        %v611 = vmul.f32 %v557, 0.5
        %v612 = vmul.f32 %v559, 0.5
        %v613 = vmul.f32 %v563, 0.5
        %v614 = vmul.f32 %v565, 0.5
        %v615 = vmul.f32 %v569, 0.5
        %v616 = vmul.f32 %v571, 0.5
        %v617 = vmul.f32 %v575, 0.5
        %v618 = vmul.f32 %v577, 0.5
        %v619 = vmul.f32 %v581, 0.5
        %v620 = vmul.f32 %v583, 0.5
        %v621 = vmul.f32 %v587, 0.5
        %v622 = vmul.f32 %v589, 0.5
        %v623 = vmul.f32 %v497, 0.70710677
        %v624 = vmul.f32 %v499, 0.70710677
        %v625 = vmul.f32 %v503, 0.70710677
        %v626 = vmul.f32 %v505, 0.70710677
        %v627 = vmul.f32 %v509, 0.70710677
        %v628 = vmul.f32 %v511, 0.70710677
        %v629 = vmul.f32 %v515, 0.70710677
        %v630 = vmul.f32 %v517, 0.70710677
        %v631 = vmul.f32 %v521, 0.70710677
        %v632 = vmul.f32 %v523, 0.70710677
        %v633 = vmul.f32 %v527, 0.70710677
        %v634 = vmul.f32 %v529, 0.70710677
        %v635 = vmul.f32 %v533, 0.70710677
        %v636 = vmul.f32 %v535, 0.70710677
        %v637 = vmul.f32 %v539, 0.70710677
        %v638 = vmul.f32 %v541, 0.70710677
        %v639 = vmul.f32 %v545, 0.70710677
        %v640 = vmul.f32 %v547, 0.70710677
        %v641 = vmul.f32 %v551, 0.70710677
        %v642 = vmul.f32 %v553, 0.70710677
        %v643 = vmul.f32 %v557, 0.70710677
        %v644 = vmul.f32 %v559, 0.70710677
        %v645 = vmul.f32 %v563, 0.70710677
        %v646 = vmul.f32 %v565, 0.70710677
        %v647 = vmul.f32 %v569, 0.70710677
        %v648 = vmul.f32 %v571, 0.70710677
        %v649 = vmul.f32 %v575, 0.70710677
        %v650 = vmul.f32 %v577, 0.70710677
        %v651 = vmul.f32 %v581, 0.70710677
        %v652 = vmul.f32 %v583, 0.70710677
        %v653 = vmul.f32 %v587, 0.70710677
        %v654 = vmul.f32 %v589, 0.70710677
        %v655 = vand.u32 2147483647, %v623
        %v656 = vand.u32 2147483647, %v624
        %v657 = vand.u32 2147483647, %v625
        %v658 = vand.u32 2147483647, %v626
        %v659 = vand.u32 2147483647, %v627
        %v660 = vand.u32 2147483647, %v628
        %v661 = vand.u32 2147483647, %v629
        %v662 = vand.u32 2147483647, %v630
        %v663 = vand.u32 2147483647, %v631
        %v664 = vand.u32 2147483647, %v632
        %v665 = vand.u32 2147483647, %v633
        %v666 = vand.u32 2147483647, %v634
        %v667 = vand.u32 2147483647, %v635
        %v668 = vand.u32 2147483647, %v636
        %v669 = vand.u32 2147483647, %v637
        %v670 = vand.u32 2147483647, %v638
        %v671 = vand.u32 2147483647, %v639
        %v672 = vand.u32 2147483647, %v640
        %v673 = vand.u32 2147483647, %v641
        %v674 = vand.u32 2147483647, %v642
        %v675 = vand.u32 2147483647, %v643
        %v676 = vand.u32 2147483647, %v644
        %v677 = vand.u32 2147483647, %v645
        %v678 = vand.u32 2147483647, %v646
        %v679 = vand.u32 2147483647, %v647
        %v680 = vand.u32 2147483647, %v648
        %v681 = vand.u32 2147483647, %v649
        %v682 = vand.u32 2147483647, %v650
        %v683 = vand.u32 2147483647, %v651
        %v684 = vand.u32 2147483647, %v652
        %v685 = vand.u32 2147483647, %v653
        %v686 = vand.u32 2147483647, %v654
        %v687 = vmul.f32 %v655, 0.5
        %v688 = vmul.f32 %v656, 0.5
        %v689 = vmul.f32 %v657, 0.5
        %v690 = vmul.f32 %v658, 0.5
        %v691 = vmul.f32 %v659, 0.5
        %v692 = vmul.f32 %v660, 0.5
        %v693 = vmul.f32 %v661, 0.5
        %v694 = vmul.f32 %v662, 0.5
        %v695 = vmul.f32 %v663, 0.5
        %v696 = vmul.f32 %v664, 0.5
        %v697 = vmul.f32 %v665, 0.5
        %v698 = vmul.f32 %v666, 0.5
        %v699 = vmul.f32 %v667, 0.5
        %v700 = vmul.f32 %v668, 0.5
        %v701 = vmul.f32 %v669, 0.5
        %v702 = vmul.f32 %v670, 0.5
        %v703 = vmul.f32 %v671, 0.5
        %v704 = vmul.f32 %v672, 0.5
        %v705 = vmul.f32 %v673, 0.5
        %v706 = vmul.f32 %v674, 0.5
        %v707 = vmul.f32 %v675, 0.5
        %v708 = vmul.f32 %v676, 0.5
        %v709 = vmul.f32 %v677, 0.5
        %v710 = vmul.f32 %v678, 0.5
        %v711 = vmul.f32 %v679, 0.5
        %v712 = vmul.f32 %v680, 0.5
        %v713 = vmul.f32 %v681, 0.5
        %v714 = vmul.f32 %v682, 0.5
        %v715 = vmul.f32 %v683, 0.5
        %v716 = vmul.f32 %v684, 0.5
        %v717 = vmul.f32 %v685, 0.5
        %v718 = vmul.f32 %v686, 0.5
        %v719 = vadd.f32 %v687, 1.0
        %v720 = vadd.f32 %v688, 1.0
        %v721 = vadd.f32 %v689, 1.0
        %v722 = vadd.f32 %v690, 1.0
        %v723 = vadd.f32 %v691, 1.0
        %v724 = vadd.f32 %v692, 1.0
        %v725 = vadd.f32 %v693, 1.0
        %v726 = vadd.f32 %v694, 1.0
        %v727 = vadd.f32 %v695, 1.0
        %v728 = vadd.f32 %v696, 1.0
        %v729 = vadd.f32 %v697, 1.0
        %v730 = vadd.f32 %v698, 1.0
        %v731 = vadd.f32 %v699, 1.0
        %v732 = vadd.f32 %v700, 1.0
        %v733 = vadd.f32 %v701, 1.0
        %v734 = vadd.f32 %v702, 1.0
        %v735 = vadd.f32 %v703, 1.0
        %v736 = vadd.f32 %v704, 1.0
        %v737 = vadd.f32 %v705, 1.0
        %v738 = vadd.f32 %v706, 1.0
        %v739 = vadd.f32 %v707, 1.0
        %v740 = vadd.f32 %v708, 1.0
        %v741 = vadd.f32 %v709, 1.0
        %v742 = vadd.f32 %v710, 1.0
        %v743 = vadd.f32 %v711, 1.0
        %v744 = vadd.f32 %v712, 1.0
        %v745 = vadd.f32 %v713, 1.0
        %v746 = vadd.f32 %v714, 1.0
        %v747 = vadd.f32 %v715, 1.0
        %v748 = vadd.f32 %v716, 1.0
        %v749 = vadd.f32 %v717, 1.0
        %v750 = vadd.f32 %v718, 1.0
        %v751 = vrcp.pop %v719
        %v752 = vmul.f32 1.0, %v751
        %v753 = vrcp.pop %v720
        %v754 = vmul.f32 1.0, %v753
        %v755 = vrcp.pop %v721
        %v756 = vmul.f32 1.0, %v755
        %v757 = vrcp.pop %v722
        %v758 = vmul.f32 1.0, %v757
        %v759 = vrcp.pop %v723
        %v760 = vmul.f32 1.0, %v759
        %v761 = vrcp.pop %v724
        %v762 = vmul.f32 1.0, %v761
        %v763 = vrcp.pop %v725
        %v764 = vmul.f32 1.0, %v763
        %v765 = vrcp.pop %v726
        %v766 = vmul.f32 1.0, %v765
        %v767 = vrcp.pop %v727
        %v768 = vmul.f32 1.0, %v767
        %v769 = vrcp.pop %v728
        %v770 = vmul.f32 1.0, %v769
        %v771 = vrcp.pop %v729
        %v772 = vmul.f32 1.0, %v771
        %v773 = vrcp.pop %v730
        %v774 = vmul.f32 1.0, %v773
        %v775 = vrcp.pop %v731
        %v776 = vmul.f32 1.0, %v775
        %v777 = vrcp.pop %v732
        %v778 = vmul.f32 1.0, %v777
        %v779 = vrcp.pop %v733
        %v780 = vmul.f32 1.0, %v779
        %v781 = vrcp.pop %v734
        %v782 = vmul.f32 1.0, %v781
        %v783 = vrcp.pop %v735
        %v784 = vmul.f32 1.0, %v783
        %v785 = vrcp.pop %v736
        %v786 = vmul.f32 1.0, %v785
        %v787 = vrcp.pop %v737
        %v788 = vmul.f32 1.0, %v787
        %v789 = vrcp.pop %v738
        %v790 = vmul.f32 1.0, %v789
        %v791 = vrcp.pop %v739
        %v792 = vmul.f32 1.0, %v791
        %v793 = vrcp.pop %v740
        %v794 = vmul.f32 1.0, %v793
        %v795 = vrcp.pop %v741
        %v796 = vmul.f32 1.0, %v795
        %v797 = vrcp.pop %v742
        %v798 = vmul.f32 1.0, %v797
        %v799 = vrcp.pop %v743
        %v800 = vmul.f32 1.0, %v799
        %v801 = vrcp.pop %v744
        %v802 = vmul.f32 1.0, %v801
        %v803 = vrcp.pop %v745
        %v804 = vmul.f32 1.0, %v803
        %v805 = vrcp.pop %v746
        %v806 = vmul.f32 1.0, %v805
        %v807 = vrcp.pop %v747
        %v808 = vmul.f32 1.0, %v807
        %v809 = vrcp.pop %v748
        %v810 = vmul.f32 1.0, %v809
        %v811 = vrcp.pop %v749
        %v812 = vmul.f32 1.0, %v811
        %v813 = vrcp.pop %v750
        %v814 = vmul.f32 1.0, %v813
        %v815 = vmul.f32 %v752, 0.17087276
        %v816 = vmul.f32 %v754, 0.17087276
        %v817 = vmul.f32 %v756, 0.17087276
        %v818 = vmul.f32 %v758, 0.17087276
        %v819 = vmul.f32 %v760, 0.17087276
        %v820 = vmul.f32 %v762, 0.17087276
        %v821 = vmul.f32 %v764, 0.17087276
        %v822 = vmul.f32 %v766, 0.17087276
        %v823 = vmul.f32 %v768, 0.17087276
        %v824 = vmul.f32 %v770, 0.17087276
        %v825 = vmul.f32 %v772, 0.17087276
        %v826 = vmul.f32 %v774, 0.17087276
        %v827 = vmul.f32 %v776, 0.17087276
        %v828 = vmul.f32 %v778, 0.17087276
        %v829 = vmul.f32 %v780, 0.17087276
        %v830 = vmul.f32 %v782, 0.17087276
        %v831 = vmul.f32 %v784, 0.17087276
        %v832 = vmul.f32 %v786, 0.17087276
        %v833 = vmul.f32 %v788, 0.17087276
        %v834 = vmul.f32 %v790, 0.17087276
        %v835 = vmul.f32 %v792, 0.17087276
        %v836 = vmul.f32 %v794, 0.17087276
        %v837 = vmul.f32 %v796, 0.17087276
        %v838 = vmul.f32 %v798, 0.17087276
        %v839 = vmul.f32 %v800, 0.17087276
        %v840 = vmul.f32 %v802, 0.17087276
        %v841 = vmul.f32 %v804, 0.17087276
        %v842 = vmul.f32 %v806, 0.17087276
        %v843 = vmul.f32 %v808, 0.17087276
        %v844 = vmul.f32 %v810, 0.17087276
        %v845 = vmul.f32 %v812, 0.17087276
        %v846 = vmul.f32 %v814, 0.17087276
        %v847 = vadd.f32 %v815, -0.82215226
        %v848 = vadd.f32 %v816, -0.82215226
        %v849 = vadd.f32 %v817, -0.82215226
        %v850 = vadd.f32 %v818, -0.82215226
        %v851 = vadd.f32 %v819, -0.82215226
        %v852 = vadd.f32 %v820, -0.82215226
        %v853 = vadd.f32 %v821, -0.82215226
        %v854 = vadd.f32 %v822, -0.82215226
        %v855 = vadd.f32 %v823, -0.82215226
        %v856 = vadd.f32 %v824, -0.82215226
        %v857 = vadd.f32 %v825, -0.82215226
        %v858 = vadd.f32 %v826, -0.82215226
        %v859 = vadd.f32 %v827, -0.82215226
        %v860 = vadd.f32 %v828, -0.82215226
        %v861 = vadd.f32 %v829, -0.82215226
        %v862 = vadd.f32 %v830, -0.82215226
        %v863 = vadd.f32 %v831, -0.82215226
        %v864 = vadd.f32 %v832, -0.82215226
        %v865 = vadd.f32 %v833, -0.82215226
        %v866 = vadd.f32 %v834, -0.82215226
        %v867 = vadd.f32 %v835, -0.82215226
        %v868 = vadd.f32 %v836, -0.82215226
        %v869 = vadd.f32 %v837, -0.82215226
        %v870 = vadd.f32 %v838, -0.82215226
        %v871 = vadd.f32 %v839, -0.82215226
        %v872 = vadd.f32 %v840, -0.82215226
        %v873 = vadd.f32 %v841, -0.82215226
        %v874 = vadd.f32 %v842, -0.82215226
        %v875 = vadd.f32 %v843, -0.82215226
        %v876 = vadd.f32 %v844, -0.82215226
        %v877 = vadd.f32 %v845, -0.82215226
        %v878 = vadd.f32 %v846, -0.82215226
        %v879 = vmul.f32 %v752, %v847
        %v880 = vmul.f32 %v754, %v848
        %v881 = vmul.f32 %v756, %v849
        %v882 = vmul.f32 %v758, %v850
        %v883 = vmul.f32 %v760, %v851
        %v884 = vmul.f32 %v762, %v852
        %v885 = vmul.f32 %v764, %v853
        %v886 = vmul.f32 %v766, %v854
        %v887 = vmul.f32 %v768, %v855
        %v888 = vmul.f32 %v770, %v856
        %v889 = vmul.f32 %v772, %v857
        %v890 = vmul.f32 %v774, %v858
        %v891 = vmul.f32 %v776, %v859
        %v892 = vmul.f32 %v778, %v860
        %v893 = vmul.f32 %v780, %v861
        %v894 = vmul.f32 %v782, %v862
        %v895 = vmul.f32 %v784, %v863
        %v896 = vmul.f32 %v786, %v864
        %v897 = vmul.f32 %v788, %v865
        %v898 = vmul.f32 %v790, %v866
        %v899 = vmul.f32 %v792, %v867
        %v900 = vmul.f32 %v794, %v868
        %v901 = vmul.f32 %v796, %v869
        %v902 = vmul.f32 %v798, %v870
        %v903 = vmul.f32 %v800, %v871
        %v904 = vmul.f32 %v802, %v872
        %v905 = vmul.f32 %v804, %v873
        %v906 = vmul.f32 %v806, %v874
        %v907 = vmul.f32 %v808, %v875
        %v908 = vmul.f32 %v810, %v876
        %v909 = vmul.f32 %v812, %v877
        %v910 = vmul.f32 %v814, %v878
        %v911 = vadd.f32 %v879, 1.4885159
        %v912 = vadd.f32 %v880, 1.4885159
        %v913 = vadd.f32 %v881, 1.4885159
        %v914 = vadd.f32 %v882, 1.4885159
        %v915 = vadd.f32 %v883, 1.4885159
        %v916 = vadd.f32 %v884, 1.4885159
        %v917 = vadd.f32 %v885, 1.4885159
        %v918 = vadd.f32 %v886, 1.4885159
        %v919 = vadd.f32 %v887, 1.4885159
        %v920 = vadd.f32 %v888, 1.4885159
        %v921 = vadd.f32 %v889, 1.4885159
        %v922 = vadd.f32 %v890, 1.4885159
        %v923 = vadd.f32 %v891, 1.4885159
        %v924 = vadd.f32 %v892, 1.4885159
        %v925 = vadd.f32 %v893, 1.4885159
        %v926 = vadd.f32 %v894, 1.4885159
        %v927 = vadd.f32 %v895, 1.4885159
        %v928 = vadd.f32 %v896, 1.4885159
        %v929 = vadd.f32 %v897, 1.4885159
        %v930 = vadd.f32 %v898, 1.4885159
        %v931 = vadd.f32 %v899, 1.4885159
        %v932 = vadd.f32 %v900, 1.4885159
        %v933 = vadd.f32 %v901, 1.4885159
        %v934 = vadd.f32 %v902, 1.4885159
        %v935 = vadd.f32 %v903, 1.4885159
        %v936 = vadd.f32 %v904, 1.4885159
        %v937 = vadd.f32 %v905, 1.4885159
        %v938 = vadd.f32 %v906, 1.4885159
        %v939 = vadd.f32 %v907, 1.4885159
        %v940 = vadd.f32 %v908, 1.4885159
        %v941 = vadd.f32 %v909, 1.4885159
        %v942 = vadd.f32 %v910, 1.4885159
        %v943 = vmul.f32 %v752, %v911
        %v944 = vmul.f32 %v754, %v912
        %v945 = vmul.f32 %v756, %v913
        %v946 = vmul.f32 %v758, %v914
        %v947 = vmul.f32 %v760, %v915
        %v948 = vmul.f32 %v762, %v916
        %v949 = vmul.f32 %v764, %v917
        %v950 = vmul.f32 %v766, %v918
        %v951 = vmul.f32 %v768, %v919
        %v952 = vmul.f32 %v770, %v920
        %v953 = vmul.f32 %v772, %v921
        %v954 = vmul.f32 %v774, %v922
        %v955 = vmul.f32 %v776, %v923
        %v956 = vmul.f32 %v778, %v924
        %v957 = vmul.f32 %v780, %v925
        %v958 = vmul.f32 %v782, %v926
        %v959 = vmul.f32 %v784, %v927
        %v960 = vmul.f32 %v786, %v928
        %v961 = vmul.f32 %v788, %v929
        %v962 = vmul.f32 %v790, %v930
        %v963 = vmul.f32 %v792, %v931
        %v964 = vmul.f32 %v794, %v932
        %v965 = vmul.f32 %v796, %v933
        %v966 = vmul.f32 %v798, %v934
        %v967 = vmul.f32 %v800, %v935
        %v968 = vmul.f32 %v802, %v936
        %v969 = vmul.f32 %v804, %v937
        %v970 = vmul.f32 %v806, %v938
        %v971 = vmul.f32 %v808, %v939
        %v972 = vmul.f32 %v810, %v940
        %v973 = vmul.f32 %v812, %v941
        %v974 = vmul.f32 %v814, %v942
        %v975 = vadd.f32 %v943, -1.135204
        %v976 = vadd.f32 %v944, -1.135204
        %v977 = vadd.f32 %v945, -1.135204
        %v978 = vadd.f32 %v946, -1.135204
        %v979 = vadd.f32 %v947, -1.135204
        %v980 = vadd.f32 %v948, -1.135204
        %v981 = vadd.f32 %v949, -1.135204
        %v982 = vadd.f32 %v950, -1.135204
        %v983 = vadd.f32 %v951, -1.135204
        %v984 = vadd.f32 %v952, -1.135204
        %v985 = vadd.f32 %v953, -1.135204
        %v986 = vadd.f32 %v954, -1.135204
        %v987 = vadd.f32 %v955, -1.135204
        %v988 = vadd.f32 %v956, -1.135204
        %v989 = vadd.f32 %v957, -1.135204
        %v990 = vadd.f32 %v958, -1.135204
        %v991 = vadd.f32 %v959, -1.135204
        %v992 = vadd.f32 %v960, -1.135204
        %v993 = vadd.f32 %v961, -1.135204
        %v994 = vadd.f32 %v962, -1.135204
        %v995 = vadd.f32 %v963, -1.135204
        %v996 = vadd.f32 %v964, -1.135204
        %v997 = vadd.f32 %v965, -1.135204
        %v998 = vadd.f32 %v966, -1.135204
        %v999 = vadd.f32 %v967, -1.135204
        %v1000 = vadd.f32 %v968, -1.135204
        %v1001 = vadd.f32 %v969, -1.135204
        %v1002 = vadd.f32 %v970, -1.135204
        %v1003 = vadd.f32 %v971, -1.135204
        %v1004 = vadd.f32 %v972, -1.135204
        %v1005 = vadd.f32 %v973, -1.135204
        %v1006 = vadd.f32 %v974, -1.135204
        %v1007 = vmul.f32 %v752, %v975
        %v1008 = vmul.f32 %v754, %v976
        %v1009 = vmul.f32 %v756, %v977
        %v1010 = vmul.f32 %v758, %v978
        %v1011 = vmul.f32 %v760, %v979
        %v1012 = vmul.f32 %v762, %v980
        %v1013 = vmul.f32 %v764, %v981
        %v1014 = vmul.f32 %v766, %v982
        %v1015 = vmul.f32 %v768, %v983
        %v1016 = vmul.f32 %v770, %v984
        %v1017 = vmul.f32 %v772, %v985
        %v1018 = vmul.f32 %v774, %v986
        %v1019 = vmul.f32 %v776, %v987
        %v1020 = vmul.f32 %v778, %v988
        %v1021 = vmul.f32 %v780, %v989
        %v1022 = vmul.f32 %v782, %v990
        %v1023 = vmul.f32 %v784, %v991
        %v1024 = vmul.f32 %v786, %v992
        %v1025 = vmul.f32 %v788, %v993
        %v1026 = vmul.f32 %v790, %v994
        %v1027 = vmul.f32 %v792, %v995
        %v1028 = vmul.f32 %v794, %v996
        %v1029 = vmul.f32 %v796, %v997
        %v1030 = vmul.f32 %v798, %v998
        %v1031 = vmul.f32 %v800, %v999
        %v1032 = vmul.f32 %v802, %v1000
        %v1033 = vmul.f32 %v804, %v1001
        %v1034 = vmul.f32 %v806, %v1002
        %v1035 = vmul.f32 %v808, %v1003
        %v1036 = vmul.f32 %v810, %v1004
        %v1037 = vmul.f32 %v812, %v1005
        %v1038 = vmul.f32 %v814, %v1006
        %v1039 = vadd.f32 %v1007, 0.27886808
        %v1040 = vadd.f32 %v1008, 0.27886808
        %v1041 = vadd.f32 %v1009, 0.27886808
        %v1042 = vadd.f32 %v1010, 0.27886808
        %v1043 = vadd.f32 %v1011, 0.27886808
        %v1044 = vadd.f32 %v1012, 0.27886808
        %v1045 = vadd.f32 %v1013, 0.27886808
        %v1046 = vadd.f32 %v1014, 0.27886808
        %v1047 = vadd.f32 %v1015, 0.27886808
        %v1048 = vadd.f32 %v1016, 0.27886808
        %v1049 = vadd.f32 %v1017, 0.27886808
        %v1050 = vadd.f32 %v1018, 0.27886808
        %v1051 = vadd.f32 %v1019, 0.27886808
        %v1052 = vadd.f32 %v1020, 0.27886808
        %v1053 = vadd.f32 %v1021, 0.27886808
        %v1054 = vadd.f32 %v1022, 0.27886808
        %v1055 = vadd.f32 %v1023, 0.27886808
        %v1056 = vadd.f32 %v1024, 0.27886808
        %v1057 = vadd.f32 %v1025, 0.27886808
        %v1058 = vadd.f32 %v1026, 0.27886808
        %v1059 = vadd.f32 %v1027, 0.27886808
        %v1060 = vadd.f32 %v1028, 0.27886808
        %v1061 = vadd.f32 %v1029, 0.27886808
        %v1062 = vadd.f32 %v1030, 0.27886808
        %v1063 = vadd.f32 %v1031, 0.27886808
        %v1064 = vadd.f32 %v1032, 0.27886808
        %v1065 = vadd.f32 %v1033, 0.27886808
        %v1066 = vadd.f32 %v1034, 0.27886808
        %v1067 = vadd.f32 %v1035, 0.27886808
        %v1068 = vadd.f32 %v1036, 0.27886808
        %v1069 = vadd.f32 %v1037, 0.27886808
        %v1070 = vadd.f32 %v1038, 0.27886808
        %v1071 = vmul.f32 %v752, %v1039
        %v1072 = vmul.f32 %v754, %v1040
        %v1073 = vmul.f32 %v756, %v1041
        %v1074 = vmul.f32 %v758, %v1042
        %v1075 = vmul.f32 %v760, %v1043
        %v1076 = vmul.f32 %v762, %v1044
        %v1077 = vmul.f32 %v764, %v1045
        %v1078 = vmul.f32 %v766, %v1046
        %v1079 = vmul.f32 %v768, %v1047
        %v1080 = vmul.f32 %v770, %v1048
        %v1081 = vmul.f32 %v772, %v1049
        %v1082 = vmul.f32 %v774, %v1050
        %v1083 = vmul.f32 %v776, %v1051
        %v1084 = vmul.f32 %v778, %v1052
        %v1085 = vmul.f32 %v780, %v1053
        %v1086 = vmul.f32 %v782, %v1054
        %v1087 = vmul.f32 %v784, %v1055
        %v1088 = vmul.f32 %v786, %v1056
        %v1089 = vmul.f32 %v788, %v1057
        %v1090 = vmul.f32 %v790, %v1058
        %v1091 = vmul.f32 %v792, %v1059
        %v1092 = vmul.f32 %v794, %v1060
        %v1093 = vmul.f32 %v796, %v1061
        %v1094 = vmul.f32 %v798, %v1062
        %v1095 = vmul.f32 %v800, %v1063
        %v1096 = vmul.f32 %v802, %v1064
        %v1097 = vmul.f32 %v804, %v1065
        %v1098 = vmul.f32 %v806, %v1066
        %v1099 = vmul.f32 %v808, %v1067
        %v1100 = vmul.f32 %v810, %v1068
        %v1101 = vmul.f32 %v812, %v1069
        %v1102 = vmul.f32 %v814, %v1070
        %v1103 = vadd.f32 %v1071, -0.18628806
        %v1104 = vadd.f32 %v1072, -0.18628806
        %v1105 = vadd.f32 %v1073, -0.18628806
        %v1106 = vadd.f32 %v1074, -0.18628806
        %v1107 = vadd.f32 %v1075, -0.18628806
        %v1108 = vadd.f32 %v1076, -0.18628806
        %v1109 = vadd.f32 %v1077, -0.18628806
        %v1110 = vadd.f32 %v1078, -0.18628806
        %v1111 = vadd.f32 %v1079, -0.18628806
        %v1112 = vadd.f32 %v1080, -0.18628806
        %v1113 = vadd.f32 %v1081, -0.18628806
        %v1114 = vadd.f32 %v1082, -0.18628806
        %v1115 = vadd.f32 %v1083, -0.18628806
        %v1116 = vadd.f32 %v1084, -0.18628806
        %v1117 = vadd.f32 %v1085, -0.18628806
        %v1118 = vadd.f32 %v1086, -0.18628806
        %v1119 = vadd.f32 %v1087, -0.18628806
        %v1120 = vadd.f32 %v1088, -0.18628806
        %v1121 = vadd.f32 %v1089, -0.18628806
        %v1122 = vadd.f32 %v1090, -0.18628806
        %v1123 = vadd.f32 %v1091, -0.18628806
        %v1124 = vadd.f32 %v1092, -0.18628806
        %v1125 = vadd.f32 %v1093, -0.18628806
        %v1126 = vadd.f32 %v1094, -0.18628806
        %v1127 = vadd.f32 %v1095, -0.18628806
        %v1128 = vadd.f32 %v1096, -0.18628806
        %v1129 = vadd.f32 %v1097, -0.18628806
        %v1130 = vadd.f32 %v1098, -0.18628806
        %v1131 = vadd.f32 %v1099, -0.18628806
        %v1132 = vadd.f32 %v1100, -0.18628806
        %v1133 = vadd.f32 %v1101, -0.18628806
        %v1134 = vadd.f32 %v1102, -0.18628806
        %v1135 = vmul.f32 %v752, %v1103
        %v1136 = vmul.f32 %v754, %v1104
        %v1137 = vmul.f32 %v756, %v1105
        %v1138 = vmul.f32 %v758, %v1106
        %v1139 = vmul.f32 %v760, %v1107
        %v1140 = vmul.f32 %v762, %v1108
        %v1141 = vmul.f32 %v764, %v1109
        %v1142 = vmul.f32 %v766, %v1110
        %v1143 = vmul.f32 %v768, %v1111
        %v1144 = vmul.f32 %v770, %v1112
        %v1145 = vmul.f32 %v772, %v1113
        %v1146 = vmul.f32 %v774, %v1114
        %v1147 = vmul.f32 %v776, %v1115
        %v1148 = vmul.f32 %v778, %v1116
        %v1149 = vmul.f32 %v780, %v1117
        %v1150 = vmul.f32 %v782, %v1118
        %v1151 = vmul.f32 %v784, %v1119
        %v1152 = vmul.f32 %v786, %v1120
        %v1153 = vmul.f32 %v788, %v1121
        %v1154 = vmul.f32 %v790, %v1122
        %v1155 = vmul.f32 %v792, %v1123
        %v1156 = vmul.f32 %v794, %v1124
        %v1157 = vmul.f32 %v796, %v1125
        %v1158 = vmul.f32 %v798, %v1126
        %v1159 = vmul.f32 %v800, %v1127
        %v1160 = vmul.f32 %v802, %v1128
        %v1161 = vmul.f32 %v804, %v1129
        %v1162 = vmul.f32 %v806, %v1130
        %v1163 = vmul.f32 %v808, %v1131
        %v1164 = vmul.f32 %v810, %v1132
        %v1165 = vmul.f32 %v812, %v1133
        %v1166 = vmul.f32 %v814, %v1134
        %v1167 = vadd.f32 %v1135, 0.09678418
        %v1168 = vadd.f32 %v1136, 0.09678418
        %v1169 = vadd.f32 %v1137, 0.09678418
        %v1170 = vadd.f32 %v1138, 0.09678418
        %v1171 = vadd.f32 %v1139, 0.09678418
        %v1172 = vadd.f32 %v1140, 0.09678418
        %v1173 = vadd.f32 %v1141, 0.09678418
        %v1174 = vadd.f32 %v1142, 0.09678418
        %v1175 = vadd.f32 %v1143, 0.09678418
        %v1176 = vadd.f32 %v1144, 0.09678418
        %v1177 = vadd.f32 %v1145, 0.09678418
        %v1178 = vadd.f32 %v1146, 0.09678418
        %v1179 = vadd.f32 %v1147, 0.09678418
        %v1180 = vadd.f32 %v1148, 0.09678418
        %v1181 = vadd.f32 %v1149, 0.09678418
        %v1182 = vadd.f32 %v1150, 0.09678418
        %v1183 = vadd.f32 %v1151, 0.09678418
        %v1184 = vadd.f32 %v1152, 0.09678418
        %v1185 = vadd.f32 %v1153, 0.09678418
        %v1186 = vadd.f32 %v1154, 0.09678418
        %v1187 = vadd.f32 %v1155, 0.09678418
        %v1188 = vadd.f32 %v1156, 0.09678418
        %v1189 = vadd.f32 %v1157, 0.09678418
        %v1190 = vadd.f32 %v1158, 0.09678418
        %v1191 = vadd.f32 %v1159, 0.09678418
        %v1192 = vadd.f32 %v1160, 0.09678418
        %v1193 = vadd.f32 %v1161, 0.09678418
        %v1194 = vadd.f32 %v1162, 0.09678418
        %v1195 = vadd.f32 %v1163, 0.09678418
        %v1196 = vadd.f32 %v1164, 0.09678418
        %v1197 = vadd.f32 %v1165, 0.09678418
        %v1198 = vadd.f32 %v1166, 0.09678418
        %v1199 = vmul.f32 %v752, %v1167
        %v1200 = vmul.f32 %v754, %v1168
        %v1201 = vmul.f32 %v756, %v1169
        %v1202 = vmul.f32 %v758, %v1170
        %v1203 = vmul.f32 %v760, %v1171
        %v1204 = vmul.f32 %v762, %v1172
        %v1205 = vmul.f32 %v764, %v1173
        %v1206 = vmul.f32 %v766, %v1174
        %v1207 = vmul.f32 %v768, %v1175
        %v1208 = vmul.f32 %v770, %v1176
        %v1209 = vmul.f32 %v772, %v1177
        %v1210 = vmul.f32 %v774, %v1178
        %v1211 = vmul.f32 %v776, %v1179
        %v1212 = vmul.f32 %v778, %v1180
        %v1213 = vmul.f32 %v780, %v1181
        %v1214 = vmul.f32 %v782, %v1182
        %v1215 = vmul.f32 %v784, %v1183
        %v1216 = vmul.f32 %v786, %v1184
        %v1217 = vmul.f32 %v788, %v1185
        %v1218 = vmul.f32 %v790, %v1186
        %v1219 = vmul.f32 %v792, %v1187
        %v1220 = vmul.f32 %v794, %v1188
        %v1221 = vmul.f32 %v796, %v1189
        %v1222 = vmul.f32 %v798, %v1190
        %v1223 = vmul.f32 %v800, %v1191
        %v1224 = vmul.f32 %v802, %v1192
        %v1225 = vmul.f32 %v804, %v1193
        %v1226 = vmul.f32 %v806, %v1194
        %v1227 = vmul.f32 %v808, %v1195
        %v1228 = vmul.f32 %v810, %v1196
        %v1229 = vmul.f32 %v812, %v1197
        %v1230 = vmul.f32 %v814, %v1198
        %v1231 = vadd.f32 %v1199, 0.37409195
        %v1232 = vadd.f32 %v1200, 0.37409195
        %v1233 = vadd.f32 %v1201, 0.37409195
        %v1234 = vadd.f32 %v1202, 0.37409195
        %v1235 = vadd.f32 %v1203, 0.37409195
        %v1236 = vadd.f32 %v1204, 0.37409195
        %v1237 = vadd.f32 %v1205, 0.37409195
        %v1238 = vadd.f32 %v1206, 0.37409195
        %v1239 = vadd.f32 %v1207, 0.37409195
        %v1240 = vadd.f32 %v1208, 0.37409195
        %v1241 = vadd.f32 %v1209, 0.37409195
        %v1242 = vadd.f32 %v1210, 0.37409195
        %v1243 = vadd.f32 %v1211, 0.37409195
        %v1244 = vadd.f32 %v1212, 0.37409195
        %v1245 = vadd.f32 %v1213, 0.37409195
        %v1246 = vadd.f32 %v1214, 0.37409195
        %v1247 = vadd.f32 %v1215, 0.37409195
        %v1248 = vadd.f32 %v1216, 0.37409195
        %v1249 = vadd.f32 %v1217, 0.37409195
        %v1250 = vadd.f32 %v1218, 0.37409195
        %v1251 = vadd.f32 %v1219, 0.37409195
        %v1252 = vadd.f32 %v1220, 0.37409195
        %v1253 = vadd.f32 %v1221, 0.37409195
        %v1254 = vadd.f32 %v1222, 0.37409195
        %v1255 = vadd.f32 %v1223, 0.37409195
        %v1256 = vadd.f32 %v1224, 0.37409195
        %v1257 = vadd.f32 %v1225, 0.37409195
        %v1258 = vadd.f32 %v1226, 0.37409195
        %v1259 = vadd.f32 %v1227, 0.37409195
        %v1260 = vadd.f32 %v1228, 0.37409195
        %v1261 = vadd.f32 %v1229, 0.37409195
        %v1262 = vadd.f32 %v1230, 0.37409195
        %v1263 = vmul.f32 %v752, %v1231
        %v1264 = vmul.f32 %v754, %v1232
        %v1265 = vmul.f32 %v756, %v1233
        %v1266 = vmul.f32 %v758, %v1234
        %v1267 = vmul.f32 %v760, %v1235
        %v1268 = vmul.f32 %v762, %v1236
        %v1269 = vmul.f32 %v764, %v1237
        %v1270 = vmul.f32 %v766, %v1238
        %v1271 = vmul.f32 %v768, %v1239
        %v1272 = vmul.f32 %v770, %v1240
        %v1273 = vmul.f32 %v772, %v1241
        %v1274 = vmul.f32 %v774, %v1242
        %v1275 = vmul.f32 %v776, %v1243
        %v1276 = vmul.f32 %v778, %v1244
        %v1277 = vmul.f32 %v780, %v1245
        %v1278 = vmul.f32 %v782, %v1246
        %v1279 = vmul.f32 %v784, %v1247
        %v1280 = vmul.f32 %v786, %v1248
        %v1281 = vmul.f32 %v788, %v1249
        %v1282 = vmul.f32 %v790, %v1250
        %v1283 = vmul.f32 %v792, %v1251
        %v1284 = vmul.f32 %v794, %v1252
        %v1285 = vmul.f32 %v796, %v1253
        %v1286 = vmul.f32 %v798, %v1254
        %v1287 = vmul.f32 %v800, %v1255
        %v1288 = vmul.f32 %v802, %v1256
        %v1289 = vmul.f32 %v804, %v1257
        %v1290 = vmul.f32 %v806, %v1258
        %v1291 = vmul.f32 %v808, %v1259
        %v1292 = vmul.f32 %v810, %v1260
        %v1293 = vmul.f32 %v812, %v1261
        %v1294 = vmul.f32 %v814, %v1262
        %v1295 = vadd.f32 %v1263, 1.0000237
        %v1296 = vadd.f32 %v1264, 1.0000237
        %v1297 = vadd.f32 %v1265, 1.0000237
        %v1298 = vadd.f32 %v1266, 1.0000237
        %v1299 = vadd.f32 %v1267, 1.0000237
        %v1300 = vadd.f32 %v1268, 1.0000237
        %v1301 = vadd.f32 %v1269, 1.0000237
        %v1302 = vadd.f32 %v1270, 1.0000237
        %v1303 = vadd.f32 %v1271, 1.0000237
        %v1304 = vadd.f32 %v1272, 1.0000237
        %v1305 = vadd.f32 %v1273, 1.0000237
        %v1306 = vadd.f32 %v1274, 1.0000237
        %v1307 = vadd.f32 %v1275, 1.0000237
        %v1308 = vadd.f32 %v1276, 1.0000237
        %v1309 = vadd.f32 %v1277, 1.0000237
        %v1310 = vadd.f32 %v1278, 1.0000237
        %v1311 = vadd.f32 %v1279, 1.0000237
        %v1312 = vadd.f32 %v1280, 1.0000237
        %v1313 = vadd.f32 %v1281, 1.0000237
        %v1314 = vadd.f32 %v1282, 1.0000237
        %v1315 = vadd.f32 %v1283, 1.0000237
        %v1316 = vadd.f32 %v1284, 1.0000237
        %v1317 = vadd.f32 %v1285, 1.0000237
        %v1318 = vadd.f32 %v1286, 1.0000237
        %v1319 = vadd.f32 %v1287, 1.0000237
        %v1320 = vadd.f32 %v1288, 1.0000237
        %v1321 = vadd.f32 %v1289, 1.0000237
        %v1322 = vadd.f32 %v1290, 1.0000237
        %v1323 = vadd.f32 %v1291, 1.0000237
        %v1324 = vadd.f32 %v1292, 1.0000237
        %v1325 = vadd.f32 %v1293, 1.0000237
        %v1326 = vadd.f32 %v1294, 1.0000237
        %v1327 = vmul.f32 %v752, %v1295
        %v1328 = vmul.f32 %v754, %v1296
        %v1329 = vmul.f32 %v756, %v1297
        %v1330 = vmul.f32 %v758, %v1298
        %v1331 = vmul.f32 %v760, %v1299
        %v1332 = vmul.f32 %v762, %v1300
        %v1333 = vmul.f32 %v764, %v1301
        %v1334 = vmul.f32 %v766, %v1302
        %v1335 = vmul.f32 %v768, %v1303
        %v1336 = vmul.f32 %v770, %v1304
        %v1337 = vmul.f32 %v772, %v1305
        %v1338 = vmul.f32 %v774, %v1306
        %v1339 = vmul.f32 %v776, %v1307
        %v1340 = vmul.f32 %v778, %v1308
        %v1341 = vmul.f32 %v780, %v1309
        %v1342 = vmul.f32 %v782, %v1310
        %v1343 = vmul.f32 %v784, %v1311
        %v1344 = vmul.f32 %v786, %v1312
        %v1345 = vmul.f32 %v788, %v1313
        %v1346 = vmul.f32 %v790, %v1314
        %v1347 = vmul.f32 %v792, %v1315
        %v1348 = vmul.f32 %v794, %v1316
        %v1349 = vmul.f32 %v796, %v1317
        %v1350 = vmul.f32 %v798, %v1318
        %v1351 = vmul.f32 %v800, %v1319
        %v1352 = vmul.f32 %v802, %v1320
        %v1353 = vmul.f32 %v804, %v1321
        %v1354 = vmul.f32 %v806, %v1322
        %v1355 = vmul.f32 %v808, %v1323
        %v1356 = vmul.f32 %v810, %v1324
        %v1357 = vmul.f32 %v812, %v1325
        %v1358 = vmul.f32 %v814, %v1326
        %v1359 = vadd.f32 %v1327, -1.2655122
        %v1360 = vadd.f32 %v1328, -1.2655122
        %v1361 = vadd.f32 %v1329, -1.2655122
        %v1362 = vadd.f32 %v1330, -1.2655122
        %v1363 = vadd.f32 %v1331, -1.2655122
        %v1364 = vadd.f32 %v1332, -1.2655122
        %v1365 = vadd.f32 %v1333, -1.2655122
        %v1366 = vadd.f32 %v1334, -1.2655122
        %v1367 = vadd.f32 %v1335, -1.2655122
        %v1368 = vadd.f32 %v1336, -1.2655122
        %v1369 = vadd.f32 %v1337, -1.2655122
        %v1370 = vadd.f32 %v1338, -1.2655122
        %v1371 = vadd.f32 %v1339, -1.2655122
        %v1372 = vadd.f32 %v1340, -1.2655122
        %v1373 = vadd.f32 %v1341, -1.2655122
        %v1374 = vadd.f32 %v1342, -1.2655122
        %v1375 = vadd.f32 %v1343, -1.2655122
        %v1376 = vadd.f32 %v1344, -1.2655122
        %v1377 = vadd.f32 %v1345, -1.2655122
        %v1378 = vadd.f32 %v1346, -1.2655122
        %v1379 = vadd.f32 %v1347, -1.2655122
        %v1380 = vadd.f32 %v1348, -1.2655122
        %v1381 = vadd.f32 %v1349, -1.2655122
        %v1382 = vadd.f32 %v1350, -1.2655122
        %v1383 = vadd.f32 %v1351, -1.2655122
        %v1384 = vadd.f32 %v1352, -1.2655122
        %v1385 = vadd.f32 %v1353, -1.2655122
        %v1386 = vadd.f32 %v1354, -1.2655122
        %v1387 = vadd.f32 %v1355, -1.2655122
        %v1388 = vadd.f32 %v1356, -1.2655122
        %v1389 = vadd.f32 %v1357, -1.2655122
        %v1390 = vadd.f32 %v1358, -1.2655122
        %v1391 = vsub.f32 0.0, %v655
        %v1392 = vsub.f32 0.0, %v656
        %v1393 = vsub.f32 0.0, %v657
        %v1394 = vsub.f32 0.0, %v658
        %v1395 = vsub.f32 0.0, %v659
        %v1396 = vsub.f32 0.0, %v660
        %v1397 = vsub.f32 0.0, %v661
        %v1398 = vsub.f32 0.0, %v662
        %v1399 = vsub.f32 0.0, %v663
        %v1400 = vsub.f32 0.0, %v664
        %v1401 = vsub.f32 0.0, %v665
        %v1402 = vsub.f32 0.0, %v666
        %v1403 = vsub.f32 0.0, %v667
        %v1404 = vsub.f32 0.0, %v668
        %v1405 = vsub.f32 0.0, %v669
        %v1406 = vsub.f32 0.0, %v670
        %v1407 = vsub.f32 0.0, %v671
        %v1408 = vsub.f32 0.0, %v672
        %v1409 = vsub.f32 0.0, %v673
        %v1410 = vsub.f32 0.0, %v674
        %v1411 = vsub.f32 0.0, %v675
        %v1412 = vsub.f32 0.0, %v676
        %v1413 = vsub.f32 0.0, %v677
        %v1414 = vsub.f32 0.0, %v678
        %v1415 = vsub.f32 0.0, %v679
        %v1416 = vsub.f32 0.0, %v680
        %v1417 = vsub.f32 0.0, %v681
        %v1418 = vsub.f32 0.0, %v682
        %v1419 = vsub.f32 0.0, %v683
        %v1420 = vsub.f32 0.0, %v684
        %v1421 = vsub.f32 0.0, %v685
        %v1422 = vsub.f32 0.0, %v686
        %v1423 = vmul.f32 %v1391, %v655
        %v1424 = vmul.f32 %v1392, %v656
        %v1425 = vmul.f32 %v1393, %v657
        %v1426 = vmul.f32 %v1394, %v658
        %v1427 = vmul.f32 %v1395, %v659
        %v1428 = vmul.f32 %v1396, %v660
        %v1429 = vmul.f32 %v1397, %v661
        %v1430 = vmul.f32 %v1398, %v662
        %v1431 = vmul.f32 %v1399, %v663
        %v1432 = vmul.f32 %v1400, %v664
        %v1433 = vmul.f32 %v1401, %v665
        %v1434 = vmul.f32 %v1402, %v666
        %v1435 = vmul.f32 %v1403, %v667
        %v1436 = vmul.f32 %v1404, %v668
        %v1437 = vmul.f32 %v1405, %v669
        %v1438 = vmul.f32 %v1406, %v670
        %v1439 = vmul.f32 %v1407, %v671
        %v1440 = vmul.f32 %v1408, %v672
        %v1441 = vmul.f32 %v1409, %v673
        %v1442 = vmul.f32 %v1410, %v674
        %v1443 = vmul.f32 %v1411, %v675
        %v1444 = vmul.f32 %v1412, %v676
        %v1445 = vmul.f32 %v1413, %v677
        %v1446 = vmul.f32 %v1414, %v678
        %v1447 = vmul.f32 %v1415, %v679
        %v1448 = vmul.f32 %v1416, %v680
        %v1449 = vmul.f32 %v1417, %v681
        %v1450 = vmul.f32 %v1418, %v682
        %v1451 = vmul.f32 %v1419, %v683
        %v1452 = vmul.f32 %v1420, %v684
        %v1453 = vmul.f32 %v1421, %v685
        %v1454 = vmul.f32 %v1422, %v686
        %v1455 = vadd.f32 %v1423, %v1359
        %v1456 = vadd.f32 %v1424, %v1360
        %v1457 = vadd.f32 %v1425, %v1361
        %v1458 = vadd.f32 %v1426, %v1362
        %v1459 = vadd.f32 %v1427, %v1363
        %v1460 = vadd.f32 %v1428, %v1364
        %v1461 = vadd.f32 %v1429, %v1365
        %v1462 = vadd.f32 %v1430, %v1366
        %v1463 = vadd.f32 %v1431, %v1367
        %v1464 = vadd.f32 %v1432, %v1368
        %v1465 = vadd.f32 %v1433, %v1369
        %v1466 = vadd.f32 %v1434, %v1370
        %v1467 = vadd.f32 %v1435, %v1371
        %v1468 = vadd.f32 %v1436, %v1372
        %v1469 = vadd.f32 %v1437, %v1373
        %v1470 = vadd.f32 %v1438, %v1374
        %v1471 = vadd.f32 %v1439, %v1375
        %v1472 = vadd.f32 %v1440, %v1376
        %v1473 = vadd.f32 %v1441, %v1377
        %v1474 = vadd.f32 %v1442, %v1378
        %v1475 = vadd.f32 %v1443, %v1379
        %v1476 = vadd.f32 %v1444, %v1380
        %v1477 = vadd.f32 %v1445, %v1381
        %v1478 = vadd.f32 %v1446, %v1382
        %v1479 = vadd.f32 %v1447, %v1383
        %v1480 = vadd.f32 %v1448, %v1384
        %v1481 = vadd.f32 %v1449, %v1385
        %v1482 = vadd.f32 %v1450, %v1386
        %v1483 = vadd.f32 %v1451, %v1387
        %v1484 = vadd.f32 %v1452, %v1388
        %v1485 = vadd.f32 %v1453, %v1389
        %v1486 = vadd.f32 %v1454, %v1390
        %v1487 = vmul.f32 %v1455, 1.442695
        %v1488 = vpow.pop %v1487
        %v1489 = vmul.f32 %v1456, 1.442695
        %v1490 = vpow.pop %v1489
        %v1491 = vmul.f32 %v1457, 1.442695
        %v1492 = vpow.pop %v1491
        %v1493 = vmul.f32 %v1458, 1.442695
        %v1494 = vpow.pop %v1493
        %v1495 = vmul.f32 %v1459, 1.442695
        %v1496 = vpow.pop %v1495
        %v1497 = vmul.f32 %v1460, 1.442695
        %v1498 = vpow.pop %v1497
        %v1499 = vmul.f32 %v1461, 1.442695
        %v1500 = vpow.pop %v1499
        %v1501 = vmul.f32 %v1462, 1.442695
        %v1502 = vpow.pop %v1501
        %v1503 = vmul.f32 %v1463, 1.442695
        %v1504 = vpow.pop %v1503
        %v1505 = vmul.f32 %v1464, 1.442695
        %v1506 = vpow.pop %v1505
        %v1507 = vmul.f32 %v1465, 1.442695
        %v1508 = vpow.pop %v1507
        %v1509 = vmul.f32 %v1466, 1.442695
        %v1510 = vpow.pop %v1509
        %v1511 = vmul.f32 %v1467, 1.442695
        %v1512 = vpow.pop %v1511
        %v1513 = vmul.f32 %v1468, 1.442695
        %v1514 = vpow.pop %v1513
        %v1515 = vmul.f32 %v1469, 1.442695
        %v1516 = vpow.pop %v1515
        %v1517 = vmul.f32 %v1470, 1.442695
        %v1518 = vpow.pop %v1517
        %v1519 = vmul.f32 %v1471, 1.442695
        %v1520 = vpow.pop %v1519
        %v1521 = vmul.f32 %v1472, 1.442695
        %v1522 = vpow.pop %v1521
        %v1523 = vmul.f32 %v1473, 1.442695
        %v1524 = vpow.pop %v1523
        %v1525 = vmul.f32 %v1474, 1.442695
        %v1526 = vpow.pop %v1525
        %v1527 = vmul.f32 %v1475, 1.442695
        %v1528 = vpow.pop %v1527
        %v1529 = vmul.f32 %v1476, 1.442695
        %v1530 = vpow.pop %v1529
        %v1531 = vmul.f32 %v1477, 1.442695
        %v1532 = vpow.pop %v1531
        %v1533 = vmul.f32 %v1478, 1.442695
        %v1534 = vpow.pop %v1533
        %v1535 = vmul.f32 %v1479, 1.442695
        %v1536 = vpow.pop %v1535
        %v1537 = vmul.f32 %v1480, 1.442695
        %v1538 = vpow.pop %v1537
        %v1539 = vmul.f32 %v1481, 1.442695
        %v1540 = vpow.pop %v1539
        %v1541 = vmul.f32 %v1482, 1.442695
        %v1542 = vpow.pop %v1541
        %v1543 = vmul.f32 %v1483, 1.442695
        %v1544 = vpow.pop %v1543
        %v1545 = vmul.f32 %v1484, 1.442695
        %v1546 = vpow.pop %v1545
        %v1547 = vmul.f32 %v1485, 1.442695
        %v1548 = vpow.pop %v1547
        %v1549 = vmul.f32 %v1486, 1.442695
        %v1550 = vpow.pop %v1549
        %v1551 = vmul.f32 %v752, %v1488
        %v1552 = vmul.f32 %v754, %v1490
        %v1553 = vmul.f32 %v756, %v1492
        %v1554 = vmul.f32 %v758, %v1494
        %v1555 = vmul.f32 %v760, %v1496
        %v1556 = vmul.f32 %v762, %v1498
        %v1557 = vmul.f32 %v764, %v1500
        %v1558 = vmul.f32 %v766, %v1502
        %v1559 = vmul.f32 %v768, %v1504
        %v1560 = vmul.f32 %v770, %v1506
        %v1561 = vmul.f32 %v772, %v1508
        %v1562 = vmul.f32 %v774, %v1510
        %v1563 = vmul.f32 %v776, %v1512
        %v1564 = vmul.f32 %v778, %v1514
        %v1565 = vmul.f32 %v780, %v1516
        %v1566 = vmul.f32 %v782, %v1518
        %v1567 = vmul.f32 %v784, %v1520
        %v1568 = vmul.f32 %v786, %v1522
        %v1569 = vmul.f32 %v788, %v1524
        %v1570 = vmul.f32 %v790, %v1526
        %v1571 = vmul.f32 %v792, %v1528
        %v1572 = vmul.f32 %v794, %v1530
        %v1573 = vmul.f32 %v796, %v1532
        %v1574 = vmul.f32 %v798, %v1534
        %v1575 = vmul.f32 %v800, %v1536
        %v1576 = vmul.f32 %v802, %v1538
        %v1577 = vmul.f32 %v804, %v1540
        %v1578 = vmul.f32 %v806, %v1542
        %v1579 = vmul.f32 %v808, %v1544
        %v1580 = vmul.f32 %v810, %v1546
        %v1581 = vmul.f32 %v812, %v1548
        %v1582 = vmul.f32 %v814, %v1550
        %vm1583 = vcmp.ge.f32.partialorder %v623, 0.0
        %vm1584 = vcmp.ge.f32.partialorder %v624, 0.0
        %vm1585 = vcmp.ge.f32.partialorder %v625, 0.0
        %vm1586 = vcmp.ge.f32.partialorder %v626, 0.0
        %vm1587 = vcmp.ge.f32.partialorder %v627, 0.0
        %vm1588 = vcmp.ge.f32.partialorder %v628, 0.0
        %vm1589 = vcmp.ge.f32.partialorder %v629, 0.0
        %vm1590 = vcmp.ge.f32.partialorder %v630, 0.0
        %vm1591 = vcmp.ge.f32.partialorder %v631, 0.0
        %vm1592 = vcmp.ge.f32.partialorder %v632, 0.0
        %vm1593 = vcmp.ge.f32.partialorder %v633, 0.0
        %vm1594 = vcmp.ge.f32.partialorder %v634, 0.0
        %vm1595 = vcmp.ge.f32.partialorder %v635, 0.0
        %vm1596 = vcmp.ge.f32.partialorder %v636, 0.0
        %vm1597 = vcmp.ge.f32.partialorder %v637, 0.0
        %vm1598 = vcmp.ge.f32.partialorder %v638, 0.0
        %vm1599 = vcmp.ge.f32.partialorder %v639, 0.0
        %vm1600 = vcmp.ge.f32.partialorder %v640, 0.0
        %vm1601 = vcmp.ge.f32.partialorder %v641, 0.0
        %vm1602 = vcmp.ge.f32.partialorder %v642, 0.0
        %vm1603 = vcmp.ge.f32.partialorder %v643, 0.0
        %vm1604 = vcmp.ge.f32.partialorder %v644, 0.0
        %vm1605 = vcmp.ge.f32.partialorder %v645, 0.0
        %vm1606 = vcmp.ge.f32.partialorder %v646, 0.0
        %vm1607 = vcmp.ge.f32.partialorder %v647, 0.0
        %vm1608 = vcmp.ge.f32.partialorder %v648, 0.0
        %vm1609 = vcmp.ge.f32.partialorder %v649, 0.0
        %vm1610 = vcmp.ge.f32.partialorder %v650, 0.0
        %vm1611 = vcmp.ge.f32.partialorder %v651, 0.0
        %vm1612 = vcmp.ge.f32.partialorder %v652, 0.0
        %vm1613 = vcmp.ge.f32.partialorder %v653, 0.0
        %vm1614 = vcmp.ge.f32.partialorder %v654, 0.0
        %v1615 = vsub.f32 1.0, %v1551
        %v1616 = vsub.f32 1.0, %v1552
        %v1617 = vsub.f32 1.0, %v1553
        %v1618 = vsub.f32 1.0, %v1554
        %v1619 = vsub.f32 1.0, %v1555
        %v1620 = vsub.f32 1.0, %v1556
        %v1621 = vsub.f32 1.0, %v1557
        %v1622 = vsub.f32 1.0, %v1558
        %v1623 = vsub.f32 1.0, %v1559
        %v1624 = vsub.f32 1.0, %v1560
        %v1625 = vsub.f32 1.0, %v1561
        %v1626 = vsub.f32 1.0, %v1562
        %v1627 = vsub.f32 1.0, %v1563
        %v1628 = vsub.f32 1.0, %v1564
        %v1629 = vsub.f32 1.0, %v1565
        %v1630 = vsub.f32 1.0, %v1566
        %v1631 = vsub.f32 1.0, %v1567
        %v1632 = vsub.f32 1.0, %v1568
        %v1633 = vsub.f32 1.0, %v1569
        %v1634 = vsub.f32 1.0, %v1570
        %v1635 = vsub.f32 1.0, %v1571
        %v1636 = vsub.f32 1.0, %v1572
        %v1637 = vsub.f32 1.0, %v1573
        %v1638 = vsub.f32 1.0, %v1574
        %v1639 = vsub.f32 1.0, %v1575
        %v1640 = vsub.f32 1.0, %v1576
        %v1641 = vsub.f32 1.0, %v1577
        %v1642 = vsub.f32 1.0, %v1578
        %v1643 = vsub.f32 1.0, %v1579
        %v1644 = vsub.f32 1.0, %v1580
        %v1645 = vsub.f32 1.0, %v1581
        %v1646 = vsub.f32 1.0, %v1582
        %v1647 = vsub.f32 %v1551, 1.0
        %v1648 = vsub.f32 %v1552, 1.0
        %v1649 = vsub.f32 %v1553, 1.0
        %v1650 = vsub.f32 %v1554, 1.0
        %v1651 = vsub.f32 %v1555, 1.0
        %v1652 = vsub.f32 %v1556, 1.0
        %v1653 = vsub.f32 %v1557, 1.0
        %v1654 = vsub.f32 %v1558, 1.0
        %v1655 = vsub.f32 %v1559, 1.0
        %v1656 = vsub.f32 %v1560, 1.0
        %v1657 = vsub.f32 %v1561, 1.0
        %v1658 = vsub.f32 %v1562, 1.0
        %v1659 = vsub.f32 %v1563, 1.0
        %v1660 = vsub.f32 %v1564, 1.0
        %v1661 = vsub.f32 %v1565, 1.0
        %v1662 = vsub.f32 %v1566, 1.0
        %v1663 = vsub.f32 %v1567, 1.0
        %v1664 = vsub.f32 %v1568, 1.0
        %v1665 = vsub.f32 %v1569, 1.0
        %v1666 = vsub.f32 %v1570, 1.0
        %v1667 = vsub.f32 %v1571, 1.0
        %v1668 = vsub.f32 %v1572, 1.0
        %v1669 = vsub.f32 %v1573, 1.0
        %v1670 = vsub.f32 %v1574, 1.0
        %v1671 = vsub.f32 %v1575, 1.0
        %v1672 = vsub.f32 %v1576, 1.0
        %v1673 = vsub.f32 %v1577, 1.0
        %v1674 = vsub.f32 %v1578, 1.0
        %v1675 = vsub.f32 %v1579, 1.0
        %v1676 = vsub.f32 %v1580, 1.0
        %v1677 = vsub.f32 %v1581, 1.0
        %v1678 = vsub.f32 %v1582, 1.0
        %v1679 = vsel %vm1583, %v1615, %v1647
        %v1680 = vsel %vm1584, %v1616, %v1648
        %v1681 = vsel %vm1585, %v1617, %v1649
        %v1682 = vsel %vm1586, %v1618, %v1650
        %v1683 = vsel %vm1587, %v1619, %v1651
        %v1684 = vsel %vm1588, %v1620, %v1652
        %v1685 = vsel %vm1589, %v1621, %v1653
        %v1686 = vsel %vm1590, %v1622, %v1654
        %v1687 = vsel %vm1591, %v1623, %v1655
        %v1688 = vsel %vm1592, %v1624, %v1656
        %v1689 = vsel %vm1593, %v1625, %v1657
        %v1690 = vsel %vm1594, %v1626, %v1658
        %v1691 = vsel %vm1595, %v1627, %v1659
        %v1692 = vsel %vm1596, %v1628, %v1660
        %v1693 = vsel %vm1597, %v1629, %v1661
        %v1694 = vsel %vm1598, %v1630, %v1662
        %v1695 = vsel %vm1599, %v1631, %v1663
        %v1696 = vsel %vm1600, %v1632, %v1664
        %v1697 = vsel %vm1601, %v1633, %v1665
        %v1698 = vsel %vm1602, %v1634, %v1666
        %v1699 = vsel %vm1603, %v1635, %v1667
        %v1700 = vsel %vm1604, %v1636, %v1668
        %v1701 = vsel %vm1605, %v1637, %v1669
        %v1702 = vsel %vm1606, %v1638, %v1670
        %v1703 = vsel %vm1607, %v1639, %v1671
        %v1704 = vsel %vm1608, %v1640, %v1672
        %v1705 = vsel %vm1609, %v1641, %v1673
        %v1706 = vsel %vm1610, %v1642, %v1674
        %v1707 = vsel %vm1611, %v1643, %v1675
        %v1708 = vsel %vm1612, %v1644, %v1676
        %v1709 = vsel %vm1613, %v1645, %v1677
        %v1710 = vsel %vm1614, %v1646, %v1678
        %v1711 = vadd.f32 %v1679, 1.0
        %v1712 = vadd.f32 %v1680, 1.0
        %v1713 = vadd.f32 %v1681, 1.0
        %v1714 = vadd.f32 %v1682, 1.0
        %v1715 = vadd.f32 %v1683, 1.0
        %v1716 = vadd.f32 %v1684, 1.0
        %v1717 = vadd.f32 %v1685, 1.0
        %v1718 = vadd.f32 %v1686, 1.0
        %v1719 = vadd.f32 %v1687, 1.0
        %v1720 = vadd.f32 %v1688, 1.0
        %v1721 = vadd.f32 %v1689, 1.0
        %v1722 = vadd.f32 %v1690, 1.0
        %v1723 = vadd.f32 %v1691, 1.0
        %v1724 = vadd.f32 %v1692, 1.0
        %v1725 = vadd.f32 %v1693, 1.0
        %v1726 = vadd.f32 %v1694, 1.0
        %v1727 = vadd.f32 %v1695, 1.0
        %v1728 = vadd.f32 %v1696, 1.0
        %v1729 = vadd.f32 %v1697, 1.0
        %v1730 = vadd.f32 %v1698, 1.0
        %v1731 = vadd.f32 %v1699, 1.0
        %v1732 = vadd.f32 %v1700, 1.0
        %v1733 = vadd.f32 %v1701, 1.0
        %v1734 = vadd.f32 %v1702, 1.0
        %v1735 = vadd.f32 %v1703, 1.0
        %v1736 = vadd.f32 %v1704, 1.0
        %v1737 = vadd.f32 %v1705, 1.0
        %v1738 = vadd.f32 %v1706, 1.0
        %v1739 = vadd.f32 %v1707, 1.0
        %v1740 = vadd.f32 %v1708, 1.0
        %v1741 = vadd.f32 %v1709, 1.0
        %v1742 = vadd.f32 %v1710, 1.0
        %v1743 = vmul.f32 %v591, %v1711
        %v1744 = vmul.f32 %v592, %v1712
        %v1745 = vmul.f32 %v593, %v1713
        %v1746 = vmul.f32 %v594, %v1714
        %v1747 = vmul.f32 %v595, %v1715
        %v1748 = vmul.f32 %v596, %v1716
        %v1749 = vmul.f32 %v597, %v1717
        %v1750 = vmul.f32 %v598, %v1718
        %v1751 = vmul.f32 %v599, %v1719
        %v1752 = vmul.f32 %v600, %v1720
        %v1753 = vmul.f32 %v601, %v1721
        %v1754 = vmul.f32 %v602, %v1722
        %v1755 = vmul.f32 %v603, %v1723
        %v1756 = vmul.f32 %v604, %v1724
        %v1757 = vmul.f32 %v605, %v1725
        %v1758 = vmul.f32 %v606, %v1726
        %v1759 = vmul.f32 %v607, %v1727
        %v1760 = vmul.f32 %v608, %v1728
        %v1761 = vmul.f32 %v609, %v1729
        %v1762 = vmul.f32 %v610, %v1730
        %v1763 = vmul.f32 %v611, %v1731
        %v1764 = vmul.f32 %v612, %v1732
        %v1765 = vmul.f32 %v613, %v1733
        %v1766 = vmul.f32 %v614, %v1734
        %v1767 = vmul.f32 %v615, %v1735
        %v1768 = vmul.f32 %v616, %v1736
        %v1769 = vmul.f32 %v617, %v1737
        %v1770 = vmul.f32 %v618, %v1738
        %v1771 = vmul.f32 %v619, %v1739
        %v1772 = vmul.f32 %v620, %v1740
        %v1773 = vmul.f32 %v621, %v1741
        %v1774 = vmul.f32 %v622, %v1742
        %v1775 = vld [vmem:[%s3] sm:$0x7]
        %v1776 = vld [vmem:[%s4] sm:$0x7]
        %1778 = vset.pattern.permute.xlu0 0
        %1779 = vperm.xlu0 %1778, %v1776
        %v1780 = vpop.permute.xlu0 %1779
        %1782 = vmatprep.subr.mxu0 %v1774
        %1783 = vmatpush1.msra.mxu0 %v1773
        %1784 = vmatprep.subr.mxu0 %v1772
        %1785 = vmatpush1.msra.mxu0 %v1771
        %1786 = vmatprep.subr.mxu0 %v1770
        %1787 = vmatpush1.msra.mxu0 %v1769
        %1788 = vmatprep.subr.mxu0 %v1768
        %1789 = vmatpush1.msra.mxu0 %v1767
        %1790 = vmatprep.subr.mxu0 %v1766
        %1791 = vmatpush1.msra.mxu0 %v1765
        %1792 = vmatprep.subr.mxu0 %v1764
        %1793 = vmatpush1.msra.mxu0 %v1763
        %1794 = vmatprep.subr.mxu0 %v1762
        %1795 = vmatpush1.msra.mxu0 %v1761
        %1796 = vmatprep.subr.mxu0 %v1760
        %1797 = vmatpush1.msra.mxu0 %v1759
        %1798 = vmatprep.subr.mxu0 %v1758
        %1799 = vmatpush1.msra.mxu0 %v1757
        %1800 = vmatprep.subr.mxu0 %v1756
        %1801 = vmatpush1.msra.mxu0 %v1755
        %1802 = vmatprep.subr.mxu0 %v1754
        %1803 = vmatpush1.msra.mxu0 %v1753
        %1804 = vmatprep.subr.mxu0 %v1752
        %1805 = vmatpush1.msra.mxu0 %v1751
        %1806 = vmatprep.subr.mxu0 %v1750
        %1807 = vmatpush1.msra.mxu0 %v1749
        %1808 = vmatprep.subr.mxu0 %v1748
        %1809 = vmatpush1.msra.mxu0 %v1747
        %1810 = vmatprep.subr.mxu0 %v1746
        %1811 = vmatpush1.msra.mxu0 %v1745
        %1812 = vmatprep.subr.mxu0 %v1744
        %1813 = vmatpush1.msra.mxu0 %v1743
        %1814 = vmatprep.subr.mxu0 0.0
        %1815 = vmatpush2.msra.mxu0 0.0
        %1816 = vmatprep.subr.mxu0 0.0
        %1817 = vmatpush2.msra.mxu0 0.0
        %1818 = vmatprep.subr.mxu0 0.0
        %1819 = vmatpush2.msra.mxu0 0.0
        %1820 = vmatprep.subr.mxu0 0.0
        %1821 = vmatpush2.msra.mxu0 0.0
        %1822 = vmatprep.subr.mxu0 0.0
        %1823 = vmatpush2.msra.mxu0 0.0
        %1824 = vmatprep.subr.mxu0 0.0
        %1825 = vmatpush2.msra.mxu0 0.0
        %1826 = vmatprep.subr.mxu0 0.0
        %1827 = vmatpush2.msra.mxu0 0.0
        %1828 = vmatprep.subr.mxu0 0.0
        %1829 = vmatpush2.msra.mxu0 0.0
        %1830 = vmatprep.subr.mxu0 0.0
        %1831 = vmatpush2.msra.mxu0 0.0
        %1832 = vmatprep.subr.mxu0 0.0
        %1833 = vmatpush2.msra.mxu0 0.0
        %1834 = vmatprep.subr.mxu0 0.0
        %1835 = vmatpush2.msra.mxu0 0.0
        %1836 = vmatprep.subr.mxu0 0.0
        %1837 = vmatpush2.msra.mxu0 0.0
        %1838 = vmatprep.subr.mxu0 0.0
        %1839 = vmatpush2.msra.mxu0 0.0
        %1840 = vmatprep.subr.mxu0 0.0
        %1841 = vmatpush2.msra.mxu0 0.0
        %1842 = vmatprep.subr.mxu0 0.0
        %1843 = vmatpush2.msra.mxu0 0.0
        %1844 = vmatprep.subr.mxu0 0.0
        %1845 = vmatpush2.msra.mxu0 0.0
        %1846 = vmatprep.mubr.f32.mxu0 0.0
        %1847 = vmatmul.mubr.f32.gmra.mxu0 %v1775
        %v1848 = vpop.f32.mrf.mxu0
        %v1849 = vadd.f32 %v1780, %v1848
        %v1850 = vpop.f32.mrf.mxu0
        %v1851 = vadd.f32 %v1780, %v1850
        %1852 = vdwg.mxu0
        %v1855 = vcombine.low %v1849, %v1851
        %1857 = vst [vmem:[%s259] sm:$0x77] %v1855
        %s1858 = smul.u32 2, %s16
        %p1859 = scmp.lt.s32.totalorder %s1858, 3
        %s1860 = scalar_select %p1859, %s1858, 3
        %s1861 = smul.addr %s1860, 4
        %s1862 = scalar_lea.vmem %s5, %s1861
        // Predicated region
        $region64: #{fno2d_forward.19} parent=58 // pred_check
          %p1863 = pneg %p144
        $region65: #{fno2d_forward.19} parent=58 // pred_check_branch
          %1865 = sbr.rel (%p1863) target = $region67
        $region66: #{fno2d_forward.19} parent=58 // pred_region
          %s1866 = smul.u32 2, %s16
        $region67: #{fno2d_forward.19} parent=58 // pred_fallthru
          _
      $region59: #{fno2d_forward.19} parent=5 // pred_fallthru
        _
      %p1867 = scmp.le.s32.totalorder 2, %s11
      // Predicated region
      $region68: #{fno2d_forward.19} parent=5 // pred_check
        %p1868 = pneg %p1867
      $region69: #{fno2d_forward.19} parent=5 // pred_check_branch
        %1870 = sbr.rel (%p1868) target = $region71
      $region70: #{fno2d_forward.19} parent=5 // pred_region
        %s1871 = ssub.s32 %s11, 2
        // Predicated region
        $region72: #{fno2d_forward.19} parent=70 // pred_check
          %p1872 = pneg %p150
        $region73: #{fno2d_forward.19} parent=70 // pred_check_branch
          %1874 = sbr.rel (%p1872) target = $region75
        $region74: #{fno2d_forward.19} parent=70 // pred_region
          %s1875 = smul.u32 2, %s17
          %p1876 = scmp.lt.s32.totalorder %s1875, 3
          %s1877 = scalar_select %p1876, %s1875, 3
          %s1878 = smul.addr %s1877, 4
          %s1879 = scalar_lea.vmem %s5, %s1878
        $region75: #{fno2d_forward.19} parent=70 // pred_fallthru
          _
      $region71: #{fno2d_forward.19} parent=5 // pred_fallthru
        _
    $region6: #{fno2d_forward.19} parent=1 // loop_footer
      %s15 = sadd.s32 1, %s11
    $region7: #{fno2d_forward.19} parent=1 // loop_footer_branch
      %10 = sbr.rel target = $region3
    $region8: #{fno2d_forward.19} parent=1 // loop_exit
      _

</llo_original>
